<compile_context>
chip_gen: v5e
topology: v5e:2x2
jax: 0.10.0
libtpu: 0.0.40
codegen_flags: <defaults>
</compile_context>

<pallas_src>
import functools
import math

import jax
import jax.numpy as jnp
import numpy as np
from jax.experimental import pallas as pl
from jax.experimental.pallas import tpu as pltpu

_HI = jax.lax.Precision.HIGHEST


# ----------------------------------------------------------------------------
# helpers
# ----------------------------------------------------------------------------
def _round_up(x, m):
    return ((x + m - 1) // m) * m


def _uniform(key, shape, bound):
    return jax.random.uniform(key, shape, jnp.float32, minval=-bound, maxval=bound)


def _pad_gates_mat(w, din_pad, h_pad):
    """w: (din, 3h) -> (din_pad, 3*h_pad), each gate block zero-padded separately."""
    din, three_h = w.shape
    h = three_h // 3
    gates = [jnp.pad(w[:, i * h:(i + 1) * h], ((0, din_pad - din), (0, h_pad - h)))
             for i in range(3)]
    return jnp.concatenate(gates, axis=1)


def _pad_gates_vec(b, h_pad):
    """b: (3h,) -> (1, 3*h_pad), each gate block zero-padded separately."""
    h = b.shape[0] // 3
    gates = [jnp.pad(b[i * h:(i + 1) * h], (0, h_pad - h)) for i in range(3)]
    return jnp.concatenate(gates)[None, :]


# ----------------------------------------------------------------------------
# Fused Seq2Seq Pallas kernel (single invocation, no grid)
# ----------------------------------------------------------------------------
def _make_seq2seq_kernel(num_layers, seq_len, pred_len, b_pad):
    """Kernel arg layout:
       x2d, dec_in0,
       [enc layer l: w_ih (Din,3H), w_hh (H,3H), b_comb (1,3H), b_hn (1,H)] * L,
       [dec layer l: w_cat (Din+H,4H), b_cat (1,4H)] * L,
       lin_w (H,OUT), lin_b (1,OUT),
       out (pred_len,B,OUT),                      # output
       gi_scr (T*B,3H), seq_scr (T*B,H)           # VMEM scratch
    """
    def kernel(*args):
        x_ref = args[0]
        dec_in_ref = args[1]
        enc_refs = [tuple(args[2 + 4 * l: 2 + 4 * (l + 1)]) for l in range(num_layers)]
        base = 2 + 4 * num_layers
        dec_refs = [tuple(args[base + 2 * l: base + 2 * (l + 1)]) for l in range(num_layers)]
        base2 = base + 2 * num_layers
        lin_w_ref = args[base2]
        lin_b_ref = args[base2 + 1]
        out_ref = args[base2 + 2]
        gi_scr = args[base2 + 3]
        seq_scr = args[base2 + 4]

        H = enc_refs[0][1].shape[0]          # padded hidden width (H_pad)

        # ----------------- encoder: L GRU layers over T steps -----------------
        hs = []                              # per-layer final hidden, kept in vregs
        for l, (w_ih_ref, w_hh_ref, b_comb_ref, b_hn_ref) in enumerate(enc_refs):
            inp2d = x_ref[...] if l == 0 else seq_scr[...]
            # Hoisted input projection for ALL timesteps: one MXU GEMM,
            # b_ih + (r,z parts of b_hh) pre-folded into b_comb.
            gi_scr[...] = (jnp.dot(inp2d, w_ih_ref[...],
                                   preferred_element_type=jnp.float32)
                           + b_comb_ref[...])
            b_hn = b_hn_ref[...]
            h = jnp.zeros((b_pad, H), jnp.float32)      # PyTorch: zero init hidden
            for t in range(seq_len):                    # static unroll, aligned slices
                gi = gi_scr[t * b_pad:(t + 1) * b_pad, :]
                gh = jnp.dot(h, w_hh_ref[...], preferred_element_type=jnp.float32)
                r = jax.nn.sigmoid(gi[:, 0:H] + gh[:, 0:H])
                z = jax.nn.sigmoid(gi[:, H:2 * H] + gh[:, H:2 * H])
                n = jnp.tanh(gi[:, 2 * H:3 * H] + r * (gh[:, 2 * H:3 * H] + b_hn))
                h = (1.0 - z) * n + z * h
                if l + 1 < num_layers:
                    # Only intermediate layers need their sequence (next layer's input);
                    # the last layer's sequence is never materialized.
                    seq_scr[t * b_pad:(t + 1) * b_pad, :] = h
            hs.append(h)

        # ------------- decoder: pred_len fused autoregressive steps -------------
        x = dec_in_ref[...]                             # decoder_input = last_location
        for t in range(pred_len):
            inp = x
            for l, (w_cat_ref, b_cat_ref) in enumerate(dec_refs):
                h = hs[l]
                xh = jnp.concatenate([inp, h], axis=1)  # (B, 2*H) -> K=256 MXU op
                g = (jnp.dot(xh, w_cat_ref[...], preferred_element_type=jnp.float32)
                     + b_cat_ref[...])                  # (B, 4*H): [rz | gi_n | gh_n]
                r = jax.nn.sigmoid(g[:, 0:H])
                z = jax.nn.sigmoid(g[:, H:2 * H])
                n = jnp.tanh(g[:, 2 * H:3 * H] + r * g[:, 3 * H:4 * H])
                h_new = (1.0 - z) * n + z * h
                hs[l] = h_new
                inp = h_new
            # TODO(synk): nn.Dropout is stochastic in training; modeled as eval-mode identity.
            y = (jnp.dot(inp, lin_w_ref[...], preferred_element_type=jnp.float32)
                 + lin_b_ref[...])
            now = y + x                                 # residual add with decoder_input
            out_ref[t] = now
            x = now                                     # teacher_forcing_ratio = 0
    return kernel


def _vmem_spec():
    return pl.BlockSpec(memory_space=pltpu.MemorySpace.VMEM)


def seq2seq_pallas(x2d, dec_in0, enc_layers, dec_layers, lin_w, lin_b,
                   seq_len, pred_len, b_pad):
    L = len(enc_layers)
    H_pad = enc_layers[0][1].shape[0]
    G3 = enc_layers[0][1].shape[1]
    OUT_pad = lin_w.shape[1]

    flat = [x2d, dec_in0]
    for lay in enc_layers:
        flat += list(lay)
    for lay in dec_layers:
        flat += list(lay)
    flat += [lin_w, lin_b]

    return pl.pallas_call(
        _make_seq2seq_kernel(L, seq_len, pred_len, b_pad),
        out_shape=jax.ShapeDtypeStruct((pred_len, b_pad, OUT_pad), jnp.float32),
        in_specs=[_vmem_spec()] * len(flat),
        out_specs=_vmem_spec(),
        scratch_shapes=[pltpu.VMEM((seq_len * b_pad, G3), jnp.float32),
                        pltpu.VMEM((seq_len * b_pad, H_pad), jnp.float32)],
        compiler_params=pltpu.CompilerParams(vmem_limit_bytes=32 * 1024 * 1024),
    )(*flat)


# ----------------------------------------------------------------------------
# Parameters (deterministic PyTorch-style uniform init) + zero padding
# ----------------------------------------------------------------------------
def _make_raw_gru(key, in_dim, h, num_layers):
    bound = 1.0 / math.sqrt(h)
    layers = []
    for l in range(num_layers):
        d = in_dim if l == 0 else h
        key, k1, k2, k3, k4 = jax.random.split(key, 5)
        layers.append((
            _uniform(k1, (d, 3 * h), bound),     # W_ih^T  (Din, 3H)
            _uniform(k2, (h, 3 * h), bound),     # W_hh^T  (H, 3H)
            _uniform(k3, (3 * h,), bound),       # b_ih
            _uniform(k4, (3 * h,), bound),       # b_hh
        ))
    return layers, key


def _pad_encoder_layers(raw_layers, din0_pad, h_pad):
    """Encoder layout: hoisted gi, so fold b_ih + (r,z of b_hh); b_hn kept separate."""
    padded = []
    for l, (w_ih, w_hh, b_ih, b_hh) in enumerate(raw_layers):
        h = w_hh.shape[0]
        din_pad = din0_pad if l == 0 else h_pad
        b_comb = b_ih + jnp.concatenate([b_hh[:2 * h], jnp.zeros((h,), b_hh.dtype)])
        padded.append((
            _pad_gates_mat(w_ih, din_pad, h_pad),            # (Din_pad, 3*H_pad)
            _pad_gates_mat(w_hh, h_pad, h_pad),              # (H_pad, 3*H_pad)
            _pad_gates_vec(b_comb, h_pad),                   # (1, 3*H_pad)
            jnp.pad(b_hh[2 * h:], (0, h_pad - h))[None, :],  # b_hn (1, H_pad)
        ))
    return padded


def _pad_decoder_layers(raw_layers, din0_pad, h_pad):
    """Decoder 4H-wide fused layout so one K=Din_pad+H_pad matmul yields
    [gi_r+gh_r | gi_z+gh_z | gi_n | gh_n] while preserving the PyTorch n-gate."""
    padded = []
    for l, (w_ih, w_hh, b_ih, b_hh) in enumerate(raw_layers):
        h = w_hh.shape[0]
        din_pad = din0_pad if l == 0 else h_pad

        def padm(w, row_pad):
            return jnp.pad(w, ((0, row_pad - w.shape[0]), (0, h_pad - h)))

        def padv(v):
            return jnp.pad(v, (0, h_pad - h))

        top = jnp.concatenate([padm(w_ih[:, 0:h], din_pad),
                               padm(w_ih[:, h:2 * h], din_pad),
                               padm(w_ih[:, 2 * h:3 * h], din_pad),
                               jnp.zeros((din_pad, h_pad), jnp.float32)], axis=1)
        bot = jnp.concatenate([padm(w_hh[:, 0:h], h_pad),
                               padm(w_hh[:, h:2 * h], h_pad),
                               jnp.zeros((h_pad, h_pad), jnp.float32),
                               padm(w_hh[:, 2 * h:3 * h], h_pad)], axis=1)
        w_cat = jnp.concatenate([top, bot], axis=0)          # (Din_pad+H_pad, 4*H_pad)
        b_cat = jnp.concatenate([padv(b_ih[0:h] + b_hh[0:h]),
                                 padv(b_ih[h:2 * h] + b_hh[h:2 * h]),
                                 padv(b_ih[2 * h:3 * h]),
                                 padv(b_hh[2 * h:3 * h])])[None, :]   # (1, 4*H_pad)
        padded.append((w_cat, b_cat))
    return padded


def make_seq2seq_params(key, input_size, hidden_size, num_layers):
    h_big = hidden_size * 30
    h_pad = _round_up(h_big, 128)
    in_pad = _round_up(input_size, 128)
    out_pad = _round_up(hidden_size, 128)

    enc_raw, key = _make_raw_gru(key, input_size, h_big, num_layers)
    dec_raw, key = _make_raw_gru(key, hidden_size, h_big, num_layers)
    key, k1, k2 = jax.random.split(key, 3)
    lb = 1.0 / math.sqrt(h_big)
    lin_w = _uniform(k1, (h_big, hidden_size), lb)           # (H_big, hidden)
    lin_b = _uniform(k2, (hidden_size,), lb)

    params = {
        "enc": _pad_encoder_layers(enc_raw, in_pad, h_pad),
        "dec": _pad_decoder_layers(dec_raw, out_pad, h_pad),
        "lin_w": jnp.pad(lin_w, ((0, h_pad - h_big), (0, out_pad - hidden_size))),
        "lin_b": jnp.pad(lin_b, (0, out_pad - hidden_size))[None, :],
    }
    raw = {"enc": enc_raw, "dec": dec_raw, "lin_w": lin_w, "lin_b": lin_b}
    return params, raw


# ----------------------------------------------------------------------------
# Seq2Seq forward (teacher_forcing_ratio = 0, eval-mode dropout = identity)
# ----------------------------------------------------------------------------
@functools.partial(jax.jit, static_argnums=(3,))
def seq2seq_forward(params, in_data, last_location, pred_length):
    """in_data: (B, T, input_size), last_location: (B, 1, hidden_size)
    returns outputs: (B, pred_length, hidden_size)."""
    B, T, in_size = in_data.shape
    hidden_size = last_location.shape[-1]

    enc = params["enc"]
    dec = params["dec"]
    lin_w = params["lin_w"]
    lin_b = params["lin_b"]
    OUT_pad = lin_w.shape[1]
    IN_pad = enc[0][0].shape[0]
    B_pad = max(_round_up(B, 8), 8)

    # time-major, batch/lane padded, flattened to (T*B_pad, IN_pad) for the
    # hoisted in-kernel input-projection GEMM
    x = jnp.transpose(in_data, (1, 0, 2)).astype(jnp.float32)
    x = jnp.pad(x, ((0, 0), (0, B_pad - B), (0, IN_pad - in_size)))
    x2d = x.reshape(T * B_pad, IN_pad)

    dec_in0 = jnp.pad(last_location[:, 0, :].astype(jnp.float32),
                      ((0, B_pad - B), (0, OUT_pad - hidden_size)))

    outs = seq2seq_pallas(x2d, dec_in0, enc, dec, lin_w, lin_b,
                          T, pred_length, B_pad)
    # outs: (pred_length, B_pad, OUT_pad) -> (B, pred_length, hidden_size)
    return jnp.transpose(outs[:, :B, :hidden_size], (1, 0, 2))


# ----------------------------------------------------------------------------
# Pure-JAX reference (unpadded, precision=HIGHEST) for correctness checking
# ----------------------------------------------------------------------------
def _gru_ref(x, h0, layers):
    B, T, _ = x.shape
    hs = []
    layer_in = x
    for l, (w_ih, w_hh, b_ih, b_hh) in enumerate(layers):
        H = w_hh.shape[0]
        h = h0[l]
        outs = []
        for t in range(T):
            xt = layer_in[:, t, :]
            gi = jnp.dot(xt, w_ih, precision=_HI) + b_ih
            gh = jnp.dot(h, w_hh, precision=_HI) + b_hh
            r = jax.nn.sigmoid(gi[:, :H] + gh[:, :H])
            z = jax.nn.sigmoid(gi[:, H:2 * H] + gh[:, H:2 * H])
            n = jnp.tanh(gi[:, 2 * H:] + r * gh[:, 2 * H:])
            h = (1.0 - z) * n + z * h
            outs.append(h)
        layer_in = jnp.stack(outs, axis=1)
        hs.append(h)
    return layer_in, jnp.stack(hs, axis=0)


def seq2seq_reference(raw, in_data, last_location, pred_length):
    B = in_data.shape[0]
    L = len(raw["enc"])
    H = raw["enc"][0][1].shape[0]
    h0 = jnp.zeros((L, B, H), jnp.float32)
    _, hidden = _gru_ref(in_data, h0, raw["enc"])
    dec_in = last_location
    outs = []
    for _ in range(pred_length):
        dec_out, hidden = _gru_ref(dec_in, hidden, raw["dec"])
        y = jnp.dot(dec_out[:, 0, :], raw["lin_w"], precision=_HI) + raw["lin_b"]
        now = y[:, None, :] + dec_in
        outs.append(now)
        dec_in = now
    return jnp.concatenate(outs, axis=1)


# ----------------------------------------------------------------------------
if __name__ == "__main__":
    input_size = 4
    hidden_size = 4
    num_layers = 2
    batch = 2
    seq = 8
    pred_length = 5

    key = jax.random.PRNGKey(0)
    key, kp, kx, kl = jax.random.split(key, 4)
    params, raw = make_seq2seq_params(kp, input_size, hidden_size, num_layers)

    in_data = jax.random.normal(kx, (batch, seq, input_size), jnp.float32)
    last_location = jax.random.normal(kl, (batch, 1, hidden_size), jnp.float32)

    outputs = seq2seq_forward(params, in_data, last_location, pred_length)
    jax.block_until_ready(outputs)
    assert outputs.shape == (batch, pred_length, hidden_size)

    ref = seq2seq_reference(raw, in_data, last_location, pred_length)
    np.testing.assert_allclose(np.asarray(outputs), np.asarray(ref),
                               atol=2e-5, rtol=2e-5)
    print("KERNEL_OK")
</pallas_src>

<mosaic_0001>
module attributes {stable_mosaic.version = 11 : i64} {
  func.func @kernel(%arg0: memref<64x128xf32, #tpu.memory_space<vmem>>, %arg1: memref<8x128xf32, #tpu.memory_space<vmem>>, %arg2: memref<128x384xf32, #tpu.memory_space<vmem>>, %arg3: memref<128x384xf32, #tpu.memory_space<vmem>>, %arg4: memref<1x384xf32, #tpu.memory_space<vmem>>, %arg5: memref<1x128xf32, #tpu.memory_space<vmem>>, %arg6: memref<128x384xf32, #tpu.memory_space<vmem>>, %arg7: memref<128x384xf32, #tpu.memory_space<vmem>>, %arg8: memref<1x384xf32, #tpu.memory_space<vmem>>, %arg9: memref<1x128xf32, #tpu.memory_space<vmem>>, %arg10: memref<256x512xf32, #tpu.memory_space<vmem>>, %arg11: memref<1x512xf32, #tpu.memory_space<vmem>>, %arg12: memref<256x512xf32, #tpu.memory_space<vmem>>, %arg13: memref<1x512xf32, #tpu.memory_space<vmem>>, %arg14: memref<128x128xf32, #tpu.memory_space<vmem>>, %arg15: memref<1x128xf32, #tpu.memory_space<vmem>>, %arg16: memref<5x8x128xf32, #tpu.memory_space<vmem>>, %arg17: memref<64x384xf32, #tpu.memory_space<vmem>>, %arg18: memref<64x128xf32, #tpu.memory_space<vmem>>) attributes {dimension_semantics = [], scalar_prefetch = 0 : i64, scratch_operands = 2 : i64, tpu.core_type = #tpu.core_type<tc>} {
    %c0 = arith.constant 0 : index
    %c0_0 = arith.constant 0 : index
    %0 = vector.load %arg0[%c0, %c0_0] : memref<64x128xf32, #tpu.memory_space<vmem>>, vector<64x128xf32>
    %c0_1 = arith.constant 0 : index
    %c0_2 = arith.constant 0 : index
    %1 = vector.load %arg2[%c0_1, %c0_2] : memref<128x384xf32, #tpu.memory_space<vmem>>, vector<128x384xf32>
    %cst = arith.constant dense<0.000000e+00> : vector<64x384xf32>
    %2 = tpu.matmul %0, %1, %cst {dimension_numbers = #tpu.dot_dimension_numbers<[1], [0], [0], [1], [0, 0, 1, 1], [], []>} : vector<64x128xf32>, vector<128x384xf32>, vector<64x384xf32> -> vector<64x384xf32>
    %c0_3 = arith.constant 0 : index
    %c0_4 = arith.constant 0 : index
    %3 = vector.load %arg4[%c0_3, %c0_4] : memref<1x384xf32, #tpu.memory_space<vmem>>, vector<1x384xf32>
    %4 = vector.broadcast %3 : vector<1x384xf32> to vector<64x384xf32>
    %5 = arith.addf %2, %4 : vector<64x384xf32>
    %c0_5 = arith.constant 0 : index
    %c0_6 = arith.constant 0 : index
    %6 = vector.load %arg17[%c0_5, %c0_6] : memref<64x384xf32, #tpu.memory_space<vmem>>, vector<64x384xf32>
    tpu.vector_store %arg17[%c0_5, %c0_6], %5 {strides = array<i32>} : memref<64x384xf32, #tpu.memory_space<vmem>>, vector<64x384xf32>,
    %c0_7 = arith.constant 0 : index
    %c0_8 = arith.constant 0 : index
    %7 = vector.load %arg5[%c0_7, %c0_8] : memref<1x128xf32, #tpu.memory_space<vmem>>, vector<1x128xf32>
    %cst_9 = arith.constant 0.000000e+00 : f32
    %8 = vector.broadcast %cst_9 : f32 to vector<8x128xf32>
    %c0_10 = arith.constant 0 : index
    %c0_11 = arith.constant 0 : index
    %9 = vector.load %arg17[%c0_10, %c0_11] : memref<64x384xf32, #tpu.memory_space<vmem>>, vector<8x384xf32>
    %c0_12 = arith.constant 0 : index
    %c0_13 = arith.constant 0 : index
    %10 = vector.load %arg3[%c0_12, %c0_13] : memref<128x384xf32, #tpu.memory_space<vmem>>, vector<128x384xf32>
    %cst_14 = arith.constant dense<0.000000e+00> : vector<8x384xf32>
    %11 = tpu.matmul %8, %10, %cst_14 {dimension_numbers = #tpu.dot_dimension_numbers<[1], [0], [0], [1], [0, 0, 1, 1], [], []>} : vector<8x128xf32>, vector<128x384xf32>, vector<8x384xf32> -> vector<8x384xf32>
    %12 = vector.extract_strided_slice %9 {offsets = [0, 0], sizes = [8, 128], strides = [1, 1]} : vector<8x384xf32> to vector<8x128xf32>
    %13 = vector.extract_strided_slice %11 {offsets = [0, 0], sizes = [8, 128], strides = [1, 1]} : vector<8x384xf32> to vector<8x128xf32>
    %14 = arith.addf %12, %13 : vector<8x128xf32>
    %15 = arith.negf %14 : vector<8x128xf32>
    %16 = math.exp %15 : vector<8x128xf32>
    %cst_15 = arith.constant 1.000000e+00 : f32
    %17 = vector.broadcast %cst_15 : f32 to vector<8x128xf32>
    %18 = arith.addf %17, %16 : vector<8x128xf32>
    %19 = arith.divf %17, %18 : vector<8x128xf32>
    %20 = vector.extract_strided_slice %9 {offsets = [0, 128], sizes = [8, 128], strides = [1, 1]} : vector<8x384xf32> to vector<8x128xf32>
    %21 = vector.extract_strided_slice %11 {offsets = [0, 128], sizes = [8, 128], strides = [1, 1]} : vector<8x384xf32> to vector<8x128xf32>
    %22 = arith.addf %20, %21 : vector<8x128xf32>
    %23 = arith.negf %22 : vector<8x128xf32>
    %24 = math.exp %23 : vector<8x128xf32>
    %cst_16 = arith.constant 1.000000e+00 : f32
    %25 = vector.broadcast %cst_16 : f32 to vector<8x128xf32>
    %26 = arith.addf %25, %24 : vector<8x128xf32>
    %27 = arith.divf %25, %26 : vector<8x128xf32>
    %28 = vector.extract_strided_slice %9 {offsets = [0, 256], sizes = [8, 128], strides = [1, 1]} : vector<8x384xf32> to vector<8x128xf32>
    %29 = vector.extract_strided_slice %11 {offsets = [0, 256], sizes = [8, 128], strides = [1, 1]} : vector<8x384xf32> to vector<8x128xf32>
    %30 = vector.broadcast %7 : vector<1x128xf32> to vector<8x128xf32>
    %31 = arith.addf %29, %30 : vector<8x128xf32>
    %32 = arith.mulf %19, %31 : vector<8x128xf32>
    %33 = arith.addf %28, %32 : vector<8x128xf32>
    %34 = math.tanh %33 : vector<8x128xf32>
    %cst_17 = arith.constant 1.000000e+00 : f32
    %35 = vector.broadcast %cst_17 : f32 to vector<8x128xf32>
    %36 = arith.subf %35, %27 : vector<8x128xf32>
    %37 = arith.mulf %36, %34 : vector<8x128xf32>
    %38 = arith.mulf %27, %8 : vector<8x128xf32>
    %39 = arith.addf %37, %38 : vector<8x128xf32>
    %c0_18 = arith.constant 0 : index
    %c0_19 = arith.constant 0 : index
    %40 = vector.load %arg18[%c0_18, %c0_19] : memref<64x128xf32, #tpu.memory_space<vmem>>, vector<8x128xf32>
    tpu.vector_store %arg18[%c0_18, %c0_19], %39 {strides = array<i32>} : memref<64x128xf32, #tpu.memory_space<vmem>>, vector<8x128xf32>,
    %c8 = arith.constant 8 : index
    %c0_20 = arith.constant 0 : index
    %41 = vector.load %arg17[%c8, %c0_20] : memref<64x384xf32, #tpu.memory_space<vmem>>, vector<8x384xf32>
    %c0_21 = arith.constant 0 : index
    %c0_22 = arith.constant 0 : index
    %42 = vector.load %arg3[%c0_21, %c0_22] : memref<128x384xf32, #tpu.memory_space<vmem>>, vector<128x384xf32>
    %cst_23 = arith.constant dense<0.000000e+00> : vector<8x384xf32>
    %43 = tpu.matmul %39, %42, %cst_23 {dimension_numbers = #tpu.dot_dimension_numbers<[1], [0], [0], [1], [0, 0, 1, 1], [], []>} : vector<8x128xf32>, vector<128x384xf32>, vector<8x384xf32> -> vector<8x384xf32>
    %44 = vector.extract_strided_slice %41 {offsets = [0, 0], sizes = [8, 128], strides = [1, 1]} : vector<8x384xf32> to vector<8x128xf32>
    %45 = vector.extract_strided_slice %43 {offsets = [0, 0], sizes = [8, 128], strides = [1, 1]} : vector<8x384xf32> to vector<8x128xf32>
    %46 = arith.addf %44, %45 : vector<8x128xf32>
    %47 = arith.negf %46 : vector<8x128xf32>
    %48 = math.exp %47 : vector<8x128xf32>
    %cst_24 = arith.constant 1.000000e+00 : f32
    %49 = vector.broadcast %cst_24 : f32 to vector<8x128xf32>
    %50 = arith.addf %49, %48 : vector<8x128xf32>
    %51 = arith.divf %49, %50 : vector<8x128xf32>
    %52 = vector.extract_strided_slice %41 {offsets = [0, 128], sizes = [8, 128], strides = [1, 1]} : vector<8x384xf32> to vector<8x128xf32>
    %53 = vector.extract_strided_slice %43 {offsets = [0, 128], sizes = [8, 128], strides = [1, 1]} : vector<8x384xf32> to vector<8x128xf32>
    %54 = arith.addf %52, %53 : vector<8x128xf32>
    %55 = arith.negf %54 : vector<8x128xf32>
    %56 = math.exp %55 : vector<8x128xf32>
    %cst_25 = arith.constant 1.000000e+00 : f32
    %57 = vector.broadcast %cst_25 : f32 to vector<8x128xf32>
    %58 = arith.addf %57, %56 : vector<8x128xf32>
    %59 = arith.divf %57, %58 : vector<8x128xf32>
    %60 = vector.extract_strided_slice %41 {offsets = [0, 256], sizes = [8, 128], strides = [1, 1]} : vector<8x384xf32> to vector<8x128xf32>
    %61 = vector.extract_strided_slice %43 {offsets = [0, 256], sizes = [8, 128], strides = [1, 1]} : vector<8x384xf32> to vector<8x128xf32>
    %62 = vector.broadcast %7 : vector<1x128xf32> to vector<8x128xf32>
    %63 = arith.addf %61, %62 : vector<8x128xf32>
    %64 = arith.mulf %51, %63 : vector<8x128xf32>
    %65 = arith.addf %60, %64 : vector<8x128xf32>
    %66 = math.tanh %65 : vector<8x128xf32>
    %cst_26 = arith.constant 1.000000e+00 : f32
    %67 = vector.broadcast %cst_26 : f32 to vector<8x128xf32>
    %68 = arith.subf %67, %59 : vector<8x128xf32>
    %69 = arith.mulf %68, %66 : vector<8x128xf32>
    %70 = arith.mulf %59, %39 : vector<8x128xf32>
    %71 = arith.addf %69, %70 : vector<8x128xf32>
    %c8_27 = arith.constant 8 : index
    %c0_28 = arith.constant 0 : index
    %72 = vector.load %arg18[%c8_27, %c0_28] : memref<64x128xf32, #tpu.memory_space<vmem>>, vector<8x128xf32>
    tpu.vector_store %arg18[%c8_27, %c0_28], %71 {strides = array<i32>} : memref<64x128xf32, #tpu.memory_space<vmem>>, vector<8x128xf32>,
    %c16 = arith.constant 16 : index
    %c0_29 = arith.constant 0 : index
    %73 = vector.load %arg17[%c16, %c0_29] : memref<64x384xf32, #tpu.memory_space<vmem>>, vector<8x384xf32>
    %c0_30 = arith.constant 0 : index
    %c0_31 = arith.constant 0 : index
    %74 = vector.load %arg3[%c0_30, %c0_31] : memref<128x384xf32, #tpu.memory_space<vmem>>, vector<128x384xf32>
    %cst_32 = arith.constant dense<0.000000e+00> : vector<8x384xf32>
    %75 = tpu.matmul %71, %74, %cst_32 {dimension_numbers = #tpu.dot_dimension_numbers<[1], [0], [0], [1], [0, 0, 1, 1], [], []>} : vector<8x128xf32>, vector<128x384xf32>, vector<8x384xf32> -> vector<8x384xf32>
    %76 = vector.extract_strided_slice %73 {offsets = [0, 0], sizes = [8, 128], strides = [1, 1]} : vector<8x384xf32> to vector<8x128xf32>
    %77 = vector.extract_strided_slice %75 {offsets = [0, 0], sizes = [8, 128], strides = [1, 1]} : vector<8x384xf32> to vector<8x128xf32>
    %78 = arith.addf %76, %77 : vector<8x128xf32>
    %79 = arith.negf %78 : vector<8x128xf32>
    %80 = math.exp %79 : vector<8x128xf32>
    %cst_33 = arith.constant 1.000000e+00 : f32
    %81 = vector.broadcast %cst_33 : f32 to vector<8x128xf32>
    %82 = arith.addf %81, %80 : vector<8x128xf32>
    %83 = arith.divf %81, %82 : vector<8x128xf32>
    %84 = vector.extract_strided_slice %73 {offsets = [0, 128], sizes = [8, 128], strides = [1, 1]} : vector<8x384xf32> to vector<8x128xf32>
    %85 = vector.extract_strided_slice %75 {offsets = [0, 128], sizes = [8, 128], strides = [1, 1]} : vector<8x384xf32> to vector<8x128xf32>
    %86 = arith.addf %84, %85 : vector<8x128xf32>
    %87 = arith.negf %86 : vector<8x128xf32>
    %88 = math.exp %87 : vector<8x128xf32>
    %cst_34 = arith.constant 1.000000e+00 : f32
    %89 = vector.broadcast %cst_34 : f32 to vector<8x128xf32>
    %90 = arith.addf %89, %88 : vector<8x128xf32>
    %91 = arith.divf %89, %90 : vector<8x128xf32>
    %92 = vector.extract_strided_slice %73 {offsets = [0, 256], sizes = [8, 128], strides = [1, 1]} : vector<8x384xf32> to vector<8x128xf32>
    %93 = vector.extract_strided_slice %75 {offsets = [0, 256], sizes = [8, 128], strides = [1, 1]} : vector<8x384xf32> to vector<8x128xf32>
    %94 = vector.broadcast %7 : vector<1x128xf32> to vector<8x128xf32>
    %95 = arith.addf %93, %94 : vector<8x128xf32>
    %96 = arith.mulf %83, %95 : vector<8x128xf32>
    %97 = arith.addf %92, %96 : vector<8x128xf32>
    %98 = math.tanh %97 : vector<8x128xf32>
    %cst_35 = arith.constant 1.000000e+00 : f32
    %99 = vector.broadcast %cst_35 : f32 to vector<8x128xf32>
    %100 = arith.subf %99, %91 : vector<8x128xf32>
    %101 = arith.mulf %100, %98 : vector<8x128xf32>
    %102 = arith.mulf %91, %71 : vector<8x128xf32>
    %103 = arith.addf %101, %102 : vector<8x128xf32>
    %c16_36 = arith.constant 16 : index
    %c0_37 = arith.constant 0 : index
    %104 = vector.load %arg18[%c16_36, %c0_37] : memref<64x128xf32, #tpu.memory_space<vmem>>, vector<8x128xf32>
    tpu.vector_store %arg18[%c16_36, %c0_37], %103 {strides = array<i32>} : memref<64x128xf32, #tpu.memory_space<vmem>>, vector<8x128xf32>,
    %c24 = arith.constant 24 : index
    %c0_38 = arith.constant 0 : index
    %105 = vector.load %arg17[%c24, %c0_38] : memref<64x384xf32, #tpu.memory_space<vmem>>, vector<8x384xf32>
    %c0_39 = arith.constant 0 : index
    %c0_40 = arith.constant 0 : index
    %106 = vector.load %arg3[%c0_39, %c0_40] : memref<128x384xf32, #tpu.memory_space<vmem>>, vector<128x384xf32>
    %cst_41 = arith.constant dense<0.000000e+00> : vector<8x384xf32>
    %107 = tpu.matmul %103, %106, %cst_41 {dimension_numbers = #tpu.dot_dimension_numbers<[1], [0], [0], [1], [0, 0, 1, 1], [], []>} : vector<8x128xf32>, vector<128x384xf32>, vector<8x384xf32> -> vector<8x384xf32>
    %108 = vector.extract_strided_slice %105 {offsets = [0, 0], sizes = [8, 128], strides = [1, 1]} : vector<8x384xf32> to vector<8x128xf32>
    %109 = vector.extract_strided_slice %107 {offsets = [0, 0], sizes = [8, 128], strides = [1, 1]} : vector<8x384xf32> to vector<8x128xf32>
    %110 = arith.addf %108, %109 : vector<8x128xf32>
    %111 = arith.negf %110 : vector<8x128xf32>
    %112 = math.exp %111 : vector<8x128xf32>
    %cst_42 = arith.constant 1.000000e+00 : f32
    %113 = vector.broadcast %cst_42 : f32 to vector<8x128xf32>
    %114 = arith.addf %113, %112 : vector<8x128xf32>
    %115 = arith.divf %113, %114 : vector<8x128xf32>
    %116 = vector.extract_strided_slice %105 {offsets = [0, 128], sizes = [8, 128], strides = [1, 1]} : vector<8x384xf32> to vector<8x128xf32>
    %117 = vector.extract_strided_slice %107 {offsets = [0, 128], sizes = [8, 128], strides = [1, 1]} : vector<8x384xf32> to vector<8x128xf32>
    %118 = arith.addf %116, %117 : vector<8x128xf32>
    %119 = arith.negf %118 : vector<8x128xf32>
    %120 = math.exp %119 : vector<8x128xf32>
    %cst_43 = arith.constant 1.000000e+00 : f32
    %121 = vector.broadcast %cst_43 : f32 to vector<8x128xf32>
    %122 = arith.addf %121, %120 : vector<8x128xf32>
    %123 = arith.divf %121, %122 : vector<8x128xf32>
    %124 = vector.extract_strided_slice %105 {offsets = [0, 256], sizes = [8, 128], strides = [1, 1]} : vector<8x384xf32> to vector<8x128xf32>
    %125 = vector.extract_strided_slice %107 {offsets = [0, 256], sizes = [8, 128], strides = [1, 1]} : vector<8x384xf32> to vector<8x128xf32>
    %126 = vector.broadcast %7 : vector<1x128xf32> to vector<8x128xf32>
    %127 = arith.addf %125, %126 : vector<8x128xf32>
    %128 = arith.mulf %115, %127 : vector<8x128xf32>
    %129 = arith.addf %124, %128 : vector<8x128xf32>
    %130 = math.tanh %129 : vector<8x128xf32>
    %cst_44 = arith.constant 1.000000e+00 : f32
    %131 = vector.broadcast %cst_44 : f32 to vector<8x128xf32>
    %132 = arith.subf %131, %123 : vector<8x128xf32>
    %133 = arith.mulf %132, %130 : vector<8x128xf32>
    %134 = arith.mulf %123, %103 : vector<8x128xf32>
    %135 = arith.addf %133, %134 : vector<8x128xf32>
    %c24_45 = arith.constant 24 : index
    %c0_46 = arith.constant 0 : index
    %136 = vector.load %arg18[%c24_45, %c0_46] : memref<64x128xf32, #tpu.memory_space<vmem>>, vector<8x128xf32>
    tpu.vector_store %arg18[%c24_45, %c0_46], %135 {strides = array<i32>} : memref<64x128xf32, #tpu.memory_space<vmem>>, vector<8x128xf32>,
    %c32 = arith.constant 32 : index
    %c0_47 = arith.constant 0 : index
    %137 = vector.load %arg17[%c32, %c0_47] : memref<64x384xf32, #tpu.memory_space<vmem>>, vector<8x384xf32>
    %c0_48 = arith.constant 0 : index
    %c0_49 = arith.constant 0 : index
    %138 = vector.load %arg3[%c0_48, %c0_49] : memref<128x384xf32, #tpu.memory_space<vmem>>, vector<128x384xf32>
    %cst_50 = arith.constant dense<0.000000e+00> : vector<8x384xf32>
    %139 = tpu.matmul %135, %138, %cst_50 {dimension_numbers = #tpu.dot_dimension_numbers<[1], [0], [0], [1], [0, 0, 1, 1], [], []>} : vector<8x128xf32>, vector<128x384xf32>, vector<8x384xf32> -> vector<8x384xf32>
    %140 = vector.extract_strided_slice %137 {offsets = [0, 0], sizes = [8, 128], strides = [1, 1]} : vector<8x384xf32> to vector<8x128xf32>
    %141 = vector.extract_strided_slice %139 {offsets = [0, 0], sizes = [8, 128], strides = [1, 1]} : vector<8x384xf32> to vector<8x128xf32>
    %142 = arith.addf %140, %141 : vector<8x128xf32>
    %143 = arith.negf %142 : vector<8x128xf32>
    %144 = math.exp %143 : vector<8x128xf32>
    %cst_51 = arith.constant 1.000000e+00 : f32
    %145 = vector.broadcast %cst_51 : f32 to vector<8x128xf32>
    %146 = arith.addf %145, %144 : vector<8x128xf32>
    %147 = arith.divf %145, %146 : vector<8x128xf32>
    %148 = vector.extract_strided_slice %137 {offsets = [0, 128], sizes = [8, 128], strides = [1, 1]} : vector<8x384xf32> to vector<8x128xf32>
    %149 = vector.extract_strided_slice %139 {offsets = [0, 128], sizes = [8, 128], strides = [1, 1]} : vector<8x384xf32> to vector<8x128xf32>
    %150 = arith.addf %148, %149 : vector<8x128xf32>
    %151 = arith.negf %150 : vector<8x128xf32>
    %152 = math.exp %151 : vector<8x128xf32>
    %cst_52 = arith.constant 1.000000e+00 : f32
    %153 = vector.broadcast %cst_52 : f32 to vector<8x128xf32>
    %154 = arith.addf %153, %152 : vector<8x128xf32>
    %155 = arith.divf %153, %154 : vector<8x128xf32>
    %156 = vector.extract_strided_slice %137 {offsets = [0, 256], sizes = [8, 128], strides = [1, 1]} : vector<8x384xf32> to vector<8x128xf32>
    %157 = vector.extract_strided_slice %139 {offsets = [0, 256], sizes = [8, 128], strides = [1, 1]} : vector<8x384xf32> to vector<8x128xf32>
    %158 = vector.broadcast %7 : vector<1x128xf32> to vector<8x128xf32>
    %159 = arith.addf %157, %158 : vector<8x128xf32>
    %160 = arith.mulf %147, %159 : vector<8x128xf32>
    %161 = arith.addf %156, %160 : vector<8x128xf32>
    %162 = math.tanh %161 : vector<8x128xf32>
    %cst_53 = arith.constant 1.000000e+00 : f32
    %163 = vector.broadcast %cst_53 : f32 to vector<8x128xf32>
    %164 = arith.subf %163, %155 : vector<8x128xf32>
    %165 = arith.mulf %164, %162 : vector<8x128xf32>
    %166 = arith.mulf %155, %135 : vector<8x128xf32>
    %167 = arith.addf %165, %166 : vector<8x128xf32>
    %c32_54 = arith.constant 32 : index
    %c0_55 = arith.constant 0 : index
    %168 = vector.load %arg18[%c32_54, %c0_55] : memref<64x128xf32, #tpu.memory_space<vmem>>, vector<8x128xf32>
    tpu.vector_store %arg18[%c32_54, %c0_55], %167 {strides = array<i32>} : memref<64x128xf32, #tpu.memory_space<vmem>>, vector<8x128xf32>,
    %c40 = arith.constant 40 : index
    %c0_56 = arith.constant 0 : index
    %169 = vector.load %arg17[%c40, %c0_56] : memref<64x384xf32, #tpu.memory_space<vmem>>, vector<8x384xf32>
    %c0_57 = arith.constant 0 : index
    %c0_58 = arith.constant 0 : index
    %170 = vector.load %arg3[%c0_57, %c0_58] : memref<128x384xf32, #tpu.memory_space<vmem>>, vector<128x384xf32>
    %cst_59 = arith.constant dense<0.000000e+00> : vector<8x384xf32>
    %171 = tpu.matmul %167, %170, %cst_59 {dimension_numbers = #tpu.dot_dimension_numbers<[1], [0], [0], [1], [0, 0, 1, 1], [], []>} : vector<8x128xf32>, vector<128x384xf32>, vector<8x384xf32> -> vector<8x384xf32>
    %172 = vector.extract_strided_slice %169 {offsets = [0, 0], sizes = [8, 128], strides = [1, 1]} : vector<8x384xf32> to vector<8x128xf32>
    %173 = vector.extract_strided_slice %171 {offsets = [0, 0], sizes = [8, 128], strides = [1, 1]} : vector<8x384xf32> to vector<8x128xf32>
    %174 = arith.addf %172, %173 : vector<8x128xf32>
    %175 = arith.negf %174 : vector<8x128xf32>
    %176 = math.exp %175 : vector<8x128xf32>
    %cst_60 = arith.constant 1.000000e+00 : f32
    %177 = vector.broadcast %cst_60 : f32 to vector<8x128xf32>
    %178 = arith.addf %177, %176 : vector<8x128xf32>
    %179 = arith.divf %177, %178 : vector<8x128xf32>
    %180 = vector.extract_strided_slice %169 {offsets = [0, 128], sizes = [8, 128], strides = [1, 1]} : vector<8x384xf32> to vector<8x128xf32>
    %181 = vector.extract_strided_slice %171 {offsets = [0, 128], sizes = [8, 128], strides = [1, 1]} : vector<8x384xf32> to vector<8x128xf32>
    %182 = arith.addf %180, %181 : vector<8x128xf32>
    %183 = arith.negf %182 : vector<8x128xf32>
    %184 = math.exp %183 : vector<8x128xf32>
    %cst_61 = arith.constant 1.000000e+00 : f32
    %185 = vector.broadcast %cst_61 : f32 to vector<8x128xf32>
    %186 = arith.addf %185, %184 : vector<8x128xf32>
    %187 = arith.divf %185, %186 : vector<8x128xf32>
    %188 = vector.extract_strided_slice %169 {offsets = [0, 256], sizes = [8, 128], strides = [1, 1]} : vector<8x384xf32> to vector<8x128xf32>
    %189 = vector.extract_strided_slice %171 {offsets = [0, 256], sizes = [8, 128], strides = [1, 1]} : vector<8x384xf32> to vector<8x128xf32>
    %190 = vector.broadcast %7 : vector<1x128xf32> to vector<8x128xf32>
    %191 = arith.addf %189, %190 : vector<8x128xf32>
    %192 = arith.mulf %179, %191 : vector<8x128xf32>
    %193 = arith.addf %188, %192 : vector<8x128xf32>
    %194 = math.tanh %193 : vector<8x128xf32>
    %cst_62 = arith.constant 1.000000e+00 : f32
    %195 = vector.broadcast %cst_62 : f32 to vector<8x128xf32>
    %196 = arith.subf %195, %187 : vector<8x128xf32>
    %197 = arith.mulf %196, %194 : vector<8x128xf32>
    %198 = arith.mulf %187, %167 : vector<8x128xf32>
    %199 = arith.addf %197, %198 : vector<8x128xf32>
    %c40_63 = arith.constant 40 : index
    %c0_64 = arith.constant 0 : index
    %200 = vector.load %arg18[%c40_63, %c0_64] : memref<64x128xf32, #tpu.memory_space<vmem>>, vector<8x128xf32>
    tpu.vector_store %arg18[%c40_63, %c0_64], %199 {strides = array<i32>} : memref<64x128xf32, #tpu.memory_space<vmem>>, vector<8x128xf32>,
    %c48 = arith.constant 48 : index
    %c0_65 = arith.constant 0 : index
    %201 = vector.load %arg17[%c48, %c0_65] : memref<64x384xf32, #tpu.memory_space<vmem>>, vector<8x384xf32>
    %c0_66 = arith.constant 0 : index
    %c0_67 = arith.constant 0 : index
    %202 = vector.load %arg3[%c0_66, %c0_67] : memref<128x384xf32, #tpu.memory_space<vmem>>, vector<128x384xf32>
    %cst_68 = arith.constant dense<0.000000e+00> : vector<8x384xf32>
    %203 = tpu.matmul %199, %202, %cst_68 {dimension_numbers = #tpu.dot_dimension_numbers<[1], [0], [0], [1], [0, 0, 1, 1], [], []>} : vector<8x128xf32>, vector<128x384xf32>, vector<8x384xf32> -> vector<8x384xf32>
    %204 = vector.extract_strided_slice %201 {offsets = [0, 0], sizes = [8, 128], strides = [1, 1]} : vector<8x384xf32> to vector<8x128xf32>
    %205 = vector.extract_strided_slice %203 {offsets = [0, 0], sizes = [8, 128], strides = [1, 1]} : vector<8x384xf32> to vector<8x128xf32>
    %206 = arith.addf %204, %205 : vector<8x128xf32>
    %207 = arith.negf %206 : vector<8x128xf32>
    %208 = math.exp %207 : vector<8x128xf32>
    %cst_69 = arith.constant 1.000000e+00 : f32
    %209 = vector.broadcast %cst_69 : f32 to vector<8x128xf32>
    %210 = arith.addf %209, %208 : vector<8x128xf32>
    %211 = arith.divf %209, %210 : vector<8x128xf32>
    %212 = vector.extract_strided_slice %201 {offsets = [0, 128], sizes = [8, 128], strides = [1, 1]} : vector<8x384xf32> to vector<8x128xf32>
    %213 = vector.extract_strided_slice %203 {offsets = [0, 128], sizes = [8, 128], strides = [1, 1]} : vector<8x384xf32> to vector<8x128xf32>
    %214 = arith.addf %212, %213 : vector<8x128xf32>
    %215 = arith.negf %214 : vector<8x128xf32>
    %216 = math.exp %215 : vector<8x128xf32>
    %cst_70 = arith.constant 1.000000e+00 : f32
    %217 = vector.broadcast %cst_70 : f32 to vector<8x128xf32>
    %218 = arith.addf %217, %216 : vector<8x128xf32>
    %219 = arith.divf %217, %218 : vector<8x128xf32>
    %220 = vector.extract_strided_slice %201 {offsets = [0, 256], sizes = [8, 128], strides = [1, 1]} : vector<8x384xf32> to vector<8x128xf32>
    %221 = vector.extract_strided_slice %203 {offsets = [0, 256], sizes = [8, 128], strides = [1, 1]} : vector<8x384xf32> to vector<8x128xf32>
    %222 = vector.broadcast %7 : vector<1x128xf32> to vector<8x128xf32>
    %223 = arith.addf %221, %222 : vector<8x128xf32>
    %224 = arith.mulf %211, %223 : vector<8x128xf32>
    %225 = arith.addf %220, %224 : vector<8x128xf32>
    %226 = math.tanh %225 : vector<8x128xf32>
    %cst_71 = arith.constant 1.000000e+00 : f32
    %227 = vector.broadcast %cst_71 : f32 to vector<8x128xf32>
    %228 = arith.subf %227, %219 : vector<8x128xf32>
    %229 = arith.mulf %228, %226 : vector<8x128xf32>
    %230 = arith.mulf %219, %199 : vector<8x128xf32>
    %231 = arith.addf %229, %230 : vector<8x128xf32>
    %c48_72 = arith.constant 48 : index
    %c0_73 = arith.constant 0 : index
    %232 = vector.load %arg18[%c48_72, %c0_73] : memref<64x128xf32, #tpu.memory_space<vmem>>, vector<8x128xf32>
    tpu.vector_store %arg18[%c48_72, %c0_73], %231 {strides = array<i32>} : memref<64x128xf32, #tpu.memory_space<vmem>>, vector<8x128xf32>,
    %c56 = arith.constant 56 : index
    %c0_74 = arith.constant 0 : index
    %233 = vector.load %arg17[%c56, %c0_74] : memref<64x384xf32, #tpu.memory_space<vmem>>, vector<8x384xf32>
    %c0_75 = arith.constant 0 : index
    %c0_76 = arith.constant 0 : index
    %234 = vector.load %arg3[%c0_75, %c0_76] : memref<128x384xf32, #tpu.memory_space<vmem>>, vector<128x384xf32>
    %cst_77 = arith.constant dense<0.000000e+00> : vector<8x384xf32>
    %235 = tpu.matmul %231, %234, %cst_77 {dimension_numbers = #tpu.dot_dimension_numbers<[1], [0], [0], [1], [0, 0, 1, 1], [], []>} : vector<8x128xf32>, vector<128x384xf32>, vector<8x384xf32> -> vector<8x384xf32>
    %236 = vector.extract_strided_slice %233 {offsets = [0, 0], sizes = [8, 128], strides = [1, 1]} : vector<8x384xf32> to vector<8x128xf32>
    %237 = vector.extract_strided_slice %235 {offsets = [0, 0], sizes = [8, 128], strides = [1, 1]} : vector<8x384xf32> to vector<8x128xf32>
    %238 = arith.addf %236, %237 : vector<8x128xf32>
    %239 = arith.negf %238 : vector<8x128xf32>
    %240 = math.exp %239 : vector<8x128xf32>
    %cst_78 = arith.constant 1.000000e+00 : f32
    %241 = vector.broadcast %cst_78 : f32 to vector<8x128xf32>
    %242 = arith.addf %241, %240 : vector<8x128xf32>
    %243 = arith.divf %241, %242 : vector<8x128xf32>
    %244 = vector.extract_strided_slice %233 {offsets = [0, 128], sizes = [8, 128], strides = [1, 1]} : vector<8x384xf32> to vector<8x128xf32>
    %245 = vector.extract_strided_slice %235 {offsets = [0, 128], sizes = [8, 128], strides = [1, 1]} : vector<8x384xf32> to vector<8x128xf32>
    %246 = arith.addf %244, %245 : vector<8x128xf32>
    %247 = arith.negf %246 : vector<8x128xf32>
    %248 = math.exp %247 : vector<8x128xf32>
    %cst_79 = arith.constant 1.000000e+00 : f32
    %249 = vector.broadcast %cst_79 : f32 to vector<8x128xf32>
    %250 = arith.addf %249, %248 : vector<8x128xf32>
    %251 = arith.divf %249, %250 : vector<8x128xf32>
    %252 = vector.extract_strided_slice %233 {offsets = [0, 256], sizes = [8, 128], strides = [1, 1]} : vector<8x384xf32> to vector<8x128xf32>
    %253 = vector.extract_strided_slice %235 {offsets = [0, 256], sizes = [8, 128], strides = [1, 1]} : vector<8x384xf32> to vector<8x128xf32>
    %254 = vector.broadcast %7 : vector<1x128xf32> to vector<8x128xf32>
    %255 = arith.addf %253, %254 : vector<8x128xf32>
    %256 = arith.mulf %243, %255 : vector<8x128xf32>
    %257 = arith.addf %252, %256 : vector<8x128xf32>
    %258 = math.tanh %257 : vector<8x128xf32>
    %cst_80 = arith.constant 1.000000e+00 : f32
    %259 = vector.broadcast %cst_80 : f32 to vector<8x128xf32>
    %260 = arith.subf %259, %251 : vector<8x128xf32>
    %261 = arith.mulf %260, %258 : vector<8x128xf32>
    %262 = arith.mulf %251, %231 : vector<8x128xf32>
    %263 = arith.addf %261, %262 : vector<8x128xf32>
    %c56_81 = arith.constant 56 : index
    %c0_82 = arith.constant 0 : index
    %264 = vector.load %arg18[%c56_81, %c0_82] : memref<64x128xf32, #tpu.memory_space<vmem>>, vector<8x128xf32>
    tpu.vector_store %arg18[%c56_81, %c0_82], %263 {strides = array<i32>} : memref<64x128xf32, #tpu.memory_space<vmem>>, vector<8x128xf32>,
    %c0_83 = arith.constant 0 : index
    %c0_84 = arith.constant 0 : index
    %265 = vector.load %arg18[%c0_83, %c0_84] : memref<64x128xf32, #tpu.memory_space<vmem>>, vector<64x128xf32>
    %c0_85 = arith.constant 0 : index
    %c0_86 = arith.constant 0 : index
    %266 = vector.load %arg6[%c0_85, %c0_86] : memref<128x384xf32, #tpu.memory_space<vmem>>, vector<128x384xf32>
    %cst_87 = arith.constant dense<0.000000e+00> : vector<64x384xf32>
    %267 = tpu.matmul %265, %266, %cst_87 {dimension_numbers = #tpu.dot_dimension_numbers<[1], [0], [0], [1], [0, 0, 1, 1], [], []>} : vector<64x128xf32>, vector<128x384xf32>, vector<64x384xf32> -> vector<64x384xf32>
    %c0_88 = arith.constant 0 : index
    %c0_89 = arith.constant 0 : index
    %268 = vector.load %arg8[%c0_88, %c0_89] : memref<1x384xf32, #tpu.memory_space<vmem>>, vector<1x384xf32>
    %269 = vector.broadcast %268 : vector<1x384xf32> to vector<64x384xf32>
    %270 = arith.addf %267, %269 : vector<64x384xf32>
    %c0_90 = arith.constant 0 : index
    %c0_91 = arith.constant 0 : index
    %271 = vector.load %arg17[%c0_90, %c0_91] : memref<64x384xf32, #tpu.memory_space<vmem>>, vector<64x384xf32>
    tpu.vector_store %arg17[%c0_90, %c0_91], %270 {strides = array<i32>} : memref<64x384xf32, #tpu.memory_space<vmem>>, vector<64x384xf32>,
    %c0_92 = arith.constant 0 : index
    %c0_93 = arith.constant 0 : index
    %272 = vector.load %arg9[%c0_92, %c0_93] : memref<1x128xf32, #tpu.memory_space<vmem>>, vector<1x128xf32>
    %cst_94 = arith.constant 0.000000e+00 : f32
    %273 = vector.broadcast %cst_94 : f32 to vector<8x128xf32>
    %c0_95 = arith.constant 0 : index
    %c0_96 = arith.constant 0 : index
    %274 = vector.load %arg17[%c0_95, %c0_96] : memref<64x384xf32, #tpu.memory_space<vmem>>, vector<8x384xf32>
    %c0_97 = arith.constant 0 : index
    %c0_98 = arith.constant 0 : index
    %275 = vector.load %arg7[%c0_97, %c0_98] : memref<128x384xf32, #tpu.memory_space<vmem>>, vector<128x384xf32>
    %cst_99 = arith.constant dense<0.000000e+00> : vector<8x384xf32>
    %276 = tpu.matmul %273, %275, %cst_99 {dimension_numbers = #tpu.dot_dimension_numbers<[1], [0], [0], [1], [0, 0, 1, 1], [], []>} : vector<8x128xf32>, vector<128x384xf32>, vector<8x384xf32> -> vector<8x384xf32>
    %277 = vector.extract_strided_slice %274 {offsets = [0, 0], sizes = [8, 128], strides = [1, 1]} : vector<8x384xf32> to vector<8x128xf32>
    %278 = vector.extract_strided_slice %276 {offsets = [0, 0], sizes = [8, 128], strides = [1, 1]} : vector<8x384xf32> to vector<8x128xf32>
    %279 = arith.addf %277, %278 : vector<8x128xf32>
    %280 = arith.negf %279 : vector<8x128xf32>
    %281 = math.exp %280 : vector<8x128xf32>
    %cst_100 = arith.constant 1.000000e+00 : f32
    %282 = vector.broadcast %cst_100 : f32 to vector<8x128xf32>
    %283 = arith.addf %282, %281 : vector<8x128xf32>
    %284 = arith.divf %282, %283 : vector<8x128xf32>
    %285 = vector.extract_strided_slice %274 {offsets = [0, 128], sizes = [8, 128], strides = [1, 1]} : vector<8x384xf32> to vector<8x128xf32>
    %286 = vector.extract_strided_slice %276 {offsets = [0, 128], sizes = [8, 128], strides = [1, 1]} : vector<8x384xf32> to vector<8x128xf32>
    %287 = arith.addf %285, %286 : vector<8x128xf32>
    %288 = arith.negf %287 : vector<8x128xf32>
    %289 = math.exp %288 : vector<8x128xf32>
    %cst_101 = arith.constant 1.000000e+00 : f32
    %290 = vector.broadcast %cst_101 : f32 to vector<8x128xf32>
    %291 = arith.addf %290, %289 : vector<8x128xf32>
    %292 = arith.divf %290, %291 : vector<8x128xf32>
    %293 = vector.extract_strided_slice %274 {offsets = [0, 256], sizes = [8, 128], strides = [1, 1]} : vector<8x384xf32> to vector<8x128xf32>
    %294 = vector.extract_strided_slice %276 {offsets = [0, 256], sizes = [8, 128], strides = [1, 1]} : vector<8x384xf32> to vector<8x128xf32>
    %295 = vector.broadcast %272 : vector<1x128xf32> to vector<8x128xf32>
    %296 = arith.addf %294, %295 : vector<8x128xf32>
    %297 = arith.mulf %284, %296 : vector<8x128xf32>
    %298 = arith.addf %293, %297 : vector<8x128xf32>
    %299 = math.tanh %298 : vector<8x128xf32>
    %cst_102 = arith.constant 1.000000e+00 : f32
    %300 = vector.broadcast %cst_102 : f32 to vector<8x128xf32>
    %301 = arith.subf %300, %292 : vector<8x128xf32>
    %302 = arith.mulf %301, %299 : vector<8x128xf32>
    %303 = arith.mulf %292, %273 : vector<8x128xf32>
    %304 = arith.addf %302, %303 : vector<8x128xf32>
    %c8_103 = arith.constant 8 : index
    %c0_104 = arith.constant 0 : index
    %305 = vector.load %arg17[%c8_103, %c0_104] : memref<64x384xf32, #tpu.memory_space<vmem>>, vector<8x384xf32>
    %c0_105 = arith.constant 0 : index
    %c0_106 = arith.constant 0 : index
    %306 = vector.load %arg7[%c0_105, %c0_106] : memref<128x384xf32, #tpu.memory_space<vmem>>, vector<128x384xf32>
    %cst_107 = arith.constant dense<0.000000e+00> : vector<8x384xf32>
    %307 = tpu.matmul %304, %306, %cst_107 {dimension_numbers = #tpu.dot_dimension_numbers<[1], [0], [0], [1], [0, 0, 1, 1], [], []>} : vector<8x128xf32>, vector<128x384xf32>, vector<8x384xf32> -> vector<8x384xf32>
    %308 = vector.extract_strided_slice %305 {offsets = [0, 0], sizes = [8, 128], strides = [1, 1]} : vector<8x384xf32> to vector<8x128xf32>
    %309 = vector.extract_strided_slice %307 {offsets = [0, 0], sizes = [8, 128], strides = [1, 1]} : vector<8x384xf32> to vector<8x128xf32>
    %310 = arith.addf %308, %309 : vector<8x128xf32>
    %311 = arith.negf %310 : vector<8x128xf32>
    %312 = math.exp %311 : vector<8x128xf32>
    %cst_108 = arith.constant 1.000000e+00 : f32
    %313 = vector.broadcast %cst_108 : f32 to vector<8x128xf32>
    %314 = arith.addf %313, %312 : vector<8x128xf32>
    %315 = arith.divf %313, %314 : vector<8x128xf32>
    %316 = vector.extract_strided_slice %305 {offsets = [0, 128], sizes = [8, 128], strides = [1, 1]} : vector<8x384xf32> to vector<8x128xf32>
    %317 = vector.extract_strided_slice %307 {offsets = [0, 128], sizes = [8, 128], strides = [1, 1]} : vector<8x384xf32> to vector<8x128xf32>
    %318 = arith.addf %316, %317 : vector<8x128xf32>
    %319 = arith.negf %318 : vector<8x128xf32>
    %320 = math.exp %319 : vector<8x128xf32>
    %cst_109 = arith.constant 1.000000e+00 : f32
    %321 = vector.broadcast %cst_109 : f32 to vector<8x128xf32>
    %322 = arith.addf %321, %320 : vector<8x128xf32>
    %323 = arith.divf %321, %322 : vector<8x128xf32>
    %324 = vector.extract_strided_slice %305 {offsets = [0, 256], sizes = [8, 128], strides = [1, 1]} : vector<8x384xf32> to vector<8x128xf32>
    %325 = vector.extract_strided_slice %307 {offsets = [0, 256], sizes = [8, 128], strides = [1, 1]} : vector<8x384xf32> to vector<8x128xf32>
    %326 = vector.broadcast %272 : vector<1x128xf32> to vector<8x128xf32>
    %327 = arith.addf %325, %326 : vector<8x128xf32>
    %328 = arith.mulf %315, %327 : vector<8x128xf32>
    %329 = arith.addf %324, %328 : vector<8x128xf32>
    %330 = math.tanh %329 : vector<8x128xf32>
    %cst_110 = arith.constant 1.000000e+00 : f32
    %331 = vector.broadcast %cst_110 : f32 to vector<8x128xf32>
    %332 = arith.subf %331, %323 : vector<8x128xf32>
    %333 = arith.mulf %332, %330 : vector<8x128xf32>
    %334 = arith.mulf %323, %304 : vector<8x128xf32>
    %335 = arith.addf %333, %334 : vector<8x128xf32>
    %c16_111 = arith.constant 16 : index
    %c0_112 = arith.constant 0 : index
    %336 = vector.load %arg17[%c16_111, %c0_112] : memref<64x384xf32, #tpu.memory_space<vmem>>, vector<8x384xf32>
    %c0_113 = arith.constant 0 : index
    %c0_114 = arith.constant 0 : index
    %337 = vector.load %arg7[%c0_113, %c0_114] : memref<128x384xf32, #tpu.memory_space<vmem>>, vector<128x384xf32>
    %cst_115 = arith.constant dense<0.000000e+00> : vector<8x384xf32>
    %338 = tpu.matmul %335, %337, %cst_115 {dimension_numbers = #tpu.dot_dimension_numbers<[1], [0], [0], [1], [0, 0, 1, 1], [], []>} : vector<8x128xf32>, vector<128x384xf32>, vector<8x384xf32> -> vector<8x384xf32>
    %339 = vector.extract_strided_slice %336 {offsets = [0, 0], sizes = [8, 128], strides = [1, 1]} : vector<8x384xf32> to vector<8x128xf32>
    %340 = vector.extract_strided_slice %338 {offsets = [0, 0], sizes = [8, 128], strides = [1, 1]} : vector<8x384xf32> to vector<8x128xf32>
    %341 = arith.addf %339, %340 : vector<8x128xf32>
    %342 = arith.negf %341 : vector<8x128xf32>
    %343 = math.exp %342 : vector<8x128xf32>
    %cst_116 = arith.constant 1.000000e+00 : f32
    %344 = vector.broadcast %cst_116 : f32 to vector<8x128xf32>
    %345 = arith.addf %344, %343 : vector<8x128xf32>
    %346 = arith.divf %344, %345 : vector<8x128xf32>
    %347 = vector.extract_strided_slice %336 {offsets = [0, 128], sizes = [8, 128], strides = [1, 1]} : vector<8x384xf32> to vector<8x128xf32>
    %348 = vector.extract_strided_slice %338 {offsets = [0, 128], sizes = [8, 128], strides = [1, 1]} : vector<8x384xf32> to vector<8x128xf32>
    %349 = arith.addf %347, %348 : vector<8x128xf32>
    %350 = arith.negf %349 : vector<8x128xf32>
    %351 = math.exp %350 : vector<8x128xf32>
    %cst_117 = arith.constant 1.000000e+00 : f32
    %352 = vector.broadcast %cst_117 : f32 to vector<8x128xf32>
    %353 = arith.addf %352, %351 : vector<8x128xf32>
    %354 = arith.divf %352, %353 : vector<8x128xf32>
    %355 = vector.extract_strided_slice %336 {offsets = [0, 256], sizes = [8, 128], strides = [1, 1]} : vector<8x384xf32> to vector<8x128xf32>
    %356 = vector.extract_strided_slice %338 {offsets = [0, 256], sizes = [8, 128], strides = [1, 1]} : vector<8x384xf32> to vector<8x128xf32>
    %357 = vector.broadcast %272 : vector<1x128xf32> to vector<8x128xf32>
    %358 = arith.addf %356, %357 : vector<8x128xf32>
    %359 = arith.mulf %346, %358 : vector<8x128xf32>
    %360 = arith.addf %355, %359 : vector<8x128xf32>
    %361 = math.tanh %360 : vector<8x128xf32>
    %cst_118 = arith.constant 1.000000e+00 : f32
    %362 = vector.broadcast %cst_118 : f32 to vector<8x128xf32>
    %363 = arith.subf %362, %354 : vector<8x128xf32>
    %364 = arith.mulf %363, %361 : vector<8x128xf32>
    %365 = arith.mulf %354, %335 : vector<8x128xf32>
    %366 = arith.addf %364, %365 : vector<8x128xf32>
    %c24_119 = arith.constant 24 : index
    %c0_120 = arith.constant 0 : index
    %367 = vector.load %arg17[%c24_119, %c0_120] : memref<64x384xf32, #tpu.memory_space<vmem>>, vector<8x384xf32>
    %c0_121 = arith.constant 0 : index
    %c0_122 = arith.constant 0 : index
    %368 = vector.load %arg7[%c0_121, %c0_122] : memref<128x384xf32, #tpu.memory_space<vmem>>, vector<128x384xf32>
    %cst_123 = arith.constant dense<0.000000e+00> : vector<8x384xf32>
    %369 = tpu.matmul %366, %368, %cst_123 {dimension_numbers = #tpu.dot_dimension_numbers<[1], [0], [0], [1], [0, 0, 1, 1], [], []>} : vector<8x128xf32>, vector<128x384xf32>, vector<8x384xf32> -> vector<8x384xf32>
    %370 = vector.extract_strided_slice %367 {offsets = [0, 0], sizes = [8, 128], strides = [1, 1]} : vector<8x384xf32> to vector<8x128xf32>
    %371 = vector.extract_strided_slice %369 {offsets = [0, 0], sizes = [8, 128], strides = [1, 1]} : vector<8x384xf32> to vector<8x128xf32>
    %372 = arith.addf %370, %371 : vector<8x128xf32>
    %373 = arith.negf %372 : vector<8x128xf32>
    %374 = math.exp %373 : vector<8x128xf32>
    %cst_124 = arith.constant 1.000000e+00 : f32
    %375 = vector.broadcast %cst_124 : f32 to vector<8x128xf32>
    %376 = arith.addf %375, %374 : vector<8x128xf32>
    %377 = arith.divf %375, %376 : vector<8x128xf32>
    %378 = vector.extract_strided_slice %367 {offsets = [0, 128], sizes = [8, 128], strides = [1, 1]} : vector<8x384xf32> to vector<8x128xf32>
    %379 = vector.extract_strided_slice %369 {offsets = [0, 128], sizes = [8, 128], strides = [1, 1]} : vector<8x384xf32> to vector<8x128xf32>
    %380 = arith.addf %378, %379 : vector<8x128xf32>
    %381 = arith.negf %380 : vector<8x128xf32>
    %382 = math.exp %381 : vector<8x128xf32>
    %cst_125 = arith.constant 1.000000e+00 : f32
    %383 = vector.broadcast %cst_125 : f32 to vector<8x128xf32>
    %384 = arith.addf %383, %382 : vector<8x128xf32>
    %385 = arith.divf %383, %384 : vector<8x128xf32>
    %386 = vector.extract_strided_slice %367 {offsets = [0, 256], sizes = [8, 128], strides = [1, 1]} : vector<8x384xf32> to vector<8x128xf32>
    %387 = vector.extract_strided_slice %369 {offsets = [0, 256], sizes = [8, 128], strides = [1, 1]} : vector<8x384xf32> to vector<8x128xf32>
    %388 = vector.broadcast %272 : vector<1x128xf32> to vector<8x128xf32>
    %389 = arith.addf %387, %388 : vector<8x128xf32>
    %390 = arith.mulf %377, %389 : vector<8x128xf32>
    %391 = arith.addf %386, %390 : vector<8x128xf32>
    %392 = math.tanh %391 : vector<8x128xf32>
    %cst_126 = arith.constant 1.000000e+00 : f32
    %393 = vector.broadcast %cst_126 : f32 to vector<8x128xf32>
    %394 = arith.subf %393, %385 : vector<8x128xf32>
    %395 = arith.mulf %394, %392 : vector<8x128xf32>
    %396 = arith.mulf %385, %366 : vector<8x128xf32>
    %397 = arith.addf %395, %396 : vector<8x128xf32>
    %c32_127 = arith.constant 32 : index
    %c0_128 = arith.constant 0 : index
    %398 = vector.load %arg17[%c32_127, %c0_128] : memref<64x384xf32, #tpu.memory_space<vmem>>, vector<8x384xf32>
    %c0_129 = arith.constant 0 : index
    %c0_130 = arith.constant 0 : index
    %399 = vector.load %arg7[%c0_129, %c0_130] : memref<128x384xf32, #tpu.memory_space<vmem>>, vector<128x384xf32>
    %cst_131 = arith.constant dense<0.000000e+00> : vector<8x384xf32>
    %400 = tpu.matmul %397, %399, %cst_131 {dimension_numbers = #tpu.dot_dimension_numbers<[1], [0], [0], [1], [0, 0, 1, 1], [], []>} : vector<8x128xf32>, vector<128x384xf32>, vector<8x384xf32> -> vector<8x384xf32>
    %401 = vector.extract_strided_slice %398 {offsets = [0, 0], sizes = [8, 128], strides = [1, 1]} : vector<8x384xf32> to vector<8x128xf32>
    %402 = vector.extract_strided_slice %400 {offsets = [0, 0], sizes = [8, 128], strides = [1, 1]} : vector<8x384xf32> to vector<8x128xf32>
    %403 = arith.addf %401, %402 : vector<8x128xf32>
    %404 = arith.negf %403 : vector<8x128xf32>
    %405 = math.exp %404 : vector<8x128xf32>
    %cst_132 = arith.constant 1.000000e+00 : f32
    %406 = vector.broadcast %cst_132 : f32 to vector<8x128xf32>
    %407 = arith.addf %406, %405 : vector<8x128xf32>
    %408 = arith.divf %406, %407 : vector<8x128xf32>
    %409 = vector.extract_strided_slice %398 {offsets = [0, 128], sizes = [8, 128], strides = [1, 1]} : vector<8x384xf32> to vector<8x128xf32>
    %410 = vector.extract_strided_slice %400 {offsets = [0, 128], sizes = [8, 128], strides = [1, 1]} : vector<8x384xf32> to vector<8x128xf32>
    %411 = arith.addf %409, %410 : vector<8x128xf32>
    %412 = arith.negf %411 : vector<8x128xf32>
    %413 = math.exp %412 : vector<8x128xf32>
    %cst_133 = arith.constant 1.000000e+00 : f32
    %414 = vector.broadcast %cst_133 : f32 to vector<8x128xf32>
    %415 = arith.addf %414, %413 : vector<8x128xf32>
    %416 = arith.divf %414, %415 : vector<8x128xf32>
    %417 = vector.extract_strided_slice %398 {offsets = [0, 256], sizes = [8, 128], strides = [1, 1]} : vector<8x384xf32> to vector<8x128xf32>
    %418 = vector.extract_strided_slice %400 {offsets = [0, 256], sizes = [8, 128], strides = [1, 1]} : vector<8x384xf32> to vector<8x128xf32>
    %419 = vector.broadcast %272 : vector<1x128xf32> to vector<8x128xf32>
    %420 = arith.addf %418, %419 : vector<8x128xf32>
    %421 = arith.mulf %408, %420 : vector<8x128xf32>
    %422 = arith.addf %417, %421 : vector<8x128xf32>
    %423 = math.tanh %422 : vector<8x128xf32>
    %cst_134 = arith.constant 1.000000e+00 : f32
    %424 = vector.broadcast %cst_134 : f32 to vector<8x128xf32>
    %425 = arith.subf %424, %416 : vector<8x128xf32>
    %426 = arith.mulf %425, %423 : vector<8x128xf32>
    %427 = arith.mulf %416, %397 : vector<8x128xf32>
    %428 = arith.addf %426, %427 : vector<8x128xf32>
    %c40_135 = arith.constant 40 : index
    %c0_136 = arith.constant 0 : index
    %429 = vector.load %arg17[%c40_135, %c0_136] : memref<64x384xf32, #tpu.memory_space<vmem>>, vector<8x384xf32>
    %c0_137 = arith.constant 0 : index
    %c0_138 = arith.constant 0 : index
    %430 = vector.load %arg7[%c0_137, %c0_138] : memref<128x384xf32, #tpu.memory_space<vmem>>, vector<128x384xf32>
    %cst_139 = arith.constant dense<0.000000e+00> : vector<8x384xf32>
    %431 = tpu.matmul %428, %430, %cst_139 {dimension_numbers = #tpu.dot_dimension_numbers<[1], [0], [0], [1], [0, 0, 1, 1], [], []>} : vector<8x128xf32>, vector<128x384xf32>, vector<8x384xf32> -> vector<8x384xf32>
    %432 = vector.extract_strided_slice %429 {offsets = [0, 0], sizes = [8, 128], strides = [1, 1]} : vector<8x384xf32> to vector<8x128xf32>
    %433 = vector.extract_strided_slice %431 {offsets = [0, 0], sizes = [8, 128], strides = [1, 1]} : vector<8x384xf32> to vector<8x128xf32>
    %434 = arith.addf %432, %433 : vector<8x128xf32>
    %435 = arith.negf %434 : vector<8x128xf32>
    %436 = math.exp %435 : vector<8x128xf32>
    %cst_140 = arith.constant 1.000000e+00 : f32
    %437 = vector.broadcast %cst_140 : f32 to vector<8x128xf32>
    %438 = arith.addf %437, %436 : vector<8x128xf32>
    %439 = arith.divf %437, %438 : vector<8x128xf32>
    %440 = vector.extract_strided_slice %429 {offsets = [0, 128], sizes = [8, 128], strides = [1, 1]} : vector<8x384xf32> to vector<8x128xf32>
    %441 = vector.extract_strided_slice %431 {offsets = [0, 128], sizes = [8, 128], strides = [1, 1]} : vector<8x384xf32> to vector<8x128xf32>
    %442 = arith.addf %440, %441 : vector<8x128xf32>
    %443 = arith.negf %442 : vector<8x128xf32>
    %444 = math.exp %443 : vector<8x128xf32>
    %cst_141 = arith.constant 1.000000e+00 : f32
    %445 = vector.broadcast %cst_141 : f32 to vector<8x128xf32>
    %446 = arith.addf %445, %444 : vector<8x128xf32>
    %447 = arith.divf %445, %446 : vector<8x128xf32>
    %448 = vector.extract_strided_slice %429 {offsets = [0, 256], sizes = [8, 128], strides = [1, 1]} : vector<8x384xf32> to vector<8x128xf32>
    %449 = vector.extract_strided_slice %431 {offsets = [0, 256], sizes = [8, 128], strides = [1, 1]} : vector<8x384xf32> to vector<8x128xf32>
    %450 = vector.broadcast %272 : vector<1x128xf32> to vector<8x128xf32>
    %451 = arith.addf %449, %450 : vector<8x128xf32>
    %452 = arith.mulf %439, %451 : vector<8x128xf32>
    %453 = arith.addf %448, %452 : vector<8x128xf32>
    %454 = math.tanh %453 : vector<8x128xf32>
    %cst_142 = arith.constant 1.000000e+00 : f32
    %455 = vector.broadcast %cst_142 : f32 to vector<8x128xf32>
    %456 = arith.subf %455, %447 : vector<8x128xf32>
    %457 = arith.mulf %456, %454 : vector<8x128xf32>
    %458 = arith.mulf %447, %428 : vector<8x128xf32>
    %459 = arith.addf %457, %458 : vector<8x128xf32>
    %c48_143 = arith.constant 48 : index
    %c0_144 = arith.constant 0 : index
    %460 = vector.load %arg17[%c48_143, %c0_144] : memref<64x384xf32, #tpu.memory_space<vmem>>, vector<8x384xf32>
    %c0_145 = arith.constant 0 : index
    %c0_146 = arith.constant 0 : index
    %461 = vector.load %arg7[%c0_145, %c0_146] : memref<128x384xf32, #tpu.memory_space<vmem>>, vector<128x384xf32>
    %cst_147 = arith.constant dense<0.000000e+00> : vector<8x384xf32>
    %462 = tpu.matmul %459, %461, %cst_147 {dimension_numbers = #tpu.dot_dimension_numbers<[1], [0], [0], [1], [0, 0, 1, 1], [], []>} : vector<8x128xf32>, vector<128x384xf32>, vector<8x384xf32> -> vector<8x384xf32>
    %463 = vector.extract_strided_slice %460 {offsets = [0, 0], sizes = [8, 128], strides = [1, 1]} : vector<8x384xf32> to vector<8x128xf32>
    %464 = vector.extract_strided_slice %462 {offsets = [0, 0], sizes = [8, 128], strides = [1, 1]} : vector<8x384xf32> to vector<8x128xf32>
    %465 = arith.addf %463, %464 : vector<8x128xf32>
    %466 = arith.negf %465 : vector<8x128xf32>
    %467 = math.exp %466 : vector<8x128xf32>
    %cst_148 = arith.constant 1.000000e+00 : f32
    %468 = vector.broadcast %cst_148 : f32 to vector<8x128xf32>
    %469 = arith.addf %468, %467 : vector<8x128xf32>
    %470 = arith.divf %468, %469 : vector<8x128xf32>
    %471 = vector.extract_strided_slice %460 {offsets = [0, 128], sizes = [8, 128], strides = [1, 1]} : vector<8x384xf32> to vector<8x128xf32>
    %472 = vector.extract_strided_slice %462 {offsets = [0, 128], sizes = [8, 128], strides = [1, 1]} : vector<8x384xf32> to vector<8x128xf32>
    %473 = arith.addf %471, %472 : vector<8x128xf32>
    %474 = arith.negf %473 : vector<8x128xf32>
    %475 = math.exp %474 : vector<8x128xf32>
    %cst_149 = arith.constant 1.000000e+00 : f32
    %476 = vector.broadcast %cst_149 : f32 to vector<8x128xf32>
    %477 = arith.addf %476, %475 : vector<8x128xf32>
    %478 = arith.divf %476, %477 : vector<8x128xf32>
    %479 = vector.extract_strided_slice %460 {offsets = [0, 256], sizes = [8, 128], strides = [1, 1]} : vector<8x384xf32> to vector<8x128xf32>
    %480 = vector.extract_strided_slice %462 {offsets = [0, 256], sizes = [8, 128], strides = [1, 1]} : vector<8x384xf32> to vector<8x128xf32>
    %481 = vector.broadcast %272 : vector<1x128xf32> to vector<8x128xf32>
    %482 = arith.addf %480, %481 : vector<8x128xf32>
    %483 = arith.mulf %470, %482 : vector<8x128xf32>
    %484 = arith.addf %479, %483 : vector<8x128xf32>
    %485 = math.tanh %484 : vector<8x128xf32>
    %cst_150 = arith.constant 1.000000e+00 : f32
    %486 = vector.broadcast %cst_150 : f32 to vector<8x128xf32>
    %487 = arith.subf %486, %478 : vector<8x128xf32>
    %488 = arith.mulf %487, %485 : vector<8x128xf32>
    %489 = arith.mulf %478, %459 : vector<8x128xf32>
    %490 = arith.addf %488, %489 : vector<8x128xf32>
    %c56_151 = arith.constant 56 : index
    %c0_152 = arith.constant 0 : index
    %491 = vector.load %arg17[%c56_151, %c0_152] : memref<64x384xf32, #tpu.memory_space<vmem>>, vector<8x384xf32>
    %c0_153 = arith.constant 0 : index
    %c0_154 = arith.constant 0 : index
    %492 = vector.load %arg7[%c0_153, %c0_154] : memref<128x384xf32, #tpu.memory_space<vmem>>, vector<128x384xf32>
    %cst_155 = arith.constant dense<0.000000e+00> : vector<8x384xf32>
    %493 = tpu.matmul %490, %492, %cst_155 {dimension_numbers = #tpu.dot_dimension_numbers<[1], [0], [0], [1], [0, 0, 1, 1], [], []>} : vector<8x128xf32>, vector<128x384xf32>, vector<8x384xf32> -> vector<8x384xf32>
    %494 = vector.extract_strided_slice %491 {offsets = [0, 0], sizes = [8, 128], strides = [1, 1]} : vector<8x384xf32> to vector<8x128xf32>
    %495 = vector.extract_strided_slice %493 {offsets = [0, 0], sizes = [8, 128], strides = [1, 1]} : vector<8x384xf32> to vector<8x128xf32>
    %496 = arith.addf %494, %495 : vector<8x128xf32>
    %497 = arith.negf %496 : vector<8x128xf32>
    %498 = math.exp %497 : vector<8x128xf32>
    %cst_156 = arith.constant 1.000000e+00 : f32
    %499 = vector.broadcast %cst_156 : f32 to vector<8x128xf32>
    %500 = arith.addf %499, %498 : vector<8x128xf32>
    %501 = arith.divf %499, %500 : vector<8x128xf32>
    %502 = vector.extract_strided_slice %491 {offsets = [0, 128], sizes = [8, 128], strides = [1, 1]} : vector<8x384xf32> to vector<8x128xf32>
    %503 = vector.extract_strided_slice %493 {offsets = [0, 128], sizes = [8, 128], strides = [1, 1]} : vector<8x384xf32> to vector<8x128xf32>
    %504 = arith.addf %502, %503 : vector<8x128xf32>
    %505 = arith.negf %504 : vector<8x128xf32>
    %506 = math.exp %505 : vector<8x128xf32>
    %cst_157 = arith.constant 1.000000e+00 : f32
    %507 = vector.broadcast %cst_157 : f32 to vector<8x128xf32>
    %508 = arith.addf %507, %506 : vector<8x128xf32>
    %509 = arith.divf %507, %508 : vector<8x128xf32>
    %510 = vector.extract_strided_slice %491 {offsets = [0, 256], sizes = [8, 128], strides = [1, 1]} : vector<8x384xf32> to vector<8x128xf32>
    %511 = vector.extract_strided_slice %493 {offsets = [0, 256], sizes = [8, 128], strides = [1, 1]} : vector<8x384xf32> to vector<8x128xf32>
    %512 = vector.broadcast %272 : vector<1x128xf32> to vector<8x128xf32>
    %513 = arith.addf %511, %512 : vector<8x128xf32>
    %514 = arith.mulf %501, %513 : vector<8x128xf32>
    %515 = arith.addf %510, %514 : vector<8x128xf32>
    %516 = math.tanh %515 : vector<8x128xf32>
    %cst_158 = arith.constant 1.000000e+00 : f32
    %517 = vector.broadcast %cst_158 : f32 to vector<8x128xf32>
    %518 = arith.subf %517, %509 : vector<8x128xf32>
    %519 = arith.mulf %518, %516 : vector<8x128xf32>
    %520 = arith.mulf %509, %490 : vector<8x128xf32>
    %521 = arith.addf %519, %520 : vector<8x128xf32>
    %c0_159 = arith.constant 0 : index
    %c0_160 = arith.constant 0 : index
    %522 = vector.load %arg1[%c0_159, %c0_160] : memref<8x128xf32, #tpu.memory_space<vmem>>, vector<8x128xf32>
    %523 = tpu.concatenate %522, %263 in 1 : vector<8x128xf32>, vector<8x128xf32> -> vector<8x256xf32>
    %c0_161 = arith.constant 0 : index
    %c0_162 = arith.constant 0 : index
    %524 = vector.load %arg10[%c0_161, %c0_162] : memref<256x512xf32, #tpu.memory_space<vmem>>, vector<256x512xf32>
    %cst_163 = arith.constant dense<0.000000e+00> : vector<8x512xf32>
    %525 = tpu.matmul %523, %524, %cst_163 {dimension_numbers = #tpu.dot_dimension_numbers<[1], [0], [0], [1], [0, 0, 1, 1], [], []>} : vector<8x256xf32>, vector<256x512xf32>, vector<8x512xf32> -> vector<8x512xf32>
    %c0_164 = arith.constant 0 : index
    %c0_165 = arith.constant 0 : index
    %526 = vector.load %arg11[%c0_164, %c0_165] : memref<1x512xf32, #tpu.memory_space<vmem>>, vector<1x512xf32>
    %527 = vector.broadcast %526 : vector<1x512xf32> to vector<8x512xf32>
    %528 = arith.addf %525, %527 : vector<8x512xf32>
    %529 = vector.extract_strided_slice %528 {offsets = [0, 0], sizes = [8, 128], strides = [1, 1]} : vector<8x512xf32> to vector<8x128xf32>
    %530 = arith.negf %529 : vector<8x128xf32>
    %531 = math.exp %530 : vector<8x128xf32>
    %cst_166 = arith.constant 1.000000e+00 : f32
    %532 = vector.broadcast %cst_166 : f32 to vector<8x128xf32>
    %533 = arith.addf %532, %531 : vector<8x128xf32>
    %534 = arith.divf %532, %533 : vector<8x128xf32>
    %535 = vector.extract_strided_slice %528 {offsets = [0, 128], sizes = [8, 128], strides = [1, 1]} : vector<8x512xf32> to vector<8x128xf32>
    %536 = arith.negf %535 : vector<8x128xf32>
    %537 = math.exp %536 : vector<8x128xf32>
    %cst_167 = arith.constant 1.000000e+00 : f32
    %538 = vector.broadcast %cst_167 : f32 to vector<8x128xf32>
    %539 = arith.addf %538, %537 : vector<8x128xf32>
    %540 = arith.divf %538, %539 : vector<8x128xf32>
    %541 = vector.extract_strided_slice %528 {offsets = [0, 256], sizes = [8, 128], strides = [1, 1]} : vector<8x512xf32> to vector<8x128xf32>
    %542 = vector.extract_strided_slice %528 {offsets = [0, 384], sizes = [8, 128], strides = [1, 1]} : vector<8x512xf32> to vector<8x128xf32>
    %543 = arith.mulf %534, %542 : vector<8x128xf32>
    %544 = arith.addf %541, %543 : vector<8x128xf32>
    %545 = math.tanh %544 : vector<8x128xf32>
    %cst_168 = arith.constant 1.000000e+00 : f32
    %546 = vector.broadcast %cst_168 : f32 to vector<8x128xf32>
    %547 = arith.subf %546, %540 : vector<8x128xf32>
    %548 = arith.mulf %547, %545 : vector<8x128xf32>
    %549 = arith.mulf %540, %263 : vector<8x128xf32>
    %550 = arith.addf %548, %549 : vector<8x128xf32>
    %551 = tpu.concatenate %550, %521 in 1 : vector<8x128xf32>, vector<8x128xf32> -> vector<8x256xf32>
    %c0_169 = arith.constant 0 : index
    %c0_170 = arith.constant 0 : index
    %552 = vector.load %arg12[%c0_169, %c0_170] : memref<256x512xf32, #tpu.memory_space<vmem>>, vector<256x512xf32>
    %cst_171 = arith.constant dense<0.000000e+00> : vector<8x512xf32>
    %553 = tpu.matmul %551, %552, %cst_171 {dimension_numbers = #tpu.dot_dimension_numbers<[1], [0], [0], [1], [0, 0, 1, 1], [], []>} : vector<8x256xf32>, vector<256x512xf32>, vector<8x512xf32> -> vector<8x512xf32>
    %c0_172 = arith.constant 0 : index
    %c0_173 = arith.constant 0 : index
    %554 = vector.load %arg13[%c0_172, %c0_173] : memref<1x512xf32, #tpu.memory_space<vmem>>, vector<1x512xf32>
    %555 = vector.broadcast %554 : vector<1x512xf32> to vector<8x512xf32>
    %556 = arith.addf %553, %555 : vector<8x512xf32>
    %557 = vector.extract_strided_slice %556 {offsets = [0, 0], sizes = [8, 128], strides = [1, 1]} : vector<8x512xf32> to vector<8x128xf32>
    %558 = arith.negf %557 : vector<8x128xf32>
    %559 = math.exp %558 : vector<8x128xf32>
    %cst_174 = arith.constant 1.000000e+00 : f32
    %560 = vector.broadcast %cst_174 : f32 to vector<8x128xf32>
    %561 = arith.addf %560, %559 : vector<8x128xf32>
    %562 = arith.divf %560, %561 : vector<8x128xf32>
    %563 = vector.extract_strided_slice %556 {offsets = [0, 128], sizes = [8, 128], strides = [1, 1]} : vector<8x512xf32> to vector<8x128xf32>
    %564 = arith.negf %563 : vector<8x128xf32>
    %565 = math.exp %564 : vector<8x128xf32>
    %cst_175 = arith.constant 1.000000e+00 : f32
    %566 = vector.broadcast %cst_175 : f32 to vector<8x128xf32>
    %567 = arith.addf %566, %565 : vector<8x128xf32>
    %568 = arith.divf %566, %567 : vector<8x128xf32>
    %569 = vector.extract_strided_slice %556 {offsets = [0, 256], sizes = [8, 128], strides = [1, 1]} : vector<8x512xf32> to vector<8x128xf32>
    %570 = vector.extract_strided_slice %556 {offsets = [0, 384], sizes = [8, 128], strides = [1, 1]} : vector<8x512xf32> to vector<8x128xf32>
    %571 = arith.mulf %562, %570 : vector<8x128xf32>
    %572 = arith.addf %569, %571 : vector<8x128xf32>
    %573 = math.tanh %572 : vector<8x128xf32>
    %cst_176 = arith.constant 1.000000e+00 : f32
    %574 = vector.broadcast %cst_176 : f32 to vector<8x128xf32>
    %575 = arith.subf %574, %568 : vector<8x128xf32>
    %576 = arith.mulf %575, %573 : vector<8x128xf32>
    %577 = arith.mulf %568, %521 : vector<8x128xf32>
    %578 = arith.addf %576, %577 : vector<8x128xf32>
    %c0_177 = arith.constant 0 : index
    %c0_178 = arith.constant 0 : index
    %579 = vector.load %arg14[%c0_177, %c0_178] : memref<128x128xf32, #tpu.memory_space<vmem>>, vector<128x128xf32>
    %cst_179 = arith.constant dense<0.000000e+00> : vector<8x128xf32>
    %580 = tpu.matmul %578, %579, %cst_179 {dimension_numbers = #tpu.dot_dimension_numbers<[1], [0], [0], [1], [0, 0, 1, 1], [], []>} : vector<8x128xf32>, vector<128x128xf32>, vector<8x128xf32> -> vector<8x128xf32>
    %c0_180 = arith.constant 0 : index
    %c0_181 = arith.constant 0 : index
    %581 = vector.load %arg15[%c0_180, %c0_181] : memref<1x128xf32, #tpu.memory_space<vmem>>, vector<1x128xf32>
    %582 = vector.broadcast %581 : vector<1x128xf32> to vector<8x128xf32>
    %583 = arith.addf %580, %582 : vector<8x128xf32>
    %584 = arith.addf %583, %522 : vector<8x128xf32>
    %c0_182 = arith.constant 0 : index
    %c0_183 = arith.constant 0 : index
    %c0_184 = arith.constant 0 : index
    %585 = vector.load %arg16[%c0_182, %c0_183, %c0_184] : memref<5x8x128xf32, #tpu.memory_space<vmem>>, vector<1x8x128xf32>
    %586 = vector.shape_cast %585 : vector<1x8x128xf32> to vector<8x128xf32>
    %587 = vector.shape_cast %584 : vector<8x128xf32> to vector<1x8x128xf32>
    tpu.vector_store %arg16[%c0_182, %c0_183, %c0_184], %587 {strides = array<i32>} : memref<5x8x128xf32, #tpu.memory_space<vmem>>, vector<1x8x128xf32>,
    %588 = tpu.concatenate %584, %550 in 1 : vector<8x128xf32>, vector<8x128xf32> -> vector<8x256xf32>
    %c0_185 = arith.constant 0 : index
    %c0_186 = arith.constant 0 : index
    %589 = vector.load %arg10[%c0_185, %c0_186] : memref<256x512xf32, #tpu.memory_space<vmem>>, vector<256x512xf32>
    %cst_187 = arith.constant dense<0.000000e+00> : vector<8x512xf32>
    %590 = tpu.matmul %588, %589, %cst_187 {dimension_numbers = #tpu.dot_dimension_numbers<[1], [0], [0], [1], [0, 0, 1, 1], [], []>} : vector<8x256xf32>, vector<256x512xf32>, vector<8x512xf32> -> vector<8x512xf32>
    %c0_188 = arith.constant 0 : index
    %c0_189 = arith.constant 0 : index
    %591 = vector.load %arg11[%c0_188, %c0_189] : memref<1x512xf32, #tpu.memory_space<vmem>>, vector<1x512xf32>
    %592 = vector.broadcast %591 : vector<1x512xf32> to vector<8x512xf32>
    %593 = arith.addf %590, %592 : vector<8x512xf32>
    %594 = vector.extract_strided_slice %593 {offsets = [0, 0], sizes = [8, 128], strides = [1, 1]} : vector<8x512xf32> to vector<8x128xf32>
    %595 = arith.negf %594 : vector<8x128xf32>
    %596 = math.exp %595 : vector<8x128xf32>
    %cst_190 = arith.constant 1.000000e+00 : f32
    %597 = vector.broadcast %cst_190 : f32 to vector<8x128xf32>
    %598 = arith.addf %597, %596 : vector<8x128xf32>
    %599 = arith.divf %597, %598 : vector<8x128xf32>
    %600 = vector.extract_strided_slice %593 {offsets = [0, 128], sizes = [8, 128], strides = [1, 1]} : vector<8x512xf32> to vector<8x128xf32>
    %601 = arith.negf %600 : vector<8x128xf32>
    %602 = math.exp %601 : vector<8x128xf32>
    %cst_191 = arith.constant 1.000000e+00 : f32
    %603 = vector.broadcast %cst_191 : f32 to vector<8x128xf32>
    %604 = arith.addf %603, %602 : vector<8x128xf32>
    %605 = arith.divf %603, %604 : vector<8x128xf32>
    %606 = vector.extract_strided_slice %593 {offsets = [0, 256], sizes = [8, 128], strides = [1, 1]} : vector<8x512xf32> to vector<8x128xf32>
    %607 = vector.extract_strided_slice %593 {offsets = [0, 384], sizes = [8, 128], strides = [1, 1]} : vector<8x512xf32> to vector<8x128xf32>
    %608 = arith.mulf %599, %607 : vector<8x128xf32>
    %609 = arith.addf %606, %608 : vector<8x128xf32>
    %610 = math.tanh %609 : vector<8x128xf32>
    %cst_192 = arith.constant 1.000000e+00 : f32
    %611 = vector.broadcast %cst_192 : f32 to vector<8x128xf32>
    %612 = arith.subf %611, %605 : vector<8x128xf32>
    %613 = arith.mulf %612, %610 : vector<8x128xf32>
    %614 = arith.mulf %605, %550 : vector<8x128xf32>
    %615 = arith.addf %613, %614 : vector<8x128xf32>
    %616 = tpu.concatenate %615, %578 in 1 : vector<8x128xf32>, vector<8x128xf32> -> vector<8x256xf32>
    %c0_193 = arith.constant 0 : index
    %c0_194 = arith.constant 0 : index
    %617 = vector.load %arg12[%c0_193, %c0_194] : memref<256x512xf32, #tpu.memory_space<vmem>>, vector<256x512xf32>
    %cst_195 = arith.constant dense<0.000000e+00> : vector<8x512xf32>
    %618 = tpu.matmul %616, %617, %cst_195 {dimension_numbers = #tpu.dot_dimension_numbers<[1], [0], [0], [1], [0, 0, 1, 1], [], []>} : vector<8x256xf32>, vector<256x512xf32>, vector<8x512xf32> -> vector<8x512xf32>
    %c0_196 = arith.constant 0 : index
    %c0_197 = arith.constant 0 : index
    %619 = vector.load %arg13[%c0_196, %c0_197] : memref<1x512xf32, #tpu.memory_space<vmem>>, vector<1x512xf32>
    %620 = vector.broadcast %619 : vector<1x512xf32> to vector<8x512xf32>
    %621 = arith.addf %618, %620 : vector<8x512xf32>
    %622 = vector.extract_strided_slice %621 {offsets = [0, 0], sizes = [8, 128], strides = [1, 1]} : vector<8x512xf32> to vector<8x128xf32>
    %623 = arith.negf %622 : vector<8x128xf32>
    %624 = math.exp %623 : vector<8x128xf32>
    %cst_198 = arith.constant 1.000000e+00 : f32
    %625 = vector.broadcast %cst_198 : f32 to vector<8x128xf32>
    %626 = arith.addf %625, %624 : vector<8x128xf32>
    %627 = arith.divf %625, %626 : vector<8x128xf32>
    %628 = vector.extract_strided_slice %621 {offsets = [0, 128], sizes = [8, 128], strides = [1, 1]} : vector<8x512xf32> to vector<8x128xf32>
    %629 = arith.negf %628 : vector<8x128xf32>
    %630 = math.exp %629 : vector<8x128xf32>
    %cst_199 = arith.constant 1.000000e+00 : f32
    %631 = vector.broadcast %cst_199 : f32 to vector<8x128xf32>
    %632 = arith.addf %631, %630 : vector<8x128xf32>
    %633 = arith.divf %631, %632 : vector<8x128xf32>
    %634 = vector.extract_strided_slice %621 {offsets = [0, 256], sizes = [8, 128], strides = [1, 1]} : vector<8x512xf32> to vector<8x128xf32>
    %635 = vector.extract_strided_slice %621 {offsets = [0, 384], sizes = [8, 128], strides = [1, 1]} : vector<8x512xf32> to vector<8x128xf32>
    %636 = arith.mulf %627, %635 : vector<8x128xf32>
    %637 = arith.addf %634, %636 : vector<8x128xf32>
    %638 = math.tanh %637 : vector<8x128xf32>
    %cst_200 = arith.constant 1.000000e+00 : f32
    %639 = vector.broadcast %cst_200 : f32 to vector<8x128xf32>
    %640 = arith.subf %639, %633 : vector<8x128xf32>
    %641 = arith.mulf %640, %638 : vector<8x128xf32>
    %642 = arith.mulf %633, %578 : vector<8x128xf32>
    %643 = arith.addf %641, %642 : vector<8x128xf32>
    %c0_201 = arith.constant 0 : index
    %c0_202 = arith.constant 0 : index
    %644 = vector.load %arg14[%c0_201, %c0_202] : memref<128x128xf32, #tpu.memory_space<vmem>>, vector<128x128xf32>
    %cst_203 = arith.constant dense<0.000000e+00> : vector<8x128xf32>
    %645 = tpu.matmul %643, %644, %cst_203 {dimension_numbers = #tpu.dot_dimension_numbers<[1], [0], [0], [1], [0, 0, 1, 1], [], []>} : vector<8x128xf32>, vector<128x128xf32>, vector<8x128xf32> -> vector<8x128xf32>
    %c0_204 = arith.constant 0 : index
    %c0_205 = arith.constant 0 : index
    %646 = vector.load %arg15[%c0_204, %c0_205] : memref<1x128xf32, #tpu.memory_space<vmem>>, vector<1x128xf32>
    %647 = vector.broadcast %646 : vector<1x128xf32> to vector<8x128xf32>
    %648 = arith.addf %645, %647 : vector<8x128xf32>
    %649 = arith.addf %648, %584 : vector<8x128xf32>
    %c1 = arith.constant 1 : index
    %c0_206 = arith.constant 0 : index
    %c0_207 = arith.constant 0 : index
    %650 = vector.load %arg16[%c1, %c0_206, %c0_207] : memref<5x8x128xf32, #tpu.memory_space<vmem>>, vector<1x8x128xf32>
    %651 = vector.shape_cast %650 : vector<1x8x128xf32> to vector<8x128xf32>
    %652 = vector.shape_cast %649 : vector<8x128xf32> to vector<1x8x128xf32>
    tpu.vector_store %arg16[%c1, %c0_206, %c0_207], %652 {strides = array<i32>} : memref<5x8x128xf32, #tpu.memory_space<vmem>>, vector<1x8x128xf32>,
    %653 = tpu.concatenate %649, %615 in 1 : vector<8x128xf32>, vector<8x128xf32> -> vector<8x256xf32>
    %c0_208 = arith.constant 0 : index
    %c0_209 = arith.constant 0 : index
    %654 = vector.load %arg10[%c0_208, %c0_209] : memref<256x512xf32, #tpu.memory_space<vmem>>, vector<256x512xf32>
    %cst_210 = arith.constant dense<0.000000e+00> : vector<8x512xf32>
    %655 = tpu.matmul %653, %654, %cst_210 {dimension_numbers = #tpu.dot_dimension_numbers<[1], [0], [0], [1], [0, 0, 1, 1], [], []>} : vector<8x256xf32>, vector<256x512xf32>, vector<8x512xf32> -> vector<8x512xf32>
    %c0_211 = arith.constant 0 : index
    %c0_212 = arith.constant 0 : index
    %656 = vector.load %arg11[%c0_211, %c0_212] : memref<1x512xf32, #tpu.memory_space<vmem>>, vector<1x512xf32>
    %657 = vector.broadcast %656 : vector<1x512xf32> to vector<8x512xf32>
    %658 = arith.addf %655, %657 : vector<8x512xf32>
    %659 = vector.extract_strided_slice %658 {offsets = [0, 0], sizes = [8, 128], strides = [1, 1]} : vector<8x512xf32> to vector<8x128xf32>
    %660 = arith.negf %659 : vector<8x128xf32>
    %661 = math.exp %660 : vector<8x128xf32>
    %cst_213 = arith.constant 1.000000e+00 : f32
    %662 = vector.broadcast %cst_213 : f32 to vector<8x128xf32>
    %663 = arith.addf %662, %661 : vector<8x128xf32>
    %664 = arith.divf %662, %663 : vector<8x128xf32>
    %665 = vector.extract_strided_slice %658 {offsets = [0, 128], sizes = [8, 128], strides = [1, 1]} : vector<8x512xf32> to vector<8x128xf32>
    %666 = arith.negf %665 : vector<8x128xf32>
    %667 = math.exp %666 : vector<8x128xf32>
    %cst_214 = arith.constant 1.000000e+00 : f32
    %668 = vector.broadcast %cst_214 : f32 to vector<8x128xf32>
    %669 = arith.addf %668, %667 : vector<8x128xf32>
    %670 = arith.divf %668, %669 : vector<8x128xf32>
    %671 = vector.extract_strided_slice %658 {offsets = [0, 256], sizes = [8, 128], strides = [1, 1]} : vector<8x512xf32> to vector<8x128xf32>
    %672 = vector.extract_strided_slice %658 {offsets = [0, 384], sizes = [8, 128], strides = [1, 1]} : vector<8x512xf32> to vector<8x128xf32>
    %673 = arith.mulf %664, %672 : vector<8x128xf32>
    %674 = arith.addf %671, %673 : vector<8x128xf32>
    %675 = math.tanh %674 : vector<8x128xf32>
    %cst_215 = arith.constant 1.000000e+00 : f32
    %676 = vector.broadcast %cst_215 : f32 to vector<8x128xf32>
    %677 = arith.subf %676, %670 : vector<8x128xf32>
    %678 = arith.mulf %677, %675 : vector<8x128xf32>
    %679 = arith.mulf %670, %615 : vector<8x128xf32>
    %680 = arith.addf %678, %679 : vector<8x128xf32>
    %681 = tpu.concatenate %680, %643 in 1 : vector<8x128xf32>, vector<8x128xf32> -> vector<8x256xf32>
    %c0_216 = arith.constant 0 : index
    %c0_217 = arith.constant 0 : index
    %682 = vector.load %arg12[%c0_216, %c0_217] : memref<256x512xf32, #tpu.memory_space<vmem>>, vector<256x512xf32>
    %cst_218 = arith.constant dense<0.000000e+00> : vector<8x512xf32>
    %683 = tpu.matmul %681, %682, %cst_218 {dimension_numbers = #tpu.dot_dimension_numbers<[1], [0], [0], [1], [0, 0, 1, 1], [], []>} : vector<8x256xf32>, vector<256x512xf32>, vector<8x512xf32> -> vector<8x512xf32>
    %c0_219 = arith.constant 0 : index
    %c0_220 = arith.constant 0 : index
    %684 = vector.load %arg13[%c0_219, %c0_220] : memref<1x512xf32, #tpu.memory_space<vmem>>, vector<1x512xf32>
    %685 = vector.broadcast %684 : vector<1x512xf32> to vector<8x512xf32>
    %686 = arith.addf %683, %685 : vector<8x512xf32>
    %687 = vector.extract_strided_slice %686 {offsets = [0, 0], sizes = [8, 128], strides = [1, 1]} : vector<8x512xf32> to vector<8x128xf32>
    %688 = arith.negf %687 : vector<8x128xf32>
    %689 = math.exp %688 : vector<8x128xf32>
    %cst_221 = arith.constant 1.000000e+00 : f32
    %690 = vector.broadcast %cst_221 : f32 to vector<8x128xf32>
    %691 = arith.addf %690, %689 : vector<8x128xf32>
    %692 = arith.divf %690, %691 : vector<8x128xf32>
    %693 = vector.extract_strided_slice %686 {offsets = [0, 128], sizes = [8, 128], strides = [1, 1]} : vector<8x512xf32> to vector<8x128xf32>
    %694 = arith.negf %693 : vector<8x128xf32>
    %695 = math.exp %694 : vector<8x128xf32>
    %cst_222 = arith.constant 1.000000e+00 : f32
    %696 = vector.broadcast %cst_222 : f32 to vector<8x128xf32>
    %697 = arith.addf %696, %695 : vector<8x128xf32>
    %698 = arith.divf %696, %697 : vector<8x128xf32>
    %699 = vector.extract_strided_slice %686 {offsets = [0, 256], sizes = [8, 128], strides = [1, 1]} : vector<8x512xf32> to vector<8x128xf32>
    %700 = vector.extract_strided_slice %686 {offsets = [0, 384], sizes = [8, 128], strides = [1, 1]} : vector<8x512xf32> to vector<8x128xf32>
    %701 = arith.mulf %692, %700 : vector<8x128xf32>
    %702 = arith.addf %699, %701 : vector<8x128xf32>
    %703 = math.tanh %702 : vector<8x128xf32>
    %cst_223 = arith.constant 1.000000e+00 : f32
    %704 = vector.broadcast %cst_223 : f32 to vector<8x128xf32>
    %705 = arith.subf %704, %698 : vector<8x128xf32>
    %706 = arith.mulf %705, %703 : vector<8x128xf32>
    %707 = arith.mulf %698, %643 : vector<8x128xf32>
    %708 = arith.addf %706, %707 : vector<8x128xf32>
    %c0_224 = arith.constant 0 : index
    %c0_225 = arith.constant 0 : index
    %709 = vector.load %arg14[%c0_224, %c0_225] : memref<128x128xf32, #tpu.memory_space<vmem>>, vector<128x128xf32>
    %cst_226 = arith.constant dense<0.000000e+00> : vector<8x128xf32>
    %710 = tpu.matmul %708, %709, %cst_226 {dimension_numbers = #tpu.dot_dimension_numbers<[1], [0], [0], [1], [0, 0, 1, 1], [], []>} : vector<8x128xf32>, vector<128x128xf32>, vector<8x128xf32> -> vector<8x128xf32>
    %c0_227 = arith.constant 0 : index
    %c0_228 = arith.constant 0 : index
    %711 = vector.load %arg15[%c0_227, %c0_228] : memref<1x128xf32, #tpu.memory_space<vmem>>, vector<1x128xf32>
    %712 = vector.broadcast %711 : vector<1x128xf32> to vector<8x128xf32>
    %713 = arith.addf %710, %712 : vector<8x128xf32>
    %714 = arith.addf %713, %649 : vector<8x128xf32>
    %c2 = arith.constant 2 : index
    %c0_229 = arith.constant 0 : index
    %c0_230 = arith.constant 0 : index
    %715 = vector.load %arg16[%c2, %c0_229, %c0_230] : memref<5x8x128xf32, #tpu.memory_space<vmem>>, vector<1x8x128xf32>
    %716 = vector.shape_cast %715 : vector<1x8x128xf32> to vector<8x128xf32>
    %717 = vector.shape_cast %714 : vector<8x128xf32> to vector<1x8x128xf32>
    tpu.vector_store %arg16[%c2, %c0_229, %c0_230], %717 {strides = array<i32>} : memref<5x8x128xf32, #tpu.memory_space<vmem>>, vector<1x8x128xf32>,
    %718 = tpu.concatenate %714, %680 in 1 : vector<8x128xf32>, vector<8x128xf32> -> vector<8x256xf32>
    %c0_231 = arith.constant 0 : index
    %c0_232 = arith.constant 0 : index
    %719 = vector.load %arg10[%c0_231, %c0_232] : memref<256x512xf32, #tpu.memory_space<vmem>>, vector<256x512xf32>
    %cst_233 = arith.constant dense<0.000000e+00> : vector<8x512xf32>
    %720 = tpu.matmul %718, %719, %cst_233 {dimension_numbers = #tpu.dot_dimension_numbers<[1], [0], [0], [1], [0, 0, 1, 1], [], []>} : vector<8x256xf32>, vector<256x512xf32>, vector<8x512xf32> -> vector<8x512xf32>
    %c0_234 = arith.constant 0 : index
    %c0_235 = arith.constant 0 : index
    %721 = vector.load %arg11[%c0_234, %c0_235] : memref<1x512xf32, #tpu.memory_space<vmem>>, vector<1x512xf32>
    %722 = vector.broadcast %721 : vector<1x512xf32> to vector<8x512xf32>
    %723 = arith.addf %720, %722 : vector<8x512xf32>
    %724 = vector.extract_strided_slice %723 {offsets = [0, 0], sizes = [8, 128], strides = [1, 1]} : vector<8x512xf32> to vector<8x128xf32>
    %725 = arith.negf %724 : vector<8x128xf32>
    %726 = math.exp %725 : vector<8x128xf32>
    %cst_236 = arith.constant 1.000000e+00 : f32
    %727 = vector.broadcast %cst_236 : f32 to vector<8x128xf32>
    %728 = arith.addf %727, %726 : vector<8x128xf32>
    %729 = arith.divf %727, %728 : vector<8x128xf32>
    %730 = vector.extract_strided_slice %723 {offsets = [0, 128], sizes = [8, 128], strides = [1, 1]} : vector<8x512xf32> to vector<8x128xf32>
    %731 = arith.negf %730 : vector<8x128xf32>
    %732 = math.exp %731 : vector<8x128xf32>
    %cst_237 = arith.constant 1.000000e+00 : f32
    %733 = vector.broadcast %cst_237 : f32 to vector<8x128xf32>
    %734 = arith.addf %733, %732 : vector<8x128xf32>
    %735 = arith.divf %733, %734 : vector<8x128xf32>
    %736 = vector.extract_strided_slice %723 {offsets = [0, 256], sizes = [8, 128], strides = [1, 1]} : vector<8x512xf32> to vector<8x128xf32>
    %737 = vector.extract_strided_slice %723 {offsets = [0, 384], sizes = [8, 128], strides = [1, 1]} : vector<8x512xf32> to vector<8x128xf32>
    %738 = arith.mulf %729, %737 : vector<8x128xf32>
    %739 = arith.addf %736, %738 : vector<8x128xf32>
    %740 = math.tanh %739 : vector<8x128xf32>
    %cst_238 = arith.constant 1.000000e+00 : f32
    %741 = vector.broadcast %cst_238 : f32 to vector<8x128xf32>
    %742 = arith.subf %741, %735 : vector<8x128xf32>
    %743 = arith.mulf %742, %740 : vector<8x128xf32>
    %744 = arith.mulf %735, %680 : vector<8x128xf32>
    %745 = arith.addf %743, %744 : vector<8x128xf32>
    %746 = tpu.concatenate %745, %708 in 1 : vector<8x128xf32>, vector<8x128xf32> -> vector<8x256xf32>
    %c0_239 = arith.constant 0 : index
    %c0_240 = arith.constant 0 : index
    %747 = vector.load %arg12[%c0_239, %c0_240] : memref<256x512xf32, #tpu.memory_space<vmem>>, vector<256x512xf32>
    %cst_241 = arith.constant dense<0.000000e+00> : vector<8x512xf32>
    %748 = tpu.matmul %746, %747, %cst_241 {dimension_numbers = #tpu.dot_dimension_numbers<[1], [0], [0], [1], [0, 0, 1, 1], [], []>} : vector<8x256xf32>, vector<256x512xf32>, vector<8x512xf32> -> vector<8x512xf32>
    %c0_242 = arith.constant 0 : index
    %c0_243 = arith.constant 0 : index
    %749 = vector.load %arg13[%c0_242, %c0_243] : memref<1x512xf32, #tpu.memory_space<vmem>>, vector<1x512xf32>
    %750 = vector.broadcast %749 : vector<1x512xf32> to vector<8x512xf32>
    %751 = arith.addf %748, %750 : vector<8x512xf32>
    %752 = vector.extract_strided_slice %751 {offsets = [0, 0], sizes = [8, 128], strides = [1, 1]} : vector<8x512xf32> to vector<8x128xf32>
    %753 = arith.negf %752 : vector<8x128xf32>
    %754 = math.exp %753 : vector<8x128xf32>
    %cst_244 = arith.constant 1.000000e+00 : f32
    %755 = vector.broadcast %cst_244 : f32 to vector<8x128xf32>
    %756 = arith.addf %755, %754 : vector<8x128xf32>
    %757 = arith.divf %755, %756 : vector<8x128xf32>
    %758 = vector.extract_strided_slice %751 {offsets = [0, 128], sizes = [8, 128], strides = [1, 1]} : vector<8x512xf32> to vector<8x128xf32>
    %759 = arith.negf %758 : vector<8x128xf32>
    %760 = math.exp %759 : vector<8x128xf32>
    %cst_245 = arith.constant 1.000000e+00 : f32
    %761 = vector.broadcast %cst_245 : f32 to vector<8x128xf32>
    %762 = arith.addf %761, %760 : vector<8x128xf32>
    %763 = arith.divf %761, %762 : vector<8x128xf32>
    %764 = vector.extract_strided_slice %751 {offsets = [0, 256], sizes = [8, 128], strides = [1, 1]} : vector<8x512xf32> to vector<8x128xf32>
    %765 = vector.extract_strided_slice %751 {offsets = [0, 384], sizes = [8, 128], strides = [1, 1]} : vector<8x512xf32> to vector<8x128xf32>
    %766 = arith.mulf %757, %765 : vector<8x128xf32>
    %767 = arith.addf %764, %766 : vector<8x128xf32>
    %768 = math.tanh %767 : vector<8x128xf32>
    %cst_246 = arith.constant 1.000000e+00 : f32
    %769 = vector.broadcast %cst_246 : f32 to vector<8x128xf32>
    %770 = arith.subf %769, %763 : vector<8x128xf32>
    %771 = arith.mulf %770, %768 : vector<8x128xf32>
    %772 = arith.mulf %763, %708 : vector<8x128xf32>
    %773 = arith.addf %771, %772 : vector<8x128xf32>
    %c0_247 = arith.constant 0 : index
    %c0_248 = arith.constant 0 : index
    %774 = vector.load %arg14[%c0_247, %c0_248] : memref<128x128xf32, #tpu.memory_space<vmem>>, vector<128x128xf32>
    %cst_249 = arith.constant dense<0.000000e+00> : vector<8x128xf32>
    %775 = tpu.matmul %773, %774, %cst_249 {dimension_numbers = #tpu.dot_dimension_numbers<[1], [0], [0], [1], [0, 0, 1, 1], [], []>} : vector<8x128xf32>, vector<128x128xf32>, vector<8x128xf32> -> vector<8x128xf32>
    %c0_250 = arith.constant 0 : index
    %c0_251 = arith.constant 0 : index
    %776 = vector.load %arg15[%c0_250, %c0_251] : memref<1x128xf32, #tpu.memory_space<vmem>>, vector<1x128xf32>
    %777 = vector.broadcast %776 : vector<1x128xf32> to vector<8x128xf32>
    %778 = arith.addf %775, %777 : vector<8x128xf32>
    %779 = arith.addf %778, %714 : vector<8x128xf32>
    %c3 = arith.constant 3 : index
    %c0_252 = arith.constant 0 : index
    %c0_253 = arith.constant 0 : index
    %780 = vector.load %arg16[%c3, %c0_252, %c0_253] : memref<5x8x128xf32, #tpu.memory_space<vmem>>, vector<1x8x128xf32>
    %781 = vector.shape_cast %780 : vector<1x8x128xf32> to vector<8x128xf32>
    %782 = vector.shape_cast %779 : vector<8x128xf32> to vector<1x8x128xf32>
    tpu.vector_store %arg16[%c3, %c0_252, %c0_253], %782 {strides = array<i32>} : memref<5x8x128xf32, #tpu.memory_space<vmem>>, vector<1x8x128xf32>,
    %783 = tpu.concatenate %779, %745 in 1 : vector<8x128xf32>, vector<8x128xf32> -> vector<8x256xf32>
    %c0_254 = arith.constant 0 : index
    %c0_255 = arith.constant 0 : index
    %784 = vector.load %arg10[%c0_254, %c0_255] : memref<256x512xf32, #tpu.memory_space<vmem>>, vector<256x512xf32>
    %cst_256 = arith.constant dense<0.000000e+00> : vector<8x512xf32>
    %785 = tpu.matmul %783, %784, %cst_256 {dimension_numbers = #tpu.dot_dimension_numbers<[1], [0], [0], [1], [0, 0, 1, 1], [], []>} : vector<8x256xf32>, vector<256x512xf32>, vector<8x512xf32> -> vector<8x512xf32>
    %c0_257 = arith.constant 0 : index
    %c0_258 = arith.constant 0 : index
    %786 = vector.load %arg11[%c0_257, %c0_258] : memref<1x512xf32, #tpu.memory_space<vmem>>, vector<1x512xf32>
    %787 = vector.broadcast %786 : vector<1x512xf32> to vector<8x512xf32>
    %788 = arith.addf %785, %787 : vector<8x512xf32>
    %789 = vector.extract_strided_slice %788 {offsets = [0, 0], sizes = [8, 128], strides = [1, 1]} : vector<8x512xf32> to vector<8x128xf32>
    %790 = arith.negf %789 : vector<8x128xf32>
    %791 = math.exp %790 : vector<8x128xf32>
    %cst_259 = arith.constant 1.000000e+00 : f32
    %792 = vector.broadcast %cst_259 : f32 to vector<8x128xf32>
    %793 = arith.addf %792, %791 : vector<8x128xf32>
    %794 = arith.divf %792, %793 : vector<8x128xf32>
    %795 = vector.extract_strided_slice %788 {offsets = [0, 128], sizes = [8, 128], strides = [1, 1]} : vector<8x512xf32> to vector<8x128xf32>
    %796 = arith.negf %795 : vector<8x128xf32>
    %797 = math.exp %796 : vector<8x128xf32>
    %cst_260 = arith.constant 1.000000e+00 : f32
    %798 = vector.broadcast %cst_260 : f32 to vector<8x128xf32>
    %799 = arith.addf %798, %797 : vector<8x128xf32>
    %800 = arith.divf %798, %799 : vector<8x128xf32>
    %801 = vector.extract_strided_slice %788 {offsets = [0, 256], sizes = [8, 128], strides = [1, 1]} : vector<8x512xf32> to vector<8x128xf32>
    %802 = vector.extract_strided_slice %788 {offsets = [0, 384], sizes = [8, 128], strides = [1, 1]} : vector<8x512xf32> to vector<8x128xf32>
    %803 = arith.mulf %794, %802 : vector<8x128xf32>
    %804 = arith.addf %801, %803 : vector<8x128xf32>
    %805 = math.tanh %804 : vector<8x128xf32>
    %cst_261 = arith.constant 1.000000e+00 : f32
    %806 = vector.broadcast %cst_261 : f32 to vector<8x128xf32>
    %807 = arith.subf %806, %800 : vector<8x128xf32>
    %808 = arith.mulf %807, %805 : vector<8x128xf32>
    %809 = arith.mulf %800, %745 : vector<8x128xf32>
    %810 = arith.addf %808, %809 : vector<8x128xf32>
    %811 = tpu.concatenate %810, %773 in 1 : vector<8x128xf32>, vector<8x128xf32> -> vector<8x256xf32>
    %c0_262 = arith.constant 0 : index
    %c0_263 = arith.constant 0 : index
    %812 = vector.load %arg12[%c0_262, %c0_263] : memref<256x512xf32, #tpu.memory_space<vmem>>, vector<256x512xf32>
    %cst_264 = arith.constant dense<0.000000e+00> : vector<8x512xf32>
    %813 = tpu.matmul %811, %812, %cst_264 {dimension_numbers = #tpu.dot_dimension_numbers<[1], [0], [0], [1], [0, 0, 1, 1], [], []>} : vector<8x256xf32>, vector<256x512xf32>, vector<8x512xf32> -> vector<8x512xf32>
    %c0_265 = arith.constant 0 : index
    %c0_266 = arith.constant 0 : index
    %814 = vector.load %arg13[%c0_265, %c0_266] : memref<1x512xf32, #tpu.memory_space<vmem>>, vector<1x512xf32>
    %815 = vector.broadcast %814 : vector<1x512xf32> to vector<8x512xf32>
    %816 = arith.addf %813, %815 : vector<8x512xf32>
    %817 = vector.extract_strided_slice %816 {offsets = [0, 0], sizes = [8, 128], strides = [1, 1]} : vector<8x512xf32> to vector<8x128xf32>
    %818 = arith.negf %817 : vector<8x128xf32>
    %819 = math.exp %818 : vector<8x128xf32>
    %cst_267 = arith.constant 1.000000e+00 : f32
    %820 = vector.broadcast %cst_267 : f32 to vector<8x128xf32>
    %821 = arith.addf %820, %819 : vector<8x128xf32>
    %822 = arith.divf %820, %821 : vector<8x128xf32>
    %823 = vector.extract_strided_slice %816 {offsets = [0, 128], sizes = [8, 128], strides = [1, 1]} : vector<8x512xf32> to vector<8x128xf32>
    %824 = arith.negf %823 : vector<8x128xf32>
    %825 = math.exp %824 : vector<8x128xf32>
    %cst_268 = arith.constant 1.000000e+00 : f32
    %826 = vector.broadcast %cst_268 : f32 to vector<8x128xf32>
    %827 = arith.addf %826, %825 : vector<8x128xf32>
    %828 = arith.divf %826, %827 : vector<8x128xf32>
    %829 = vector.extract_strided_slice %816 {offsets = [0, 256], sizes = [8, 128], strides = [1, 1]} : vector<8x512xf32> to vector<8x128xf32>
    %830 = vector.extract_strided_slice %816 {offsets = [0, 384], sizes = [8, 128], strides = [1, 1]} : vector<8x512xf32> to vector<8x128xf32>
    %831 = arith.mulf %822, %830 : vector<8x128xf32>
    %832 = arith.addf %829, %831 : vector<8x128xf32>
    %833 = math.tanh %832 : vector<8x128xf32>
    %cst_269 = arith.constant 1.000000e+00 : f32
    %834 = vector.broadcast %cst_269 : f32 to vector<8x128xf32>
    %835 = arith.subf %834, %828 : vector<8x128xf32>
    %836 = arith.mulf %835, %833 : vector<8x128xf32>
    %837 = arith.mulf %828, %773 : vector<8x128xf32>
    %838 = arith.addf %836, %837 : vector<8x128xf32>
    %c0_270 = arith.constant 0 : index
    %c0_271 = arith.constant 0 : index
    %839 = vector.load %arg14[%c0_270, %c0_271] : memref<128x128xf32, #tpu.memory_space<vmem>>, vector<128x128xf32>
    %cst_272 = arith.constant dense<0.000000e+00> : vector<8x128xf32>
    %840 = tpu.matmul %838, %839, %cst_272 {dimension_numbers = #tpu.dot_dimension_numbers<[1], [0], [0], [1], [0, 0, 1, 1], [], []>} : vector<8x128xf32>, vector<128x128xf32>, vector<8x128xf32> -> vector<8x128xf32>
    %c0_273 = arith.constant 0 : index
    %c0_274 = arith.constant 0 : index
    %841 = vector.load %arg15[%c0_273, %c0_274] : memref<1x128xf32, #tpu.memory_space<vmem>>, vector<1x128xf32>
    %842 = vector.broadcast %841 : vector<1x128xf32> to vector<8x128xf32>
    %843 = arith.addf %840, %842 : vector<8x128xf32>
    %844 = arith.addf %843, %779 : vector<8x128xf32>
    %c4 = arith.constant 4 : index
    %c0_275 = arith.constant 0 : index
    %c0_276 = arith.constant 0 : index
    %845 = vector.load %arg16[%c4, %c0_275, %c0_276] : memref<5x8x128xf32, #tpu.memory_space<vmem>>, vector<1x8x128xf32>
    %846 = vector.shape_cast %845 : vector<1x8x128xf32> to vector<8x128xf32>
    %847 = vector.shape_cast %844 : vector<8x128xf32> to vector<1x8x128xf32>
    tpu.vector_store %arg16[%c4, %c0_275, %c0_276], %847 {strides = array<i32>} : memref<5x8x128xf32, #tpu.memory_space<vmem>>, vector<1x8x128xf32>,
    return
  }
}

</mosaic_0001>

<llo_original>
// kernel: seq2seq_forward.1
$region0: #{seq2seq_forward.1}
  #allocation0 [shape = 'u32[]', space=smem, size = 0x4, offset = 0x4, fixed_abs, tag = 'smem constant byte address 0x4 - core index']
  #allocation1 [shape = 'u32[72,128]{1,0:T(1,128)}', space=vmem, size = 0x9000, scoped, tag = 'internal scratch']
  #allocation2 [shape = 'f32[64,384]{1,0:T(8,128)}', space=vmem, size = 0x18000, scoped, tag = 'scratch operand']
  #allocation3 [shape = 'f32[64,128]{1,0:T(8,128)}', space=vmem, size = 0x8000, scoped, tag = 'scratch operand']
  %s0 = inlined_call_operand.vmem [shape: f32[64,128], index: 0, kind: input, shape index: {}]
  %s1 = inlined_call_operand.vmem [shape: f32[8,128], index: 1, kind: input, shape index: {}]
  %s2 = inlined_call_operand.hbm [shape: f32[128,384], index: 2, kind: input, shape index: {}]
  %s3 = inlined_call_operand.hbm [shape: f32[128,384], index: 3, kind: input, shape index: {}]
  %s4 = inlined_call_operand.vmem [shape: f32[1,384], index: 4, kind: input, shape index: {}]
  %s5 = inlined_call_operand.vmem [shape: f32[1,128], index: 5, kind: input, shape index: {}]
  %s6 = inlined_call_operand.hbm [shape: f32[128,384], index: 6, kind: input, shape index: {}]
  %s7 = inlined_call_operand.hbm [shape: f32[128,384], index: 7, kind: input, shape index: {}]
  %s8 = inlined_call_operand.vmem [shape: f32[1,384], index: 8, kind: input, shape index: {}]
  %s9 = inlined_call_operand.vmem [shape: f32[1,128], index: 9, kind: input, shape index: {}]
  %s10 = inlined_call_operand.hbm [shape: f32[256,512], index: 10, kind: input, shape index: {}]
  %s11 = inlined_call_operand.vmem [shape: f32[1,512], index: 11, kind: input, shape index: {}]
  %s12 = inlined_call_operand.hbm [shape: f32[256,512], index: 12, kind: input, shape index: {}]
  %s13 = inlined_call_operand.vmem [shape: f32[1,512], index: 13, kind: input, shape index: {}]
  %s14 = inlined_call_operand.hbm [shape: f32[128,128], index: 14, kind: input, shape index: {}]
  %s15 = inlined_call_operand.vmem [shape: f32[1,128], index: 15, kind: input, shape index: {}]
  %s16 = inlined_call_operand.vmem [shape: f32[5,8,128], index: 16, kind: output, shape index: {}]
  %s17 = sld [smem:[#allocation0]]
  $region102: #{seq2seq_forward.1} parent=0
    _
  %s19 = ssub.s32 1, %s17
  %s20 = scalar_select 0, %s19, %s17
  $region1: #{seq2seq_forward.1} parent=0
    #allocation4 [shape = 'u8[196608]{0}', space=vmem, size = 0x30000, scoped, tag = 'input window, operand 2, single buffered']
    #allocation5 [shape = 's32[1]{0}', space=sflag, size = 0x4, scoped, tag = 'scoped memory for seq2seq_forward.1']
    #allocation6 [shape = 'u8[196608]{0}', space=vmem, size = 0x30000, scoped, tag = 'input window, operand 3, single buffered']
    #allocation7 [shape = 's32[1]{0}', space=sflag, size = 0x4, scoped, tag = 'scoped memory for seq2seq_forward.1']
    #allocation8 [shape = 'u8[196608]{0}', space=vmem, size = 0x30000, scoped, tag = 'input window, operand 6, single buffered']
    #allocation9 [shape = 'u8[196608]{0}', space=vmem, size = 0x30000, scoped, tag = 'input window, operand 7, single buffered']
    #allocation10 [shape = 's32[1]{0}', space=sflag, size = 0x4, scoped, tag = 'scoped memory for seq2seq_forward.1']
    #allocation11 [shape = 'u8[524288]{0}', space=vmem, size = 0x80000, scoped, tag = 'input window, operand 10, single buffered']
    #allocation12 [shape = 'u8[524288]{0}', space=vmem, size = 0x80000, scoped, tag = 'input window, operand 12, single buffered']
    #allocation13 [shape = 's32[1]{0}', space=sflag, size = 0x4, scoped, tag = 'scoped memory for seq2seq_forward.1']
    #allocation14 [shape = 'u8[65536]{0}', space=vmem, size = 0x10000, scoped, tag = 'input window, operand 14, single buffered']
    %21 = vsyncpa [#allocation5], 0
    %22 = vsyncpa [#allocation7], 0
    %23 = vsyncpa [#allocation10], 0
    %24 = vsyncpa [#allocation13], 0
    // Predicated region
    $region2: #{seq2seq_forward.1} parent=1 // pred_check
      _
    $region3: #{seq2seq_forward.1} parent=1 // pred_check_branch
      %26 = sbr.rel (0) target = $region5
    $region4: #{seq2seq_forward.1} parent=1 // pred_region
      _
    $region5: #{seq2seq_forward.1} parent=1 // pred_fallthru
      _
    // Predicated region
    $region6: #{seq2seq_forward.1} parent=1 // pred_check
      _
    $region7: #{seq2seq_forward.1} parent=1 // pred_check_branch
      %28 = sbr.rel (0) target = $region9
    $region8: #{seq2seq_forward.1} parent=1 // pred_region
      _
    $region9: #{seq2seq_forward.1} parent=1 // pred_fallthru
      _
    // Predicated region
    $region10: #{seq2seq_forward.1} parent=1 // pred_check
      _
    $region11: #{seq2seq_forward.1} parent=1 // pred_check_branch
      %30 = sbr.rel (0) target = $region13
    $region12: #{seq2seq_forward.1} parent=1 // pred_region
      %32 = vsyncadd [#allocation5], 0
      %s33 = sshll.u32 %s2, 4
      %s34 = int_to_ptr.hbm [resolvable:$true] %s33
      %s35 = sshll.u32 [#allocation4], 4
      %s36 = int_to_ptr.vmem [resolvable:$true] %s35
      %41 = dma.hbm_to_vmem [thread:$0]  %s34, 6144, %s36, [#allocation5], 384, 384, 24
    $region13: #{seq2seq_forward.1} parent=1 // pred_fallthru
      _
    // Predicated region
    $region14: #{seq2seq_forward.1} parent=1 // pred_check
      _
    $region15: #{seq2seq_forward.1} parent=1 // pred_check_branch
      %43 = sbr.rel (0) target = $region17
    $region16: #{seq2seq_forward.1} parent=1 // pred_region
      %45 = vsyncadd [#allocation7], 0
      %s46 = sshll.u32 %s3, 4
      %s47 = int_to_ptr.hbm [resolvable:$true] %s46
      %s48 = sshll.u32 [#allocation6], 4
      %s49 = int_to_ptr.vmem [resolvable:$true] %s48
      %54 = dma.hbm_to_vmem [thread:$0]  %s47, 6144, %s49, [#allocation7], 384, 384, 24
    $region17: #{seq2seq_forward.1} parent=1 // pred_fallthru
      _
    // Predicated region
    $region18: #{seq2seq_forward.1} parent=1 // pred_check
      _
    $region19: #{seq2seq_forward.1} parent=1 // pred_check_branch
      %56 = sbr.rel (0) target = $region21
    $region20: #{seq2seq_forward.1} parent=1 // pred_region
      _
    $region21: #{seq2seq_forward.1} parent=1 // pred_fallthru
      _
    // Predicated region
    $region22: #{seq2seq_forward.1} parent=1 // pred_check
      _
    $region23: #{seq2seq_forward.1} parent=1 // pred_check_branch
      %58 = sbr.rel (0) target = $region25
    $region24: #{seq2seq_forward.1} parent=1 // pred_region
      _
    $region25: #{seq2seq_forward.1} parent=1 // pred_fallthru
      _
    // Predicated region
    $region26: #{seq2seq_forward.1} parent=1 // pred_check
      _
    $region27: #{seq2seq_forward.1} parent=1 // pred_check_branch
      %60 = sbr.rel (0) target = $region29
    $region28: #{seq2seq_forward.1} parent=1 // pred_region
      %62 = vsyncadd [#allocation7], 0
      %s63 = sshll.u32 %s6, 4
      %s64 = int_to_ptr.hbm [resolvable:$true] %s63
      %s65 = sshll.u32 [#allocation8], 4
      %s66 = int_to_ptr.vmem [resolvable:$true] %s65
      %71 = dma.hbm_to_vmem [thread:$0]  %s64, 6144, %s66, [#allocation7], 384, 384, 24
    $region29: #{seq2seq_forward.1} parent=1 // pred_fallthru
      _
    // Predicated region
    $region30: #{seq2seq_forward.1} parent=1 // pred_check
      _
    $region31: #{seq2seq_forward.1} parent=1 // pred_check_branch
      %73 = sbr.rel (0) target = $region33
    $region32: #{seq2seq_forward.1} parent=1 // pred_region
      %75 = vsyncadd [#allocation10], 0
      %s76 = sshll.u32 %s7, 4
      %s77 = int_to_ptr.hbm [resolvable:$true] %s76
      %s78 = sshll.u32 [#allocation9], 4
      %s79 = int_to_ptr.vmem [resolvable:$true] %s78
      %84 = dma.hbm_to_vmem [thread:$0]  %s77, 6144, %s79, [#allocation10], 384, 384, 24
    $region33: #{seq2seq_forward.1} parent=1 // pred_fallthru
      _
    // Predicated region
    $region34: #{seq2seq_forward.1} parent=1 // pred_check
      _
    $region35: #{seq2seq_forward.1} parent=1 // pred_check_branch
      %86 = sbr.rel (0) target = $region37
    $region36: #{seq2seq_forward.1} parent=1 // pred_region
      _
    $region37: #{seq2seq_forward.1} parent=1 // pred_fallthru
      _
    // Predicated region
    $region38: #{seq2seq_forward.1} parent=1 // pred_check
      _
    $region39: #{seq2seq_forward.1} parent=1 // pred_check_branch
      %88 = sbr.rel (0) target = $region41
    $region40: #{seq2seq_forward.1} parent=1 // pred_region
      _
    $region41: #{seq2seq_forward.1} parent=1 // pred_fallthru
      _
    // Predicated region
    $region42: #{seq2seq_forward.1} parent=1 // pred_check
      _
    $region43: #{seq2seq_forward.1} parent=1 // pred_check_branch
      %90 = sbr.rel (0) target = $region45
    $region44: #{seq2seq_forward.1} parent=1 // pred_region
      %92 = vsyncadd [#allocation10], 0
      %s93 = sshll.u32 %s10, 4
      %s94 = int_to_ptr.hbm [resolvable:$true] %s93
      %s95 = sshll.u32 [#allocation11], 4
      %s96 = int_to_ptr.vmem [resolvable:$true] %s95
      %101 = dma.hbm_to_vmem [thread:$0]  %s94, 16384, %s96, [#allocation10], 512, 512, 32
    $region45: #{seq2seq_forward.1} parent=1 // pred_fallthru
      _
    // Predicated region
    $region46: #{seq2seq_forward.1} parent=1 // pred_check
      _
    $region47: #{seq2seq_forward.1} parent=1 // pred_check_branch
      %103 = sbr.rel (0) target = $region49
    $region48: #{seq2seq_forward.1} parent=1 // pred_region
      _
    $region49: #{seq2seq_forward.1} parent=1 // pred_fallthru
      _
    // Predicated region
    $region50: #{seq2seq_forward.1} parent=1 // pred_check
      _
    $region51: #{seq2seq_forward.1} parent=1 // pred_check_branch
      %105 = sbr.rel (0) target = $region53
    $region52: #{seq2seq_forward.1} parent=1 // pred_region
      %107 = vsyncadd [#allocation13], 0
      %s108 = sshll.u32 %s12, 4
      %s109 = int_to_ptr.hbm [resolvable:$true] %s108
      %s110 = sshll.u32 [#allocation12], 4
      %s111 = int_to_ptr.vmem [resolvable:$true] %s110
      %116 = dma.hbm_to_vmem [thread:$0]  %s109, 16384, %s111, [#allocation13], 512, 512, 32
    $region53: #{seq2seq_forward.1} parent=1 // pred_fallthru
      _
    // Predicated region
    $region54: #{seq2seq_forward.1} parent=1 // pred_check
      _
    $region55: #{seq2seq_forward.1} parent=1 // pred_check_branch
      %118 = sbr.rel (0) target = $region57
    $region56: #{seq2seq_forward.1} parent=1 // pred_region
      _
    $region57: #{seq2seq_forward.1} parent=1 // pred_fallthru
      _
    // Predicated region
    $region58: #{seq2seq_forward.1} parent=1 // pred_check
      _
    $region59: #{seq2seq_forward.1} parent=1 // pred_check_branch
      %120 = sbr.rel (0) target = $region61
    $region60: #{seq2seq_forward.1} parent=1 // pred_region
      %122 = vsyncadd [#allocation13], 0
      %s123 = sshll.u32 %s14, 4
      %s124 = int_to_ptr.hbm [resolvable:$true] %s123
      %s125 = sshll.u32 [#allocation14], 4
      %s126 = int_to_ptr.vmem [resolvable:$true] %s125
      %131 = dma.hbm_to_vmem [thread:$0]  %s124, 2048, %s126, [#allocation13], 128, 128, 8
    $region61: #{seq2seq_forward.1} parent=1 // pred_fallthru
      _
    // Predicated region
    $region62: #{seq2seq_forward.1} parent=1 // pred_check
      _
    $region63: #{seq2seq_forward.1} parent=1 // pred_check_branch
      %133 = sbr.rel (0) target = $region65
    $region64: #{seq2seq_forward.1} parent=1 // pred_region
      _
    $region65: #{seq2seq_forward.1} parent=1 // pred_fallthru
      _
    // Predicated region
    $region66: #{seq2seq_forward.1} parent=1 // pred_check
      _
    $region67: #{seq2seq_forward.1} parent=1 // pred_check_branch
      %135 = sbr.rel (0) target = $region69
    $region68: #{seq2seq_forward.1} parent=1 // pred_region
      %137 = dma.done [#allocation5], 6144
    $region69: #{seq2seq_forward.1} parent=1 // pred_fallthru
      _
    // Predicated region
    $region70: #{seq2seq_forward.1} parent=1 // pred_check
      _
    $region71: #{seq2seq_forward.1} parent=1 // pred_check_branch
      %139 = sbr.rel (0) target = $region73
    $region72: #{seq2seq_forward.1} parent=1 // pred_region
      %141 = dma.done [#allocation7], 6144
    $region73: #{seq2seq_forward.1} parent=1 // pred_fallthru
      _
    // Predicated region
    $region74: #{seq2seq_forward.1} parent=1 // pred_check
      _
    $region75: #{seq2seq_forward.1} parent=1 // pred_check_branch
      %143 = sbr.rel (0) target = $region77
    $region76: #{seq2seq_forward.1} parent=1 // pred_region
      %145 = dma.done [#allocation7], 6144
    $region77: #{seq2seq_forward.1} parent=1 // pred_fallthru
      _
    // Predicated region
    $region78: #{seq2seq_forward.1} parent=1 // pred_check
      _
    $region79: #{seq2seq_forward.1} parent=1 // pred_check_branch
      %147 = sbr.rel (0) target = $region81
    $region80: #{seq2seq_forward.1} parent=1 // pred_region
      %149 = dma.done [#allocation10], 6144
    $region81: #{seq2seq_forward.1} parent=1 // pred_fallthru
      _
    // Predicated region
    $region82: #{seq2seq_forward.1} parent=1 // pred_check
      _
    $region83: #{seq2seq_forward.1} parent=1 // pred_check_branch
      %151 = sbr.rel (0) target = $region85
    $region84: #{seq2seq_forward.1} parent=1 // pred_region
      %153 = dma.done [#allocation10], 16384
    $region85: #{seq2seq_forward.1} parent=1 // pred_fallthru
      _
    // Predicated region
    $region86: #{seq2seq_forward.1} parent=1 // pred_check
      _
    $region87: #{seq2seq_forward.1} parent=1 // pred_check_branch
      %155 = sbr.rel (0) target = $region89
    $region88: #{seq2seq_forward.1} parent=1 // pred_region
      %157 = dma.done [#allocation13], 16384
    $region89: #{seq2seq_forward.1} parent=1 // pred_fallthru
      _
    // Predicated region
    $region90: #{seq2seq_forward.1} parent=1 // pred_check
      _
    $region91: #{seq2seq_forward.1} parent=1 // pred_check_branch
      %159 = sbr.rel (0) target = $region93
    $region92: #{seq2seq_forward.1} parent=1 // pred_region
      %161 = dma.done [#allocation13], 2048
    $region93: #{seq2seq_forward.1} parent=1 // pred_fallthru
      _
    %v162 = vld [vmem:[%s0] sm:$0xff]
    %v163 = vld [vmem:[%s0 + $0x8] sm:$0xff]
    %v164 = vld [vmem:[%s0 + $0x10] sm:$0xff]
    %v165 = vld [vmem:[%s0 + $0x18] sm:$0xff]
    %v166 = vld [vmem:[%s0 + $0x20] sm:$0xff]
    %v167 = vld [vmem:[%s0 + $0x28] sm:$0xff]
    %v168 = vld [vmem:[%s0 + $0x30] sm:$0xff]
    %v169 = vld [vmem:[%s0 + $0x38] sm:$0xff]
    %v170 = vld [vmem:[#allocation4] sm:$0xff]
    %v171 = vld [vmem:[#allocation4 + $0x8] sm:$0xff]
    %v172 = vld [vmem:[#allocation4 + $0x10] sm:$0xff]
    %v173 = vld [vmem:[#allocation4 + $0x18] sm:$0xff]
    %v174 = vld [vmem:[#allocation4 + $0x20] sm:$0xff]
    %v175 = vld [vmem:[#allocation4 + $0x28] sm:$0xff]
    %v176 = vld [vmem:[#allocation4 + $0x30] sm:$0xff]
    %v177 = vld [vmem:[#allocation4 + $0x38] sm:$0xff]
    %v178 = vld [vmem:[#allocation4 + $0x40] sm:$0xff]
    %v179 = vld [vmem:[#allocation4 + $0x48] sm:$0xff]
    %v180 = vld [vmem:[#allocation4 + $0x50] sm:$0xff]
    %v181 = vld [vmem:[#allocation4 + $0x58] sm:$0xff]
    %v182 = vld [vmem:[#allocation4 + $0x60] sm:$0xff]
    %v183 = vld [vmem:[#allocation4 + $0x68] sm:$0xff]
    %v184 = vld [vmem:[#allocation4 + $0x70] sm:$0xff]
    %v185 = vld [vmem:[#allocation4 + $0x78] sm:$0xff]
    %v186 = vld [vmem:[#allocation4 + $0x80] sm:$0xff]
    %v187 = vld [vmem:[#allocation4 + $0x88] sm:$0xff]
    %v188 = vld [vmem:[#allocation4 + $0x90] sm:$0xff]
    %v189 = vld [vmem:[#allocation4 + $0x98] sm:$0xff]
    %v190 = vld [vmem:[#allocation4 + $0xa0] sm:$0xff]
    %v191 = vld [vmem:[#allocation4 + $0xa8] sm:$0xff]
    %v192 = vld [vmem:[#allocation4 + $0xb0] sm:$0xff]
    %v193 = vld [vmem:[#allocation4 + $0xb8] sm:$0xff]
    %v194 = vld [vmem:[#allocation4 + $0xc0] sm:$0xff]
    %v195 = vld [vmem:[#allocation4 + $0xc8] sm:$0xff]
    %v196 = vld [vmem:[#allocation4 + $0xd0] sm:$0xff]
    %v197 = vld [vmem:[#allocation4 + $0xd8] sm:$0xff]
    %v198 = vld [vmem:[#allocation4 + $0xe0] sm:$0xff]
    %v199 = vld [vmem:[#allocation4 + $0xe8] sm:$0xff]
    %v200 = vld [vmem:[#allocation4 + $0xf0] sm:$0xff]
    %v201 = vld [vmem:[#allocation4 + $0xf8] sm:$0xff]
    %v202 = vld [vmem:[#allocation4 + $0x100] sm:$0xff]
    %v203 = vld [vmem:[#allocation4 + $0x108] sm:$0xff]
    %v204 = vld [vmem:[#allocation4 + $0x110] sm:$0xff]
    %v205 = vld [vmem:[#allocation4 + $0x118] sm:$0xff]
    %v206 = vld [vmem:[#allocation4 + $0x120] sm:$0xff]
    %v207 = vld [vmem:[#allocation4 + $0x128] sm:$0xff]
    %v208 = vld [vmem:[#allocation4 + $0x130] sm:$0xff]
    %v209 = vld [vmem:[#allocation4 + $0x138] sm:$0xff]
    %v210 = vld [vmem:[#allocation4 + $0x140] sm:$0xff]
    %v211 = vld [vmem:[#allocation4 + $0x148] sm:$0xff]
    %v212 = vld [vmem:[#allocation4 + $0x150] sm:$0xff]
    %v213 = vld [vmem:[#allocation4 + $0x158] sm:$0xff]
    %v214 = vld [vmem:[#allocation4 + $0x160] sm:$0xff]
    %v215 = vld [vmem:[#allocation4 + $0x168] sm:$0xff]
    %v216 = vld [vmem:[#allocation4 + $0x170] sm:$0xff]
    %v217 = vld [vmem:[#allocation4 + $0x178] sm:$0xff]
    %v218 = vld [vmem:[%s4] sm:$0x7]
    %v220 = vperm.slane %v218, 0
    %v221 = vperm.slane %v218, 1
    %v222 = vperm.slane %v218, 2
    %226 = vmatpush.msra.mxu0 %v215
    %227 = vmatpush.msra.mxu0 %v212
    %228 = vmatpush.msra.mxu0 %v209
    %229 = vmatpush.msra.mxu0 %v206
    %230 = vmatpush.msra.mxu0 %v203
    %231 = vmatpush.msra.mxu0 %v200
    %232 = vmatpush.msra.mxu0 %v197
    %233 = vmatpush.msra.mxu0 %v194
    %234 = vmatpush.msra.mxu0 %v191
    %235 = vmatpush.msra.mxu0 %v188
    %236 = vmatpush.msra.mxu0 %v185
    %237 = vmatpush.msra.mxu0 %v182
    %238 = vmatpush.msra.mxu0 %v179
    %239 = vmatpush.msra.mxu0 %v176
    %240 = vmatpush.msra.mxu0 %v173
    %241 = vmatpush.msra.mxu0 %v170
    %242 = vmatmul.f32.gmra.mxu0 %v162
    %v243 = vpop.f32.mrf.mxu0
    %v244 = vadd.f32 %v220, %v243
    %245 = vmatmul.f32.gmra.mxu0 %v163
    %v246 = vpop.f32.mrf.mxu0
    %v247 = vadd.f32 %v220, %v246
    %248 = vmatmul.f32.gmra.mxu0 %v164
    %v249 = vpop.f32.mrf.mxu0
    %v250 = vadd.f32 %v220, %v249
    %251 = vmatmul.f32.gmra.mxu0 %v165
    %v252 = vpop.f32.mrf.mxu0
    %v253 = vadd.f32 %v220, %v252
    %254 = vmatmul.f32.gmra.mxu0 %v166
    %v255 = vpop.f32.mrf.mxu0
    %v256 = vadd.f32 %v220, %v255
    %257 = vmatmul.f32.gmra.mxu0 %v167
    %v258 = vpop.f32.mrf.mxu0
    %v259 = vadd.f32 %v220, %v258
    %260 = vmatmul.f32.gmra.mxu0 %v168
    %v261 = vpop.f32.mrf.mxu0
    %v262 = vadd.f32 %v220, %v261
    %263 = vmatmul.f32.gmra.mxu0 %v169
    %v264 = vpop.f32.mrf.mxu0
    %v265 = vadd.f32 %v220, %v264
    %266 = vdwg.mxu0
    %267 = vmatpush.msra.mxu0 %v216
    %268 = vmatpush.msra.mxu0 %v213
    %269 = vmatpush.msra.mxu0 %v210
    %270 = vmatpush.msra.mxu0 %v207
    %271 = vmatpush.msra.mxu0 %v204
    %272 = vmatpush.msra.mxu0 %v201
    %273 = vmatpush.msra.mxu0 %v198
    %274 = vmatpush.msra.mxu0 %v195
    %275 = vmatpush.msra.mxu0 %v192
    %276 = vmatpush.msra.mxu0 %v189
    %277 = vmatpush.msra.mxu0 %v186
    %278 = vmatpush.msra.mxu0 %v183
    %279 = vmatpush.msra.mxu0 %v180
    %280 = vmatpush.msra.mxu0 %v177
    %281 = vmatpush.msra.mxu0 %v174
    %282 = vmatpush.msra.mxu0 %v171
    %283 = vmatmul.f32.gmra.mxu0 %v162
    %v284 = vpop.f32.mrf.mxu0
    %v285 = vadd.f32 %v221, %v284
    %286 = vmatmul.f32.gmra.mxu0 %v163
    %v287 = vpop.f32.mrf.mxu0
    %v288 = vadd.f32 %v221, %v287
    %289 = vmatmul.f32.gmra.mxu0 %v164
    %v290 = vpop.f32.mrf.mxu0
    %v291 = vadd.f32 %v221, %v290
    %292 = vmatmul.f32.gmra.mxu0 %v165
    %v293 = vpop.f32.mrf.mxu0
    %v294 = vadd.f32 %v221, %v293
    %295 = vmatmul.f32.gmra.mxu0 %v166
    %v296 = vpop.f32.mrf.mxu0
    %v297 = vadd.f32 %v221, %v296
    %298 = vmatmul.f32.gmra.mxu0 %v167
    %v299 = vpop.f32.mrf.mxu0
    %v300 = vadd.f32 %v221, %v299
    %301 = vmatmul.f32.gmra.mxu0 %v168
    %v302 = vpop.f32.mrf.mxu0
    %v303 = vadd.f32 %v221, %v302
    %304 = vmatmul.f32.gmra.mxu0 %v169
    %v305 = vpop.f32.mrf.mxu0
    %v306 = vadd.f32 %v221, %v305
    %307 = vdwg.mxu0
    %308 = vmatpush.msra.mxu0 %v217
    %309 = vmatpush.msra.mxu0 %v214
    %310 = vmatpush.msra.mxu0 %v211
    %311 = vmatpush.msra.mxu0 %v208
    %312 = vmatpush.msra.mxu0 %v205
    %313 = vmatpush.msra.mxu0 %v202
    %314 = vmatpush.msra.mxu0 %v199
    %315 = vmatpush.msra.mxu0 %v196
    %316 = vmatpush.msra.mxu0 %v193
    %317 = vmatpush.msra.mxu0 %v190
    %318 = vmatpush.msra.mxu0 %v187
    %319 = vmatpush.msra.mxu0 %v184
    %320 = vmatpush.msra.mxu0 %v181
    %321 = vmatpush.msra.mxu0 %v178
    %322 = vmatpush.msra.mxu0 %v175
    %323 = vmatpush.msra.mxu0 %v172
    %324 = vmatmul.f32.gmra.mxu0 %v162
    %v325 = vpop.f32.mrf.mxu0
    %v326 = vadd.f32 %v222, %v325
    %327 = vmatmul.f32.gmra.mxu0 %v163
    %v328 = vpop.f32.mrf.mxu0
    %v329 = vadd.f32 %v222, %v328
    %330 = vmatmul.f32.gmra.mxu0 %v164
    %v331 = vpop.f32.mrf.mxu0
    %v332 = vadd.f32 %v222, %v331
    %333 = vmatmul.f32.gmra.mxu0 %v165
    %v334 = vpop.f32.mrf.mxu0
    %v335 = vadd.f32 %v222, %v334
    %336 = vmatmul.f32.gmra.mxu0 %v166
    %v337 = vpop.f32.mrf.mxu0
    %v338 = vadd.f32 %v222, %v337
    %339 = vmatmul.f32.gmra.mxu0 %v167
    %v340 = vpop.f32.mrf.mxu0
    %v341 = vadd.f32 %v222, %v340
    %342 = vmatmul.f32.gmra.mxu0 %v168
    %v343 = vpop.f32.mrf.mxu0
    %v344 = vadd.f32 %v222, %v343
    %345 = vmatmul.f32.gmra.mxu0 %v169
    %v346 = vpop.f32.mrf.mxu0
    %v347 = vadd.f32 %v222, %v346
    %348 = vdwg.mxu0
    %349 = vst [vmem:[#allocation2] sm:$0xff] %v244
    %350 = vst [vmem:[#allocation2 + $0x8] sm:$0xff] %v285
    %351 = vst [vmem:[#allocation2 + $0x10] sm:$0xff] %v326
    %352 = vst [vmem:[#allocation2 + $0x18] sm:$0xff] %v247
    %353 = vst [vmem:[#allocation2 + $0x20] sm:$0xff] %v288
    %354 = vst [vmem:[#allocation2 + $0x28] sm:$0xff] %v329
    %355 = vst [vmem:[#allocation2 + $0x30] sm:$0xff] %v250
    %356 = vst [vmem:[#allocation2 + $0x38] sm:$0xff] %v291
    %357 = vst [vmem:[#allocation2 + $0x40] sm:$0xff] %v332
    %358 = vst [vmem:[#allocation2 + $0x48] sm:$0xff] %v253
    %359 = vst [vmem:[#allocation2 + $0x50] sm:$0xff] %v294
    %360 = vst [vmem:[#allocation2 + $0x58] sm:$0xff] %v335
    %361 = vst [vmem:[#allocation2 + $0x60] sm:$0xff] %v256
    %362 = vst [vmem:[#allocation2 + $0x68] sm:$0xff] %v297
    %363 = vst [vmem:[#allocation2 + $0x70] sm:$0xff] %v338
    %364 = vst [vmem:[#allocation2 + $0x78] sm:$0xff] %v259
    %365 = vst [vmem:[#allocation2 + $0x80] sm:$0xff] %v300
    %366 = vst [vmem:[#allocation2 + $0x88] sm:$0xff] %v341
    %367 = vst [vmem:[#allocation2 + $0x90] sm:$0xff] %v262
    %368 = vst [vmem:[#allocation2 + $0x98] sm:$0xff] %v303
    %369 = vst [vmem:[#allocation2 + $0xa0] sm:$0xff] %v344
    %370 = vst [vmem:[#allocation2 + $0xa8] sm:$0xff] %v265
    %371 = vst [vmem:[#allocation2 + $0xb0] sm:$0xff] %v306
    %372 = vst [vmem:[#allocation2 + $0xb8] sm:$0xff] %v347
    %v373 = vld [vmem:[%s5] sm:$0x1]
    %v374 = vld [vmem:[#allocation2] sm:$0xff]
    %v375 = vld [vmem:[#allocation2 + $0x8] sm:$0xff]
    %v376 = vld [vmem:[#allocation2 + $0x10] sm:$0xff]
    %v377 = vld [vmem:[#allocation6] sm:$0xff]
    %v378 = vld [vmem:[#allocation6 + $0x8] sm:$0xff]
    %v379 = vld [vmem:[#allocation6 + $0x10] sm:$0xff]
    %v380 = vld [vmem:[#allocation6 + $0x18] sm:$0xff]
    %v381 = vld [vmem:[#allocation6 + $0x20] sm:$0xff]
    %v382 = vld [vmem:[#allocation6 + $0x28] sm:$0xff]
    %v383 = vld [vmem:[#allocation6 + $0x30] sm:$0xff]
    %v384 = vld [vmem:[#allocation6 + $0x38] sm:$0xff]
    %v385 = vld [vmem:[#allocation6 + $0x40] sm:$0xff]
    %v386 = vld [vmem:[#allocation6 + $0x48] sm:$0xff]
    %v387 = vld [vmem:[#allocation6 + $0x50] sm:$0xff]
    %v388 = vld [vmem:[#allocation6 + $0x58] sm:$0xff]
    %v389 = vld [vmem:[#allocation6 + $0x60] sm:$0xff]
    %v390 = vld [vmem:[#allocation6 + $0x68] sm:$0xff]
    %v391 = vld [vmem:[#allocation6 + $0x70] sm:$0xff]
    %v392 = vld [vmem:[#allocation6 + $0x78] sm:$0xff]
    %v393 = vld [vmem:[#allocation6 + $0x80] sm:$0xff]
    %v394 = vld [vmem:[#allocation6 + $0x88] sm:$0xff]
    %v395 = vld [vmem:[#allocation6 + $0x90] sm:$0xff]
    %v396 = vld [vmem:[#allocation6 + $0x98] sm:$0xff]
    %v397 = vld [vmem:[#allocation6 + $0xa0] sm:$0xff]
    %v398 = vld [vmem:[#allocation6 + $0xa8] sm:$0xff]
    %v399 = vld [vmem:[#allocation6 + $0xb0] sm:$0xff]
    %v400 = vld [vmem:[#allocation6 + $0xb8] sm:$0xff]
    %v401 = vld [vmem:[#allocation6 + $0xc0] sm:$0xff]
    %v402 = vld [vmem:[#allocation6 + $0xc8] sm:$0xff]
    %v403 = vld [vmem:[#allocation6 + $0xd0] sm:$0xff]
    %v404 = vld [vmem:[#allocation6 + $0xd8] sm:$0xff]
    %v405 = vld [vmem:[#allocation6 + $0xe0] sm:$0xff]
    %v406 = vld [vmem:[#allocation6 + $0xe8] sm:$0xff]
    %v407 = vld [vmem:[#allocation6 + $0xf0] sm:$0xff]
    %v408 = vld [vmem:[#allocation6 + $0xf8] sm:$0xff]
    %v409 = vld [vmem:[#allocation6 + $0x100] sm:$0xff]
    %v410 = vld [vmem:[#allocation6 + $0x108] sm:$0xff]
    %v411 = vld [vmem:[#allocation6 + $0x110] sm:$0xff]
    %v412 = vld [vmem:[#allocation6 + $0x118] sm:$0xff]
    %v413 = vld [vmem:[#allocation6 + $0x120] sm:$0xff]
    %v414 = vld [vmem:[#allocation6 + $0x128] sm:$0xff]
    %v415 = vld [vmem:[#allocation6 + $0x130] sm:$0xff]
    %v416 = vld [vmem:[#allocation6 + $0x138] sm:$0xff]
    %v417 = vld [vmem:[#allocation6 + $0x140] sm:$0xff]
    %v418 = vld [vmem:[#allocation6 + $0x148] sm:$0xff]
    %v419 = vld [vmem:[#allocation6 + $0x150] sm:$0xff]
    %v420 = vld [vmem:[#allocation6 + $0x158] sm:$0xff]
    %v421 = vld [vmem:[#allocation6 + $0x160] sm:$0xff]
    %v422 = vld [vmem:[#allocation6 + $0x168] sm:$0xff]
    %v423 = vld [vmem:[#allocation6 + $0x170] sm:$0xff]
    %v424 = vld [vmem:[#allocation6 + $0x178] sm:$0xff]
    %425 = vmatpush.msra.mxu0 %v422
    %426 = vmatpush.msra.mxu0 %v419
    %427 = vmatpush.msra.mxu0 %v416
    %428 = vmatpush.msra.mxu0 %v413
    %429 = vmatpush.msra.mxu0 %v410
    %430 = vmatpush.msra.mxu0 %v407
    %431 = vmatpush.msra.mxu0 %v404
    %432 = vmatpush.msra.mxu0 %v401
    %433 = vmatpush.msra.mxu0 %v398
    %434 = vmatpush.msra.mxu0 %v395
    %435 = vmatpush.msra.mxu0 %v392
    %436 = vmatpush.msra.mxu0 %v389
    %437 = vmatpush.msra.mxu0 %v386
    %438 = vmatpush.msra.mxu0 %v383
    %439 = vmatpush.msra.mxu0 %v380
    %440 = vmatpush.msra.mxu0 %v377
    %441 = vmatmul.f32.gmra.mxu0 0.0
    %v442 = vpop.f32.mrf.mxu0
    %v443 = vadd.f32 0.0, %v442
    %444 = vdwg.mxu0
    %445 = vmatpush.msra.mxu0 %v423
    %446 = vmatpush.msra.mxu0 %v420
    %447 = vmatpush.msra.mxu0 %v417
    %448 = vmatpush.msra.mxu0 %v414
    %449 = vmatpush.msra.mxu0 %v411
    %450 = vmatpush.msra.mxu0 %v408
    %451 = vmatpush.msra.mxu0 %v405
    %452 = vmatpush.msra.mxu0 %v402
    %453 = vmatpush.msra.mxu0 %v399
    %454 = vmatpush.msra.mxu0 %v396
    %455 = vmatpush.msra.mxu0 %v393
    %456 = vmatpush.msra.mxu0 %v390
    %457 = vmatpush.msra.mxu0 %v387
    %458 = vmatpush.msra.mxu0 %v384
    %459 = vmatpush.msra.mxu0 %v381
    %460 = vmatpush.msra.mxu0 %v378
    %461 = vmatmul.f32.gmra.mxu0 0.0
    %v462 = vpop.f32.mrf.mxu0
    %v463 = vadd.f32 0.0, %v462
    %464 = vdwg.mxu0
    %465 = vmatpush.msra.mxu0 %v424
    %466 = vmatpush.msra.mxu0 %v421
    %467 = vmatpush.msra.mxu0 %v418
    %468 = vmatpush.msra.mxu0 %v415
    %469 = vmatpush.msra.mxu0 %v412
    %470 = vmatpush.msra.mxu0 %v409
    %471 = vmatpush.msra.mxu0 %v406
    %472 = vmatpush.msra.mxu0 %v403
    %473 = vmatpush.msra.mxu0 %v400
    %474 = vmatpush.msra.mxu0 %v397
    %475 = vmatpush.msra.mxu0 %v394
    %476 = vmatpush.msra.mxu0 %v391
    %477 = vmatpush.msra.mxu0 %v388
    %478 = vmatpush.msra.mxu0 %v385
    %479 = vmatpush.msra.mxu0 %v382
    %480 = vmatpush.msra.mxu0 %v379
    %481 = vmatmul.f32.gmra.mxu0 0.0
    %v482 = vpop.f32.mrf.mxu0
    %v483 = vadd.f32 0.0, %v482
    %484 = vdwg.mxu0
    %v485 = vadd.f32 %v374, %v443
    %v486 = vxor.u32 %v485, 2147483648
    %v487 = vmul.f32 %v486, 1.442695
    %v488 = vpow.pop %v487
    %v489 = vadd.f32 %v488, 1.0
    %v490 = vrcp.pop %v489
    %v491 = vmul.f32 %v489, %v490
    %v492 = vsub.f32 1.0, %v491
    %v493 = vmul.f32 %v490, %v492
    %v494 = vadd.f32 %v490, %v493
    %vm495 = vweird.f32 %v489
    %vm496 = vweird.f32 %v490
    %vm497 = vmor %vm495, %vm496
    %v498 = vsel %vm497, %v490, %v494
    %v499 = vand.u32 2147483647, %v489
    %vm500 = vcmp.eq.f32.partialorder %v499, 8.507059e+37
    %v501 = vand.u32 %v489, 2147483648
    %v502 = vor.u32 1.1754944e-38, %v501
    %v503 = vsel %vm500, %v502, %v498
    %v504 = vmul.f32 1.0, %v503
    %v505 = vadd.f32 %v375, %v463
    %v506 = vxor.u32 %v505, 2147483648
    %v507 = vmul.f32 %v506, 1.442695
    %v508 = vpow.pop %v507
    %v509 = vadd.f32 %v508, 1.0
    %v510 = vrcp.pop %v509
    %v511 = vmul.f32 %v509, %v510
    %v512 = vsub.f32 1.0, %v511
    %v513 = vmul.f32 %v510, %v512
    %v514 = vadd.f32 %v510, %v513
    %vm515 = vweird.f32 %v509
    %vm516 = vweird.f32 %v510
    %vm517 = vmor %vm515, %vm516
    %v518 = vsel %vm517, %v510, %v514
    %v519 = vand.u32 2147483647, %v509
    %vm520 = vcmp.eq.f32.partialorder %v519, 8.507059e+37
    %v521 = vand.u32 %v509, 2147483648
    %v522 = vor.u32 1.1754944e-38, %v521
    %v523 = vsel %vm520, %v522, %v518
    %v524 = vmul.f32 1.0, %v523
    %v526 = vperm.slane %v373, 0
    %v528 = vadd.f32 %v483, %v526
    %v529 = vmul.f32 %v504, %v528
    %v530 = vadd.f32 %v376, %v529
    %v531 = vtanh.pop %v530
    %v532 = vsub.f32 1.0, %v524
    %v533 = vmul.f32 %v532, %v531
    %v534 = vmul.f32 %v524, 0.0
    %v535 = vadd.f32 %v533, %v534
    %536 = vst [vmem:[#allocation3] sm:$0xff] %v535
    %v537 = vld [vmem:[#allocation2 + $0x18] sm:$0xff]
    %v538 = vld [vmem:[#allocation2 + $0x20] sm:$0xff]
    %v539 = vld [vmem:[#allocation2 + $0x28] sm:$0xff]
    %v540 = vld [vmem:[#allocation6] sm:$0xff]
    %v541 = vld [vmem:[#allocation6 + $0x8] sm:$0xff]
    %v542 = vld [vmem:[#allocation6 + $0x10] sm:$0xff]
    %v543 = vld [vmem:[#allocation6 + $0x18] sm:$0xff]
    %v544 = vld [vmem:[#allocation6 + $0x20] sm:$0xff]
    %v545 = vld [vmem:[#allocation6 + $0x28] sm:$0xff]
    %v546 = vld [vmem:[#allocation6 + $0x30] sm:$0xff]
    %v547 = vld [vmem:[#allocation6 + $0x38] sm:$0xff]
    %v548 = vld [vmem:[#allocation6 + $0x40] sm:$0xff]
    %v549 = vld [vmem:[#allocation6 + $0x48] sm:$0xff]
    %v550 = vld [vmem:[#allocation6 + $0x50] sm:$0xff]
    %v551 = vld [vmem:[#allocation6 + $0x58] sm:$0xff]
    %v552 = vld [vmem:[#allocation6 + $0x60] sm:$0xff]
    %v553 = vld [vmem:[#allocation6 + $0x68] sm:$0xff]
    %v554 = vld [vmem:[#allocation6 + $0x70] sm:$0xff]
    %v555 = vld [vmem:[#allocation6 + $0x78] sm:$0xff]
    %v556 = vld [vmem:[#allocation6 + $0x80] sm:$0xff]
    %v557 = vld [vmem:[#allocation6 + $0x88] sm:$0xff]
    %v558 = vld [vmem:[#allocation6 + $0x90] sm:$0xff]
    %v559 = vld [vmem:[#allocation6 + $0x98] sm:$0xff]
    %v560 = vld [vmem:[#allocation6 + $0xa0] sm:$0xff]
    %v561 = vld [vmem:[#allocation6 + $0xa8] sm:$0xff]
    %v562 = vld [vmem:[#allocation6 + $0xb0] sm:$0xff]
    %v563 = vld [vmem:[#allocation6 + $0xb8] sm:$0xff]
    %v564 = vld [vmem:[#allocation6 + $0xc0] sm:$0xff]
    %v565 = vld [vmem:[#allocation6 + $0xc8] sm:$0xff]
    %v566 = vld [vmem:[#allocation6 + $0xd0] sm:$0xff]
    %v567 = vld [vmem:[#allocation6 + $0xd8] sm:$0xff]
    %v568 = vld [vmem:[#allocation6 + $0xe0] sm:$0xff]
    %v569 = vld [vmem:[#allocation6 + $0xe8] sm:$0xff]
    %v570 = vld [vmem:[#allocation6 + $0xf0] sm:$0xff]
    %v571 = vld [vmem:[#allocation6 + $0xf8] sm:$0xff]
    %v572 = vld [vmem:[#allocation6 + $0x100] sm:$0xff]
    %v573 = vld [vmem:[#allocation6 + $0x108] sm:$0xff]
    %v574 = vld [vmem:[#allocation6 + $0x110] sm:$0xff]
    %v575 = vld [vmem:[#allocation6 + $0x118] sm:$0xff]
    %v576 = vld [vmem:[#allocation6 + $0x120] sm:$0xff]
    %v577 = vld [vmem:[#allocation6 + $0x128] sm:$0xff]
    %v578 = vld [vmem:[#allocation6 + $0x130] sm:$0xff]
    %v579 = vld [vmem:[#allocation6 + $0x138] sm:$0xff]
    %v580 = vld [vmem:[#allocation6 + $0x140] sm:$0xff]
    %v581 = vld [vmem:[#allocation6 + $0x148] sm:$0xff]
    %v582 = vld [vmem:[#allocation6 + $0x150] sm:$0xff]
    %v583 = vld [vmem:[#allocation6 + $0x158] sm:$0xff]
    %v584 = vld [vmem:[#allocation6 + $0x160] sm:$0xff]
    %v585 = vld [vmem:[#allocation6 + $0x168] sm:$0xff]
    %v586 = vld [vmem:[#allocation6 + $0x170] sm:$0xff]
    %v587 = vld [vmem:[#allocation6 + $0x178] sm:$0xff]
    %588 = vmatpush.msra.mxu0 %v585
    %589 = vmatpush.msra.mxu0 %v582
    %590 = vmatpush.msra.mxu0 %v579
    %591 = vmatpush.msra.mxu0 %v576
    %592 = vmatpush.msra.mxu0 %v573
    %593 = vmatpush.msra.mxu0 %v570
    %594 = vmatpush.msra.mxu0 %v567
    %595 = vmatpush.msra.mxu0 %v564
    %596 = vmatpush.msra.mxu0 %v561
    %597 = vmatpush.msra.mxu0 %v558
    %598 = vmatpush.msra.mxu0 %v555
    %599 = vmatpush.msra.mxu0 %v552
    %600 = vmatpush.msra.mxu0 %v549
    %601 = vmatpush.msra.mxu0 %v546
    %602 = vmatpush.msra.mxu0 %v543
    %603 = vmatpush.msra.mxu0 %v540
    %604 = vmatmul.f32.gmra.mxu0 %v535
    %v605 = vpop.f32.mrf.mxu0
    %v606 = vadd.f32 0.0, %v605
    %607 = vdwg.mxu0
    %608 = vmatpush.msra.mxu0 %v586
    %609 = vmatpush.msra.mxu0 %v583
    %610 = vmatpush.msra.mxu0 %v580
    %611 = vmatpush.msra.mxu0 %v577
    %612 = vmatpush.msra.mxu0 %v574
    %613 = vmatpush.msra.mxu0 %v571
    %614 = vmatpush.msra.mxu0 %v568
    %615 = vmatpush.msra.mxu0 %v565
    %616 = vmatpush.msra.mxu0 %v562
    %617 = vmatpush.msra.mxu0 %v559
    %618 = vmatpush.msra.mxu0 %v556
    %619 = vmatpush.msra.mxu0 %v553
    %620 = vmatpush.msra.mxu0 %v550
    %621 = vmatpush.msra.mxu0 %v547
    %622 = vmatpush.msra.mxu0 %v544
    %623 = vmatpush.msra.mxu0 %v541
    %624 = vmatmul.f32.gmra.mxu0 %v535
    %v625 = vpop.f32.mrf.mxu0
    %v626 = vadd.f32 0.0, %v625
    %627 = vdwg.mxu0
    %628 = vmatpush.msra.mxu0 %v587
    %629 = vmatpush.msra.mxu0 %v584
    %630 = vmatpush.msra.mxu0 %v581
    %631 = vmatpush.msra.mxu0 %v578
    %632 = vmatpush.msra.mxu0 %v575
    %633 = vmatpush.msra.mxu0 %v572
    %634 = vmatpush.msra.mxu0 %v569
    %635 = vmatpush.msra.mxu0 %v566
    %636 = vmatpush.msra.mxu0 %v563
    %637 = vmatpush.msra.mxu0 %v560
    %638 = vmatpush.msra.mxu0 %v557
    %639 = vmatpush.msra.mxu0 %v554
    %640 = vmatpush.msra.mxu0 %v551
    %641 = vmatpush.msra.mxu0 %v548
    %642 = vmatpush.msra.mxu0 %v545
    %643 = vmatpush.msra.mxu0 %v542
    %644 = vmatmul.f32.gmra.mxu0 %v535
    %v645 = vpop.f32.mrf.mxu0
    %v646 = vadd.f32 0.0, %v645
    %647 = vdwg.mxu0
    %v648 = vadd.f32 %v537, %v606
    %v649 = vxor.u32 %v648, 2147483648
    %v650 = vmul.f32 %v649, 1.442695
    %v651 = vpow.pop %v650
    %v652 = vadd.f32 %v651, 1.0
    %v653 = vrcp.pop %v652
    %v654 = vmul.f32 %v652, %v653
    %v655 = vsub.f32 1.0, %v654
    %v656 = vmul.f32 %v653, %v655
    %v657 = vadd.f32 %v653, %v656
    %vm658 = vweird.f32 %v652
    %vm659 = vweird.f32 %v653
    %vm660 = vmor %vm658, %vm659
    %v661 = vsel %vm660, %v653, %v657
    %v662 = vand.u32 2147483647, %v652
    %vm663 = vcmp.eq.f32.partialorder %v662, 8.507059e+37
    %v664 = vand.u32 %v652, 2147483648
    %v665 = vor.u32 1.1754944e-38, %v664
    %v666 = vsel %vm663, %v665, %v661
    %v667 = vmul.f32 1.0, %v666
    %v668 = vadd.f32 %v538, %v626
    %v669 = vxor.u32 %v668, 2147483648
    %v670 = vmul.f32 %v669, 1.442695
    %v671 = vpow.pop %v670
    %v672 = vadd.f32 %v671, 1.0
    %v673 = vrcp.pop %v672
    %v674 = vmul.f32 %v672, %v673
    %v675 = vsub.f32 1.0, %v674
    %v676 = vmul.f32 %v673, %v675
    %v677 = vadd.f32 %v673, %v676
    %vm678 = vweird.f32 %v672
    %vm679 = vweird.f32 %v673
    %vm680 = vmor %vm678, %vm679
    %v681 = vsel %vm680, %v673, %v677
    %v682 = vand.u32 2147483647, %v672
    %vm683 = vcmp.eq.f32.partialorder %v682, 8.507059e+37
    %v684 = vand.u32 %v672, 2147483648
    %v685 = vor.u32 1.1754944e-38, %v684
    %v686 = vsel %vm683, %v685, %v681
    %v687 = vmul.f32 1.0, %v686
    %v688 = vadd.f32 %v646, %v526
    %v689 = vmul.f32 %v667, %v688
    %v690 = vadd.f32 %v539, %v689
    %v691 = vtanh.pop %v690
    %v692 = vsub.f32 1.0, %v687
    %v693 = vmul.f32 %v692, %v691
    %v694 = vmul.f32 %v687, %v535
    %v695 = vadd.f32 %v693, %v694
    %696 = vst [vmem:[#allocation3 + $0x8] sm:$0xff] %v695
    %v697 = vld [vmem:[#allocation2 + $0x30] sm:$0xff]
    %v698 = vld [vmem:[#allocation2 + $0x38] sm:$0xff]
    %v699 = vld [vmem:[#allocation2 + $0x40] sm:$0xff]
    %v700 = vld [vmem:[#allocation6] sm:$0xff]
    %v701 = vld [vmem:[#allocation6 + $0x8] sm:$0xff]
    %v702 = vld [vmem:[#allocation6 + $0x10] sm:$0xff]
    %v703 = vld [vmem:[#allocation6 + $0x18] sm:$0xff]
    %v704 = vld [vmem:[#allocation6 + $0x20] sm:$0xff]
    %v705 = vld [vmem:[#allocation6 + $0x28] sm:$0xff]
    %v706 = vld [vmem:[#allocation6 + $0x30] sm:$0xff]
    %v707 = vld [vmem:[#allocation6 + $0x38] sm:$0xff]
    %v708 = vld [vmem:[#allocation6 + $0x40] sm:$0xff]
    %v709 = vld [vmem:[#allocation6 + $0x48] sm:$0xff]
    %v710 = vld [vmem:[#allocation6 + $0x50] sm:$0xff]
    %v711 = vld [vmem:[#allocation6 + $0x58] sm:$0xff]
    %v712 = vld [vmem:[#allocation6 + $0x60] sm:$0xff]
    %v713 = vld [vmem:[#allocation6 + $0x68] sm:$0xff]
    %v714 = vld [vmem:[#allocation6 + $0x70] sm:$0xff]
    %v715 = vld [vmem:[#allocation6 + $0x78] sm:$0xff]
    %v716 = vld [vmem:[#allocation6 + $0x80] sm:$0xff]
    %v717 = vld [vmem:[#allocation6 + $0x88] sm:$0xff]
    %v718 = vld [vmem:[#allocation6 + $0x90] sm:$0xff]
    %v719 = vld [vmem:[#allocation6 + $0x98] sm:$0xff]
    %v720 = vld [vmem:[#allocation6 + $0xa0] sm:$0xff]
    %v721 = vld [vmem:[#allocation6 + $0xa8] sm:$0xff]
    %v722 = vld [vmem:[#allocation6 + $0xb0] sm:$0xff]
    %v723 = vld [vmem:[#allocation6 + $0xb8] sm:$0xff]
    %v724 = vld [vmem:[#allocation6 + $0xc0] sm:$0xff]
    %v725 = vld [vmem:[#allocation6 + $0xc8] sm:$0xff]
    %v726 = vld [vmem:[#allocation6 + $0xd0] sm:$0xff]
    %v727 = vld [vmem:[#allocation6 + $0xd8] sm:$0xff]
    %v728 = vld [vmem:[#allocation6 + $0xe0] sm:$0xff]
    %v729 = vld [vmem:[#allocation6 + $0xe8] sm:$0xff]
    %v730 = vld [vmem:[#allocation6 + $0xf0] sm:$0xff]
    %v731 = vld [vmem:[#allocation6 + $0xf8] sm:$0xff]
    %v732 = vld [vmem:[#allocation6 + $0x100] sm:$0xff]
    %v733 = vld [vmem:[#allocation6 + $0x108] sm:$0xff]
    %v734 = vld [vmem:[#allocation6 + $0x110] sm:$0xff]
    %v735 = vld [vmem:[#allocation6 + $0x118] sm:$0xff]
    %v736 = vld [vmem:[#allocation6 + $0x120] sm:$0xff]
    %v737 = vld [vmem:[#allocation6 + $0x128] sm:$0xff]
    %v738 = vld [vmem:[#allocation6 + $0x130] sm:$0xff]
    %v739 = vld [vmem:[#allocation6 + $0x138] sm:$0xff]
    %v740 = vld [vmem:[#allocation6 + $0x140] sm:$0xff]
    %v741 = vld [vmem:[#allocation6 + $0x148] sm:$0xff]
    %v742 = vld [vmem:[#allocation6 + $0x150] sm:$0xff]
    %v743 = vld [vmem:[#allocation6 + $0x158] sm:$0xff]
    %v744 = vld [vmem:[#allocation6 + $0x160] sm:$0xff]
    %v745 = vld [vmem:[#allocation6 + $0x168] sm:$0xff]
    %v746 = vld [vmem:[#allocation6 + $0x170] sm:$0xff]
    %v747 = vld [vmem:[#allocation6 + $0x178] sm:$0xff]
    %748 = vmatpush.msra.mxu0 %v745
    %749 = vmatpush.msra.mxu0 %v742
    %750 = vmatpush.msra.mxu0 %v739
    %751 = vmatpush.msra.mxu0 %v736
    %752 = vmatpush.msra.mxu0 %v733
    %753 = vmatpush.msra.mxu0 %v730
    %754 = vmatpush.msra.mxu0 %v727
    %755 = vmatpush.msra.mxu0 %v724
    %756 = vmatpush.msra.mxu0 %v721
    %757 = vmatpush.msra.mxu0 %v718
    %758 = vmatpush.msra.mxu0 %v715
    %759 = vmatpush.msra.mxu0 %v712
    %760 = vmatpush.msra.mxu0 %v709
    %761 = vmatpush.msra.mxu0 %v706
    %762 = vmatpush.msra.mxu0 %v703
    %763 = vmatpush.msra.mxu0 %v700
    %764 = vmatmul.f32.gmra.mxu0 %v695
    %v765 = vpop.f32.mrf.mxu0
    %v766 = vadd.f32 0.0, %v765
    %767 = vdwg.mxu0
    %768 = vmatpush.msra.mxu0 %v746
    %769 = vmatpush.msra.mxu0 %v743
    %770 = vmatpush.msra.mxu0 %v740
    %771 = vmatpush.msra.mxu0 %v737
    %772 = vmatpush.msra.mxu0 %v734
    %773 = vmatpush.msra.mxu0 %v731
    %774 = vmatpush.msra.mxu0 %v728
    %775 = vmatpush.msra.mxu0 %v725
    %776 = vmatpush.msra.mxu0 %v722
    %777 = vmatpush.msra.mxu0 %v719
    %778 = vmatpush.msra.mxu0 %v716
    %779 = vmatpush.msra.mxu0 %v713
    %780 = vmatpush.msra.mxu0 %v710
    %781 = vmatpush.msra.mxu0 %v707
    %782 = vmatpush.msra.mxu0 %v704
    %783 = vmatpush.msra.mxu0 %v701
    %784 = vmatmul.f32.gmra.mxu0 %v695
    %v785 = vpop.f32.mrf.mxu0
    %v786 = vadd.f32 0.0, %v785
    %787 = vdwg.mxu0
    %788 = vmatpush.msra.mxu0 %v747
    %789 = vmatpush.msra.mxu0 %v744
    %790 = vmatpush.msra.mxu0 %v741
    %791 = vmatpush.msra.mxu0 %v738
    %792 = vmatpush.msra.mxu0 %v735
    %793 = vmatpush.msra.mxu0 %v732
    %794 = vmatpush.msra.mxu0 %v729
    %795 = vmatpush.msra.mxu0 %v726
    %796 = vmatpush.msra.mxu0 %v723
    %797 = vmatpush.msra.mxu0 %v720
    %798 = vmatpush.msra.mxu0 %v717
    %799 = vmatpush.msra.mxu0 %v714
    %800 = vmatpush.msra.mxu0 %v711
    %801 = vmatpush.msra.mxu0 %v708
    %802 = vmatpush.msra.mxu0 %v705
    %803 = vmatpush.msra.mxu0 %v702
    %804 = vmatmul.f32.gmra.mxu0 %v695
    %v805 = vpop.f32.mrf.mxu0
    %v806 = vadd.f32 0.0, %v805
    %807 = vdwg.mxu0
    %v808 = vadd.f32 %v697, %v766
    %v809 = vxor.u32 %v808, 2147483648
    %v810 = vmul.f32 %v809, 1.442695
    %v811 = vpow.pop %v810
    %v812 = vadd.f32 %v811, 1.0
    %v813 = vrcp.pop %v812
    %v814 = vmul.f32 %v812, %v813
    %v815 = vsub.f32 1.0, %v814
    %v816 = vmul.f32 %v813, %v815
    %v817 = vadd.f32 %v813, %v816
    %vm818 = vweird.f32 %v812
    %vm819 = vweird.f32 %v813
    %vm820 = vmor %vm818, %vm819
    %v821 = vsel %vm820, %v813, %v817
    %v822 = vand.u32 2147483647, %v812
    %vm823 = vcmp.eq.f32.partialorder %v822, 8.507059e+37
    %v824 = vand.u32 %v812, 2147483648
    %v825 = vor.u32 1.1754944e-38, %v824
    %v826 = vsel %vm823, %v825, %v821
    %v827 = vmul.f32 1.0, %v826
    %v828 = vadd.f32 %v698, %v786
    %v829 = vxor.u32 %v828, 2147483648
    %v830 = vmul.f32 %v829, 1.442695
    %v831 = vpow.pop %v830
    %v832 = vadd.f32 %v831, 1.0
    %v833 = vrcp.pop %v832
    %v834 = vmul.f32 %v832, %v833
    %v835 = vsub.f32 1.0, %v834
    %v836 = vmul.f32 %v833, %v835
    %v837 = vadd.f32 %v833, %v836
    %vm838 = vweird.f32 %v832
    %vm839 = vweird.f32 %v833
    %vm840 = vmor %vm838, %vm839
    %v841 = vsel %vm840, %v833, %v837
    %v842 = vand.u32 2147483647, %v832
    %vm843 = vcmp.eq.f32.partialorder %v842, 8.507059e+37
    %v844 = vand.u32 %v832, 2147483648
    %v845 = vor.u32 1.1754944e-38, %v844
    %v846 = vsel %vm843, %v845, %v841
    %v847 = vmul.f32 1.0, %v846
    %v848 = vadd.f32 %v806, %v526
    %v849 = vmul.f32 %v827, %v848
    %v850 = vadd.f32 %v699, %v849
    %v851 = vtanh.pop %v850
    %v852 = vsub.f32 1.0, %v847
    %v853 = vmul.f32 %v852, %v851
    %v854 = vmul.f32 %v847, %v695
    %v855 = vadd.f32 %v853, %v854
    %856 = vst [vmem:[#allocation3 + $0x10] sm:$0xff] %v855
    %v857 = vld [vmem:[#allocation2 + $0x48] sm:$0xff]
    %v858 = vld [vmem:[#allocation2 + $0x50] sm:$0xff]
    %v859 = vld [vmem:[#allocation2 + $0x58] sm:$0xff]
    %v860 = vld [vmem:[#allocation6] sm:$0xff]
    %v861 = vld [vmem:[#allocation6 + $0x8] sm:$0xff]
    %v862 = vld [vmem:[#allocation6 + $0x10] sm:$0xff]
    %v863 = vld [vmem:[#allocation6 + $0x18] sm:$0xff]
    %v864 = vld [vmem:[#allocation6 + $0x20] sm:$0xff]
    %v865 = vld [vmem:[#allocation6 + $0x28] sm:$0xff]
    %v866 = vld [vmem:[#allocation6 + $0x30] sm:$0xff]
    %v867 = vld [vmem:[#allocation6 + $0x38] sm:$0xff]
    %v868 = vld [vmem:[#allocation6 + $0x40] sm:$0xff]
    %v869 = vld [vmem:[#allocation6 + $0x48] sm:$0xff]
    %v870 = vld [vmem:[#allocation6 + $0x50] sm:$0xff]
    %v871 = vld [vmem:[#allocation6 + $0x58] sm:$0xff]
    %v872 = vld [vmem:[#allocation6 + $0x60] sm:$0xff]
    %v873 = vld [vmem:[#allocation6 + $0x68] sm:$0xff]
    %v874 = vld [vmem:[#allocation6 + $0x70] sm:$0xff]
    %v875 = vld [vmem:[#allocation6 + $0x78] sm:$0xff]
    %v876 = vld [vmem:[#allocation6 + $0x80] sm:$0xff]
    %v877 = vld [vmem:[#allocation6 + $0x88] sm:$0xff]
    %v878 = vld [vmem:[#allocation6 + $0x90] sm:$0xff]
    %v879 = vld [vmem:[#allocation6 + $0x98] sm:$0xff]
    %v880 = vld [vmem:[#allocation6 + $0xa0] sm:$0xff]
    %v881 = vld [vmem:[#allocation6 + $0xa8] sm:$0xff]
    %v882 = vld [vmem:[#allocation6 + $0xb0] sm:$0xff]
    %v883 = vld [vmem:[#allocation6 + $0xb8] sm:$0xff]
    %v884 = vld [vmem:[#allocation6 + $0xc0] sm:$0xff]
    %v885 = vld [vmem:[#allocation6 + $0xc8] sm:$0xff]
    %v886 = vld [vmem:[#allocation6 + $0xd0] sm:$0xff]
    %v887 = vld [vmem:[#allocation6 + $0xd8] sm:$0xff]
    %v888 = vld [vmem:[#allocation6 + $0xe0] sm:$0xff]
    %v889 = vld [vmem:[#allocation6 + $0xe8] sm:$0xff]
    %v890 = vld [vmem:[#allocation6 + $0xf0] sm:$0xff]
    %v891 = vld [vmem:[#allocation6 + $0xf8] sm:$0xff]
    %v892 = vld [vmem:[#allocation6 + $0x100] sm:$0xff]
    %v893 = vld [vmem:[#allocation6 + $0x108] sm:$0xff]
    %v894 = vld [vmem:[#allocation6 + $0x110] sm:$0xff]
    %v895 = vld [vmem:[#allocation6 + $0x118] sm:$0xff]
    %v896 = vld [vmem:[#allocation6 + $0x120] sm:$0xff]
    %v897 = vld [vmem:[#allocation6 + $0x128] sm:$0xff]
    %v898 = vld [vmem:[#allocation6 + $0x130] sm:$0xff]
    %v899 = vld [vmem:[#allocation6 + $0x138] sm:$0xff]
    %v900 = vld [vmem:[#allocation6 + $0x140] sm:$0xff]
    %v901 = vld [vmem:[#allocation6 + $0x148] sm:$0xff]
    %v902 = vld [vmem:[#allocation6 + $0x150] sm:$0xff]
    %v903 = vld [vmem:[#allocation6 + $0x158] sm:$0xff]
    %v904 = vld [vmem:[#allocation6 + $0x160] sm:$0xff]
    %v905 = vld [vmem:[#allocation6 + $0x168] sm:$0xff]
    %v906 = vld [vmem:[#allocation6 + $0x170] sm:$0xff]
    %v907 = vld [vmem:[#allocation6 + $0x178] sm:$0xff]
    %908 = vmatpush.msra.mxu0 %v905
    %909 = vmatpush.msra.mxu0 %v902
    %910 = vmatpush.msra.mxu0 %v899
    %911 = vmatpush.msra.mxu0 %v896
    %912 = vmatpush.msra.mxu0 %v893
    %913 = vmatpush.msra.mxu0 %v890
    %914 = vmatpush.msra.mxu0 %v887
    %915 = vmatpush.msra.mxu0 %v884
    %916 = vmatpush.msra.mxu0 %v881
    %917 = vmatpush.msra.mxu0 %v878
    %918 = vmatpush.msra.mxu0 %v875
    %919 = vmatpush.msra.mxu0 %v872
    %920 = vmatpush.msra.mxu0 %v869
    %921 = vmatpush.msra.mxu0 %v866
    %922 = vmatpush.msra.mxu0 %v863
    %923 = vmatpush.msra.mxu0 %v860
    %924 = vmatmul.f32.gmra.mxu0 %v855
    %v925 = vpop.f32.mrf.mxu0
    %v926 = vadd.f32 0.0, %v925
    %927 = vdwg.mxu0
    %928 = vmatpush.msra.mxu0 %v906
    %929 = vmatpush.msra.mxu0 %v903
    %930 = vmatpush.msra.mxu0 %v900
    %931 = vmatpush.msra.mxu0 %v897
    %932 = vmatpush.msra.mxu0 %v894
    %933 = vmatpush.msra.mxu0 %v891
    %934 = vmatpush.msra.mxu0 %v888
    %935 = vmatpush.msra.mxu0 %v885
    %936 = vmatpush.msra.mxu0 %v882
    %937 = vmatpush.msra.mxu0 %v879
    %938 = vmatpush.msra.mxu0 %v876
    %939 = vmatpush.msra.mxu0 %v873
    %940 = vmatpush.msra.mxu0 %v870
    %941 = vmatpush.msra.mxu0 %v867
    %942 = vmatpush.msra.mxu0 %v864
    %943 = vmatpush.msra.mxu0 %v861
    %944 = vmatmul.f32.gmra.mxu0 %v855
    %v945 = vpop.f32.mrf.mxu0
    %v946 = vadd.f32 0.0, %v945
    %947 = vdwg.mxu0
    %948 = vmatpush.msra.mxu0 %v907
    %949 = vmatpush.msra.mxu0 %v904
    %950 = vmatpush.msra.mxu0 %v901
    %951 = vmatpush.msra.mxu0 %v898
    %952 = vmatpush.msra.mxu0 %v895
    %953 = vmatpush.msra.mxu0 %v892
    %954 = vmatpush.msra.mxu0 %v889
    %955 = vmatpush.msra.mxu0 %v886
    %956 = vmatpush.msra.mxu0 %v883
    %957 = vmatpush.msra.mxu0 %v880
    %958 = vmatpush.msra.mxu0 %v877
    %959 = vmatpush.msra.mxu0 %v874
    %960 = vmatpush.msra.mxu0 %v871
    %961 = vmatpush.msra.mxu0 %v868
    %962 = vmatpush.msra.mxu0 %v865
    %963 = vmatpush.msra.mxu0 %v862
    %964 = vmatmul.f32.gmra.mxu0 %v855
    %v965 = vpop.f32.mrf.mxu0
    %v966 = vadd.f32 0.0, %v965
    %967 = vdwg.mxu0
    %v968 = vadd.f32 %v857, %v926
    %v969 = vxor.u32 %v968, 2147483648
    %v970 = vmul.f32 %v969, 1.442695
    %v971 = vpow.pop %v970
    %v972 = vadd.f32 %v971, 1.0
    %v973 = vrcp.pop %v972
    %v974 = vmul.f32 %v972, %v973
    %v975 = vsub.f32 1.0, %v974
    %v976 = vmul.f32 %v973, %v975
    %v977 = vadd.f32 %v973, %v976
    %vm978 = vweird.f32 %v972
    %vm979 = vweird.f32 %v973
    %vm980 = vmor %vm978, %vm979
    %v981 = vsel %vm980, %v973, %v977
    %v982 = vand.u32 2147483647, %v972
    %vm983 = vcmp.eq.f32.partialorder %v982, 8.507059e+37
    %v984 = vand.u32 %v972, 2147483648
    %v985 = vor.u32 1.1754944e-38, %v984
    %v986 = vsel %vm983, %v985, %v981
    %v987 = vmul.f32 1.0, %v986
    %v988 = vadd.f32 %v858, %v946
    %v989 = vxor.u32 %v988, 2147483648
    %v990 = vmul.f32 %v989, 1.442695
    %v991 = vpow.pop %v990
    %v992 = vadd.f32 %v991, 1.0
    %v993 = vrcp.pop %v992
    %v994 = vmul.f32 %v992, %v993
    %v995 = vsub.f32 1.0, %v994
    %v996 = vmul.f32 %v993, %v995
    %v997 = vadd.f32 %v993, %v996
    %vm998 = vweird.f32 %v992
    %vm999 = vweird.f32 %v993
    %vm1000 = vmor %vm998, %vm999
    %v1001 = vsel %vm1000, %v993, %v997
    %v1002 = vand.u32 2147483647, %v992
    %vm1003 = vcmp.eq.f32.partialorder %v1002, 8.507059e+37
    %v1004 = vand.u32 %v992, 2147483648
    %v1005 = vor.u32 1.1754944e-38, %v1004
    %v1006 = vsel %vm1003, %v1005, %v1001
    %v1007 = vmul.f32 1.0, %v1006
    %v1008 = vadd.f32 %v966, %v526
    %v1009 = vmul.f32 %v987, %v1008
    %v1010 = vadd.f32 %v859, %v1009
    %v1011 = vtanh.pop %v1010
    %v1012 = vsub.f32 1.0, %v1007
    %v1013 = vmul.f32 %v1012, %v1011
    %v1014 = vmul.f32 %v1007, %v855
    %v1015 = vadd.f32 %v1013, %v1014
    %1016 = vst [vmem:[#allocation3 + $0x18] sm:$0xff] %v1015
    %v1017 = vld [vmem:[#allocation2 + $0x60] sm:$0xff]
    %v1018 = vld [vmem:[#allocation2 + $0x68] sm:$0xff]
    %v1019 = vld [vmem:[#allocation2 + $0x70] sm:$0xff]
    %v1020 = vld [vmem:[#allocation6] sm:$0xff]
    %v1021 = vld [vmem:[#allocation6 + $0x8] sm:$0xff]
    %v1022 = vld [vmem:[#allocation6 + $0x10] sm:$0xff]
    %v1023 = vld [vmem:[#allocation6 + $0x18] sm:$0xff]
    %v1024 = vld [vmem:[#allocation6 + $0x20] sm:$0xff]
    %v1025 = vld [vmem:[#allocation6 + $0x28] sm:$0xff]
    %v1026 = vld [vmem:[#allocation6 + $0x30] sm:$0xff]
    %v1027 = vld [vmem:[#allocation6 + $0x38] sm:$0xff]
    %v1028 = vld [vmem:[#allocation6 + $0x40] sm:$0xff]
    %v1029 = vld [vmem:[#allocation6 + $0x48] sm:$0xff]
    %v1030 = vld [vmem:[#allocation6 + $0x50] sm:$0xff]
    %v1031 = vld [vmem:[#allocation6 + $0x58] sm:$0xff]
    %v1032 = vld [vmem:[#allocation6 + $0x60] sm:$0xff]
    %v1033 = vld [vmem:[#allocation6 + $0x68] sm:$0xff]
    %v1034 = vld [vmem:[#allocation6 + $0x70] sm:$0xff]
    %v1035 = vld [vmem:[#allocation6 + $0x78] sm:$0xff]
    %v1036 = vld [vmem:[#allocation6 + $0x80] sm:$0xff]
    %v1037 = vld [vmem:[#allocation6 + $0x88] sm:$0xff]
    %v1038 = vld [vmem:[#allocation6 + $0x90] sm:$0xff]
    %v1039 = vld [vmem:[#allocation6 + $0x98] sm:$0xff]
    %v1040 = vld [vmem:[#allocation6 + $0xa0] sm:$0xff]
    %v1041 = vld [vmem:[#allocation6 + $0xa8] sm:$0xff]
    %v1042 = vld [vmem:[#allocation6 + $0xb0] sm:$0xff]
    %v1043 = vld [vmem:[#allocation6 + $0xb8] sm:$0xff]
    %v1044 = vld [vmem:[#allocation6 + $0xc0] sm:$0xff]
    %v1045 = vld [vmem:[#allocation6 + $0xc8] sm:$0xff]
    %v1046 = vld [vmem:[#allocation6 + $0xd0] sm:$0xff]
    %v1047 = vld [vmem:[#allocation6 + $0xd8] sm:$0xff]
    %v1048 = vld [vmem:[#allocation6 + $0xe0] sm:$0xff]
    %v1049 = vld [vmem:[#allocation6 + $0xe8] sm:$0xff]
    %v1050 = vld [vmem:[#allocation6 + $0xf0] sm:$0xff]
    %v1051 = vld [vmem:[#allocation6 + $0xf8] sm:$0xff]
    %v1052 = vld [vmem:[#allocation6 + $0x100] sm:$0xff]
    %v1053 = vld [vmem:[#allocation6 + $0x108] sm:$0xff]
    %v1054 = vld [vmem:[#allocation6 + $0x110] sm:$0xff]
    %v1055 = vld [vmem:[#allocation6 + $0x118] sm:$0xff]
    %v1056 = vld [vmem:[#allocation6 + $0x120] sm:$0xff]
    %v1057 = vld [vmem:[#allocation6 + $0x128] sm:$0xff]
    %v1058 = vld [vmem:[#allocation6 + $0x130] sm:$0xff]
    %v1059 = vld [vmem:[#allocation6 + $0x138] sm:$0xff]
    %v1060 = vld [vmem:[#allocation6 + $0x140] sm:$0xff]
    %v1061 = vld [vmem:[#allocation6 + $0x148] sm:$0xff]
    %v1062 = vld [vmem:[#allocation6 + $0x150] sm:$0xff]
    %v1063 = vld [vmem:[#allocation6 + $0x158] sm:$0xff]
    %v1064 = vld [vmem:[#allocation6 + $0x160] sm:$0xff]
    %v1065 = vld [vmem:[#allocation6 + $0x168] sm:$0xff]
    %v1066 = vld [vmem:[#allocation6 + $0x170] sm:$0xff]
    %v1067 = vld [vmem:[#allocation6 + $0x178] sm:$0xff]
    %1068 = vmatpush.msra.mxu0 %v1065
    %1069 = vmatpush.msra.mxu0 %v1062
    %1070 = vmatpush.msra.mxu0 %v1059
    %1071 = vmatpush.msra.mxu0 %v1056
    %1072 = vmatpush.msra.mxu0 %v1053
    %1073 = vmatpush.msra.mxu0 %v1050
    %1074 = vmatpush.msra.mxu0 %v1047
    %1075 = vmatpush.msra.mxu0 %v1044
    %1076 = vmatpush.msra.mxu0 %v1041
    %1077 = vmatpush.msra.mxu0 %v1038
    %1078 = vmatpush.msra.mxu0 %v1035
    %1079 = vmatpush.msra.mxu0 %v1032
    %1080 = vmatpush.msra.mxu0 %v1029
    %1081 = vmatpush.msra.mxu0 %v1026
    %1082 = vmatpush.msra.mxu0 %v1023
    %1083 = vmatpush.msra.mxu0 %v1020
    %1084 = vmatmul.f32.gmra.mxu0 %v1015
    %v1085 = vpop.f32.mrf.mxu0
    %v1086 = vadd.f32 0.0, %v1085
    %1087 = vdwg.mxu0
    %1088 = vmatpush.msra.mxu0 %v1066
    %1089 = vmatpush.msra.mxu0 %v1063
    %1090 = vmatpush.msra.mxu0 %v1060
    %1091 = vmatpush.msra.mxu0 %v1057
    %1092 = vmatpush.msra.mxu0 %v1054
    %1093 = vmatpush.msra.mxu0 %v1051
    %1094 = vmatpush.msra.mxu0 %v1048
    %1095 = vmatpush.msra.mxu0 %v1045
    %1096 = vmatpush.msra.mxu0 %v1042
    %1097 = vmatpush.msra.mxu0 %v1039
    %1098 = vmatpush.msra.mxu0 %v1036
    %1099 = vmatpush.msra.mxu0 %v1033
    %1100 = vmatpush.msra.mxu0 %v1030
    %1101 = vmatpush.msra.mxu0 %v1027
    %1102 = vmatpush.msra.mxu0 %v1024
    %1103 = vmatpush.msra.mxu0 %v1021
    %1104 = vmatmul.f32.gmra.mxu0 %v1015
    %v1105 = vpop.f32.mrf.mxu0
    %v1106 = vadd.f32 0.0, %v1105
    %1107 = vdwg.mxu0
    %1108 = vmatpush.msra.mxu0 %v1067
    %1109 = vmatpush.msra.mxu0 %v1064
    %1110 = vmatpush.msra.mxu0 %v1061
    %1111 = vmatpush.msra.mxu0 %v1058
    %1112 = vmatpush.msra.mxu0 %v1055
    %1113 = vmatpush.msra.mxu0 %v1052
    %1114 = vmatpush.msra.mxu0 %v1049
    %1115 = vmatpush.msra.mxu0 %v1046
    %1116 = vmatpush.msra.mxu0 %v1043
    %1117 = vmatpush.msra.mxu0 %v1040
    %1118 = vmatpush.msra.mxu0 %v1037
    %1119 = vmatpush.msra.mxu0 %v1034
    %1120 = vmatpush.msra.mxu0 %v1031
    %1121 = vmatpush.msra.mxu0 %v1028
    %1122 = vmatpush.msra.mxu0 %v1025
    %1123 = vmatpush.msra.mxu0 %v1022
    %1124 = vmatmul.f32.gmra.mxu0 %v1015
    %v1125 = vpop.f32.mrf.mxu0
    %v1126 = vadd.f32 0.0, %v1125
    %1127 = vdwg.mxu0
    %v1128 = vadd.f32 %v1017, %v1086
    %v1129 = vxor.u32 %v1128, 2147483648
    %v1130 = vmul.f32 %v1129, 1.442695
    %v1131 = vpow.pop %v1130
    %v1132 = vadd.f32 %v1131, 1.0
    %v1133 = vrcp.pop %v1132
    %v1134 = vmul.f32 %v1132, %v1133
    %v1135 = vsub.f32 1.0, %v1134
    %v1136 = vmul.f32 %v1133, %v1135
    %v1137 = vadd.f32 %v1133, %v1136
    %vm1138 = vweird.f32 %v1132
    %vm1139 = vweird.f32 %v1133
    %vm1140 = vmor %vm1138, %vm1139
    %v1141 = vsel %vm1140, %v1133, %v1137
    %v1142 = vand.u32 2147483647, %v1132
    %vm1143 = vcmp.eq.f32.partialorder %v1142, 8.507059e+37
    %v1144 = vand.u32 %v1132, 2147483648
    %v1145 = vor.u32 1.1754944e-38, %v1144
    %v1146 = vsel %vm1143, %v1145, %v1141
    %v1147 = vmul.f32 1.0, %v1146
    %v1148 = vadd.f32 %v1018, %v1106
    %v1149 = vxor.u32 %v1148, 2147483648
    %v1150 = vmul.f32 %v1149, 1.442695
    %v1151 = vpow.pop %v1150
    %v1152 = vadd.f32 %v1151, 1.0
    %v1153 = vrcp.pop %v1152
    %v1154 = vmul.f32 %v1152, %v1153
    %v1155 = vsub.f32 1.0, %v1154
    %v1156 = vmul.f32 %v1153, %v1155
    %v1157 = vadd.f32 %v1153, %v1156
    %vm1158 = vweird.f32 %v1152
    %vm1159 = vweird.f32 %v1153
    %vm1160 = vmor %vm1158, %vm1159
    %v1161 = vsel %vm1160, %v1153, %v1157
    %v1162 = vand.u32 2147483647, %v1152
    %vm1163 = vcmp.eq.f32.partialorder %v1162, 8.507059e+37
    %v1164 = vand.u32 %v1152, 2147483648
    %v1165 = vor.u32 1.1754944e-38, %v1164
    %v1166 = vsel %vm1163, %v1165, %v1161
    %v1167 = vmul.f32 1.0, %v1166
    %v1168 = vadd.f32 %v1126, %v526
    %v1169 = vmul.f32 %v1147, %v1168
    %v1170 = vadd.f32 %v1019, %v1169
    %v1171 = vtanh.pop %v1170
    %v1172 = vsub.f32 1.0, %v1167
    %v1173 = vmul.f32 %v1172, %v1171
    %v1174 = vmul.f32 %v1167, %v1015
    %v1175 = vadd.f32 %v1173, %v1174
    %1176 = vst [vmem:[#allocation3 + $0x20] sm:$0xff] %v1175
    %v1177 = vld [vmem:[#allocation2 + $0x78] sm:$0xff]
    %v1178 = vld [vmem:[#allocation2 + $0x80] sm:$0xff]
    %v1179 = vld [vmem:[#allocation2 + $0x88] sm:$0xff]
    %v1180 = vld [vmem:[#allocation6] sm:$0xff]
    %v1181 = vld [vmem:[#allocation6 + $0x8] sm:$0xff]
    %v1182 = vld [vmem:[#allocation6 + $0x10] sm:$0xff]
    %v1183 = vld [vmem:[#allocation6 + $0x18] sm:$0xff]
    %v1184 = vld [vmem:[#allocation6 + $0x20] sm:$0xff]
    %v1185 = vld [vmem:[#allocation6 + $0x28] sm:$0xff]
    %v1186 = vld [vmem:[#allocation6 + $0x30] sm:$0xff]
    %v1187 = vld [vmem:[#allocation6 + $0x38] sm:$0xff]
    %v1188 = vld [vmem:[#allocation6 + $0x40] sm:$0xff]
    %v1189 = vld [vmem:[#allocation6 + $0x48] sm:$0xff]
    %v1190 = vld [vmem:[#allocation6 + $0x50] sm:$0xff]
    %v1191 = vld [vmem:[#allocation6 + $0x58] sm:$0xff]
    %v1192 = vld [vmem:[#allocation6 + $0x60] sm:$0xff]
    %v1193 = vld [vmem:[#allocation6 + $0x68] sm:$0xff]
    %v1194 = vld [vmem:[#allocation6 + $0x70] sm:$0xff]
    %v1195 = vld [vmem:[#allocation6 + $0x78] sm:$0xff]
    %v1196 = vld [vmem:[#allocation6 + $0x80] sm:$0xff]
    %v1197 = vld [vmem:[#allocation6 + $0x88] sm:$0xff]
    %v1198 = vld [vmem:[#allocation6 + $0x90] sm:$0xff]
    %v1199 = vld [vmem:[#allocation6 + $0x98] sm:$0xff]
    %v1200 = vld [vmem:[#allocation6 + $0xa0] sm:$0xff]
    %v1201 = vld [vmem:[#allocation6 + $0xa8] sm:$0xff]
    %v1202 = vld [vmem:[#allocation6 + $0xb0] sm:$0xff]
    %v1203 = vld [vmem:[#allocation6 + $0xb8] sm:$0xff]
    %v1204 = vld [vmem:[#allocation6 + $0xc0] sm:$0xff]
    %v1205 = vld [vmem:[#allocation6 + $0xc8] sm:$0xff]
    %v1206 = vld [vmem:[#allocation6 + $0xd0] sm:$0xff]
    %v1207 = vld [vmem:[#allocation6 + $0xd8] sm:$0xff]
    %v1208 = vld [vmem:[#allocation6 + $0xe0] sm:$0xff]
    %v1209 = vld [vmem:[#allocation6 + $0xe8] sm:$0xff]
    %v1210 = vld [vmem:[#allocation6 + $0xf0] sm:$0xff]
    %v1211 = vld [vmem:[#allocation6 + $0xf8] sm:$0xff]
    %v1212 = vld [vmem:[#allocation6 + $0x100] sm:$0xff]
    %v1213 = vld [vmem:[#allocation6 + $0x108] sm:$0xff]
    %v1214 = vld [vmem:[#allocation6 + $0x110] sm:$0xff]
    %v1215 = vld [vmem:[#allocation6 + $0x118] sm:$0xff]
    %v1216 = vld [vmem:[#allocation6 + $0x120] sm:$0xff]
    %v1217 = vld [vmem:[#allocation6 + $0x128] sm:$0xff]
    %v1218 = vld [vmem:[#allocation6 + $0x130] sm:$0xff]
    %v1219 = vld [vmem:[#allocation6 + $0x138] sm:$0xff]
    %v1220 = vld [vmem:[#allocation6 + $0x140] sm:$0xff]
    %v1221 = vld [vmem:[#allocation6 + $0x148] sm:$0xff]
    %v1222 = vld [vmem:[#allocation6 + $0x150] sm:$0xff]
    %v1223 = vld [vmem:[#allocation6 + $0x158] sm:$0xff]
    %v1224 = vld [vmem:[#allocation6 + $0x160] sm:$0xff]
    %v1225 = vld [vmem:[#allocation6 + $0x168] sm:$0xff]
    %v1226 = vld [vmem:[#allocation6 + $0x170] sm:$0xff]
    %v1227 = vld [vmem:[#allocation6 + $0x178] sm:$0xff]
    %1228 = vmatpush.msra.mxu0 %v1225
    %1229 = vmatpush.msra.mxu0 %v1222
    %1230 = vmatpush.msra.mxu0 %v1219
    %1231 = vmatpush.msra.mxu0 %v1216
    %1232 = vmatpush.msra.mxu0 %v1213
    %1233 = vmatpush.msra.mxu0 %v1210
    %1234 = vmatpush.msra.mxu0 %v1207
    %1235 = vmatpush.msra.mxu0 %v1204
    %1236 = vmatpush.msra.mxu0 %v1201
    %1237 = vmatpush.msra.mxu0 %v1198
    %1238 = vmatpush.msra.mxu0 %v1195
    %1239 = vmatpush.msra.mxu0 %v1192
    %1240 = vmatpush.msra.mxu0 %v1189
    %1241 = vmatpush.msra.mxu0 %v1186
    %1242 = vmatpush.msra.mxu0 %v1183
    %1243 = vmatpush.msra.mxu0 %v1180
    %1244 = vmatmul.f32.gmra.mxu0 %v1175
    %v1245 = vpop.f32.mrf.mxu0
    %v1246 = vadd.f32 0.0, %v1245
    %1247 = vdwg.mxu0
    %1248 = vmatpush.msra.mxu0 %v1226
    %1249 = vmatpush.msra.mxu0 %v1223
    %1250 = vmatpush.msra.mxu0 %v1220
    %1251 = vmatpush.msra.mxu0 %v1217
    %1252 = vmatpush.msra.mxu0 %v1214
    %1253 = vmatpush.msra.mxu0 %v1211
    %1254 = vmatpush.msra.mxu0 %v1208
    %1255 = vmatpush.msra.mxu0 %v1205
    %1256 = vmatpush.msra.mxu0 %v1202
    %1257 = vmatpush.msra.mxu0 %v1199
    %1258 = vmatpush.msra.mxu0 %v1196
    %1259 = vmatpush.msra.mxu0 %v1193
    %1260 = vmatpush.msra.mxu0 %v1190
    %1261 = vmatpush.msra.mxu0 %v1187
    %1262 = vmatpush.msra.mxu0 %v1184
    %1263 = vmatpush.msra.mxu0 %v1181
    %1264 = vmatmul.f32.gmra.mxu0 %v1175
    %v1265 = vpop.f32.mrf.mxu0
    %v1266 = vadd.f32 0.0, %v1265
    %1267 = vdwg.mxu0
    %1268 = vmatpush.msra.mxu0 %v1227
    %1269 = vmatpush.msra.mxu0 %v1224
    %1270 = vmatpush.msra.mxu0 %v1221
    %1271 = vmatpush.msra.mxu0 %v1218
    %1272 = vmatpush.msra.mxu0 %v1215
    %1273 = vmatpush.msra.mxu0 %v1212
    %1274 = vmatpush.msra.mxu0 %v1209
    %1275 = vmatpush.msra.mxu0 %v1206
    %1276 = vmatpush.msra.mxu0 %v1203
    %1277 = vmatpush.msra.mxu0 %v1200
    %1278 = vmatpush.msra.mxu0 %v1197
    %1279 = vmatpush.msra.mxu0 %v1194
    %1280 = vmatpush.msra.mxu0 %v1191
    %1281 = vmatpush.msra.mxu0 %v1188
    %1282 = vmatpush.msra.mxu0 %v1185
    %1283 = vmatpush.msra.mxu0 %v1182
    %1284 = vmatmul.f32.gmra.mxu0 %v1175
    %v1285 = vpop.f32.mrf.mxu0
    %v1286 = vadd.f32 0.0, %v1285
    %1287 = vdwg.mxu0
    %v1288 = vadd.f32 %v1177, %v1246
    %v1289 = vxor.u32 %v1288, 2147483648
    %v1290 = vmul.f32 %v1289, 1.442695
    %v1291 = vpow.pop %v1290
    %v1292 = vadd.f32 %v1291, 1.0
    %v1293 = vrcp.pop %v1292
    %v1294 = vmul.f32 %v1292, %v1293
    %v1295 = vsub.f32 1.0, %v1294
    %v1296 = vmul.f32 %v1293, %v1295
    %v1297 = vadd.f32 %v1293, %v1296
    %vm1298 = vweird.f32 %v1292
    %vm1299 = vweird.f32 %v1293
    %vm1300 = vmor %vm1298, %vm1299
    %v1301 = vsel %vm1300, %v1293, %v1297
    %v1302 = vand.u32 2147483647, %v1292
    %vm1303 = vcmp.eq.f32.partialorder %v1302, 8.507059e+37
    %v1304 = vand.u32 %v1292, 2147483648
    %v1305 = vor.u32 1.1754944e-38, %v1304
    %v1306 = vsel %vm1303, %v1305, %v1301
    %v1307 = vmul.f32 1.0, %v1306
    %v1308 = vadd.f32 %v1178, %v1266
    %v1309 = vxor.u32 %v1308, 2147483648
    %v1310 = vmul.f32 %v1309, 1.442695
    %v1311 = vpow.pop %v1310
    %v1312 = vadd.f32 %v1311, 1.0
    %v1313 = vrcp.pop %v1312
    %v1314 = vmul.f32 %v1312, %v1313
    %v1315 = vsub.f32 1.0, %v1314
    %v1316 = vmul.f32 %v1313, %v1315
    %v1317 = vadd.f32 %v1313, %v1316
    %vm1318 = vweird.f32 %v1312
    %vm1319 = vweird.f32 %v1313
    %vm1320 = vmor %vm1318, %vm1319
    %v1321 = vsel %vm1320, %v1313, %v1317
    %v1322 = vand.u32 2147483647, %v1312
    %vm1323 = vcmp.eq.f32.partialorder %v1322, 8.507059e+37
    %v1324 = vand.u32 %v1312, 2147483648
    %v1325 = vor.u32 1.1754944e-38, %v1324
    %v1326 = vsel %vm1323, %v1325, %v1321
    %v1327 = vmul.f32 1.0, %v1326
    %v1328 = vadd.f32 %v1286, %v526
    %v1329 = vmul.f32 %v1307, %v1328
    %v1330 = vadd.f32 %v1179, %v1329
    %v1331 = vtanh.pop %v1330
    %v1332 = vsub.f32 1.0, %v1327
    %v1333 = vmul.f32 %v1332, %v1331
    %v1334 = vmul.f32 %v1327, %v1175
    %v1335 = vadd.f32 %v1333, %v1334
    %1336 = vst [vmem:[#allocation3 + $0x28] sm:$0xff] %v1335
    %v1337 = vld [vmem:[#allocation2 + $0x90] sm:$0xff]
    %v1338 = vld [vmem:[#allocation2 + $0x98] sm:$0xff]
    %v1339 = vld [vmem:[#allocation2 + $0xa0] sm:$0xff]
    %v1340 = vld [vmem:[#allocation6] sm:$0xff]
    %v1341 = vld [vmem:[#allocation6 + $0x8] sm:$0xff]
    %v1342 = vld [vmem:[#allocation6 + $0x10] sm:$0xff]
    %v1343 = vld [vmem:[#allocation6 + $0x18] sm:$0xff]
    %v1344 = vld [vmem:[#allocation6 + $0x20] sm:$0xff]
    %v1345 = vld [vmem:[#allocation6 + $0x28] sm:$0xff]
    %v1346 = vld [vmem:[#allocation6 + $0x30] sm:$0xff]
    %v1347 = vld [vmem:[#allocation6 + $0x38] sm:$0xff]
    %v1348 = vld [vmem:[#allocation6 + $0x40] sm:$0xff]
    %v1349 = vld [vmem:[#allocation6 + $0x48] sm:$0xff]
    %v1350 = vld [vmem:[#allocation6 + $0x50] sm:$0xff]
    %v1351 = vld [vmem:[#allocation6 + $0x58] sm:$0xff]
    %v1352 = vld [vmem:[#allocation6 + $0x60] sm:$0xff]
    %v1353 = vld [vmem:[#allocation6 + $0x68] sm:$0xff]
    %v1354 = vld [vmem:[#allocation6 + $0x70] sm:$0xff]
    %v1355 = vld [vmem:[#allocation6 + $0x78] sm:$0xff]
    %v1356 = vld [vmem:[#allocation6 + $0x80] sm:$0xff]
    %v1357 = vld [vmem:[#allocation6 + $0x88] sm:$0xff]
    %v1358 = vld [vmem:[#allocation6 + $0x90] sm:$0xff]
    %v1359 = vld [vmem:[#allocation6 + $0x98] sm:$0xff]
    %v1360 = vld [vmem:[#allocation6 + $0xa0] sm:$0xff]
    %v1361 = vld [vmem:[#allocation6 + $0xa8] sm:$0xff]
    %v1362 = vld [vmem:[#allocation6 + $0xb0] sm:$0xff]
    %v1363 = vld [vmem:[#allocation6 + $0xb8] sm:$0xff]
    %v1364 = vld [vmem:[#allocation6 + $0xc0] sm:$0xff]
    %v1365 = vld [vmem:[#allocation6 + $0xc8] sm:$0xff]
    %v1366 = vld [vmem:[#allocation6 + $0xd0] sm:$0xff]
    %v1367 = vld [vmem:[#allocation6 + $0xd8] sm:$0xff]
    %v1368 = vld [vmem:[#allocation6 + $0xe0] sm:$0xff]
    %v1369 = vld [vmem:[#allocation6 + $0xe8] sm:$0xff]
    %v1370 = vld [vmem:[#allocation6 + $0xf0] sm:$0xff]
    %v1371 = vld [vmem:[#allocation6 + $0xf8] sm:$0xff]
    %v1372 = vld [vmem:[#allocation6 + $0x100] sm:$0xff]
    %v1373 = vld [vmem:[#allocation6 + $0x108] sm:$0xff]
    %v1374 = vld [vmem:[#allocation6 + $0x110] sm:$0xff]
    %v1375 = vld [vmem:[#allocation6 + $0x118] sm:$0xff]
    %v1376 = vld [vmem:[#allocation6 + $0x120] sm:$0xff]
    %v1377 = vld [vmem:[#allocation6 + $0x128] sm:$0xff]
    %v1378 = vld [vmem:[#allocation6 + $0x130] sm:$0xff]
    %v1379 = vld [vmem:[#allocation6 + $0x138] sm:$0xff]
    %v1380 = vld [vmem:[#allocation6 + $0x140] sm:$0xff]
    %v1381 = vld [vmem:[#allocation6 + $0x148] sm:$0xff]
    %v1382 = vld [vmem:[#allocation6 + $0x150] sm:$0xff]
    %v1383 = vld [vmem:[#allocation6 + $0x158] sm:$0xff]
    %v1384 = vld [vmem:[#allocation6 + $0x160] sm:$0xff]
    %v1385 = vld [vmem:[#allocation6 + $0x168] sm:$0xff]
    %v1386 = vld [vmem:[#allocation6 + $0x170] sm:$0xff]
    %v1387 = vld [vmem:[#allocation6 + $0x178] sm:$0xff]
    %1388 = vmatpush.msra.mxu0 %v1385
    %1389 = vmatpush.msra.mxu0 %v1382
    %1390 = vmatpush.msra.mxu0 %v1379
    %1391 = vmatpush.msra.mxu0 %v1376
    %1392 = vmatpush.msra.mxu0 %v1373
    %1393 = vmatpush.msra.mxu0 %v1370
    %1394 = vmatpush.msra.mxu0 %v1367
    %1395 = vmatpush.msra.mxu0 %v1364
    %1396 = vmatpush.msra.mxu0 %v1361
    %1397 = vmatpush.msra.mxu0 %v1358
    %1398 = vmatpush.msra.mxu0 %v1355
    %1399 = vmatpush.msra.mxu0 %v1352
    %1400 = vmatpush.msra.mxu0 %v1349
    %1401 = vmatpush.msra.mxu0 %v1346
    %1402 = vmatpush.msra.mxu0 %v1343
    %1403 = vmatpush.msra.mxu0 %v1340
    %1404 = vmatmul.f32.gmra.mxu0 %v1335
    %v1405 = vpop.f32.mrf.mxu0
    %v1406 = vadd.f32 0.0, %v1405
    %1407 = vdwg.mxu0
    %1408 = vmatpush.msra.mxu0 %v1386
    %1409 = vmatpush.msra.mxu0 %v1383
    %1410 = vmatpush.msra.mxu0 %v1380
    %1411 = vmatpush.msra.mxu0 %v1377
    %1412 = vmatpush.msra.mxu0 %v1374
    %1413 = vmatpush.msra.mxu0 %v1371
    %1414 = vmatpush.msra.mxu0 %v1368
    %1415 = vmatpush.msra.mxu0 %v1365
    %1416 = vmatpush.msra.mxu0 %v1362
    %1417 = vmatpush.msra.mxu0 %v1359
    %1418 = vmatpush.msra.mxu0 %v1356
    %1419 = vmatpush.msra.mxu0 %v1353
    %1420 = vmatpush.msra.mxu0 %v1350
    %1421 = vmatpush.msra.mxu0 %v1347
    %1422 = vmatpush.msra.mxu0 %v1344
    %1423 = vmatpush.msra.mxu0 %v1341
    %1424 = vmatmul.f32.gmra.mxu0 %v1335
    %v1425 = vpop.f32.mrf.mxu0
    %v1426 = vadd.f32 0.0, %v1425
    %1427 = vdwg.mxu0
    %1428 = vmatpush.msra.mxu0 %v1387
    %1429 = vmatpush.msra.mxu0 %v1384
    %1430 = vmatpush.msra.mxu0 %v1381
    %1431 = vmatpush.msra.mxu0 %v1378
    %1432 = vmatpush.msra.mxu0 %v1375
    %1433 = vmatpush.msra.mxu0 %v1372
    %1434 = vmatpush.msra.mxu0 %v1369
    %1435 = vmatpush.msra.mxu0 %v1366
    %1436 = vmatpush.msra.mxu0 %v1363
    %1437 = vmatpush.msra.mxu0 %v1360
    %1438 = vmatpush.msra.mxu0 %v1357
    %1439 = vmatpush.msra.mxu0 %v1354
    %1440 = vmatpush.msra.mxu0 %v1351
    %1441 = vmatpush.msra.mxu0 %v1348
    %1442 = vmatpush.msra.mxu0 %v1345
    %1443 = vmatpush.msra.mxu0 %v1342
    %1444 = vmatmul.f32.gmra.mxu0 %v1335
    %v1445 = vpop.f32.mrf.mxu0
    %v1446 = vadd.f32 0.0, %v1445
    %1447 = vdwg.mxu0
    %v1448 = vadd.f32 %v1337, %v1406
    %v1449 = vxor.u32 %v1448, 2147483648
    %v1450 = vmul.f32 %v1449, 1.442695
    %v1451 = vpow.pop %v1450
    %v1452 = vadd.f32 %v1451, 1.0
    %v1453 = vrcp.pop %v1452
    %v1454 = vmul.f32 %v1452, %v1453
    %v1455 = vsub.f32 1.0, %v1454
    %v1456 = vmul.f32 %v1453, %v1455
    %v1457 = vadd.f32 %v1453, %v1456
    %vm1458 = vweird.f32 %v1452
    %vm1459 = vweird.f32 %v1453
    %vm1460 = vmor %vm1458, %vm1459
    %v1461 = vsel %vm1460, %v1453, %v1457
    %v1462 = vand.u32 2147483647, %v1452
    %vm1463 = vcmp.eq.f32.partialorder %v1462, 8.507059e+37
    %v1464 = vand.u32 %v1452, 2147483648
    %v1465 = vor.u32 1.1754944e-38, %v1464
    %v1466 = vsel %vm1463, %v1465, %v1461
    %v1467 = vmul.f32 1.0, %v1466
    %v1468 = vadd.f32 %v1338, %v1426
    %v1469 = vxor.u32 %v1468, 2147483648
    %v1470 = vmul.f32 %v1469, 1.442695
    %v1471 = vpow.pop %v1470
    %v1472 = vadd.f32 %v1471, 1.0
    %v1473 = vrcp.pop %v1472
    %v1474 = vmul.f32 %v1472, %v1473
    %v1475 = vsub.f32 1.0, %v1474
    %v1476 = vmul.f32 %v1473, %v1475
    %v1477 = vadd.f32 %v1473, %v1476
    %vm1478 = vweird.f32 %v1472
    %vm1479 = vweird.f32 %v1473
    %vm1480 = vmor %vm1478, %vm1479
    %v1481 = vsel %vm1480, %v1473, %v1477
    %v1482 = vand.u32 2147483647, %v1472
    %vm1483 = vcmp.eq.f32.partialorder %v1482, 8.507059e+37
    %v1484 = vand.u32 %v1472, 2147483648
    %v1485 = vor.u32 1.1754944e-38, %v1484
    %v1486 = vsel %vm1483, %v1485, %v1481
    %v1487 = vmul.f32 1.0, %v1486
    %v1488 = vadd.f32 %v1446, %v526
    %v1489 = vmul.f32 %v1467, %v1488
    %v1490 = vadd.f32 %v1339, %v1489
    %v1491 = vtanh.pop %v1490
    %v1492 = vsub.f32 1.0, %v1487
    %v1493 = vmul.f32 %v1492, %v1491
    %v1494 = vmul.f32 %v1487, %v1335
    %v1495 = vadd.f32 %v1493, %v1494
    %1496 = vst [vmem:[#allocation3 + $0x30] sm:$0xff] %v1495
    %v1497 = vld [vmem:[#allocation2 + $0xa8] sm:$0xff]
    %v1498 = vld [vmem:[#allocation2 + $0xb0] sm:$0xff]
    %v1499 = vld [vmem:[#allocation2 + $0xb8] sm:$0xff]
    %v1500 = vld [vmem:[#allocation6] sm:$0xff]
    %v1501 = vld [vmem:[#allocation6 + $0x8] sm:$0xff]
    %v1502 = vld [vmem:[#allocation6 + $0x10] sm:$0xff]
    %v1503 = vld [vmem:[#allocation6 + $0x18] sm:$0xff]
    %v1504 = vld [vmem:[#allocation6 + $0x20] sm:$0xff]
    %v1505 = vld [vmem:[#allocation6 + $0x28] sm:$0xff]
    %v1506 = vld [vmem:[#allocation6 + $0x30] sm:$0xff]
    %v1507 = vld [vmem:[#allocation6 + $0x38] sm:$0xff]
    %v1508 = vld [vmem:[#allocation6 + $0x40] sm:$0xff]
    %v1509 = vld [vmem:[#allocation6 + $0x48] sm:$0xff]
    %v1510 = vld [vmem:[#allocation6 + $0x50] sm:$0xff]
    %v1511 = vld [vmem:[#allocation6 + $0x58] sm:$0xff]
    %v1512 = vld [vmem:[#allocation6 + $0x60] sm:$0xff]
    %v1513 = vld [vmem:[#allocation6 + $0x68] sm:$0xff]
    %v1514 = vld [vmem:[#allocation6 + $0x70] sm:$0xff]
    %v1515 = vld [vmem:[#allocation6 + $0x78] sm:$0xff]
    %v1516 = vld [vmem:[#allocation6 + $0x80] sm:$0xff]
    %v1517 = vld [vmem:[#allocation6 + $0x88] sm:$0xff]
    %v1518 = vld [vmem:[#allocation6 + $0x90] sm:$0xff]
    %v1519 = vld [vmem:[#allocation6 + $0x98] sm:$0xff]
    %v1520 = vld [vmem:[#allocation6 + $0xa0] sm:$0xff]
    %v1521 = vld [vmem:[#allocation6 + $0xa8] sm:$0xff]
    %v1522 = vld [vmem:[#allocation6 + $0xb0] sm:$0xff]
    %v1523 = vld [vmem:[#allocation6 + $0xb8] sm:$0xff]
    %v1524 = vld [vmem:[#allocation6 + $0xc0] sm:$0xff]
    %v1525 = vld [vmem:[#allocation6 + $0xc8] sm:$0xff]
    %v1526 = vld [vmem:[#allocation6 + $0xd0] sm:$0xff]
    %v1527 = vld [vmem:[#allocation6 + $0xd8] sm:$0xff]
    %v1528 = vld [vmem:[#allocation6 + $0xe0] sm:$0xff]
    %v1529 = vld [vmem:[#allocation6 + $0xe8] sm:$0xff]
    %v1530 = vld [vmem:[#allocation6 + $0xf0] sm:$0xff]
    %v1531 = vld [vmem:[#allocation6 + $0xf8] sm:$0xff]
    %v1532 = vld [vmem:[#allocation6 + $0x100] sm:$0xff]
    %v1533 = vld [vmem:[#allocation6 + $0x108] sm:$0xff]
    %v1534 = vld [vmem:[#allocation6 + $0x110] sm:$0xff]
    %v1535 = vld [vmem:[#allocation6 + $0x118] sm:$0xff]
    %v1536 = vld [vmem:[#allocation6 + $0x120] sm:$0xff]
    %v1537 = vld [vmem:[#allocation6 + $0x128] sm:$0xff]
    %v1538 = vld [vmem:[#allocation6 + $0x130] sm:$0xff]
    %v1539 = vld [vmem:[#allocation6 + $0x138] sm:$0xff]
    %v1540 = vld [vmem:[#allocation6 + $0x140] sm:$0xff]
    %v1541 = vld [vmem:[#allocation6 + $0x148] sm:$0xff]
    %v1542 = vld [vmem:[#allocation6 + $0x150] sm:$0xff]
    %v1543 = vld [vmem:[#allocation6 + $0x158] sm:$0xff]
    %v1544 = vld [vmem:[#allocation6 + $0x160] sm:$0xff]
    %v1545 = vld [vmem:[#allocation6 + $0x168] sm:$0xff]
    %v1546 = vld [vmem:[#allocation6 + $0x170] sm:$0xff]
    %v1547 = vld [vmem:[#allocation6 + $0x178] sm:$0xff]
    %1548 = vmatpush.msra.mxu0 %v1545
    %1549 = vmatpush.msra.mxu0 %v1542
    %1550 = vmatpush.msra.mxu0 %v1539
    %1551 = vmatpush.msra.mxu0 %v1536
    %1552 = vmatpush.msra.mxu0 %v1533
    %1553 = vmatpush.msra.mxu0 %v1530
    %1554 = vmatpush.msra.mxu0 %v1527
    %1555 = vmatpush.msra.mxu0 %v1524
    %1556 = vmatpush.msra.mxu0 %v1521
    %1557 = vmatpush.msra.mxu0 %v1518
    %1558 = vmatpush.msra.mxu0 %v1515
    %1559 = vmatpush.msra.mxu0 %v1512
    %1560 = vmatpush.msra.mxu0 %v1509
    %1561 = vmatpush.msra.mxu0 %v1506
    %1562 = vmatpush.msra.mxu0 %v1503
    %1563 = vmatpush.msra.mxu0 %v1500
    %1564 = vmatmul.f32.gmra.mxu0 %v1495
    %v1565 = vpop.f32.mrf.mxu0
    %v1566 = vadd.f32 0.0, %v1565
    %1567 = vdwg.mxu0
    %1568 = vmatpush.msra.mxu0 %v1546
    %1569 = vmatpush.msra.mxu0 %v1543
    %1570 = vmatpush.msra.mxu0 %v1540
    %1571 = vmatpush.msra.mxu0 %v1537
    %1572 = vmatpush.msra.mxu0 %v1534
    %1573 = vmatpush.msra.mxu0 %v1531
    %1574 = vmatpush.msra.mxu0 %v1528
    %1575 = vmatpush.msra.mxu0 %v1525
    %1576 = vmatpush.msra.mxu0 %v1522
    %1577 = vmatpush.msra.mxu0 %v1519
    %1578 = vmatpush.msra.mxu0 %v1516
    %1579 = vmatpush.msra.mxu0 %v1513
    %1580 = vmatpush.msra.mxu0 %v1510
    %1581 = vmatpush.msra.mxu0 %v1507
    %1582 = vmatpush.msra.mxu0 %v1504
    %1583 = vmatpush.msra.mxu0 %v1501
    %1584 = vmatmul.f32.gmra.mxu0 %v1495
    %v1585 = vpop.f32.mrf.mxu0
    %v1586 = vadd.f32 0.0, %v1585
    %1587 = vdwg.mxu0
    %1588 = vmatpush.msra.mxu0 %v1547
    %1589 = vmatpush.msra.mxu0 %v1544
    %1590 = vmatpush.msra.mxu0 %v1541
    %1591 = vmatpush.msra.mxu0 %v1538
    %1592 = vmatpush.msra.mxu0 %v1535
    %1593 = vmatpush.msra.mxu0 %v1532
    %1594 = vmatpush.msra.mxu0 %v1529
    %1595 = vmatpush.msra.mxu0 %v1526
    %1596 = vmatpush.msra.mxu0 %v1523
    %1597 = vmatpush.msra.mxu0 %v1520
    %1598 = vmatpush.msra.mxu0 %v1517
    %1599 = vmatpush.msra.mxu0 %v1514
    %1600 = vmatpush.msra.mxu0 %v1511
    %1601 = vmatpush.msra.mxu0 %v1508
    %1602 = vmatpush.msra.mxu0 %v1505
    %1603 = vmatpush.msra.mxu0 %v1502
    %1604 = vmatmul.f32.gmra.mxu0 %v1495
    %v1605 = vpop.f32.mrf.mxu0
    %v1606 = vadd.f32 0.0, %v1605
    %1607 = vdwg.mxu0
    %v1608 = vadd.f32 %v1497, %v1566
    %v1609 = vxor.u32 %v1608, 2147483648
    %v1610 = vmul.f32 %v1609, 1.442695
    %v1611 = vpow.pop %v1610
    %v1612 = vadd.f32 %v1611, 1.0
    %v1613 = vrcp.pop %v1612
    %v1614 = vmul.f32 %v1612, %v1613
    %v1615 = vsub.f32 1.0, %v1614
    %v1616 = vmul.f32 %v1613, %v1615
    %v1617 = vadd.f32 %v1613, %v1616
    %vm1618 = vweird.f32 %v1612
    %vm1619 = vweird.f32 %v1613
    %vm1620 = vmor %vm1618, %vm1619
    %v1621 = vsel %vm1620, %v1613, %v1617
    %v1622 = vand.u32 2147483647, %v1612
    %vm1623 = vcmp.eq.f32.partialorder %v1622, 8.507059e+37
    %v1624 = vand.u32 %v1612, 2147483648
    %v1625 = vor.u32 1.1754944e-38, %v1624
    %v1626 = vsel %vm1623, %v1625, %v1621
    %v1627 = vmul.f32 1.0, %v1626
    %v1628 = vadd.f32 %v1498, %v1586
    %v1629 = vxor.u32 %v1628, 2147483648
    %v1630 = vmul.f32 %v1629, 1.442695
    %v1631 = vpow.pop %v1630
    %v1632 = vadd.f32 %v1631, 1.0
    %v1633 = vrcp.pop %v1632
    %v1634 = vmul.f32 %v1632, %v1633
    %v1635 = vsub.f32 1.0, %v1634
    %v1636 = vmul.f32 %v1633, %v1635
    %v1637 = vadd.f32 %v1633, %v1636
    %vm1638 = vweird.f32 %v1632
    %vm1639 = vweird.f32 %v1633
    %vm1640 = vmor %vm1638, %vm1639
    %v1641 = vsel %vm1640, %v1633, %v1637
    %v1642 = vand.u32 2147483647, %v1632
    %vm1643 = vcmp.eq.f32.partialorder %v1642, 8.507059e+37
    %v1644 = vand.u32 %v1632, 2147483648
    %v1645 = vor.u32 1.1754944e-38, %v1644
    %v1646 = vsel %vm1643, %v1645, %v1641
    %v1647 = vmul.f32 1.0, %v1646
    %v1648 = vadd.f32 %v1606, %v526
    %v1649 = vmul.f32 %v1627, %v1648
    %v1650 = vadd.f32 %v1499, %v1649
    %v1651 = vtanh.pop %v1650
    %v1652 = vsub.f32 1.0, %v1647
    %v1653 = vmul.f32 %v1652, %v1651
    %v1654 = vmul.f32 %v1647, %v1495
    %v1655 = vadd.f32 %v1653, %v1654
    %1656 = vst [vmem:[#allocation3 + $0x38] sm:$0xff] %v1655
    %v1657 = vld [vmem:[#allocation3] sm:$0xff]
    %v1658 = vld [vmem:[#allocation3 + $0x8] sm:$0xff]
    %v1659 = vld [vmem:[#allocation3 + $0x10] sm:$0xff]
    %v1660 = vld [vmem:[#allocation3 + $0x18] sm:$0xff]
    %v1661 = vld [vmem:[#allocation3 + $0x20] sm:$0xff]
    %v1662 = vld [vmem:[#allocation3 + $0x28] sm:$0xff]
    %v1663 = vld [vmem:[#allocation3 + $0x30] sm:$0xff]
    %v1664 = vld [vmem:[#allocation3 + $0x38] sm:$0xff]
    %v1665 = vld [vmem:[#allocation8] sm:$0xff]
    %v1666 = vld [vmem:[#allocation8 + $0x8] sm:$0xff]
    %v1667 = vld [vmem:[#allocation8 + $0x10] sm:$0xff]
    %v1668 = vld [vmem:[#allocation8 + $0x18] sm:$0xff]
    %v1669 = vld [vmem:[#allocation8 + $0x20] sm:$0xff]
    %v1670 = vld [vmem:[#allocation8 + $0x28] sm:$0xff]
    %v1671 = vld [vmem:[#allocation8 + $0x30] sm:$0xff]
    %v1672 = vld [vmem:[#allocation8 + $0x38] sm:$0xff]
    %v1673 = vld [vmem:[#allocation8 + $0x40] sm:$0xff]
    %v1674 = vld [vmem:[#allocation8 + $0x48] sm:$0xff]
    %v1675 = vld [vmem:[#allocation8 + $0x50] sm:$0xff]
    %v1676 = vld [vmem:[#allocation8 + $0x58] sm:$0xff]
    %v1677 = vld [vmem:[#allocation8 + $0x60] sm:$0xff]
    %v1678 = vld [vmem:[#allocation8 + $0x68] sm:$0xff]
    %v1679 = vld [vmem:[#allocation8 + $0x70] sm:$0xff]
    %v1680 = vld [vmem:[#allocation8 + $0x78] sm:$0xff]
    %v1681 = vld [vmem:[#allocation8 + $0x80] sm:$0xff]
    %v1682 = vld [vmem:[#allocation8 + $0x88] sm:$0xff]
    %v1683 = vld [vmem:[#allocation8 + $0x90] sm:$0xff]
    %v1684 = vld [vmem:[#allocation8 + $0x98] sm:$0xff]
    %v1685 = vld [vmem:[#allocation8 + $0xa0] sm:$0xff]
    %v1686 = vld [vmem:[#allocation8 + $0xa8] sm:$0xff]
    %v1687 = vld [vmem:[#allocation8 + $0xb0] sm:$0xff]
    %v1688 = vld [vmem:[#allocation8 + $0xb8] sm:$0xff]
    %v1689 = vld [vmem:[#allocation8 + $0xc0] sm:$0xff]
    %v1690 = vld [vmem:[#allocation8 + $0xc8] sm:$0xff]
    %v1691 = vld [vmem:[#allocation8 + $0xd0] sm:$0xff]
    %v1692 = vld [vmem:[#allocation8 + $0xd8] sm:$0xff]
    %v1693 = vld [vmem:[#allocation8 + $0xe0] sm:$0xff]
    %v1694 = vld [vmem:[#allocation8 + $0xe8] sm:$0xff]
    %v1695 = vld [vmem:[#allocation8 + $0xf0] sm:$0xff]
    %v1696 = vld [vmem:[#allocation8 + $0xf8] sm:$0xff]
    %v1697 = vld [vmem:[#allocation8 + $0x100] sm:$0xff]
    %v1698 = vld [vmem:[#allocation8 + $0x108] sm:$0xff]
    %v1699 = vld [vmem:[#allocation8 + $0x110] sm:$0xff]
    %v1700 = vld [vmem:[#allocation8 + $0x118] sm:$0xff]
    %v1701 = vld [vmem:[#allocation8 + $0x120] sm:$0xff]
    %v1702 = vld [vmem:[#allocation8 + $0x128] sm:$0xff]
    %v1703 = vld [vmem:[#allocation8 + $0x130] sm:$0xff]
    %v1704 = vld [vmem:[#allocation8 + $0x138] sm:$0xff]
    %v1705 = vld [vmem:[#allocation8 + $0x140] sm:$0xff]
    %v1706 = vld [vmem:[#allocation8 + $0x148] sm:$0xff]
    %v1707 = vld [vmem:[#allocation8 + $0x150] sm:$0xff]
    %v1708 = vld [vmem:[#allocation8 + $0x158] sm:$0xff]
    %v1709 = vld [vmem:[#allocation8 + $0x160] sm:$0xff]
    %v1710 = vld [vmem:[#allocation8 + $0x168] sm:$0xff]
    %v1711 = vld [vmem:[#allocation8 + $0x170] sm:$0xff]
    %v1712 = vld [vmem:[#allocation8 + $0x178] sm:$0xff]
    %v1713 = vld [vmem:[%s8] sm:$0x7]
    %v1715 = vperm.slane %v1713, 0
    %v1716 = vperm.slane %v1713, 1
    %v1717 = vperm.slane %v1713, 2
    %1721 = vmatpush.msra.mxu0 %v1710
    %1722 = vmatpush.msra.mxu0 %v1707
    %1723 = vmatpush.msra.mxu0 %v1704
    %1724 = vmatpush.msra.mxu0 %v1701
    %1725 = vmatpush.msra.mxu0 %v1698
    %1726 = vmatpush.msra.mxu0 %v1695
    %1727 = vmatpush.msra.mxu0 %v1692
    %1728 = vmatpush.msra.mxu0 %v1689
    %1729 = vmatpush.msra.mxu0 %v1686
    %1730 = vmatpush.msra.mxu0 %v1683
    %1731 = vmatpush.msra.mxu0 %v1680
    %1732 = vmatpush.msra.mxu0 %v1677
    %1733 = vmatpush.msra.mxu0 %v1674
    %1734 = vmatpush.msra.mxu0 %v1671
    %1735 = vmatpush.msra.mxu0 %v1668
    %1736 = vmatpush.msra.mxu0 %v1665
    %1737 = vmatmul.f32.gmra.mxu0 %v1657
    %v1738 = vpop.f32.mrf.mxu0
    %v1739 = vadd.f32 %v1715, %v1738
    %1740 = vmatmul.f32.gmra.mxu0 %v1658
    %v1741 = vpop.f32.mrf.mxu0
    %v1742 = vadd.f32 %v1715, %v1741
    %1743 = vmatmul.f32.gmra.mxu0 %v1659
    %v1744 = vpop.f32.mrf.mxu0
    %v1745 = vadd.f32 %v1715, %v1744
    %1746 = vmatmul.f32.gmra.mxu0 %v1660
    %v1747 = vpop.f32.mrf.mxu0
    %v1748 = vadd.f32 %v1715, %v1747
    %1749 = vmatmul.f32.gmra.mxu0 %v1661
    %v1750 = vpop.f32.mrf.mxu0
    %v1751 = vadd.f32 %v1715, %v1750
    %1752 = vmatmul.f32.gmra.mxu0 %v1662
    %v1753 = vpop.f32.mrf.mxu0
    %v1754 = vadd.f32 %v1715, %v1753
    %1755 = vmatmul.f32.gmra.mxu0 %v1663
    %v1756 = vpop.f32.mrf.mxu0
    %v1757 = vadd.f32 %v1715, %v1756
    %1758 = vmatmul.f32.gmra.mxu0 %v1664
    %v1759 = vpop.f32.mrf.mxu0
    %v1760 = vadd.f32 %v1715, %v1759
    %1761 = vdwg.mxu0
    %1762 = vmatpush.msra.mxu0 %v1711
    %1763 = vmatpush.msra.mxu0 %v1708
    %1764 = vmatpush.msra.mxu0 %v1705
    %1765 = vmatpush.msra.mxu0 %v1702
    %1766 = vmatpush.msra.mxu0 %v1699
    %1767 = vmatpush.msra.mxu0 %v1696
    %1768 = vmatpush.msra.mxu0 %v1693
    %1769 = vmatpush.msra.mxu0 %v1690
    %1770 = vmatpush.msra.mxu0 %v1687
    %1771 = vmatpush.msra.mxu0 %v1684
    %1772 = vmatpush.msra.mxu0 %v1681
    %1773 = vmatpush.msra.mxu0 %v1678
    %1774 = vmatpush.msra.mxu0 %v1675
    %1775 = vmatpush.msra.mxu0 %v1672
    %1776 = vmatpush.msra.mxu0 %v1669
    %1777 = vmatpush.msra.mxu0 %v1666
    %1778 = vmatmul.f32.gmra.mxu0 %v1657
    %v1779 = vpop.f32.mrf.mxu0
    %v1780 = vadd.f32 %v1716, %v1779
    %1781 = vmatmul.f32.gmra.mxu0 %v1658
    %v1782 = vpop.f32.mrf.mxu0
    %v1783 = vadd.f32 %v1716, %v1782
    %1784 = vmatmul.f32.gmra.mxu0 %v1659
    %v1785 = vpop.f32.mrf.mxu0
    %v1786 = vadd.f32 %v1716, %v1785
    %1787 = vmatmul.f32.gmra.mxu0 %v1660
    %v1788 = vpop.f32.mrf.mxu0
    %v1789 = vadd.f32 %v1716, %v1788
    %1790 = vmatmul.f32.gmra.mxu0 %v1661
    %v1791 = vpop.f32.mrf.mxu0
    %v1792 = vadd.f32 %v1716, %v1791
    %1793 = vmatmul.f32.gmra.mxu0 %v1662
    %v1794 = vpop.f32.mrf.mxu0
    %v1795 = vadd.f32 %v1716, %v1794
    %1796 = vmatmul.f32.gmra.mxu0 %v1663
    %v1797 = vpop.f32.mrf.mxu0
    %v1798 = vadd.f32 %v1716, %v1797
    %1799 = vmatmul.f32.gmra.mxu0 %v1664
    %v1800 = vpop.f32.mrf.mxu0
    %v1801 = vadd.f32 %v1716, %v1800
    %1802 = vdwg.mxu0
    %1803 = vmatpush.msra.mxu0 %v1712
    %1804 = vmatpush.msra.mxu0 %v1709
    %1805 = vmatpush.msra.mxu0 %v1706
    %1806 = vmatpush.msra.mxu0 %v1703
    %1807 = vmatpush.msra.mxu0 %v1700
    %1808 = vmatpush.msra.mxu0 %v1697
    %1809 = vmatpush.msra.mxu0 %v1694
    %1810 = vmatpush.msra.mxu0 %v1691
    %1811 = vmatpush.msra.mxu0 %v1688
    %1812 = vmatpush.msra.mxu0 %v1685
    %1813 = vmatpush.msra.mxu0 %v1682
    %1814 = vmatpush.msra.mxu0 %v1679
    %1815 = vmatpush.msra.mxu0 %v1676
    %1816 = vmatpush.msra.mxu0 %v1673
    %1817 = vmatpush.msra.mxu0 %v1670
    %1818 = vmatpush.msra.mxu0 %v1667
    %1819 = vmatmul.f32.gmra.mxu0 %v1657
    %v1820 = vpop.f32.mrf.mxu0
    %v1821 = vadd.f32 %v1717, %v1820
    %1822 = vmatmul.f32.gmra.mxu0 %v1658
    %v1823 = vpop.f32.mrf.mxu0
    %v1824 = vadd.f32 %v1717, %v1823
    %1825 = vmatmul.f32.gmra.mxu0 %v1659
    %v1826 = vpop.f32.mrf.mxu0
    %v1827 = vadd.f32 %v1717, %v1826
    %1828 = vmatmul.f32.gmra.mxu0 %v1660
    %v1829 = vpop.f32.mrf.mxu0
    %v1830 = vadd.f32 %v1717, %v1829
    %1831 = vmatmul.f32.gmra.mxu0 %v1661
    %v1832 = vpop.f32.mrf.mxu0
    %v1833 = vadd.f32 %v1717, %v1832
    %1834 = vmatmul.f32.gmra.mxu0 %v1662
    %v1835 = vpop.f32.mrf.mxu0
    %v1836 = vadd.f32 %v1717, %v1835
    %1837 = vmatmul.f32.gmra.mxu0 %v1663
    %v1838 = vpop.f32.mrf.mxu0
    %v1839 = vadd.f32 %v1717, %v1838
    %1840 = vmatmul.f32.gmra.mxu0 %v1664
    %v1841 = vpop.f32.mrf.mxu0
    %v1842 = vadd.f32 %v1717, %v1841
    %1843 = vdwg.mxu0
    %1844 = vst [vmem:[#allocation2] sm:$0xff] %v1739
    %1845 = vst [vmem:[#allocation2 + $0x8] sm:$0xff] %v1780
    %1846 = vst [vmem:[#allocation2 + $0x10] sm:$0xff] %v1821
    %1847 = vst [vmem:[#allocation2 + $0x18] sm:$0xff] %v1742
    %1848 = vst [vmem:[#allocation2 + $0x20] sm:$0xff] %v1783
    %1849 = vst [vmem:[#allocation2 + $0x28] sm:$0xff] %v1824
    %1850 = vst [vmem:[#allocation2 + $0x30] sm:$0xff] %v1745
    %1851 = vst [vmem:[#allocation2 + $0x38] sm:$0xff] %v1786
    %1852 = vst [vmem:[#allocation2 + $0x40] sm:$0xff] %v1827
    %1853 = vst [vmem:[#allocation2 + $0x48] sm:$0xff] %v1748
    %1854 = vst [vmem:[#allocation2 + $0x50] sm:$0xff] %v1789
    %1855 = vst [vmem:[#allocation2 + $0x58] sm:$0xff] %v1830
    %1856 = vst [vmem:[#allocation2 + $0x60] sm:$0xff] %v1751
    %1857 = vst [vmem:[#allocation2 + $0x68] sm:$0xff] %v1792
    %1858 = vst [vmem:[#allocation2 + $0x70] sm:$0xff] %v1833
    %1859 = vst [vmem:[#allocation2 + $0x78] sm:$0xff] %v1754
    %1860 = vst [vmem:[#allocation2 + $0x80] sm:$0xff] %v1795
    %1861 = vst [vmem:[#allocation2 + $0x88] sm:$0xff] %v1836
    %1862 = vst [vmem:[#allocation2 + $0x90] sm:$0xff] %v1757
    %1863 = vst [vmem:[#allocation2 + $0x98] sm:$0xff] %v1798
    %1864 = vst [vmem:[#allocation2 + $0xa0] sm:$0xff] %v1839
    %1865 = vst [vmem:[#allocation2 + $0xa8] sm:$0xff] %v1760
    %1866 = vst [vmem:[#allocation2 + $0xb0] sm:$0xff] %v1801
    %1867 = vst [vmem:[#allocation2 + $0xb8] sm:$0xff] %v1842
    %v1868 = vld [vmem:[%s9] sm:$0x1]
    %v1869 = vld [vmem:[#allocation2] sm:$0xff]
    %v1870 = vld [vmem:[#allocation2 + $0x8] sm:$0xff]
    %v1871 = vld [vmem:[#allocation2 + $0x10] sm:$0xff]
    %v1872 = vld [vmem:[#allocation9] sm:$0xff]
    %v1873 = vld [vmem:[#allocation9 + $0x8] sm:$0xff]
    %v1874 = vld [vmem:[#allocation9 + $0x10] sm:$0xff]
    %v1875 = vld [vmem:[#allocation9 + $0x18] sm:$0xff]
    %v1876 = vld [vmem:[#allocation9 + $0x20] sm:$0xff]
    %v1877 = vld [vmem:[#allocation9 + $0x28] sm:$0xff]
    %v1878 = vld [vmem:[#allocation9 + $0x30] sm:$0xff]
    %v1879 = vld [vmem:[#allocation9 + $0x38] sm:$0xff]
    %v1880 = vld [vmem:[#allocation9 + $0x40] sm:$0xff]
    %v1881 = vld [vmem:[#allocation9 + $0x48] sm:$0xff]
    %v1882 = vld [vmem:[#allocation9 + $0x50] sm:$0xff]
    %v1883 = vld [vmem:[#allocation9 + $0x58] sm:$0xff]
    %v1884 = vld [vmem:[#allocation9 + $0x60] sm:$0xff]
    %v1885 = vld [vmem:[#allocation9 + $0x68] sm:$0xff]
    %v1886 = vld [vmem:[#allocation9 + $0x70] sm:$0xff]
    %v1887 = vld [vmem:[#allocation9 + $0x78] sm:$0xff]
    %v1888 = vld [vmem:[#allocation9 + $0x80] sm:$0xff]
    %v1889 = vld [vmem:[#allocation9 + $0x88] sm:$0xff]
    %v1890 = vld [vmem:[#allocation9 + $0x90] sm:$0xff]
    %v1891 = vld [vmem:[#allocation9 + $0x98] sm:$0xff]
    %v1892 = vld [vmem:[#allocation9 + $0xa0] sm:$0xff]
    %v1893 = vld [vmem:[#allocation9 + $0xa8] sm:$0xff]
    %v1894 = vld [vmem:[#allocation9 + $0xb0] sm:$0xff]
    %v1895 = vld [vmem:[#allocation9 + $0xb8] sm:$0xff]
    %v1896 = vld [vmem:[#allocation9 + $0xc0] sm:$0xff]
    %v1897 = vld [vmem:[#allocation9 + $0xc8] sm:$0xff]
    %v1898 = vld [vmem:[#allocation9 + $0xd0] sm:$0xff]
    %v1899 = vld [vmem:[#allocation9 + $0xd8] sm:$0xff]
    %v1900 = vld [vmem:[#allocation9 + $0xe0] sm:$0xff]
    %v1901 = vld [vmem:[#allocation9 + $0xe8] sm:$0xff]
    %v1902 = vld [vmem:[#allocation9 + $0xf0] sm:$0xff]
    %v1903 = vld [vmem:[#allocation9 + $0xf8] sm:$0xff]
    %v1904 = vld [vmem:[#allocation9 + $0x100] sm:$0xff]
    %v1905 = vld [vmem:[#allocation9 + $0x108] sm:$0xff]
    %v1906 = vld [vmem:[#allocation9 + $0x110] sm:$0xff]
    %v1907 = vld [vmem:[#allocation9 + $0x118] sm:$0xff]
    %v1908 = vld [vmem:[#allocation9 + $0x120] sm:$0xff]
    %v1909 = vld [vmem:[#allocation9 + $0x128] sm:$0xff]
    %v1910 = vld [vmem:[#allocation9 + $0x130] sm:$0xff]
    %v1911 = vld [vmem:[#allocation9 + $0x138] sm:$0xff]
    %v1912 = vld [vmem:[#allocation9 + $0x140] sm:$0xff]
    %v1913 = vld [vmem:[#allocation9 + $0x148] sm:$0xff]
    %v1914 = vld [vmem:[#allocation9 + $0x150] sm:$0xff]
    %v1915 = vld [vmem:[#allocation9 + $0x158] sm:$0xff]
    %v1916 = vld [vmem:[#allocation9 + $0x160] sm:$0xff]
    %v1917 = vld [vmem:[#allocation9 + $0x168] sm:$0xff]
    %v1918 = vld [vmem:[#allocation9 + $0x170] sm:$0xff]
    %v1919 = vld [vmem:[#allocation9 + $0x178] sm:$0xff]
    %1920 = vmatpush.msra.mxu0 %v1917
    %1921 = vmatpush.msra.mxu0 %v1914
    %1922 = vmatpush.msra.mxu0 %v1911
    %1923 = vmatpush.msra.mxu0 %v1908
    %1924 = vmatpush.msra.mxu0 %v1905
    %1925 = vmatpush.msra.mxu0 %v1902
    %1926 = vmatpush.msra.mxu0 %v1899
    %1927 = vmatpush.msra.mxu0 %v1896
    %1928 = vmatpush.msra.mxu0 %v1893
    %1929 = vmatpush.msra.mxu0 %v1890
    %1930 = vmatpush.msra.mxu0 %v1887
    %1931 = vmatpush.msra.mxu0 %v1884
    %1932 = vmatpush.msra.mxu0 %v1881
    %1933 = vmatpush.msra.mxu0 %v1878
    %1934 = vmatpush.msra.mxu0 %v1875
    %1935 = vmatpush.msra.mxu0 %v1872
    %1936 = vmatmul.f32.gmra.mxu0 0.0
    %v1937 = vpop.f32.mrf.mxu0
    %v1938 = vadd.f32 0.0, %v1937
    %1939 = vdwg.mxu0
    %1940 = vmatpush.msra.mxu0 %v1918
    %1941 = vmatpush.msra.mxu0 %v1915
    %1942 = vmatpush.msra.mxu0 %v1912
    %1943 = vmatpush.msra.mxu0 %v1909
    %1944 = vmatpush.msra.mxu0 %v1906
    %1945 = vmatpush.msra.mxu0 %v1903
    %1946 = vmatpush.msra.mxu0 %v1900
    %1947 = vmatpush.msra.mxu0 %v1897
    %1948 = vmatpush.msra.mxu0 %v1894
    %1949 = vmatpush.msra.mxu0 %v1891
    %1950 = vmatpush.msra.mxu0 %v1888
    %1951 = vmatpush.msra.mxu0 %v1885
    %1952 = vmatpush.msra.mxu0 %v1882
    %1953 = vmatpush.msra.mxu0 %v1879
    %1954 = vmatpush.msra.mxu0 %v1876
    %1955 = vmatpush.msra.mxu0 %v1873
    %1956 = vmatmul.f32.gmra.mxu0 0.0
    %v1957 = vpop.f32.mrf.mxu0
    %v1958 = vadd.f32 0.0, %v1957
    %1959 = vdwg.mxu0
    %1960 = vmatpush.msra.mxu0 %v1919
    %1961 = vmatpush.msra.mxu0 %v1916
    %1962 = vmatpush.msra.mxu0 %v1913
    %1963 = vmatpush.msra.mxu0 %v1910
    %1964 = vmatpush.msra.mxu0 %v1907
    %1965 = vmatpush.msra.mxu0 %v1904
    %1966 = vmatpush.msra.mxu0 %v1901
    %1967 = vmatpush.msra.mxu0 %v1898
    %1968 = vmatpush.msra.mxu0 %v1895
    %1969 = vmatpush.msra.mxu0 %v1892
    %1970 = vmatpush.msra.mxu0 %v1889
    %1971 = vmatpush.msra.mxu0 %v1886
    %1972 = vmatpush.msra.mxu0 %v1883
    %1973 = vmatpush.msra.mxu0 %v1880
    %1974 = vmatpush.msra.mxu0 %v1877
    %1975 = vmatpush.msra.mxu0 %v1874
    %1976 = vmatmul.f32.gmra.mxu0 0.0
    %v1977 = vpop.f32.mrf.mxu0
    %v1978 = vadd.f32 0.0, %v1977
    %1979 = vdwg.mxu0
    %v1980 = vadd.f32 %v1869, %v1938
    %v1981 = vxor.u32 %v1980, 2147483648
    %v1982 = vmul.f32 %v1981, 1.442695
    %v1983 = vpow.pop %v1982
    %v1984 = vadd.f32 %v1983, 1.0
    %v1985 = vrcp.pop %v1984
    %v1986 = vmul.f32 %v1984, %v1985
    %v1987 = vsub.f32 1.0, %v1986
    %v1988 = vmul.f32 %v1985, %v1987
    %v1989 = vadd.f32 %v1985, %v1988
    %vm1990 = vweird.f32 %v1984
    %vm1991 = vweird.f32 %v1985
    %vm1992 = vmor %vm1990, %vm1991
    %v1993 = vsel %vm1992, %v1985, %v1989
    %v1994 = vand.u32 2147483647, %v1984
    %vm1995 = vcmp.eq.f32.partialorder %v1994, 8.507059e+37
    %v1996 = vand.u32 %v1984, 2147483648
    %v1997 = vor.u32 1.1754944e-38, %v1996
    %v1998 = vsel %vm1995, %v1997, %v1993
    %v1999 = vmul.f32 1.0, %v1998
    %v2000 = vadd.f32 %v1870, %v1958
    %v2001 = vxor.u32 %v2000, 2147483648
    %v2002 = vmul.f32 %v2001, 1.442695
    %v2003 = vpow.pop %v2002
    %v2004 = vadd.f32 %v2003, 1.0
    %v2005 = vrcp.pop %v2004
    %v2006 = vmul.f32 %v2004, %v2005
    %v2007 = vsub.f32 1.0, %v2006
    %v2008 = vmul.f32 %v2005, %v2007
    %v2009 = vadd.f32 %v2005, %v2008
    %vm2010 = vweird.f32 %v2004
    %vm2011 = vweird.f32 %v2005
    %vm2012 = vmor %vm2010, %vm2011
    %v2013 = vsel %vm2012, %v2005, %v2009
    %v2014 = vand.u32 2147483647, %v2004
    %vm2015 = vcmp.eq.f32.partialorder %v2014, 8.507059e+37
    %v2016 = vand.u32 %v2004, 2147483648
    %v2017 = vor.u32 1.1754944e-38, %v2016
    %v2018 = vsel %vm2015, %v2017, %v2013
    %v2019 = vmul.f32 1.0, %v2018
    %v2021 = vperm.slane %v1868, 0
    %v2023 = vadd.f32 %v1978, %v2021
    %v2024 = vmul.f32 %v1999, %v2023
    %v2025 = vadd.f32 %v1871, %v2024
    %v2026 = vtanh.pop %v2025
    %v2027 = vsub.f32 1.0, %v2019
    %v2028 = vmul.f32 %v2027, %v2026
    %v2029 = vmul.f32 %v2019, 0.0
    %v2030 = vadd.f32 %v2028, %v2029
    %v2031 = vld [vmem:[#allocation2 + $0x18] sm:$0xff]
    %v2032 = vld [vmem:[#allocation2 + $0x20] sm:$0xff]
    %v2033 = vld [vmem:[#allocation2 + $0x28] sm:$0xff]
    %2034 = vmatpush.msra.mxu0 %v1917
    %2035 = vmatpush.msra.mxu0 %v1914
    %2036 = vmatpush.msra.mxu0 %v1911
    %2037 = vmatpush.msra.mxu0 %v1908
    %2038 = vmatpush.msra.mxu0 %v1905
    %2039 = vmatpush.msra.mxu0 %v1902
    %2040 = vmatpush.msra.mxu0 %v1899
    %2041 = vmatpush.msra.mxu0 %v1896
    %2042 = vmatpush.msra.mxu0 %v1893
    %2043 = vmatpush.msra.mxu0 %v1890
    %2044 = vmatpush.msra.mxu0 %v1887
    %2045 = vmatpush.msra.mxu0 %v1884
    %2046 = vmatpush.msra.mxu0 %v1881
    %2047 = vmatpush.msra.mxu0 %v1878
    %2048 = vmatpush.msra.mxu0 %v1875
    %2049 = vmatpush.msra.mxu0 %v1872
    %2050 = vmatmul.f32.gmra.mxu0 %v2030
    %v2051 = vpop.f32.mrf.mxu0
    %v2052 = vadd.f32 0.0, %v2051
    %2053 = vdwg.mxu0
    %2054 = vmatpush.msra.mxu0 %v1918
    %2055 = vmatpush.msra.mxu0 %v1915
    %2056 = vmatpush.msra.mxu0 %v1912
    %2057 = vmatpush.msra.mxu0 %v1909
    %2058 = vmatpush.msra.mxu0 %v1906
    %2059 = vmatpush.msra.mxu0 %v1903
    %2060 = vmatpush.msra.mxu0 %v1900
    %2061 = vmatpush.msra.mxu0 %v1897
    %2062 = vmatpush.msra.mxu0 %v1894
    %2063 = vmatpush.msra.mxu0 %v1891
    %2064 = vmatpush.msra.mxu0 %v1888
    %2065 = vmatpush.msra.mxu0 %v1885
    %2066 = vmatpush.msra.mxu0 %v1882
    %2067 = vmatpush.msra.mxu0 %v1879
    %2068 = vmatpush.msra.mxu0 %v1876
    %2069 = vmatpush.msra.mxu0 %v1873
    %2070 = vmatmul.f32.gmra.mxu0 %v2030
    %v2071 = vpop.f32.mrf.mxu0
    %v2072 = vadd.f32 0.0, %v2071
    %2073 = vdwg.mxu0
    %2074 = vmatpush.msra.mxu0 %v1919
    %2075 = vmatpush.msra.mxu0 %v1916
    %2076 = vmatpush.msra.mxu0 %v1913
    %2077 = vmatpush.msra.mxu0 %v1910
    %2078 = vmatpush.msra.mxu0 %v1907
    %2079 = vmatpush.msra.mxu0 %v1904
    %2080 = vmatpush.msra.mxu0 %v1901
    %2081 = vmatpush.msra.mxu0 %v1898
    %2082 = vmatpush.msra.mxu0 %v1895
    %2083 = vmatpush.msra.mxu0 %v1892
    %2084 = vmatpush.msra.mxu0 %v1889
    %2085 = vmatpush.msra.mxu0 %v1886
    %2086 = vmatpush.msra.mxu0 %v1883
    %2087 = vmatpush.msra.mxu0 %v1880
    %2088 = vmatpush.msra.mxu0 %v1877
    %2089 = vmatpush.msra.mxu0 %v1874
    %2090 = vmatmul.f32.gmra.mxu0 %v2030
    %v2091 = vpop.f32.mrf.mxu0
    %v2092 = vadd.f32 0.0, %v2091
    %2093 = vdwg.mxu0
    %v2094 = vadd.f32 %v2031, %v2052
    %v2095 = vxor.u32 %v2094, 2147483648
    %v2096 = vmul.f32 %v2095, 1.442695
    %v2097 = vpow.pop %v2096
    %v2098 = vadd.f32 %v2097, 1.0
    %v2099 = vrcp.pop %v2098
    %v2100 = vmul.f32 %v2098, %v2099
    %v2101 = vsub.f32 1.0, %v2100
    %v2102 = vmul.f32 %v2099, %v2101
    %v2103 = vadd.f32 %v2099, %v2102
    %vm2104 = vweird.f32 %v2098
    %vm2105 = vweird.f32 %v2099
    %vm2106 = vmor %vm2104, %vm2105
    %v2107 = vsel %vm2106, %v2099, %v2103
    %v2108 = vand.u32 2147483647, %v2098
    %vm2109 = vcmp.eq.f32.partialorder %v2108, 8.507059e+37
    %v2110 = vand.u32 %v2098, 2147483648
    %v2111 = vor.u32 1.1754944e-38, %v2110
    %v2112 = vsel %vm2109, %v2111, %v2107
    %v2113 = vmul.f32 1.0, %v2112
    %v2114 = vadd.f32 %v2032, %v2072
    %v2115 = vxor.u32 %v2114, 2147483648
    %v2116 = vmul.f32 %v2115, 1.442695
    %v2117 = vpow.pop %v2116
    %v2118 = vadd.f32 %v2117, 1.0
    %v2119 = vrcp.pop %v2118
    %v2120 = vmul.f32 %v2118, %v2119
    %v2121 = vsub.f32 1.0, %v2120
    %v2122 = vmul.f32 %v2119, %v2121
    %v2123 = vadd.f32 %v2119, %v2122
    %vm2124 = vweird.f32 %v2118
    %vm2125 = vweird.f32 %v2119
    %vm2126 = vmor %vm2124, %vm2125
    %v2127 = vsel %vm2126, %v2119, %v2123
    %v2128 = vand.u32 2147483647, %v2118
    %vm2129 = vcmp.eq.f32.partialorder %v2128, 8.507059e+37
    %v2130 = vand.u32 %v2118, 2147483648
    %v2131 = vor.u32 1.1754944e-38, %v2130
    %v2132 = vsel %vm2129, %v2131, %v2127
    %v2133 = vmul.f32 1.0, %v2132
    %v2134 = vadd.f32 %v2092, %v2021
    %v2135 = vmul.f32 %v2113, %v2134
    %v2136 = vadd.f32 %v2033, %v2135
    %v2137 = vtanh.pop %v2136
    %v2138 = vsub.f32 1.0, %v2133
    %v2139 = vmul.f32 %v2138, %v2137
    %v2140 = vmul.f32 %v2133, %v2030
    %v2141 = vadd.f32 %v2139, %v2140
    %v2142 = vld [vmem:[#allocation2 + $0x30] sm:$0xff]
    %v2143 = vld [vmem:[#allocation2 + $0x38] sm:$0xff]
    %v2144 = vld [vmem:[#allocation2 + $0x40] sm:$0xff]
    %2145 = vmatpush.msra.mxu0 %v1917
    %2146 = vmatpush.msra.mxu0 %v1914
    %2147 = vmatpush.msra.mxu0 %v1911
    %2148 = vmatpush.msra.mxu0 %v1908
    %2149 = vmatpush.msra.mxu0 %v1905
    %2150 = vmatpush.msra.mxu0 %v1902
    %2151 = vmatpush.msra.mxu0 %v1899
    %2152 = vmatpush.msra.mxu0 %v1896
    %2153 = vmatpush.msra.mxu0 %v1893
    %2154 = vmatpush.msra.mxu0 %v1890
    %2155 = vmatpush.msra.mxu0 %v1887
    %2156 = vmatpush.msra.mxu0 %v1884
    %2157 = vmatpush.msra.mxu0 %v1881
    %2158 = vmatpush.msra.mxu0 %v1878
    %2159 = vmatpush.msra.mxu0 %v1875
    %2160 = vmatpush.msra.mxu0 %v1872
    %2161 = vmatmul.f32.gmra.mxu0 %v2141
    %v2162 = vpop.f32.mrf.mxu0
    %v2163 = vadd.f32 0.0, %v2162
    %2164 = vdwg.mxu0
    %2165 = vmatpush.msra.mxu0 %v1918
    %2166 = vmatpush.msra.mxu0 %v1915
    %2167 = vmatpush.msra.mxu0 %v1912
    %2168 = vmatpush.msra.mxu0 %v1909
    %2169 = vmatpush.msra.mxu0 %v1906
    %2170 = vmatpush.msra.mxu0 %v1903
    %2171 = vmatpush.msra.mxu0 %v1900
    %2172 = vmatpush.msra.mxu0 %v1897
    %2173 = vmatpush.msra.mxu0 %v1894
    %2174 = vmatpush.msra.mxu0 %v1891
    %2175 = vmatpush.msra.mxu0 %v1888
    %2176 = vmatpush.msra.mxu0 %v1885
    %2177 = vmatpush.msra.mxu0 %v1882
    %2178 = vmatpush.msra.mxu0 %v1879
    %2179 = vmatpush.msra.mxu0 %v1876
    %2180 = vmatpush.msra.mxu0 %v1873
    %2181 = vmatmul.f32.gmra.mxu0 %v2141
    %v2182 = vpop.f32.mrf.mxu0
    %v2183 = vadd.f32 0.0, %v2182
    %2184 = vdwg.mxu0
    %2185 = vmatpush.msra.mxu0 %v1919
    %2186 = vmatpush.msra.mxu0 %v1916
    %2187 = vmatpush.msra.mxu0 %v1913
    %2188 = vmatpush.msra.mxu0 %v1910
    %2189 = vmatpush.msra.mxu0 %v1907
    %2190 = vmatpush.msra.mxu0 %v1904
    %2191 = vmatpush.msra.mxu0 %v1901
    %2192 = vmatpush.msra.mxu0 %v1898
    %2193 = vmatpush.msra.mxu0 %v1895
    %2194 = vmatpush.msra.mxu0 %v1892
    %2195 = vmatpush.msra.mxu0 %v1889
    %2196 = vmatpush.msra.mxu0 %v1886
    %2197 = vmatpush.msra.mxu0 %v1883
    %2198 = vmatpush.msra.mxu0 %v1880
    %2199 = vmatpush.msra.mxu0 %v1877
    %2200 = vmatpush.msra.mxu0 %v1874
    %2201 = vmatmul.f32.gmra.mxu0 %v2141
    %v2202 = vpop.f32.mrf.mxu0
    %v2203 = vadd.f32 0.0, %v2202
    %2204 = vdwg.mxu0
    %v2205 = vadd.f32 %v2142, %v2163
    %v2206 = vxor.u32 %v2205, 2147483648
    %v2207 = vmul.f32 %v2206, 1.442695
    %v2208 = vpow.pop %v2207
    %v2209 = vadd.f32 %v2208, 1.0
    %v2210 = vrcp.pop %v2209
    %v2211 = vmul.f32 %v2209, %v2210
    %v2212 = vsub.f32 1.0, %v2211
    %v2213 = vmul.f32 %v2210, %v2212
    %v2214 = vadd.f32 %v2210, %v2213
    %vm2215 = vweird.f32 %v2209
    %vm2216 = vweird.f32 %v2210
    %vm2217 = vmor %vm2215, %vm2216
    %v2218 = vsel %vm2217, %v2210, %v2214
    %v2219 = vand.u32 2147483647, %v2209
    %vm2220 = vcmp.eq.f32.partialorder %v2219, 8.507059e+37
    %v2221 = vand.u32 %v2209, 2147483648
    %v2222 = vor.u32 1.1754944e-38, %v2221
    %v2223 = vsel %vm2220, %v2222, %v2218
    %v2224 = vmul.f32 1.0, %v2223
    %v2225 = vadd.f32 %v2143, %v2183
    %v2226 = vxor.u32 %v2225, 2147483648
    %v2227 = vmul.f32 %v2226, 1.442695
    %v2228 = vpow.pop %v2227
    %v2229 = vadd.f32 %v2228, 1.0
    %v2230 = vrcp.pop %v2229
    %v2231 = vmul.f32 %v2229, %v2230
    %v2232 = vsub.f32 1.0, %v2231
    %v2233 = vmul.f32 %v2230, %v2232
    %v2234 = vadd.f32 %v2230, %v2233
    %vm2235 = vweird.f32 %v2229
    %vm2236 = vweird.f32 %v2230
    %vm2237 = vmor %vm2235, %vm2236
    %v2238 = vsel %vm2237, %v2230, %v2234
    %v2239 = vand.u32 2147483647, %v2229
    %vm2240 = vcmp.eq.f32.partialorder %v2239, 8.507059e+37
    %v2241 = vand.u32 %v2229, 2147483648
    %v2242 = vor.u32 1.1754944e-38, %v2241
    %v2243 = vsel %vm2240, %v2242, %v2238
    %v2244 = vmul.f32 1.0, %v2243
    %v2245 = vadd.f32 %v2203, %v2021
    %v2246 = vmul.f32 %v2224, %v2245
    %v2247 = vadd.f32 %v2144, %v2246
    %v2248 = vtanh.pop %v2247
    %v2249 = vsub.f32 1.0, %v2244
    %v2250 = vmul.f32 %v2249, %v2248
    %v2251 = vmul.f32 %v2244, %v2141
    %v2252 = vadd.f32 %v2250, %v2251
    %v2253 = vld [vmem:[#allocation2 + $0x48] sm:$0xff]
    %v2254 = vld [vmem:[#allocation2 + $0x50] sm:$0xff]
    %v2255 = vld [vmem:[#allocation2 + $0x58] sm:$0xff]
    %2256 = vmatpush.msra.mxu0 %v1917
    %2257 = vmatpush.msra.mxu0 %v1914
    %2258 = vmatpush.msra.mxu0 %v1911
    %2259 = vmatpush.msra.mxu0 %v1908
    %2260 = vmatpush.msra.mxu0 %v1905
    %2261 = vmatpush.msra.mxu0 %v1902
    %2262 = vmatpush.msra.mxu0 %v1899
    %2263 = vmatpush.msra.mxu0 %v1896
    %2264 = vmatpush.msra.mxu0 %v1893
    %2265 = vmatpush.msra.mxu0 %v1890
    %2266 = vmatpush.msra.mxu0 %v1887
    %2267 = vmatpush.msra.mxu0 %v1884
    %2268 = vmatpush.msra.mxu0 %v1881
    %2269 = vmatpush.msra.mxu0 %v1878
    %2270 = vmatpush.msra.mxu0 %v1875
    %2271 = vmatpush.msra.mxu0 %v1872
    %2272 = vmatmul.f32.gmra.mxu0 %v2252
    %v2273 = vpop.f32.mrf.mxu0
    %v2274 = vadd.f32 0.0, %v2273
    %2275 = vdwg.mxu0
    %2276 = vmatpush.msra.mxu0 %v1918
    %2277 = vmatpush.msra.mxu0 %v1915
    %2278 = vmatpush.msra.mxu0 %v1912
    %2279 = vmatpush.msra.mxu0 %v1909
    %2280 = vmatpush.msra.mxu0 %v1906
    %2281 = vmatpush.msra.mxu0 %v1903
    %2282 = vmatpush.msra.mxu0 %v1900
    %2283 = vmatpush.msra.mxu0 %v1897
    %2284 = vmatpush.msra.mxu0 %v1894
    %2285 = vmatpush.msra.mxu0 %v1891
    %2286 = vmatpush.msra.mxu0 %v1888
    %2287 = vmatpush.msra.mxu0 %v1885
    %2288 = vmatpush.msra.mxu0 %v1882
    %2289 = vmatpush.msra.mxu0 %v1879
    %2290 = vmatpush.msra.mxu0 %v1876
    %2291 = vmatpush.msra.mxu0 %v1873
    %2292 = vmatmul.f32.gmra.mxu0 %v2252
    %v2293 = vpop.f32.mrf.mxu0
    %v2294 = vadd.f32 0.0, %v2293
    %2295 = vdwg.mxu0
    %2296 = vmatpush.msra.mxu0 %v1919
    %2297 = vmatpush.msra.mxu0 %v1916
    %2298 = vmatpush.msra.mxu0 %v1913
    %2299 = vmatpush.msra.mxu0 %v1910
    %2300 = vmatpush.msra.mxu0 %v1907
    %2301 = vmatpush.msra.mxu0 %v1904
    %2302 = vmatpush.msra.mxu0 %v1901
    %2303 = vmatpush.msra.mxu0 %v1898
    %2304 = vmatpush.msra.mxu0 %v1895
    %2305 = vmatpush.msra.mxu0 %v1892
    %2306 = vmatpush.msra.mxu0 %v1889
    %2307 = vmatpush.msra.mxu0 %v1886
    %2308 = vmatpush.msra.mxu0 %v1883
    %2309 = vmatpush.msra.mxu0 %v1880
    %2310 = vmatpush.msra.mxu0 %v1877
    %2311 = vmatpush.msra.mxu0 %v1874
    %2312 = vmatmul.f32.gmra.mxu0 %v2252
    %v2313 = vpop.f32.mrf.mxu0
    %v2314 = vadd.f32 0.0, %v2313
    %2315 = vdwg.mxu0
    %v2316 = vadd.f32 %v2253, %v2274
    %v2317 = vxor.u32 %v2316, 2147483648
    %v2318 = vmul.f32 %v2317, 1.442695
    %v2319 = vpow.pop %v2318
    %v2320 = vadd.f32 %v2319, 1.0
    %v2321 = vrcp.pop %v2320
    %v2322 = vmul.f32 %v2320, %v2321
    %v2323 = vsub.f32 1.0, %v2322
    %v2324 = vmul.f32 %v2321, %v2323
    %v2325 = vadd.f32 %v2321, %v2324
    %vm2326 = vweird.f32 %v2320
    %vm2327 = vweird.f32 %v2321
    %vm2328 = vmor %vm2326, %vm2327
    %v2329 = vsel %vm2328, %v2321, %v2325
    %v2330 = vand.u32 2147483647, %v2320
    %vm2331 = vcmp.eq.f32.partialorder %v2330, 8.507059e+37
    %v2332 = vand.u32 %v2320, 2147483648
    %v2333 = vor.u32 1.1754944e-38, %v2332
    %v2334 = vsel %vm2331, %v2333, %v2329
    %v2335 = vmul.f32 1.0, %v2334
    %v2336 = vadd.f32 %v2254, %v2294
    %v2337 = vxor.u32 %v2336, 2147483648
    %v2338 = vmul.f32 %v2337, 1.442695
    %v2339 = vpow.pop %v2338
    %v2340 = vadd.f32 %v2339, 1.0
    %v2341 = vrcp.pop %v2340
    %v2342 = vmul.f32 %v2340, %v2341
    %v2343 = vsub.f32 1.0, %v2342
    %v2344 = vmul.f32 %v2341, %v2343
    %v2345 = vadd.f32 %v2341, %v2344
    %vm2346 = vweird.f32 %v2340
    %vm2347 = vweird.f32 %v2341
    %vm2348 = vmor %vm2346, %vm2347
    %v2349 = vsel %vm2348, %v2341, %v2345
    %v2350 = vand.u32 2147483647, %v2340
    %vm2351 = vcmp.eq.f32.partialorder %v2350, 8.507059e+37
    %v2352 = vand.u32 %v2340, 2147483648
    %v2353 = vor.u32 1.1754944e-38, %v2352
    %v2354 = vsel %vm2351, %v2353, %v2349
    %v2355 = vmul.f32 1.0, %v2354
    %v2356 = vadd.f32 %v2314, %v2021
    %v2357 = vmul.f32 %v2335, %v2356
    %v2358 = vadd.f32 %v2255, %v2357
    %v2359 = vtanh.pop %v2358
    %v2360 = vsub.f32 1.0, %v2355
    %v2361 = vmul.f32 %v2360, %v2359
    %v2362 = vmul.f32 %v2355, %v2252
    %v2363 = vadd.f32 %v2361, %v2362
    %v2364 = vld [vmem:[#allocation2 + $0x60] sm:$0xff]
    %v2365 = vld [vmem:[#allocation2 + $0x68] sm:$0xff]
    %v2366 = vld [vmem:[#allocation2 + $0x70] sm:$0xff]
    %2367 = vmatpush.msra.mxu0 %v1917
    %2368 = vmatpush.msra.mxu0 %v1914
    %2369 = vmatpush.msra.mxu0 %v1911
    %2370 = vmatpush.msra.mxu0 %v1908
    %2371 = vmatpush.msra.mxu0 %v1905
    %2372 = vmatpush.msra.mxu0 %v1902
    %2373 = vmatpush.msra.mxu0 %v1899
    %2374 = vmatpush.msra.mxu0 %v1896
    %2375 = vmatpush.msra.mxu0 %v1893
    %2376 = vmatpush.msra.mxu0 %v1890
    %2377 = vmatpush.msra.mxu0 %v1887
    %2378 = vmatpush.msra.mxu0 %v1884
    %2379 = vmatpush.msra.mxu0 %v1881
    %2380 = vmatpush.msra.mxu0 %v1878
    %2381 = vmatpush.msra.mxu0 %v1875
    %2382 = vmatpush.msra.mxu0 %v1872
    %2383 = vmatmul.f32.gmra.mxu0 %v2363
    %v2384 = vpop.f32.mrf.mxu0
    %v2385 = vadd.f32 0.0, %v2384
    %2386 = vdwg.mxu0
    %2387 = vmatpush.msra.mxu0 %v1918
    %2388 = vmatpush.msra.mxu0 %v1915
    %2389 = vmatpush.msra.mxu0 %v1912
    %2390 = vmatpush.msra.mxu0 %v1909
    %2391 = vmatpush.msra.mxu0 %v1906
    %2392 = vmatpush.msra.mxu0 %v1903
    %2393 = vmatpush.msra.mxu0 %v1900
    %2394 = vmatpush.msra.mxu0 %v1897
    %2395 = vmatpush.msra.mxu0 %v1894
    %2396 = vmatpush.msra.mxu0 %v1891
    %2397 = vmatpush.msra.mxu0 %v1888
    %2398 = vmatpush.msra.mxu0 %v1885
    %2399 = vmatpush.msra.mxu0 %v1882
    %2400 = vmatpush.msra.mxu0 %v1879
    %2401 = vmatpush.msra.mxu0 %v1876
    %2402 = vmatpush.msra.mxu0 %v1873
    %2403 = vmatmul.f32.gmra.mxu0 %v2363
    %v2404 = vpop.f32.mrf.mxu0
    %v2405 = vadd.f32 0.0, %v2404
    %2406 = vdwg.mxu0
    %2407 = vmatpush.msra.mxu0 %v1919
    %2408 = vmatpush.msra.mxu0 %v1916
    %2409 = vmatpush.msra.mxu0 %v1913
    %2410 = vmatpush.msra.mxu0 %v1910
    %2411 = vmatpush.msra.mxu0 %v1907
    %2412 = vmatpush.msra.mxu0 %v1904
    %2413 = vmatpush.msra.mxu0 %v1901
    %2414 = vmatpush.msra.mxu0 %v1898
    %2415 = vmatpush.msra.mxu0 %v1895
    %2416 = vmatpush.msra.mxu0 %v1892
    %2417 = vmatpush.msra.mxu0 %v1889
    %2418 = vmatpush.msra.mxu0 %v1886
    %2419 = vmatpush.msra.mxu0 %v1883
    %2420 = vmatpush.msra.mxu0 %v1880
    %2421 = vmatpush.msra.mxu0 %v1877
    %2422 = vmatpush.msra.mxu0 %v1874
    %2423 = vmatmul.f32.gmra.mxu0 %v2363
    %v2424 = vpop.f32.mrf.mxu0
    %v2425 = vadd.f32 0.0, %v2424
    %2426 = vdwg.mxu0
    %v2427 = vadd.f32 %v2364, %v2385
    %v2428 = vxor.u32 %v2427, 2147483648
    %v2429 = vmul.f32 %v2428, 1.442695
    %v2430 = vpow.pop %v2429
    %v2431 = vadd.f32 %v2430, 1.0
    %v2432 = vrcp.pop %v2431
    %v2433 = vmul.f32 %v2431, %v2432
    %v2434 = vsub.f32 1.0, %v2433
    %v2435 = vmul.f32 %v2432, %v2434
    %v2436 = vadd.f32 %v2432, %v2435
    %vm2437 = vweird.f32 %v2431
    %vm2438 = vweird.f32 %v2432
    %vm2439 = vmor %vm2437, %vm2438
    %v2440 = vsel %vm2439, %v2432, %v2436
    %v2441 = vand.u32 2147483647, %v2431
    %vm2442 = vcmp.eq.f32.partialorder %v2441, 8.507059e+37
    %v2443 = vand.u32 %v2431, 2147483648
    %v2444 = vor.u32 1.1754944e-38, %v2443
    %v2445 = vsel %vm2442, %v2444, %v2440
    %v2446 = vmul.f32 1.0, %v2445
    %v2447 = vadd.f32 %v2365, %v2405
    %v2448 = vxor.u32 %v2447, 2147483648
    %v2449 = vmul.f32 %v2448, 1.442695
    %v2450 = vpow.pop %v2449
    %v2451 = vadd.f32 %v2450, 1.0
    %v2452 = vrcp.pop %v2451
    %v2453 = vmul.f32 %v2451, %v2452
    %v2454 = vsub.f32 1.0, %v2453
    %v2455 = vmul.f32 %v2452, %v2454
    %v2456 = vadd.f32 %v2452, %v2455
    %vm2457 = vweird.f32 %v2451
    %vm2458 = vweird.f32 %v2452
    %vm2459 = vmor %vm2457, %vm2458
    %v2460 = vsel %vm2459, %v2452, %v2456
    %v2461 = vand.u32 2147483647, %v2451
    %vm2462 = vcmp.eq.f32.partialorder %v2461, 8.507059e+37
    %v2463 = vand.u32 %v2451, 2147483648
    %v2464 = vor.u32 1.1754944e-38, %v2463
    %v2465 = vsel %vm2462, %v2464, %v2460
    %v2466 = vmul.f32 1.0, %v2465
    %v2467 = vadd.f32 %v2425, %v2021
    %v2468 = vmul.f32 %v2446, %v2467
    %v2469 = vadd.f32 %v2366, %v2468
    %v2470 = vtanh.pop %v2469
    %v2471 = vsub.f32 1.0, %v2466
    %v2472 = vmul.f32 %v2471, %v2470
    %v2473 = vmul.f32 %v2466, %v2363
    %v2474 = vadd.f32 %v2472, %v2473
    %v2475 = vld [vmem:[#allocation2 + $0x78] sm:$0xff]
    %v2476 = vld [vmem:[#allocation2 + $0x80] sm:$0xff]
    %v2477 = vld [vmem:[#allocation2 + $0x88] sm:$0xff]
    %2478 = vmatpush.msra.mxu0 %v1917
    %2479 = vmatpush.msra.mxu0 %v1914
    %2480 = vmatpush.msra.mxu0 %v1911
    %2481 = vmatpush.msra.mxu0 %v1908
    %2482 = vmatpush.msra.mxu0 %v1905
    %2483 = vmatpush.msra.mxu0 %v1902
    %2484 = vmatpush.msra.mxu0 %v1899
    %2485 = vmatpush.msra.mxu0 %v1896
    %2486 = vmatpush.msra.mxu0 %v1893
    %2487 = vmatpush.msra.mxu0 %v1890
    %2488 = vmatpush.msra.mxu0 %v1887
    %2489 = vmatpush.msra.mxu0 %v1884
    %2490 = vmatpush.msra.mxu0 %v1881
    %2491 = vmatpush.msra.mxu0 %v1878
    %2492 = vmatpush.msra.mxu0 %v1875
    %2493 = vmatpush.msra.mxu0 %v1872
    %2494 = vmatmul.f32.gmra.mxu0 %v2474
    %v2495 = vpop.f32.mrf.mxu0
    %v2496 = vadd.f32 0.0, %v2495
    %2497 = vdwg.mxu0
    %2498 = vmatpush.msra.mxu0 %v1918
    %2499 = vmatpush.msra.mxu0 %v1915
    %2500 = vmatpush.msra.mxu0 %v1912
    %2501 = vmatpush.msra.mxu0 %v1909
    %2502 = vmatpush.msra.mxu0 %v1906
    %2503 = vmatpush.msra.mxu0 %v1903
    %2504 = vmatpush.msra.mxu0 %v1900
    %2505 = vmatpush.msra.mxu0 %v1897
    %2506 = vmatpush.msra.mxu0 %v1894
    %2507 = vmatpush.msra.mxu0 %v1891
    %2508 = vmatpush.msra.mxu0 %v1888
    %2509 = vmatpush.msra.mxu0 %v1885
    %2510 = vmatpush.msra.mxu0 %v1882
    %2511 = vmatpush.msra.mxu0 %v1879
    %2512 = vmatpush.msra.mxu0 %v1876
    %2513 = vmatpush.msra.mxu0 %v1873
    %2514 = vmatmul.f32.gmra.mxu0 %v2474
    %v2515 = vpop.f32.mrf.mxu0
    %v2516 = vadd.f32 0.0, %v2515
    %2517 = vdwg.mxu0
    %2518 = vmatpush.msra.mxu0 %v1919
    %2519 = vmatpush.msra.mxu0 %v1916
    %2520 = vmatpush.msra.mxu0 %v1913
    %2521 = vmatpush.msra.mxu0 %v1910
    %2522 = vmatpush.msra.mxu0 %v1907
    %2523 = vmatpush.msra.mxu0 %v1904
    %2524 = vmatpush.msra.mxu0 %v1901
    %2525 = vmatpush.msra.mxu0 %v1898
    %2526 = vmatpush.msra.mxu0 %v1895
    %2527 = vmatpush.msra.mxu0 %v1892
    %2528 = vmatpush.msra.mxu0 %v1889
    %2529 = vmatpush.msra.mxu0 %v1886
    %2530 = vmatpush.msra.mxu0 %v1883
    %2531 = vmatpush.msra.mxu0 %v1880
    %2532 = vmatpush.msra.mxu0 %v1877
    %2533 = vmatpush.msra.mxu0 %v1874
    %2534 = vmatmul.f32.gmra.mxu0 %v2474
    %v2535 = vpop.f32.mrf.mxu0
    %v2536 = vadd.f32 0.0, %v2535
    %2537 = vdwg.mxu0
    %v2538 = vadd.f32 %v2475, %v2496
    %v2539 = vxor.u32 %v2538, 2147483648
    %v2540 = vmul.f32 %v2539, 1.442695
    %v2541 = vpow.pop %v2540
    %v2542 = vadd.f32 %v2541, 1.0
    %v2543 = vrcp.pop %v2542
    %v2544 = vmul.f32 %v2542, %v2543
    %v2545 = vsub.f32 1.0, %v2544
    %v2546 = vmul.f32 %v2543, %v2545
    %v2547 = vadd.f32 %v2543, %v2546
    %vm2548 = vweird.f32 %v2542
    %vm2549 = vweird.f32 %v2543
    %vm2550 = vmor %vm2548, %vm2549
    %v2551 = vsel %vm2550, %v2543, %v2547
    %v2552 = vand.u32 2147483647, %v2542
    %vm2553 = vcmp.eq.f32.partialorder %v2552, 8.507059e+37
    %v2554 = vand.u32 %v2542, 2147483648
    %v2555 = vor.u32 1.1754944e-38, %v2554
    %v2556 = vsel %vm2553, %v2555, %v2551
    %v2557 = vmul.f32 1.0, %v2556
    %v2558 = vadd.f32 %v2476, %v2516
    %v2559 = vxor.u32 %v2558, 2147483648
    %v2560 = vmul.f32 %v2559, 1.442695
    %v2561 = vpow.pop %v2560
    %v2562 = vadd.f32 %v2561, 1.0
    %v2563 = vrcp.pop %v2562
    %v2564 = vmul.f32 %v2562, %v2563
    %v2565 = vsub.f32 1.0, %v2564
    %v2566 = vmul.f32 %v2563, %v2565
    %v2567 = vadd.f32 %v2563, %v2566
    %vm2568 = vweird.f32 %v2562
    %vm2569 = vweird.f32 %v2563
    %vm2570 = vmor %vm2568, %vm2569
    %v2571 = vsel %vm2570, %v2563, %v2567
    %v2572 = vand.u32 2147483647, %v2562
    %vm2573 = vcmp.eq.f32.partialorder %v2572, 8.507059e+37
    %v2574 = vand.u32 %v2562, 2147483648
    %v2575 = vor.u32 1.1754944e-38, %v2574
    %v2576 = vsel %vm2573, %v2575, %v2571
    %v2577 = vmul.f32 1.0, %v2576
    %v2578 = vadd.f32 %v2536, %v2021
    %v2579 = vmul.f32 %v2557, %v2578
    %v2580 = vadd.f32 %v2477, %v2579
    %v2581 = vtanh.pop %v2580
    %v2582 = vsub.f32 1.0, %v2577
    %v2583 = vmul.f32 %v2582, %v2581
    %v2584 = vmul.f32 %v2577, %v2474
    %v2585 = vadd.f32 %v2583, %v2584
    %v2586 = vld [vmem:[#allocation2 + $0x90] sm:$0xff]
    %v2587 = vld [vmem:[#allocation2 + $0x98] sm:$0xff]
    %v2588 = vld [vmem:[#allocation2 + $0xa0] sm:$0xff]
    %2589 = vmatpush.msra.mxu0 %v1917
    %2590 = vmatpush.msra.mxu0 %v1914
    %2591 = vmatpush.msra.mxu0 %v1911
    %2592 = vmatpush.msra.mxu0 %v1908
    %2593 = vmatpush.msra.mxu0 %v1905
    %2594 = vmatpush.msra.mxu0 %v1902
    %2595 = vmatpush.msra.mxu0 %v1899
    %2596 = vmatpush.msra.mxu0 %v1896
    %2597 = vmatpush.msra.mxu0 %v1893
    %2598 = vmatpush.msra.mxu0 %v1890
    %2599 = vmatpush.msra.mxu0 %v1887
    %2600 = vmatpush.msra.mxu0 %v1884
    %2601 = vmatpush.msra.mxu0 %v1881
    %2602 = vmatpush.msra.mxu0 %v1878
    %2603 = vmatpush.msra.mxu0 %v1875
    %2604 = vmatpush.msra.mxu0 %v1872
    %2605 = vmatmul.f32.gmra.mxu0 %v2585
    %v2606 = vpop.f32.mrf.mxu0
    %v2607 = vadd.f32 0.0, %v2606
    %2608 = vdwg.mxu0
    %2609 = vmatpush.msra.mxu0 %v1918
    %2610 = vmatpush.msra.mxu0 %v1915
    %2611 = vmatpush.msra.mxu0 %v1912
    %2612 = vmatpush.msra.mxu0 %v1909
    %2613 = vmatpush.msra.mxu0 %v1906
    %2614 = vmatpush.msra.mxu0 %v1903
    %2615 = vmatpush.msra.mxu0 %v1900
    %2616 = vmatpush.msra.mxu0 %v1897
    %2617 = vmatpush.msra.mxu0 %v1894
    %2618 = vmatpush.msra.mxu0 %v1891
    %2619 = vmatpush.msra.mxu0 %v1888
    %2620 = vmatpush.msra.mxu0 %v1885
    %2621 = vmatpush.msra.mxu0 %v1882
    %2622 = vmatpush.msra.mxu0 %v1879
    %2623 = vmatpush.msra.mxu0 %v1876
    %2624 = vmatpush.msra.mxu0 %v1873
    %2625 = vmatmul.f32.gmra.mxu0 %v2585
    %v2626 = vpop.f32.mrf.mxu0
    %v2627 = vadd.f32 0.0, %v2626
    %2628 = vdwg.mxu0
    %2629 = vmatpush.msra.mxu0 %v1919
    %2630 = vmatpush.msra.mxu0 %v1916
    %2631 = vmatpush.msra.mxu0 %v1913
    %2632 = vmatpush.msra.mxu0 %v1910
    %2633 = vmatpush.msra.mxu0 %v1907
    %2634 = vmatpush.msra.mxu0 %v1904
    %2635 = vmatpush.msra.mxu0 %v1901
    %2636 = vmatpush.msra.mxu0 %v1898
    %2637 = vmatpush.msra.mxu0 %v1895
    %2638 = vmatpush.msra.mxu0 %v1892
    %2639 = vmatpush.msra.mxu0 %v1889
    %2640 = vmatpush.msra.mxu0 %v1886
    %2641 = vmatpush.msra.mxu0 %v1883
    %2642 = vmatpush.msra.mxu0 %v1880
    %2643 = vmatpush.msra.mxu0 %v1877
    %2644 = vmatpush.msra.mxu0 %v1874
    %2645 = vmatmul.f32.gmra.mxu0 %v2585
    %v2646 = vpop.f32.mrf.mxu0
    %v2647 = vadd.f32 0.0, %v2646
    %2648 = vdwg.mxu0
    %v2649 = vadd.f32 %v2586, %v2607
    %v2650 = vxor.u32 %v2649, 2147483648
    %v2651 = vmul.f32 %v2650, 1.442695
    %v2652 = vpow.pop %v2651
    %v2653 = vadd.f32 %v2652, 1.0
    %v2654 = vrcp.pop %v2653
    %v2655 = vmul.f32 %v2653, %v2654
    %v2656 = vsub.f32 1.0, %v2655
    %v2657 = vmul.f32 %v2654, %v2656
    %v2658 = vadd.f32 %v2654, %v2657
    %vm2659 = vweird.f32 %v2653
    %vm2660 = vweird.f32 %v2654
    %vm2661 = vmor %vm2659, %vm2660
    %v2662 = vsel %vm2661, %v2654, %v2658
    %v2663 = vand.u32 2147483647, %v2653
    %vm2664 = vcmp.eq.f32.partialorder %v2663, 8.507059e+37
    %v2665 = vand.u32 %v2653, 2147483648
    %v2666 = vor.u32 1.1754944e-38, %v2665
    %v2667 = vsel %vm2664, %v2666, %v2662
    %v2668 = vmul.f32 1.0, %v2667
    %v2669 = vadd.f32 %v2587, %v2627
    %v2670 = vxor.u32 %v2669, 2147483648
    %v2671 = vmul.f32 %v2670, 1.442695
    %v2672 = vpow.pop %v2671
    %v2673 = vadd.f32 %v2672, 1.0
    %v2674 = vrcp.pop %v2673
    %v2675 = vmul.f32 %v2673, %v2674
    %v2676 = vsub.f32 1.0, %v2675
    %v2677 = vmul.f32 %v2674, %v2676
    %v2678 = vadd.f32 %v2674, %v2677
    %vm2679 = vweird.f32 %v2673
    %vm2680 = vweird.f32 %v2674
    %vm2681 = vmor %vm2679, %vm2680
    %v2682 = vsel %vm2681, %v2674, %v2678
    %v2683 = vand.u32 2147483647, %v2673
    %vm2684 = vcmp.eq.f32.partialorder %v2683, 8.507059e+37
    %v2685 = vand.u32 %v2673, 2147483648
    %v2686 = vor.u32 1.1754944e-38, %v2685
    %v2687 = vsel %vm2684, %v2686, %v2682
    %v2688 = vmul.f32 1.0, %v2687
    %v2689 = vadd.f32 %v2647, %v2021
    %v2690 = vmul.f32 %v2668, %v2689
    %v2691 = vadd.f32 %v2588, %v2690
    %v2692 = vtanh.pop %v2691
    %v2693 = vsub.f32 1.0, %v2688
    %v2694 = vmul.f32 %v2693, %v2692
    %v2695 = vmul.f32 %v2688, %v2585
    %v2696 = vadd.f32 %v2694, %v2695
    %v2697 = vld [vmem:[#allocation2 + $0xa8] sm:$0xff]
    %v2698 = vld [vmem:[#allocation2 + $0xb0] sm:$0xff]
    %v2699 = vld [vmem:[#allocation2 + $0xb8] sm:$0xff]
    %2700 = vmatpush.msra.mxu0 %v1917
    %2701 = vmatpush.msra.mxu0 %v1914
    %2702 = vmatpush.msra.mxu0 %v1911
    %2703 = vmatpush.msra.mxu0 %v1908
    %2704 = vmatpush.msra.mxu0 %v1905
    %2705 = vmatpush.msra.mxu0 %v1902
    %2706 = vmatpush.msra.mxu0 %v1899
    %2707 = vmatpush.msra.mxu0 %v1896
    %2708 = vmatpush.msra.mxu0 %v1893
    %2709 = vmatpush.msra.mxu0 %v1890
    %2710 = vmatpush.msra.mxu0 %v1887
    %2711 = vmatpush.msra.mxu0 %v1884
    %2712 = vmatpush.msra.mxu0 %v1881
    %2713 = vmatpush.msra.mxu0 %v1878
    %2714 = vmatpush.msra.mxu0 %v1875
    %2715 = vmatpush.msra.mxu0 %v1872
    %2716 = vmatmul.f32.gmra.mxu0 %v2696
    %v2717 = vpop.f32.mrf.mxu0
    %v2718 = vadd.f32 0.0, %v2717
    %2719 = vdwg.mxu0
    %2720 = vmatpush.msra.mxu0 %v1918
    %2721 = vmatpush.msra.mxu0 %v1915
    %2722 = vmatpush.msra.mxu0 %v1912
    %2723 = vmatpush.msra.mxu0 %v1909
    %2724 = vmatpush.msra.mxu0 %v1906
    %2725 = vmatpush.msra.mxu0 %v1903
    %2726 = vmatpush.msra.mxu0 %v1900
    %2727 = vmatpush.msra.mxu0 %v1897
    %2728 = vmatpush.msra.mxu0 %v1894
    %2729 = vmatpush.msra.mxu0 %v1891
    %2730 = vmatpush.msra.mxu0 %v1888
    %2731 = vmatpush.msra.mxu0 %v1885
    %2732 = vmatpush.msra.mxu0 %v1882
    %2733 = vmatpush.msra.mxu0 %v1879
    %2734 = vmatpush.msra.mxu0 %v1876
    %2735 = vmatpush.msra.mxu0 %v1873
    %2736 = vmatmul.f32.gmra.mxu0 %v2696
    %v2737 = vpop.f32.mrf.mxu0
    %v2738 = vadd.f32 0.0, %v2737
    %2739 = vdwg.mxu0
    %2740 = vmatpush.msra.mxu0 %v1919
    %2741 = vmatpush.msra.mxu0 %v1916
    %2742 = vmatpush.msra.mxu0 %v1913
    %2743 = vmatpush.msra.mxu0 %v1910
    %2744 = vmatpush.msra.mxu0 %v1907
    %2745 = vmatpush.msra.mxu0 %v1904
    %2746 = vmatpush.msra.mxu0 %v1901
    %2747 = vmatpush.msra.mxu0 %v1898
    %2748 = vmatpush.msra.mxu0 %v1895
    %2749 = vmatpush.msra.mxu0 %v1892
    %2750 = vmatpush.msra.mxu0 %v1889
    %2751 = vmatpush.msra.mxu0 %v1886
    %2752 = vmatpush.msra.mxu0 %v1883
    %2753 = vmatpush.msra.mxu0 %v1880
    %2754 = vmatpush.msra.mxu0 %v1877
    %2755 = vmatpush.msra.mxu0 %v1874
    %2756 = vmatmul.f32.gmra.mxu0 %v2696
    %v2757 = vpop.f32.mrf.mxu0
    %v2758 = vadd.f32 0.0, %v2757
    %2759 = vdwg.mxu0
    %v2760 = vadd.f32 %v2697, %v2718
    %v2761 = vxor.u32 %v2760, 2147483648
    %v2762 = vmul.f32 %v2761, 1.442695
    %v2763 = vpow.pop %v2762
    %v2764 = vadd.f32 %v2763, 1.0
    %v2765 = vrcp.pop %v2764
    %v2766 = vmul.f32 %v2764, %v2765
    %v2767 = vsub.f32 1.0, %v2766
    %v2768 = vmul.f32 %v2765, %v2767
    %v2769 = vadd.f32 %v2765, %v2768
    %vm2770 = vweird.f32 %v2764
    %vm2771 = vweird.f32 %v2765
    %vm2772 = vmor %vm2770, %vm2771
    %v2773 = vsel %vm2772, %v2765, %v2769
    %v2774 = vand.u32 2147483647, %v2764
    %vm2775 = vcmp.eq.f32.partialorder %v2774, 8.507059e+37
    %v2776 = vand.u32 %v2764, 2147483648
    %v2777 = vor.u32 1.1754944e-38, %v2776
    %v2778 = vsel %vm2775, %v2777, %v2773
    %v2779 = vmul.f32 1.0, %v2778
    %v2780 = vadd.f32 %v2698, %v2738
    %v2781 = vxor.u32 %v2780, 2147483648
    %v2782 = vmul.f32 %v2781, 1.442695
    %v2783 = vpow.pop %v2782
    %v2784 = vadd.f32 %v2783, 1.0
    %v2785 = vrcp.pop %v2784
    %v2786 = vmul.f32 %v2784, %v2785
    %v2787 = vsub.f32 1.0, %v2786
    %v2788 = vmul.f32 %v2785, %v2787
    %v2789 = vadd.f32 %v2785, %v2788
    %vm2790 = vweird.f32 %v2784
    %vm2791 = vweird.f32 %v2785
    %vm2792 = vmor %vm2790, %vm2791
    %v2793 = vsel %vm2792, %v2785, %v2789
    %v2794 = vand.u32 2147483647, %v2784
    %vm2795 = vcmp.eq.f32.partialorder %v2794, 8.507059e+37
    %v2796 = vand.u32 %v2784, 2147483648
    %v2797 = vor.u32 1.1754944e-38, %v2796
    %v2798 = vsel %vm2795, %v2797, %v2793
    %v2799 = vmul.f32 1.0, %v2798
    %v2800 = vadd.f32 %v2758, %v2021
    %v2801 = vmul.f32 %v2779, %v2800
    %v2802 = vadd.f32 %v2699, %v2801
    %v2803 = vtanh.pop %v2802
    %v2804 = vsub.f32 1.0, %v2799
    %v2805 = vmul.f32 %v2804, %v2803
    %v2806 = vmul.f32 %v2799, %v2696
    %v2807 = vadd.f32 %v2805, %v2806
    %v2808 = vld [vmem:[%s1] sm:$0xff]
    %v2809 = vld [vmem:[#allocation11] sm:$0xff]
    %v2810 = vld [vmem:[#allocation11 + $0x8] sm:$0xff]
    %v2811 = vld [vmem:[#allocation11 + $0x10] sm:$0xff]
    %v2812 = vld [vmem:[#allocation11 + $0x18] sm:$0xff]
    %v2813 = vld [vmem:[#allocation11 + $0x20] sm:$0xff]
    %v2814 = vld [vmem:[#allocation11 + $0x28] sm:$0xff]
    %v2815 = vld [vmem:[#allocation11 + $0x30] sm:$0xff]
    %v2816 = vld [vmem:[#allocation11 + $0x38] sm:$0xff]
    %v2817 = vld [vmem:[#allocation11 + $0x40] sm:$0xff]
    %v2818 = vld [vmem:[#allocation11 + $0x48] sm:$0xff]
    %v2819 = vld [vmem:[#allocation11 + $0x50] sm:$0xff]
    %v2820 = vld [vmem:[#allocation11 + $0x58] sm:$0xff]
    %v2821 = vld [vmem:[#allocation11 + $0x60] sm:$0xff]
    %v2822 = vld [vmem:[#allocation11 + $0x68] sm:$0xff]
    %v2823 = vld [vmem:[#allocation11 + $0x70] sm:$0xff]
    %v2824 = vld [vmem:[#allocation11 + $0x78] sm:$0xff]
    %v2825 = vld [vmem:[#allocation11 + $0x80] sm:$0xff]
    %v2826 = vld [vmem:[#allocation11 + $0x88] sm:$0xff]
    %v2827 = vld [vmem:[#allocation11 + $0x90] sm:$0xff]
    %v2828 = vld [vmem:[#allocation11 + $0x98] sm:$0xff]
    %v2829 = vld [vmem:[#allocation11 + $0xa0] sm:$0xff]
    %v2830 = vld [vmem:[#allocation11 + $0xa8] sm:$0xff]
    %v2831 = vld [vmem:[#allocation11 + $0xb0] sm:$0xff]
    %v2832 = vld [vmem:[#allocation11 + $0xb8] sm:$0xff]
    %v2833 = vld [vmem:[#allocation11 + $0xc0] sm:$0xff]
    %v2834 = vld [vmem:[#allocation11 + $0xc8] sm:$0xff]
    %v2835 = vld [vmem:[#allocation11 + $0xd0] sm:$0xff]
    %v2836 = vld [vmem:[#allocation11 + $0xd8] sm:$0xff]
    %v2837 = vld [vmem:[#allocation11 + $0xe0] sm:$0xff]
    %v2838 = vld [vmem:[#allocation11 + $0xe8] sm:$0xff]
    %v2839 = vld [vmem:[#allocation11 + $0xf0] sm:$0xff]
    %v2840 = vld [vmem:[#allocation11 + $0xf8] sm:$0xff]
    %v2841 = vld [vmem:[#allocation11 + $0x100] sm:$0xff]
    %v2842 = vld [vmem:[#allocation11 + $0x108] sm:$0xff]
    %v2843 = vld [vmem:[#allocation11 + $0x110] sm:$0xff]
    %v2844 = vld [vmem:[#allocation11 + $0x118] sm:$0xff]
    %v2845 = vld [vmem:[#allocation11 + $0x120] sm:$0xff]
    %v2846 = vld [vmem:[#allocation11 + $0x128] sm:$0xff]
    %v2847 = vld [vmem:[#allocation11 + $0x130] sm:$0xff]
    %v2848 = vld [vmem:[#allocation11 + $0x138] sm:$0xff]
    %v2849 = vld [vmem:[#allocation11 + $0x140] sm:$0xff]
    %v2850 = vld [vmem:[#allocation11 + $0x148] sm:$0xff]
    %v2851 = vld [vmem:[#allocation11 + $0x150] sm:$0xff]
    %v2852 = vld [vmem:[#allocation11 + $0x158] sm:$0xff]
    %v2853 = vld [vmem:[#allocation11 + $0x160] sm:$0xff]
    %v2854 = vld [vmem:[#allocation11 + $0x168] sm:$0xff]
    %v2855 = vld [vmem:[#allocation11 + $0x170] sm:$0xff]
    %v2856 = vld [vmem:[#allocation11 + $0x178] sm:$0xff]
    %v2857 = vld [vmem:[#allocation11 + $0x180] sm:$0xff]
    %v2858 = vld [vmem:[#allocation11 + $0x188] sm:$0xff]
    %v2859 = vld [vmem:[#allocation11 + $0x190] sm:$0xff]
    %v2860 = vld [vmem:[#allocation11 + $0x198] sm:$0xff]
    %v2861 = vld [vmem:[#allocation11 + $0x1a0] sm:$0xff]
    %v2862 = vld [vmem:[#allocation11 + $0x1a8] sm:$0xff]
    %v2863 = vld [vmem:[#allocation11 + $0x1b0] sm:$0xff]
    %v2864 = vld [vmem:[#allocation11 + $0x1b8] sm:$0xff]
    %v2865 = vld [vmem:[#allocation11 + $0x1c0] sm:$0xff]
    %v2866 = vld [vmem:[#allocation11 + $0x1c8] sm:$0xff]
    %v2867 = vld [vmem:[#allocation11 + $0x1d0] sm:$0xff]
    %v2868 = vld [vmem:[#allocation11 + $0x1d8] sm:$0xff]
    %v2869 = vld [vmem:[#allocation11 + $0x1e0] sm:$0xff]
    %v2870 = vld [vmem:[#allocation11 + $0x1e8] sm:$0xff]
    %v2871 = vld [vmem:[#allocation11 + $0x1f0] sm:$0xff]
    %v2872 = vld [vmem:[#allocation11 + $0x1f8] sm:$0xff]
    %v2873 = vld [vmem:[#allocation11 + $0x200] sm:$0xff]
    %v2874 = vld [vmem:[#allocation11 + $0x208] sm:$0xff]
    %v2875 = vld [vmem:[#allocation11 + $0x210] sm:$0xff]
    %v2876 = vld [vmem:[#allocation11 + $0x218] sm:$0xff]
    %v2877 = vld [vmem:[#allocation11 + $0x220] sm:$0xff]
    %v2878 = vld [vmem:[#allocation11 + $0x228] sm:$0xff]
    %v2879 = vld [vmem:[#allocation11 + $0x230] sm:$0xff]
    %v2880 = vld [vmem:[#allocation11 + $0x238] sm:$0xff]
    %v2881 = vld [vmem:[#allocation11 + $0x240] sm:$0xff]
    %v2882 = vld [vmem:[#allocation11 + $0x248] sm:$0xff]
    %v2883 = vld [vmem:[#allocation11 + $0x250] sm:$0xff]
    %v2884 = vld [vmem:[#allocation11 + $0x258] sm:$0xff]
    %v2885 = vld [vmem:[#allocation11 + $0x260] sm:$0xff]
    %v2886 = vld [vmem:[#allocation11 + $0x268] sm:$0xff]
    %v2887 = vld [vmem:[#allocation11 + $0x270] sm:$0xff]
    %v2888 = vld [vmem:[#allocation11 + $0x278] sm:$0xff]
    %v2889 = vld [vmem:[#allocation11 + $0x280] sm:$0xff]
    %v2890 = vld [vmem:[#allocation11 + $0x288] sm:$0xff]
    %v2891 = vld [vmem:[#allocation11 + $0x290] sm:$0xff]
    %v2892 = vld [vmem:[#allocation11 + $0x298] sm:$0xff]
    %v2893 = vld [vmem:[#allocation11 + $0x2a0] sm:$0xff]
    %v2894 = vld [vmem:[#allocation11 + $0x2a8] sm:$0xff]
    %v2895 = vld [vmem:[#allocation11 + $0x2b0] sm:$0xff]
    %v2896 = vld [vmem:[#allocation11 + $0x2b8] sm:$0xff]
    %v2897 = vld [vmem:[#allocation11 + $0x2c0] sm:$0xff]
    %v2898 = vld [vmem:[#allocation11 + $0x2c8] sm:$0xff]
    %v2899 = vld [vmem:[#allocation11 + $0x2d0] sm:$0xff]
    %v2900 = vld [vmem:[#allocation11 + $0x2d8] sm:$0xff]
    %v2901 = vld [vmem:[#allocation11 + $0x2e0] sm:$0xff]
    %v2902 = vld [vmem:[#allocation11 + $0x2e8] sm:$0xff]
    %v2903 = vld [vmem:[#allocation11 + $0x2f0] sm:$0xff]
    %v2904 = vld [vmem:[#allocation11 + $0x2f8] sm:$0xff]
    %v2905 = vld [vmem:[#allocation11 + $0x300] sm:$0xff]
    %v2906 = vld [vmem:[#allocation11 + $0x308] sm:$0xff]
    %v2907 = vld [vmem:[#allocation11 + $0x310] sm:$0xff]
    %v2908 = vld [vmem:[#allocation11 + $0x318] sm:$0xff]
    %v2909 = vld [vmem:[#allocation11 + $0x320] sm:$0xff]
    %v2910 = vld [vmem:[#allocation11 + $0x328] sm:$0xff]
    %v2911 = vld [vmem:[#allocation11 + $0x330] sm:$0xff]
    %v2912 = vld [vmem:[#allocation11 + $0x338] sm:$0xff]
    %v2913 = vld [vmem:[#allocation11 + $0x340] sm:$0xff]
    %v2914 = vld [vmem:[#allocation11 + $0x348] sm:$0xff]
    %v2915 = vld [vmem:[#allocation11 + $0x350] sm:$0xff]
    %v2916 = vld [vmem:[#allocation11 + $0x358] sm:$0xff]
    %v2917 = vld [vmem:[#allocation11 + $0x360] sm:$0xff]
    %v2918 = vld [vmem:[#allocation11 + $0x368] sm:$0xff]
    %v2919 = vld [vmem:[#allocation11 + $0x370] sm:$0xff]
    %v2920 = vld [vmem:[#allocation11 + $0x378] sm:$0xff]
    %v2921 = vld [vmem:[#allocation11 + $0x380] sm:$0xff]
    %v2922 = vld [vmem:[#allocation11 + $0x388] sm:$0xff]
    %v2923 = vld [vmem:[#allocation11 + $0x390] sm:$0xff]
    %v2924 = vld [vmem:[#allocation11 + $0x398] sm:$0xff]
    %v2925 = vld [vmem:[#allocation11 + $0x3a0] sm:$0xff]
    %v2926 = vld [vmem:[#allocation11 + $0x3a8] sm:$0xff]
    %v2927 = vld [vmem:[#allocation11 + $0x3b0] sm:$0xff]
    %v2928 = vld [vmem:[#allocation11 + $0x3b8] sm:$0xff]
    %v2929 = vld [vmem:[#allocation11 + $0x3c0] sm:$0xff]
    %v2930 = vld [vmem:[#allocation11 + $0x3c8] sm:$0xff]
    %v2931 = vld [vmem:[#allocation11 + $0x3d0] sm:$0xff]
    %v2932 = vld [vmem:[#allocation11 + $0x3d8] sm:$0xff]
    %v2933 = vld [vmem:[#allocation11 + $0x3e0] sm:$0xff]
    %v2934 = vld [vmem:[#allocation11 + $0x3e8] sm:$0xff]
    %v2935 = vld [vmem:[#allocation11 + $0x3f0] sm:$0xff]
    %v2936 = vld [vmem:[#allocation11 + $0x3f8] sm:$0xff]
    %v2937 = vld [vmem:[%s11] sm:$0xf]
    %v2939 = vperm.slane %v2937, 0
    %v2940 = vperm.slane %v2937, 1
    %v2941 = vperm.slane %v2937, 2
    %v2942 = vperm.slane %v2937, 3
    %2947 = vmatpush.msra.mxu0 %v2869
    %2948 = vmatpush.msra.mxu0 %v2865
    %2949 = vmatpush.msra.mxu0 %v2861
    %2950 = vmatpush.msra.mxu0 %v2857
    %2951 = vmatpush.msra.mxu0 %v2853
    %2952 = vmatpush.msra.mxu0 %v2849
    %2953 = vmatpush.msra.mxu0 %v2845
    %2954 = vmatpush.msra.mxu0 %v2841
    %2955 = vmatpush.msra.mxu0 %v2837
    %2956 = vmatpush.msra.mxu0 %v2833
    %2957 = vmatpush.msra.mxu0 %v2829
    %2958 = vmatpush.msra.mxu0 %v2825
    %2959 = vmatpush.msra.mxu0 %v2821
    %2960 = vmatpush.msra.mxu0 %v2817
    %2961 = vmatpush.msra.mxu0 %v2813
    %2962 = vmatpush.msra.mxu0 %v2809
    %2963 = vmatmul.f32.gmra.mxu0 %v2808
    %v2964 = vpop.f32.mrf.mxu0
    %v2965 = vadd.f32 %v2939, %v2964
    %2966 = vdwg.mxu0
    %2967 = vmatpush.msra.mxu0 %v2933
    %2968 = vmatpush.msra.mxu0 %v2929
    %2969 = vmatpush.msra.mxu0 %v2925
    %2970 = vmatpush.msra.mxu0 %v2921
    %2971 = vmatpush.msra.mxu0 %v2917
    %2972 = vmatpush.msra.mxu0 %v2913
    %2973 = vmatpush.msra.mxu0 %v2909
    %2974 = vmatpush.msra.mxu0 %v2905
    %2975 = vmatpush.msra.mxu0 %v2901
    %2976 = vmatpush.msra.mxu0 %v2897
    %2977 = vmatpush.msra.mxu0 %v2893
    %2978 = vmatpush.msra.mxu0 %v2889
    %2979 = vmatpush.msra.mxu0 %v2885
    %2980 = vmatpush.msra.mxu0 %v2881
    %2981 = vmatpush.msra.mxu0 %v2877
    %2982 = vmatpush.msra.mxu0 %v2873
    %2983 = vmatmul.f32.gmra.mxu0 %v1655
    %v2984 = vpop.f32.mrf.mxu0
    %v2985 = vadd.f32 %v2965, %v2984
    %2986 = vdwg.mxu0
    %2987 = vmatpush.msra.mxu0 %v2870
    %2988 = vmatpush.msra.mxu0 %v2866
    %2989 = vmatpush.msra.mxu0 %v2862
    %2990 = vmatpush.msra.mxu0 %v2858
    %2991 = vmatpush.msra.mxu0 %v2854
    %2992 = vmatpush.msra.mxu0 %v2850
    %2993 = vmatpush.msra.mxu0 %v2846
    %2994 = vmatpush.msra.mxu0 %v2842
    %2995 = vmatpush.msra.mxu0 %v2838
    %2996 = vmatpush.msra.mxu0 %v2834
    %2997 = vmatpush.msra.mxu0 %v2830
    %2998 = vmatpush.msra.mxu0 %v2826
    %2999 = vmatpush.msra.mxu0 %v2822
    %3000 = vmatpush.msra.mxu0 %v2818
    %3001 = vmatpush.msra.mxu0 %v2814
    %3002 = vmatpush.msra.mxu0 %v2810
    %3003 = vmatmul.f32.gmra.mxu0 %v2808
    %v3004 = vpop.f32.mrf.mxu0
    %v3005 = vadd.f32 %v2940, %v3004
    %3006 = vdwg.mxu0
    %3007 = vmatpush.msra.mxu0 %v2934
    %3008 = vmatpush.msra.mxu0 %v2930
    %3009 = vmatpush.msra.mxu0 %v2926
    %3010 = vmatpush.msra.mxu0 %v2922
    %3011 = vmatpush.msra.mxu0 %v2918
    %3012 = vmatpush.msra.mxu0 %v2914
    %3013 = vmatpush.msra.mxu0 %v2910
    %3014 = vmatpush.msra.mxu0 %v2906
    %3015 = vmatpush.msra.mxu0 %v2902
    %3016 = vmatpush.msra.mxu0 %v2898
    %3017 = vmatpush.msra.mxu0 %v2894
    %3018 = vmatpush.msra.mxu0 %v2890
    %3019 = vmatpush.msra.mxu0 %v2886
    %3020 = vmatpush.msra.mxu0 %v2882
    %3021 = vmatpush.msra.mxu0 %v2878
    %3022 = vmatpush.msra.mxu0 %v2874
    %3023 = vmatmul.f32.gmra.mxu0 %v1655
    %v3024 = vpop.f32.mrf.mxu0
    %v3025 = vadd.f32 %v3005, %v3024
    %3026 = vdwg.mxu0
    %3027 = vmatpush.msra.mxu0 %v2871
    %3028 = vmatpush.msra.mxu0 %v2867
    %3029 = vmatpush.msra.mxu0 %v2863
    %3030 = vmatpush.msra.mxu0 %v2859
    %3031 = vmatpush.msra.mxu0 %v2855
    %3032 = vmatpush.msra.mxu0 %v2851
    %3033 = vmatpush.msra.mxu0 %v2847
    %3034 = vmatpush.msra.mxu0 %v2843
    %3035 = vmatpush.msra.mxu0 %v2839
    %3036 = vmatpush.msra.mxu0 %v2835
    %3037 = vmatpush.msra.mxu0 %v2831
    %3038 = vmatpush.msra.mxu0 %v2827
    %3039 = vmatpush.msra.mxu0 %v2823
    %3040 = vmatpush.msra.mxu0 %v2819
    %3041 = vmatpush.msra.mxu0 %v2815
    %3042 = vmatpush.msra.mxu0 %v2811
    %3043 = vmatmul.f32.gmra.mxu0 %v2808
    %v3044 = vpop.f32.mrf.mxu0
    %v3045 = vadd.f32 %v2941, %v3044
    %3046 = vdwg.mxu0
    %3047 = vmatpush.msra.mxu0 %v2935
    %3048 = vmatpush.msra.mxu0 %v2931
    %3049 = vmatpush.msra.mxu0 %v2927
    %3050 = vmatpush.msra.mxu0 %v2923
    %3051 = vmatpush.msra.mxu0 %v2919
    %3052 = vmatpush.msra.mxu0 %v2915
    %3053 = vmatpush.msra.mxu0 %v2911
    %3054 = vmatpush.msra.mxu0 %v2907
    %3055 = vmatpush.msra.mxu0 %v2903
    %3056 = vmatpush.msra.mxu0 %v2899
    %3057 = vmatpush.msra.mxu0 %v2895
    %3058 = vmatpush.msra.mxu0 %v2891
    %3059 = vmatpush.msra.mxu0 %v2887
    %3060 = vmatpush.msra.mxu0 %v2883
    %3061 = vmatpush.msra.mxu0 %v2879
    %3062 = vmatpush.msra.mxu0 %v2875
    %3063 = vmatmul.f32.gmra.mxu0 %v1655
    %v3064 = vpop.f32.mrf.mxu0
    %v3065 = vadd.f32 %v3045, %v3064
    %3066 = vdwg.mxu0
    %3067 = vmatpush.msra.mxu0 %v2872
    %3068 = vmatpush.msra.mxu0 %v2868
    %3069 = vmatpush.msra.mxu0 %v2864
    %3070 = vmatpush.msra.mxu0 %v2860
    %3071 = vmatpush.msra.mxu0 %v2856
    %3072 = vmatpush.msra.mxu0 %v2852
    %3073 = vmatpush.msra.mxu0 %v2848
    %3074 = vmatpush.msra.mxu0 %v2844
    %3075 = vmatpush.msra.mxu0 %v2840
    %3076 = vmatpush.msra.mxu0 %v2836
    %3077 = vmatpush.msra.mxu0 %v2832
    %3078 = vmatpush.msra.mxu0 %v2828
    %3079 = vmatpush.msra.mxu0 %v2824
    %3080 = vmatpush.msra.mxu0 %v2820
    %3081 = vmatpush.msra.mxu0 %v2816
    %3082 = vmatpush.msra.mxu0 %v2812
    %3083 = vmatmul.f32.gmra.mxu0 %v2808
    %v3084 = vpop.f32.mrf.mxu0
    %v3085 = vadd.f32 %v2942, %v3084
    %3086 = vdwg.mxu0
    %3087 = vmatpush.msra.mxu0 %v2936
    %3088 = vmatpush.msra.mxu0 %v2932
    %3089 = vmatpush.msra.mxu0 %v2928
    %3090 = vmatpush.msra.mxu0 %v2924
    %3091 = vmatpush.msra.mxu0 %v2920
    %3092 = vmatpush.msra.mxu0 %v2916
    %3093 = vmatpush.msra.mxu0 %v2912
    %3094 = vmatpush.msra.mxu0 %v2908
    %3095 = vmatpush.msra.mxu0 %v2904
    %3096 = vmatpush.msra.mxu0 %v2900
    %3097 = vmatpush.msra.mxu0 %v2896
    %3098 = vmatpush.msra.mxu0 %v2892
    %3099 = vmatpush.msra.mxu0 %v2888
    %3100 = vmatpush.msra.mxu0 %v2884
    %3101 = vmatpush.msra.mxu0 %v2880
    %3102 = vmatpush.msra.mxu0 %v2876
    %3103 = vmatmul.f32.gmra.mxu0 %v1655
    %v3104 = vpop.f32.mrf.mxu0
    %v3105 = vadd.f32 %v3085, %v3104
    %3106 = vdwg.mxu0
    %v3107 = vxor.u32 %v2985, 2147483648
    %v3108 = vmul.f32 %v3107, 1.442695
    %v3109 = vpow.pop %v3108
    %v3110 = vadd.f32 %v3109, 1.0
    %v3111 = vrcp.pop %v3110
    %v3112 = vmul.f32 %v3110, %v3111
    %v3113 = vsub.f32 1.0, %v3112
    %v3114 = vmul.f32 %v3111, %v3113
    %v3115 = vadd.f32 %v3111, %v3114
    %vm3116 = vweird.f32 %v3110
    %vm3117 = vweird.f32 %v3111
    %vm3118 = vmor %vm3116, %vm3117
    %v3119 = vsel %vm3118, %v3111, %v3115
    %v3120 = vand.u32 2147483647, %v3110
    %vm3121 = vcmp.eq.f32.partialorder %v3120, 8.507059e+37
    %v3122 = vand.u32 %v3110, 2147483648
    %v3123 = vor.u32 1.1754944e-38, %v3122
    %v3124 = vsel %vm3121, %v3123, %v3119
    %v3125 = vmul.f32 1.0, %v3124
    %v3126 = vxor.u32 %v3025, 2147483648
    %v3127 = vmul.f32 %v3126, 1.442695
    %v3128 = vpow.pop %v3127
    %v3129 = vadd.f32 %v3128, 1.0
    %v3130 = vrcp.pop %v3129
    %v3131 = vmul.f32 %v3129, %v3130
    %v3132 = vsub.f32 1.0, %v3131
    %v3133 = vmul.f32 %v3130, %v3132
    %v3134 = vadd.f32 %v3130, %v3133
    %vm3135 = vweird.f32 %v3129
    %vm3136 = vweird.f32 %v3130
    %vm3137 = vmor %vm3135, %vm3136
    %v3138 = vsel %vm3137, %v3130, %v3134
    %v3139 = vand.u32 2147483647, %v3129
    %vm3140 = vcmp.eq.f32.partialorder %v3139, 8.507059e+37
    %v3141 = vand.u32 %v3129, 2147483648
    %v3142 = vor.u32 1.1754944e-38, %v3141
    %v3143 = vsel %vm3140, %v3142, %v3138
    %v3144 = vmul.f32 1.0, %v3143
    %v3145 = vmul.f32 %v3125, %v3105
    %v3146 = vadd.f32 %v3065, %v3145
    %v3147 = vtanh.pop %v3146
    %v3148 = vsub.f32 1.0, %v3144
    %v3149 = vmul.f32 %v3148, %v3147
    %v3150 = vmul.f32 %v3144, %v1655
    %v3151 = vadd.f32 %v3149, %v3150
    %v3152 = vld [vmem:[#allocation12] sm:$0xff]
    %v3153 = vld [vmem:[#allocation12 + $0x8] sm:$0xff]
    %v3154 = vld [vmem:[#allocation12 + $0x10] sm:$0xff]
    %v3155 = vld [vmem:[#allocation12 + $0x18] sm:$0xff]
    %v3156 = vld [vmem:[#allocation12 + $0x20] sm:$0xff]
    %v3157 = vld [vmem:[#allocation12 + $0x28] sm:$0xff]
    %v3158 = vld [vmem:[#allocation12 + $0x30] sm:$0xff]
    %v3159 = vld [vmem:[#allocation12 + $0x38] sm:$0xff]
    %v3160 = vld [vmem:[#allocation12 + $0x40] sm:$0xff]
    %v3161 = vld [vmem:[#allocation12 + $0x48] sm:$0xff]
    %v3162 = vld [vmem:[#allocation12 + $0x50] sm:$0xff]
    %v3163 = vld [vmem:[#allocation12 + $0x58] sm:$0xff]
    %v3164 = vld [vmem:[#allocation12 + $0x60] sm:$0xff]
    %v3165 = vld [vmem:[#allocation12 + $0x68] sm:$0xff]
    %v3166 = vld [vmem:[#allocation12 + $0x70] sm:$0xff]
    %v3167 = vld [vmem:[#allocation12 + $0x78] sm:$0xff]
    %v3168 = vld [vmem:[#allocation12 + $0x80] sm:$0xff]
    %v3169 = vld [vmem:[#allocation12 + $0x88] sm:$0xff]
    %v3170 = vld [vmem:[#allocation12 + $0x90] sm:$0xff]
    %v3171 = vld [vmem:[#allocation12 + $0x98] sm:$0xff]
    %v3172 = vld [vmem:[#allocation12 + $0xa0] sm:$0xff]
    %v3173 = vld [vmem:[#allocation12 + $0xa8] sm:$0xff]
    %v3174 = vld [vmem:[#allocation12 + $0xb0] sm:$0xff]
    %v3175 = vld [vmem:[#allocation12 + $0xb8] sm:$0xff]
    %v3176 = vld [vmem:[#allocation12 + $0xc0] sm:$0xff]
    %v3177 = vld [vmem:[#allocation12 + $0xc8] sm:$0xff]
    %v3178 = vld [vmem:[#allocation12 + $0xd0] sm:$0xff]
    %v3179 = vld [vmem:[#allocation12 + $0xd8] sm:$0xff]
    %v3180 = vld [vmem:[#allocation12 + $0xe0] sm:$0xff]
    %v3181 = vld [vmem:[#allocation12 + $0xe8] sm:$0xff]
    %v3182 = vld [vmem:[#allocation12 + $0xf0] sm:$0xff]
    %v3183 = vld [vmem:[#allocation12 + $0xf8] sm:$0xff]
    %v3184 = vld [vmem:[#allocation12 + $0x100] sm:$0xff]
    %v3185 = vld [vmem:[#allocation12 + $0x108] sm:$0xff]
    %v3186 = vld [vmem:[#allocation12 + $0x110] sm:$0xff]
    %v3187 = vld [vmem:[#allocation12 + $0x118] sm:$0xff]
    %v3188 = vld [vmem:[#allocation12 + $0x120] sm:$0xff]
    %v3189 = vld [vmem:[#allocation12 + $0x128] sm:$0xff]
    %v3190 = vld [vmem:[#allocation12 + $0x130] sm:$0xff]
    %v3191 = vld [vmem:[#allocation12 + $0x138] sm:$0xff]
    %v3192 = vld [vmem:[#allocation12 + $0x140] sm:$0xff]
    %v3193 = vld [vmem:[#allocation12 + $0x148] sm:$0xff]
    %v3194 = vld [vmem:[#allocation12 + $0x150] sm:$0xff]
    %v3195 = vld [vmem:[#allocation12 + $0x158] sm:$0xff]
    %v3196 = vld [vmem:[#allocation12 + $0x160] sm:$0xff]
    %v3197 = vld [vmem:[#allocation12 + $0x168] sm:$0xff]
    %v3198 = vld [vmem:[#allocation12 + $0x170] sm:$0xff]
    %v3199 = vld [vmem:[#allocation12 + $0x178] sm:$0xff]
    %v3200 = vld [vmem:[#allocation12 + $0x180] sm:$0xff]
    %v3201 = vld [vmem:[#allocation12 + $0x188] sm:$0xff]
    %v3202 = vld [vmem:[#allocation12 + $0x190] sm:$0xff]
    %v3203 = vld [vmem:[#allocation12 + $0x198] sm:$0xff]
    %v3204 = vld [vmem:[#allocation12 + $0x1a0] sm:$0xff]
    %v3205 = vld [vmem:[#allocation12 + $0x1a8] sm:$0xff]
    %v3206 = vld [vmem:[#allocation12 + $0x1b0] sm:$0xff]
    %v3207 = vld [vmem:[#allocation12 + $0x1b8] sm:$0xff]
    %v3208 = vld [vmem:[#allocation12 + $0x1c0] sm:$0xff]
    %v3209 = vld [vmem:[#allocation12 + $0x1c8] sm:$0xff]
    %v3210 = vld [vmem:[#allocation12 + $0x1d0] sm:$0xff]
    %v3211 = vld [vmem:[#allocation12 + $0x1d8] sm:$0xff]
    %v3212 = vld [vmem:[#allocation12 + $0x1e0] sm:$0xff]
    %v3213 = vld [vmem:[#allocation12 + $0x1e8] sm:$0xff]
    %v3214 = vld [vmem:[#allocation12 + $0x1f0] sm:$0xff]
    %v3215 = vld [vmem:[#allocation12 + $0x1f8] sm:$0xff]
    %v3216 = vld [vmem:[#allocation12 + $0x200] sm:$0xff]
    %v3217 = vld [vmem:[#allocation12 + $0x208] sm:$0xff]
    %v3218 = vld [vmem:[#allocation12 + $0x210] sm:$0xff]
    %v3219 = vld [vmem:[#allocation12 + $0x218] sm:$0xff]
    %v3220 = vld [vmem:[#allocation12 + $0x220] sm:$0xff]
    %v3221 = vld [vmem:[#allocation12 + $0x228] sm:$0xff]
    %v3222 = vld [vmem:[#allocation12 + $0x230] sm:$0xff]
    %v3223 = vld [vmem:[#allocation12 + $0x238] sm:$0xff]
    %v3224 = vld [vmem:[#allocation12 + $0x240] sm:$0xff]
    %v3225 = vld [vmem:[#allocation12 + $0x248] sm:$0xff]
    %v3226 = vld [vmem:[#allocation12 + $0x250] sm:$0xff]
    %v3227 = vld [vmem:[#allocation12 + $0x258] sm:$0xff]
    %v3228 = vld [vmem:[#allocation12 + $0x260] sm:$0xff]
    %v3229 = vld [vmem:[#allocation12 + $0x268] sm:$0xff]
    %v3230 = vld [vmem:[#allocation12 + $0x270] sm:$0xff]
    %v3231 = vld [vmem:[#allocation12 + $0x278] sm:$0xff]
    %v3232 = vld [vmem:[#allocation12 + $0x280] sm:$0xff]
    %v3233 = vld [vmem:[#allocation12 + $0x288] sm:$0xff]
    %v3234 = vld [vmem:[#allocation12 + $0x290] sm:$0xff]
    %v3235 = vld [vmem:[#allocation12 + $0x298] sm:$0xff]
    %v3236 = vld [vmem:[#allocation12 + $0x2a0] sm:$0xff]
    %v3237 = vld [vmem:[#allocation12 + $0x2a8] sm:$0xff]
    %v3238 = vld [vmem:[#allocation12 + $0x2b0] sm:$0xff]
    %v3239 = vld [vmem:[#allocation12 + $0x2b8] sm:$0xff]
    %v3240 = vld [vmem:[#allocation12 + $0x2c0] sm:$0xff]
    %v3241 = vld [vmem:[#allocation12 + $0x2c8] sm:$0xff]
    %v3242 = vld [vmem:[#allocation12 + $0x2d0] sm:$0xff]
    %v3243 = vld [vmem:[#allocation12 + $0x2d8] sm:$0xff]
    %v3244 = vld [vmem:[#allocation12 + $0x2e0] sm:$0xff]
    %v3245 = vld [vmem:[#allocation12 + $0x2e8] sm:$0xff]
    %v3246 = vld [vmem:[#allocation12 + $0x2f0] sm:$0xff]
    %v3247 = vld [vmem:[#allocation12 + $0x2f8] sm:$0xff]
    %v3248 = vld [vmem:[#allocation12 + $0x300] sm:$0xff]
    %v3249 = vld [vmem:[#allocation12 + $0x308] sm:$0xff]
    %v3250 = vld [vmem:[#allocation12 + $0x310] sm:$0xff]
    %v3251 = vld [vmem:[#allocation12 + $0x318] sm:$0xff]
    %v3252 = vld [vmem:[#allocation12 + $0x320] sm:$0xff]
    %v3253 = vld [vmem:[#allocation12 + $0x328] sm:$0xff]
    %v3254 = vld [vmem:[#allocation12 + $0x330] sm:$0xff]
    %v3255 = vld [vmem:[#allocation12 + $0x338] sm:$0xff]
    %v3256 = vld [vmem:[#allocation12 + $0x340] sm:$0xff]
    %v3257 = vld [vmem:[#allocation12 + $0x348] sm:$0xff]
    %v3258 = vld [vmem:[#allocation12 + $0x350] sm:$0xff]
    %v3259 = vld [vmem:[#allocation12 + $0x358] sm:$0xff]
    %v3260 = vld [vmem:[#allocation12 + $0x360] sm:$0xff]
    %v3261 = vld [vmem:[#allocation12 + $0x368] sm:$0xff]
    %v3262 = vld [vmem:[#allocation12 + $0x370] sm:$0xff]
    %v3263 = vld [vmem:[#allocation12 + $0x378] sm:$0xff]
    %v3264 = vld [vmem:[#allocation12 + $0x380] sm:$0xff]
    %v3265 = vld [vmem:[#allocation12 + $0x388] sm:$0xff]
    %v3266 = vld [vmem:[#allocation12 + $0x390] sm:$0xff]
    %v3267 = vld [vmem:[#allocation12 + $0x398] sm:$0xff]
    %v3268 = vld [vmem:[#allocation12 + $0x3a0] sm:$0xff]
    %v3269 = vld [vmem:[#allocation12 + $0x3a8] sm:$0xff]
    %v3270 = vld [vmem:[#allocation12 + $0x3b0] sm:$0xff]
    %v3271 = vld [vmem:[#allocation12 + $0x3b8] sm:$0xff]
    %v3272 = vld [vmem:[#allocation12 + $0x3c0] sm:$0xff]
    %v3273 = vld [vmem:[#allocation12 + $0x3c8] sm:$0xff]
    %v3274 = vld [vmem:[#allocation12 + $0x3d0] sm:$0xff]
    %v3275 = vld [vmem:[#allocation12 + $0x3d8] sm:$0xff]
    %v3276 = vld [vmem:[#allocation12 + $0x3e0] sm:$0xff]
    %v3277 = vld [vmem:[#allocation12 + $0x3e8] sm:$0xff]
    %v3278 = vld [vmem:[#allocation12 + $0x3f0] sm:$0xff]
    %v3279 = vld [vmem:[#allocation12 + $0x3f8] sm:$0xff]
    %v3280 = vld [vmem:[%s13] sm:$0xf]
    %v3282 = vperm.slane %v3280, 0
    %v3283 = vperm.slane %v3280, 1
    %v3284 = vperm.slane %v3280, 2
    %v3285 = vperm.slane %v3280, 3
    %3290 = vmatpush.msra.mxu0 %v3212
    %3291 = vmatpush.msra.mxu0 %v3208
    %3292 = vmatpush.msra.mxu0 %v3204
    %3293 = vmatpush.msra.mxu0 %v3200
    %3294 = vmatpush.msra.mxu0 %v3196
    %3295 = vmatpush.msra.mxu0 %v3192
    %3296 = vmatpush.msra.mxu0 %v3188
    %3297 = vmatpush.msra.mxu0 %v3184
    %3298 = vmatpush.msra.mxu0 %v3180
    %3299 = vmatpush.msra.mxu0 %v3176
    %3300 = vmatpush.msra.mxu0 %v3172
    %3301 = vmatpush.msra.mxu0 %v3168
    %3302 = vmatpush.msra.mxu0 %v3164
    %3303 = vmatpush.msra.mxu0 %v3160
    %3304 = vmatpush.msra.mxu0 %v3156
    %3305 = vmatpush.msra.mxu0 %v3152
    %3306 = vmatmul.f32.gmra.mxu0 %v3151
    %v3307 = vpop.f32.mrf.mxu0
    %v3308 = vadd.f32 %v3282, %v3307
    %3309 = vdwg.mxu0
    %3310 = vmatpush.msra.mxu0 %v3276
    %3311 = vmatpush.msra.mxu0 %v3272
    %3312 = vmatpush.msra.mxu0 %v3268
    %3313 = vmatpush.msra.mxu0 %v3264
    %3314 = vmatpush.msra.mxu0 %v3260
    %3315 = vmatpush.msra.mxu0 %v3256
    %3316 = vmatpush.msra.mxu0 %v3252
    %3317 = vmatpush.msra.mxu0 %v3248
    %3318 = vmatpush.msra.mxu0 %v3244
    %3319 = vmatpush.msra.mxu0 %v3240
    %3320 = vmatpush.msra.mxu0 %v3236
    %3321 = vmatpush.msra.mxu0 %v3232
    %3322 = vmatpush.msra.mxu0 %v3228
    %3323 = vmatpush.msra.mxu0 %v3224
    %3324 = vmatpush.msra.mxu0 %v3220
    %3325 = vmatpush.msra.mxu0 %v3216
    %3326 = vmatmul.f32.gmra.mxu0 %v2807
    %v3327 = vpop.f32.mrf.mxu0
    %v3328 = vadd.f32 %v3308, %v3327
    %3329 = vdwg.mxu0
    %3330 = vmatpush.msra.mxu0 %v3213
    %3331 = vmatpush.msra.mxu0 %v3209
    %3332 = vmatpush.msra.mxu0 %v3205
    %3333 = vmatpush.msra.mxu0 %v3201
    %3334 = vmatpush.msra.mxu0 %v3197
    %3335 = vmatpush.msra.mxu0 %v3193
    %3336 = vmatpush.msra.mxu0 %v3189
    %3337 = vmatpush.msra.mxu0 %v3185
    %3338 = vmatpush.msra.mxu0 %v3181
    %3339 = vmatpush.msra.mxu0 %v3177
    %3340 = vmatpush.msra.mxu0 %v3173
    %3341 = vmatpush.msra.mxu0 %v3169
    %3342 = vmatpush.msra.mxu0 %v3165
    %3343 = vmatpush.msra.mxu0 %v3161
    %3344 = vmatpush.msra.mxu0 %v3157
    %3345 = vmatpush.msra.mxu0 %v3153
    %3346 = vmatmul.f32.gmra.mxu0 %v3151
    %v3347 = vpop.f32.mrf.mxu0
    %v3348 = vadd.f32 %v3283, %v3347
    %3349 = vdwg.mxu0
    %3350 = vmatpush.msra.mxu0 %v3277
    %3351 = vmatpush.msra.mxu0 %v3273
    %3352 = vmatpush.msra.mxu0 %v3269
    %3353 = vmatpush.msra.mxu0 %v3265
    %3354 = vmatpush.msra.mxu0 %v3261
    %3355 = vmatpush.msra.mxu0 %v3257
    %3356 = vmatpush.msra.mxu0 %v3253
    %3357 = vmatpush.msra.mxu0 %v3249
    %3358 = vmatpush.msra.mxu0 %v3245
    %3359 = vmatpush.msra.mxu0 %v3241
    %3360 = vmatpush.msra.mxu0 %v3237
    %3361 = vmatpush.msra.mxu0 %v3233
    %3362 = vmatpush.msra.mxu0 %v3229
    %3363 = vmatpush.msra.mxu0 %v3225
    %3364 = vmatpush.msra.mxu0 %v3221
    %3365 = vmatpush.msra.mxu0 %v3217
    %3366 = vmatmul.f32.gmra.mxu0 %v2807
    %v3367 = vpop.f32.mrf.mxu0
    %v3368 = vadd.f32 %v3348, %v3367
    %3369 = vdwg.mxu0
    %3370 = vmatpush.msra.mxu0 %v3214
    %3371 = vmatpush.msra.mxu0 %v3210
    %3372 = vmatpush.msra.mxu0 %v3206
    %3373 = vmatpush.msra.mxu0 %v3202
    %3374 = vmatpush.msra.mxu0 %v3198
    %3375 = vmatpush.msra.mxu0 %v3194
    %3376 = vmatpush.msra.mxu0 %v3190
    %3377 = vmatpush.msra.mxu0 %v3186
    %3378 = vmatpush.msra.mxu0 %v3182
    %3379 = vmatpush.msra.mxu0 %v3178
    %3380 = vmatpush.msra.mxu0 %v3174
    %3381 = vmatpush.msra.mxu0 %v3170
    %3382 = vmatpush.msra.mxu0 %v3166
    %3383 = vmatpush.msra.mxu0 %v3162
    %3384 = vmatpush.msra.mxu0 %v3158
    %3385 = vmatpush.msra.mxu0 %v3154
    %3386 = vmatmul.f32.gmra.mxu0 %v3151
    %v3387 = vpop.f32.mrf.mxu0
    %v3388 = vadd.f32 %v3284, %v3387
    %3389 = vdwg.mxu0
    %3390 = vmatpush.msra.mxu0 %v3278
    %3391 = vmatpush.msra.mxu0 %v3274
    %3392 = vmatpush.msra.mxu0 %v3270
    %3393 = vmatpush.msra.mxu0 %v3266
    %3394 = vmatpush.msra.mxu0 %v3262
    %3395 = vmatpush.msra.mxu0 %v3258
    %3396 = vmatpush.msra.mxu0 %v3254
    %3397 = vmatpush.msra.mxu0 %v3250
    %3398 = vmatpush.msra.mxu0 %v3246
    %3399 = vmatpush.msra.mxu0 %v3242
    %3400 = vmatpush.msra.mxu0 %v3238
    %3401 = vmatpush.msra.mxu0 %v3234
    %3402 = vmatpush.msra.mxu0 %v3230
    %3403 = vmatpush.msra.mxu0 %v3226
    %3404 = vmatpush.msra.mxu0 %v3222
    %3405 = vmatpush.msra.mxu0 %v3218
    %3406 = vmatmul.f32.gmra.mxu0 %v2807
    %v3407 = vpop.f32.mrf.mxu0
    %v3408 = vadd.f32 %v3388, %v3407
    %3409 = vdwg.mxu0
    %3410 = vmatpush.msra.mxu0 %v3215
    %3411 = vmatpush.msra.mxu0 %v3211
    %3412 = vmatpush.msra.mxu0 %v3207
    %3413 = vmatpush.msra.mxu0 %v3203
    %3414 = vmatpush.msra.mxu0 %v3199
    %3415 = vmatpush.msra.mxu0 %v3195
    %3416 = vmatpush.msra.mxu0 %v3191
    %3417 = vmatpush.msra.mxu0 %v3187
    %3418 = vmatpush.msra.mxu0 %v3183
    %3419 = vmatpush.msra.mxu0 %v3179
    %3420 = vmatpush.msra.mxu0 %v3175
    %3421 = vmatpush.msra.mxu0 %v3171
    %3422 = vmatpush.msra.mxu0 %v3167
    %3423 = vmatpush.msra.mxu0 %v3163
    %3424 = vmatpush.msra.mxu0 %v3159
    %3425 = vmatpush.msra.mxu0 %v3155
    %3426 = vmatmul.f32.gmra.mxu0 %v3151
    %v3427 = vpop.f32.mrf.mxu0
    %v3428 = vadd.f32 %v3285, %v3427
    %3429 = vdwg.mxu0
    %3430 = vmatpush.msra.mxu0 %v3279
    %3431 = vmatpush.msra.mxu0 %v3275
    %3432 = vmatpush.msra.mxu0 %v3271
    %3433 = vmatpush.msra.mxu0 %v3267
    %3434 = vmatpush.msra.mxu0 %v3263
    %3435 = vmatpush.msra.mxu0 %v3259
    %3436 = vmatpush.msra.mxu0 %v3255
    %3437 = vmatpush.msra.mxu0 %v3251
    %3438 = vmatpush.msra.mxu0 %v3247
    %3439 = vmatpush.msra.mxu0 %v3243
    %3440 = vmatpush.msra.mxu0 %v3239
    %3441 = vmatpush.msra.mxu0 %v3235
    %3442 = vmatpush.msra.mxu0 %v3231
    %3443 = vmatpush.msra.mxu0 %v3227
    %3444 = vmatpush.msra.mxu0 %v3223
    %3445 = vmatpush.msra.mxu0 %v3219
    %3446 = vmatmul.f32.gmra.mxu0 %v2807
    %v3447 = vpop.f32.mrf.mxu0
    %v3448 = vadd.f32 %v3428, %v3447
    %3449 = vdwg.mxu0
    %v3450 = vxor.u32 %v3328, 2147483648
    %v3451 = vmul.f32 %v3450, 1.442695
    %v3452 = vpow.pop %v3451
    %v3453 = vadd.f32 %v3452, 1.0
    %v3454 = vrcp.pop %v3453
    %v3455 = vmul.f32 %v3453, %v3454
    %v3456 = vsub.f32 1.0, %v3455
    %v3457 = vmul.f32 %v3454, %v3456
    %v3458 = vadd.f32 %v3454, %v3457
    %vm3459 = vweird.f32 %v3453
    %vm3460 = vweird.f32 %v3454
    %vm3461 = vmor %vm3459, %vm3460
    %v3462 = vsel %vm3461, %v3454, %v3458
    %v3463 = vand.u32 2147483647, %v3453
    %vm3464 = vcmp.eq.f32.partialorder %v3463, 8.507059e+37
    %v3465 = vand.u32 %v3453, 2147483648
    %v3466 = vor.u32 1.1754944e-38, %v3465
    %v3467 = vsel %vm3464, %v3466, %v3462
    %v3468 = vmul.f32 1.0, %v3467
    %v3469 = vxor.u32 %v3368, 2147483648
    %v3470 = vmul.f32 %v3469, 1.442695
    %v3471 = vpow.pop %v3470
    %v3472 = vadd.f32 %v3471, 1.0
    %v3473 = vrcp.pop %v3472
    %v3474 = vmul.f32 %v3472, %v3473
    %v3475 = vsub.f32 1.0, %v3474
    %v3476 = vmul.f32 %v3473, %v3475
    %v3477 = vadd.f32 %v3473, %v3476
    %vm3478 = vweird.f32 %v3472
    %vm3479 = vweird.f32 %v3473
    %vm3480 = vmor %vm3478, %vm3479
    %v3481 = vsel %vm3480, %v3473, %v3477
    %v3482 = vand.u32 2147483647, %v3472
    %vm3483 = vcmp.eq.f32.partialorder %v3482, 8.507059e+37
    %v3484 = vand.u32 %v3472, 2147483648
    %v3485 = vor.u32 1.1754944e-38, %v3484
    %v3486 = vsel %vm3483, %v3485, %v3481
    %v3487 = vmul.f32 1.0, %v3486
    %v3488 = vmul.f32 %v3468, %v3448
    %v3489 = vadd.f32 %v3408, %v3488
    %v3490 = vtanh.pop %v3489
    %v3491 = vsub.f32 1.0, %v3487
    %v3492 = vmul.f32 %v3491, %v3490
    %v3493 = vmul.f32 %v3487, %v2807
    %v3494 = vadd.f32 %v3492, %v3493
    %v3495 = vld [vmem:[#allocation14] sm:$0xff]
    %v3496 = vld [vmem:[#allocation14 + $0x8] sm:$0xff]
    %v3497 = vld [vmem:[#allocation14 + $0x10] sm:$0xff]
    %v3498 = vld [vmem:[#allocation14 + $0x18] sm:$0xff]
    %v3499 = vld [vmem:[#allocation14 + $0x20] sm:$0xff]
    %v3500 = vld [vmem:[#allocation14 + $0x28] sm:$0xff]
    %v3501 = vld [vmem:[#allocation14 + $0x30] sm:$0xff]
    %v3502 = vld [vmem:[#allocation14 + $0x38] sm:$0xff]
    %v3503 = vld [vmem:[#allocation14 + $0x40] sm:$0xff]
    %v3504 = vld [vmem:[#allocation14 + $0x48] sm:$0xff]
    %v3505 = vld [vmem:[#allocation14 + $0x50] sm:$0xff]
    %v3506 = vld [vmem:[#allocation14 + $0x58] sm:$0xff]
    %v3507 = vld [vmem:[#allocation14 + $0x60] sm:$0xff]
    %v3508 = vld [vmem:[#allocation14 + $0x68] sm:$0xff]
    %v3509 = vld [vmem:[#allocation14 + $0x70] sm:$0xff]
    %v3510 = vld [vmem:[#allocation14 + $0x78] sm:$0xff]
    %v3511 = vld [vmem:[%s15] sm:$0x1]
    %v3513 = vperm.slane %v3511, 0
    %3515 = vmatpush.msra.mxu0 %v3510
    %3516 = vmatpush.msra.mxu0 %v3509
    %3517 = vmatpush.msra.mxu0 %v3508
    %3518 = vmatpush.msra.mxu0 %v3507
    %3519 = vmatpush.msra.mxu0 %v3506
    %3520 = vmatpush.msra.mxu0 %v3505
    %3521 = vmatpush.msra.mxu0 %v3504
    %3522 = vmatpush.msra.mxu0 %v3503
    %3523 = vmatpush.msra.mxu0 %v3502
    %3524 = vmatpush.msra.mxu0 %v3501
    %3525 = vmatpush.msra.mxu0 %v3500
    %3526 = vmatpush.msra.mxu0 %v3499
    %3527 = vmatpush.msra.mxu0 %v3498
    %3528 = vmatpush.msra.mxu0 %v3497
    %3529 = vmatpush.msra.mxu0 %v3496
    %3530 = vmatpush.msra.mxu0 %v3495
    %3531 = vmatmul.f32.gmra.mxu0 %v3494
    %v3532 = vpop.f32.mrf.mxu0
    %v3533 = vadd.f32 %v3513, %v3532
    %3534 = vdwg.mxu0
    %v3535 = vadd.f32 %v3533, %v2808
    %3536 = vst [vmem:[%s16] sm:$0xff] %v3535
    %v3537 = vld [vmem:[#allocation11] sm:$0xff]
    %v3538 = vld [vmem:[#allocation11 + $0x8] sm:$0xff]
    %v3539 = vld [vmem:[#allocation11 + $0x10] sm:$0xff]
    %v3540 = vld [vmem:[#allocation11 + $0x18] sm:$0xff]
    %v3541 = vld [vmem:[#allocation11 + $0x20] sm:$0xff]
    %v3542 = vld [vmem:[#allocation11 + $0x28] sm:$0xff]
    %v3543 = vld [vmem:[#allocation11 + $0x30] sm:$0xff]
    %v3544 = vld [vmem:[#allocation11 + $0x38] sm:$0xff]
    %v3545 = vld [vmem:[#allocation11 + $0x40] sm:$0xff]
    %v3546 = vld [vmem:[#allocation11 + $0x48] sm:$0xff]
    %v3547 = vld [vmem:[#allocation11 + $0x50] sm:$0xff]
    %v3548 = vld [vmem:[#allocation11 + $0x58] sm:$0xff]
    %v3549 = vld [vmem:[#allocation11 + $0x60] sm:$0xff]
    %v3550 = vld [vmem:[#allocation11 + $0x68] sm:$0xff]
    %v3551 = vld [vmem:[#allocation11 + $0x70] sm:$0xff]
    %v3552 = vld [vmem:[#allocation11 + $0x78] sm:$0xff]
    %v3553 = vld [vmem:[#allocation11 + $0x80] sm:$0xff]
    %v3554 = vld [vmem:[#allocation11 + $0x88] sm:$0xff]
    %v3555 = vld [vmem:[#allocation11 + $0x90] sm:$0xff]
    %v3556 = vld [vmem:[#allocation11 + $0x98] sm:$0xff]
    %v3557 = vld [vmem:[#allocation11 + $0xa0] sm:$0xff]
    %v3558 = vld [vmem:[#allocation11 + $0xa8] sm:$0xff]
    %v3559 = vld [vmem:[#allocation11 + $0xb0] sm:$0xff]
    %v3560 = vld [vmem:[#allocation11 + $0xb8] sm:$0xff]
    %v3561 = vld [vmem:[#allocation11 + $0xc0] sm:$0xff]
    %v3562 = vld [vmem:[#allocation11 + $0xc8] sm:$0xff]
    %v3563 = vld [vmem:[#allocation11 + $0xd0] sm:$0xff]
    %v3564 = vld [vmem:[#allocation11 + $0xd8] sm:$0xff]
    %v3565 = vld [vmem:[#allocation11 + $0xe0] sm:$0xff]
    %v3566 = vld [vmem:[#allocation11 + $0xe8] sm:$0xff]
    %v3567 = vld [vmem:[#allocation11 + $0xf0] sm:$0xff]
    %v3568 = vld [vmem:[#allocation11 + $0xf8] sm:$0xff]
    %v3569 = vld [vmem:[#allocation11 + $0x100] sm:$0xff]
    %v3570 = vld [vmem:[#allocation11 + $0x108] sm:$0xff]
    %v3571 = vld [vmem:[#allocation11 + $0x110] sm:$0xff]
    %v3572 = vld [vmem:[#allocation11 + $0x118] sm:$0xff]
    %v3573 = vld [vmem:[#allocation11 + $0x120] sm:$0xff]
    %v3574 = vld [vmem:[#allocation11 + $0x128] sm:$0xff]
    %v3575 = vld [vmem:[#allocation11 + $0x130] sm:$0xff]
    %v3576 = vld [vmem:[#allocation11 + $0x138] sm:$0xff]
    %v3577 = vld [vmem:[#allocation11 + $0x140] sm:$0xff]
    %v3578 = vld [vmem:[#allocation11 + $0x148] sm:$0xff]
    %v3579 = vld [vmem:[#allocation11 + $0x150] sm:$0xff]
    %v3580 = vld [vmem:[#allocation11 + $0x158] sm:$0xff]
    %v3581 = vld [vmem:[#allocation11 + $0x160] sm:$0xff]
    %v3582 = vld [vmem:[#allocation11 + $0x168] sm:$0xff]
    %v3583 = vld [vmem:[#allocation11 + $0x170] sm:$0xff]
    %v3584 = vld [vmem:[#allocation11 + $0x178] sm:$0xff]
    %v3585 = vld [vmem:[#allocation11 + $0x180] sm:$0xff]
    %v3586 = vld [vmem:[#allocation11 + $0x188] sm:$0xff]
    %v3587 = vld [vmem:[#allocation11 + $0x190] sm:$0xff]
    %v3588 = vld [vmem:[#allocation11 + $0x198] sm:$0xff]
    %v3589 = vld [vmem:[#allocation11 + $0x1a0] sm:$0xff]
    %v3590 = vld [vmem:[#allocation11 + $0x1a8] sm:$0xff]
    %v3591 = vld [vmem:[#allocation11 + $0x1b0] sm:$0xff]
    %v3592 = vld [vmem:[#allocation11 + $0x1b8] sm:$0xff]
    %v3593 = vld [vmem:[#allocation11 + $0x1c0] sm:$0xff]
    %v3594 = vld [vmem:[#allocation11 + $0x1c8] sm:$0xff]
    %v3595 = vld [vmem:[#allocation11 + $0x1d0] sm:$0xff]
    %v3596 = vld [vmem:[#allocation11 + $0x1d8] sm:$0xff]
    %v3597 = vld [vmem:[#allocation11 + $0x1e0] sm:$0xff]
    %v3598 = vld [vmem:[#allocation11 + $0x1e8] sm:$0xff]
    %v3599 = vld [vmem:[#allocation11 + $0x1f0] sm:$0xff]
    %v3600 = vld [vmem:[#allocation11 + $0x1f8] sm:$0xff]
    %v3601 = vld [vmem:[#allocation11 + $0x200] sm:$0xff]
    %v3602 = vld [vmem:[#allocation11 + $0x208] sm:$0xff]
    %v3603 = vld [vmem:[#allocation11 + $0x210] sm:$0xff]
    %v3604 = vld [vmem:[#allocation11 + $0x218] sm:$0xff]
    %v3605 = vld [vmem:[#allocation11 + $0x220] sm:$0xff]
    %v3606 = vld [vmem:[#allocation11 + $0x228] sm:$0xff]
    %v3607 = vld [vmem:[#allocation11 + $0x230] sm:$0xff]
    %v3608 = vld [vmem:[#allocation11 + $0x238] sm:$0xff]
    %v3609 = vld [vmem:[#allocation11 + $0x240] sm:$0xff]
    %v3610 = vld [vmem:[#allocation11 + $0x248] sm:$0xff]
    %v3611 = vld [vmem:[#allocation11 + $0x250] sm:$0xff]
    %v3612 = vld [vmem:[#allocation11 + $0x258] sm:$0xff]
    %v3613 = vld [vmem:[#allocation11 + $0x260] sm:$0xff]
    %v3614 = vld [vmem:[#allocation11 + $0x268] sm:$0xff]
    %v3615 = vld [vmem:[#allocation11 + $0x270] sm:$0xff]
    %v3616 = vld [vmem:[#allocation11 + $0x278] sm:$0xff]
    %v3617 = vld [vmem:[#allocation11 + $0x280] sm:$0xff]
    %v3618 = vld [vmem:[#allocation11 + $0x288] sm:$0xff]
    %v3619 = vld [vmem:[#allocation11 + $0x290] sm:$0xff]
    %v3620 = vld [vmem:[#allocation11 + $0x298] sm:$0xff]
    %v3621 = vld [vmem:[#allocation11 + $0x2a0] sm:$0xff]
    %v3622 = vld [vmem:[#allocation11 + $0x2a8] sm:$0xff]
    %v3623 = vld [vmem:[#allocation11 + $0x2b0] sm:$0xff]
    %v3624 = vld [vmem:[#allocation11 + $0x2b8] sm:$0xff]
    %v3625 = vld [vmem:[#allocation11 + $0x2c0] sm:$0xff]
    %v3626 = vld [vmem:[#allocation11 + $0x2c8] sm:$0xff]
    %v3627 = vld [vmem:[#allocation11 + $0x2d0] sm:$0xff]
    %v3628 = vld [vmem:[#allocation11 + $0x2d8] sm:$0xff]
    %v3629 = vld [vmem:[#allocation11 + $0x2e0] sm:$0xff]
    %v3630 = vld [vmem:[#allocation11 + $0x2e8] sm:$0xff]
    %v3631 = vld [vmem:[#allocation11 + $0x2f0] sm:$0xff]
    %v3632 = vld [vmem:[#allocation11 + $0x2f8] sm:$0xff]
    %v3633 = vld [vmem:[#allocation11 + $0x300] sm:$0xff]
    %v3634 = vld [vmem:[#allocation11 + $0x308] sm:$0xff]
    %v3635 = vld [vmem:[#allocation11 + $0x310] sm:$0xff]
    %v3636 = vld [vmem:[#allocation11 + $0x318] sm:$0xff]
    %v3637 = vld [vmem:[#allocation11 + $0x320] sm:$0xff]
    %v3638 = vld [vmem:[#allocation11 + $0x328] sm:$0xff]
    %v3639 = vld [vmem:[#allocation11 + $0x330] sm:$0xff]
    %v3640 = vld [vmem:[#allocation11 + $0x338] sm:$0xff]
    %v3641 = vld [vmem:[#allocation11 + $0x340] sm:$0xff]
    %v3642 = vld [vmem:[#allocation11 + $0x348] sm:$0xff]
    %v3643 = vld [vmem:[#allocation11 + $0x350] sm:$0xff]
    %v3644 = vld [vmem:[#allocation11 + $0x358] sm:$0xff]
    %v3645 = vld [vmem:[#allocation11 + $0x360] sm:$0xff]
    %v3646 = vld [vmem:[#allocation11 + $0x368] sm:$0xff]
    %v3647 = vld [vmem:[#allocation11 + $0x370] sm:$0xff]
    %v3648 = vld [vmem:[#allocation11 + $0x378] sm:$0xff]
    %v3649 = vld [vmem:[#allocation11 + $0x380] sm:$0xff]
    %v3650 = vld [vmem:[#allocation11 + $0x388] sm:$0xff]
    %v3651 = vld [vmem:[#allocation11 + $0x390] sm:$0xff]
    %v3652 = vld [vmem:[#allocation11 + $0x398] sm:$0xff]
    %v3653 = vld [vmem:[#allocation11 + $0x3a0] sm:$0xff]
    %v3654 = vld [vmem:[#allocation11 + $0x3a8] sm:$0xff]
    %v3655 = vld [vmem:[#allocation11 + $0x3b0] sm:$0xff]
    %v3656 = vld [vmem:[#allocation11 + $0x3b8] sm:$0xff]
    %v3657 = vld [vmem:[#allocation11 + $0x3c0] sm:$0xff]
    %v3658 = vld [vmem:[#allocation11 + $0x3c8] sm:$0xff]
    %v3659 = vld [vmem:[#allocation11 + $0x3d0] sm:$0xff]
    %v3660 = vld [vmem:[#allocation11 + $0x3d8] sm:$0xff]
    %v3661 = vld [vmem:[#allocation11 + $0x3e0] sm:$0xff]
    %v3662 = vld [vmem:[#allocation11 + $0x3e8] sm:$0xff]
    %v3663 = vld [vmem:[#allocation11 + $0x3f0] sm:$0xff]
    %v3664 = vld [vmem:[#allocation11 + $0x3f8] sm:$0xff]
    %v3665 = vld [vmem:[%s11] sm:$0xf]
    %v3667 = vperm.slane %v3665, 0
    %v3668 = vperm.slane %v3665, 1
    %v3669 = vperm.slane %v3665, 2
    %v3670 = vperm.slane %v3665, 3
    %3675 = vmatpush.msra.mxu0 %v3597
    %3676 = vmatpush.msra.mxu0 %v3593
    %3677 = vmatpush.msra.mxu0 %v3589
    %3678 = vmatpush.msra.mxu0 %v3585
    %3679 = vmatpush.msra.mxu0 %v3581
    %3680 = vmatpush.msra.mxu0 %v3577
    %3681 = vmatpush.msra.mxu0 %v3573
    %3682 = vmatpush.msra.mxu0 %v3569
    %3683 = vmatpush.msra.mxu0 %v3565
    %3684 = vmatpush.msra.mxu0 %v3561
    %3685 = vmatpush.msra.mxu0 %v3557
    %3686 = vmatpush.msra.mxu0 %v3553
    %3687 = vmatpush.msra.mxu0 %v3549
    %3688 = vmatpush.msra.mxu0 %v3545
    %3689 = vmatpush.msra.mxu0 %v3541
    %3690 = vmatpush.msra.mxu0 %v3537
    %3691 = vmatmul.f32.gmra.mxu0 %v3535
    %v3692 = vpop.f32.mrf.mxu0
    %v3693 = vadd.f32 %v3667, %v3692
    %3694 = vdwg.mxu0
    %3695 = vmatpush.msra.mxu0 %v3661
    %3696 = vmatpush.msra.mxu0 %v3657
    %3697 = vmatpush.msra.mxu0 %v3653
    %3698 = vmatpush.msra.mxu0 %v3649
    %3699 = vmatpush.msra.mxu0 %v3645
    %3700 = vmatpush.msra.mxu0 %v3641
    %3701 = vmatpush.msra.mxu0 %v3637
    %3702 = vmatpush.msra.mxu0 %v3633
    %3703 = vmatpush.msra.mxu0 %v3629
    %3704 = vmatpush.msra.mxu0 %v3625
    %3705 = vmatpush.msra.mxu0 %v3621
    %3706 = vmatpush.msra.mxu0 %v3617
    %3707 = vmatpush.msra.mxu0 %v3613
    %3708 = vmatpush.msra.mxu0 %v3609
    %3709 = vmatpush.msra.mxu0 %v3605
    %3710 = vmatpush.msra.mxu0 %v3601
    %3711 = vmatmul.f32.gmra.mxu0 %v3151
    %v3712 = vpop.f32.mrf.mxu0
    %v3713 = vadd.f32 %v3693, %v3712
    %3714 = vdwg.mxu0
    %3715 = vmatpush.msra.mxu0 %v3598
    %3716 = vmatpush.msra.mxu0 %v3594
    %3717 = vmatpush.msra.mxu0 %v3590
    %3718 = vmatpush.msra.mxu0 %v3586
    %3719 = vmatpush.msra.mxu0 %v3582
    %3720 = vmatpush.msra.mxu0 %v3578
    %3721 = vmatpush.msra.mxu0 %v3574
    %3722 = vmatpush.msra.mxu0 %v3570
    %3723 = vmatpush.msra.mxu0 %v3566
    %3724 = vmatpush.msra.mxu0 %v3562
    %3725 = vmatpush.msra.mxu0 %v3558
    %3726 = vmatpush.msra.mxu0 %v3554
    %3727 = vmatpush.msra.mxu0 %v3550
    %3728 = vmatpush.msra.mxu0 %v3546
    %3729 = vmatpush.msra.mxu0 %v3542
    %3730 = vmatpush.msra.mxu0 %v3538
    %3731 = vmatmul.f32.gmra.mxu0 %v3535
    %v3732 = vpop.f32.mrf.mxu0
    %v3733 = vadd.f32 %v3668, %v3732
    %3734 = vdwg.mxu0
    %3735 = vmatpush.msra.mxu0 %v3662
    %3736 = vmatpush.msra.mxu0 %v3658
    %3737 = vmatpush.msra.mxu0 %v3654
    %3738 = vmatpush.msra.mxu0 %v3650
    %3739 = vmatpush.msra.mxu0 %v3646
    %3740 = vmatpush.msra.mxu0 %v3642
    %3741 = vmatpush.msra.mxu0 %v3638
    %3742 = vmatpush.msra.mxu0 %v3634
    %3743 = vmatpush.msra.mxu0 %v3630
    %3744 = vmatpush.msra.mxu0 %v3626
    %3745 = vmatpush.msra.mxu0 %v3622
    %3746 = vmatpush.msra.mxu0 %v3618
    %3747 = vmatpush.msra.mxu0 %v3614
    %3748 = vmatpush.msra.mxu0 %v3610
    %3749 = vmatpush.msra.mxu0 %v3606
    %3750 = vmatpush.msra.mxu0 %v3602
    %3751 = vmatmul.f32.gmra.mxu0 %v3151
    %v3752 = vpop.f32.mrf.mxu0
    %v3753 = vadd.f32 %v3733, %v3752
    %3754 = vdwg.mxu0
    %3755 = vmatpush.msra.mxu0 %v3599
    %3756 = vmatpush.msra.mxu0 %v3595
    %3757 = vmatpush.msra.mxu0 %v3591
    %3758 = vmatpush.msra.mxu0 %v3587
    %3759 = vmatpush.msra.mxu0 %v3583
    %3760 = vmatpush.msra.mxu0 %v3579
    %3761 = vmatpush.msra.mxu0 %v3575
    %3762 = vmatpush.msra.mxu0 %v3571
    %3763 = vmatpush.msra.mxu0 %v3567
    %3764 = vmatpush.msra.mxu0 %v3563
    %3765 = vmatpush.msra.mxu0 %v3559
    %3766 = vmatpush.msra.mxu0 %v3555
    %3767 = vmatpush.msra.mxu0 %v3551
    %3768 = vmatpush.msra.mxu0 %v3547
    %3769 = vmatpush.msra.mxu0 %v3543
    %3770 = vmatpush.msra.mxu0 %v3539
    %3771 = vmatmul.f32.gmra.mxu0 %v3535
    %v3772 = vpop.f32.mrf.mxu0
    %v3773 = vadd.f32 %v3669, %v3772
    %3774 = vdwg.mxu0
    %3775 = vmatpush.msra.mxu0 %v3663
    %3776 = vmatpush.msra.mxu0 %v3659
    %3777 = vmatpush.msra.mxu0 %v3655
    %3778 = vmatpush.msra.mxu0 %v3651
    %3779 = vmatpush.msra.mxu0 %v3647
    %3780 = vmatpush.msra.mxu0 %v3643
    %3781 = vmatpush.msra.mxu0 %v3639
    %3782 = vmatpush.msra.mxu0 %v3635
    %3783 = vmatpush.msra.mxu0 %v3631
    %3784 = vmatpush.msra.mxu0 %v3627
    %3785 = vmatpush.msra.mxu0 %v3623
    %3786 = vmatpush.msra.mxu0 %v3619
    %3787 = vmatpush.msra.mxu0 %v3615
    %3788 = vmatpush.msra.mxu0 %v3611
    %3789 = vmatpush.msra.mxu0 %v3607
    %3790 = vmatpush.msra.mxu0 %v3603
    %3791 = vmatmul.f32.gmra.mxu0 %v3151
    %v3792 = vpop.f32.mrf.mxu0
    %v3793 = vadd.f32 %v3773, %v3792
    %3794 = vdwg.mxu0
    %3795 = vmatpush.msra.mxu0 %v3600
    %3796 = vmatpush.msra.mxu0 %v3596
    %3797 = vmatpush.msra.mxu0 %v3592
    %3798 = vmatpush.msra.mxu0 %v3588
    %3799 = vmatpush.msra.mxu0 %v3584
    %3800 = vmatpush.msra.mxu0 %v3580
    %3801 = vmatpush.msra.mxu0 %v3576
    %3802 = vmatpush.msra.mxu0 %v3572
    %3803 = vmatpush.msra.mxu0 %v3568
    %3804 = vmatpush.msra.mxu0 %v3564
    %3805 = vmatpush.msra.mxu0 %v3560
    %3806 = vmatpush.msra.mxu0 %v3556
    %3807 = vmatpush.msra.mxu0 %v3552
    %3808 = vmatpush.msra.mxu0 %v3548
    %3809 = vmatpush.msra.mxu0 %v3544
    %3810 = vmatpush.msra.mxu0 %v3540
    %3811 = vmatmul.f32.gmra.mxu0 %v3535
    %v3812 = vpop.f32.mrf.mxu0
    %v3813 = vadd.f32 %v3670, %v3812
    %3814 = vdwg.mxu0
    %3815 = vmatpush.msra.mxu0 %v3664
    %3816 = vmatpush.msra.mxu0 %v3660
    %3817 = vmatpush.msra.mxu0 %v3656
    %3818 = vmatpush.msra.mxu0 %v3652
    %3819 = vmatpush.msra.mxu0 %v3648
    %3820 = vmatpush.msra.mxu0 %v3644
    %3821 = vmatpush.msra.mxu0 %v3640
    %3822 = vmatpush.msra.mxu0 %v3636
    %3823 = vmatpush.msra.mxu0 %v3632
    %3824 = vmatpush.msra.mxu0 %v3628
    %3825 = vmatpush.msra.mxu0 %v3624
    %3826 = vmatpush.msra.mxu0 %v3620
    %3827 = vmatpush.msra.mxu0 %v3616
    %3828 = vmatpush.msra.mxu0 %v3612
    %3829 = vmatpush.msra.mxu0 %v3608
    %3830 = vmatpush.msra.mxu0 %v3604
    %3831 = vmatmul.f32.gmra.mxu0 %v3151
    %v3832 = vpop.f32.mrf.mxu0
    %v3833 = vadd.f32 %v3813, %v3832
    %3834 = vdwg.mxu0
    %v3835 = vxor.u32 %v3713, 2147483648
    %v3836 = vmul.f32 %v3835, 1.442695
    %v3837 = vpow.pop %v3836
    %v3838 = vadd.f32 %v3837, 1.0
    %v3839 = vrcp.pop %v3838
    %v3840 = vmul.f32 %v3838, %v3839
    %v3841 = vsub.f32 1.0, %v3840
    %v3842 = vmul.f32 %v3839, %v3841
    %v3843 = vadd.f32 %v3839, %v3842
    %vm3844 = vweird.f32 %v3838
    %vm3845 = vweird.f32 %v3839
    %vm3846 = vmor %vm3844, %vm3845
    %v3847 = vsel %vm3846, %v3839, %v3843
    %v3848 = vand.u32 2147483647, %v3838
    %vm3849 = vcmp.eq.f32.partialorder %v3848, 8.507059e+37
    %v3850 = vand.u32 %v3838, 2147483648
    %v3851 = vor.u32 1.1754944e-38, %v3850
    %v3852 = vsel %vm3849, %v3851, %v3847
    %v3853 = vmul.f32 1.0, %v3852
    %v3854 = vxor.u32 %v3753, 2147483648
    %v3855 = vmul.f32 %v3854, 1.442695
    %v3856 = vpow.pop %v3855
    %v3857 = vadd.f32 %v3856, 1.0
    %v3858 = vrcp.pop %v3857
    %v3859 = vmul.f32 %v3857, %v3858
    %v3860 = vsub.f32 1.0, %v3859
    %v3861 = vmul.f32 %v3858, %v3860
    %v3862 = vadd.f32 %v3858, %v3861
    %vm3863 = vweird.f32 %v3857
    %vm3864 = vweird.f32 %v3858
    %vm3865 = vmor %vm3863, %vm3864
    %v3866 = vsel %vm3865, %v3858, %v3862
    %v3867 = vand.u32 2147483647, %v3857
    %vm3868 = vcmp.eq.f32.partialorder %v3867, 8.507059e+37
    %v3869 = vand.u32 %v3857, 2147483648
    %v3870 = vor.u32 1.1754944e-38, %v3869
    %v3871 = vsel %vm3868, %v3870, %v3866
    %v3872 = vmul.f32 1.0, %v3871
    %v3873 = vmul.f32 %v3853, %v3833
    %v3874 = vadd.f32 %v3793, %v3873
    %v3875 = vtanh.pop %v3874
    %v3876 = vsub.f32 1.0, %v3872
    %v3877 = vmul.f32 %v3876, %v3875
    %v3878 = vmul.f32 %v3872, %v3151
    %v3879 = vadd.f32 %v3877, %v3878
    %v3880 = vld [vmem:[#allocation12] sm:$0xff]
    %v3881 = vld [vmem:[#allocation12 + $0x8] sm:$0xff]
    %v3882 = vld [vmem:[#allocation12 + $0x10] sm:$0xff]
    %v3883 = vld [vmem:[#allocation12 + $0x18] sm:$0xff]
    %v3884 = vld [vmem:[#allocation12 + $0x20] sm:$0xff]
    %v3885 = vld [vmem:[#allocation12 + $0x28] sm:$0xff]
    %v3886 = vld [vmem:[#allocation12 + $0x30] sm:$0xff]
    %v3887 = vld [vmem:[#allocation12 + $0x38] sm:$0xff]
    %v3888 = vld [vmem:[#allocation12 + $0x40] sm:$0xff]
    %v3889 = vld [vmem:[#allocation12 + $0x48] sm:$0xff]
    %v3890 = vld [vmem:[#allocation12 + $0x50] sm:$0xff]
    %v3891 = vld [vmem:[#allocation12 + $0x58] sm:$0xff]
    %v3892 = vld [vmem:[#allocation12 + $0x60] sm:$0xff]
    %v3893 = vld [vmem:[#allocation12 + $0x68] sm:$0xff]
    %v3894 = vld [vmem:[#allocation12 + $0x70] sm:$0xff]
    %v3895 = vld [vmem:[#allocation12 + $0x78] sm:$0xff]
    %v3896 = vld [vmem:[#allocation12 + $0x80] sm:$0xff]
    %v3897 = vld [vmem:[#allocation12 + $0x88] sm:$0xff]
    %v3898 = vld [vmem:[#allocation12 + $0x90] sm:$0xff]
    %v3899 = vld [vmem:[#allocation12 + $0x98] sm:$0xff]
    %v3900 = vld [vmem:[#allocation12 + $0xa0] sm:$0xff]
    %v3901 = vld [vmem:[#allocation12 + $0xa8] sm:$0xff]
    %v3902 = vld [vmem:[#allocation12 + $0xb0] sm:$0xff]
    %v3903 = vld [vmem:[#allocation12 + $0xb8] sm:$0xff]
    %v3904 = vld [vmem:[#allocation12 + $0xc0] sm:$0xff]
    %v3905 = vld [vmem:[#allocation12 + $0xc8] sm:$0xff]
    %v3906 = vld [vmem:[#allocation12 + $0xd0] sm:$0xff]
    %v3907 = vld [vmem:[#allocation12 + $0xd8] sm:$0xff]
    %v3908 = vld [vmem:[#allocation12 + $0xe0] sm:$0xff]
    %v3909 = vld [vmem:[#allocation12 + $0xe8] sm:$0xff]
    %v3910 = vld [vmem:[#allocation12 + $0xf0] sm:$0xff]
    %v3911 = vld [vmem:[#allocation12 + $0xf8] sm:$0xff]
    %v3912 = vld [vmem:[#allocation12 + $0x100] sm:$0xff]
    %v3913 = vld [vmem:[#allocation12 + $0x108] sm:$0xff]
    %v3914 = vld [vmem:[#allocation12 + $0x110] sm:$0xff]
    %v3915 = vld [vmem:[#allocation12 + $0x118] sm:$0xff]
    %v3916 = vld [vmem:[#allocation12 + $0x120] sm:$0xff]
    %v3917 = vld [vmem:[#allocation12 + $0x128] sm:$0xff]
    %v3918 = vld [vmem:[#allocation12 + $0x130] sm:$0xff]
    %v3919 = vld [vmem:[#allocation12 + $0x138] sm:$0xff]
    %v3920 = vld [vmem:[#allocation12 + $0x140] sm:$0xff]
    %v3921 = vld [vmem:[#allocation12 + $0x148] sm:$0xff]
    %v3922 = vld [vmem:[#allocation12 + $0x150] sm:$0xff]
    %v3923 = vld [vmem:[#allocation12 + $0x158] sm:$0xff]
    %v3924 = vld [vmem:[#allocation12 + $0x160] sm:$0xff]
    %v3925 = vld [vmem:[#allocation12 + $0x168] sm:$0xff]
    %v3926 = vld [vmem:[#allocation12 + $0x170] sm:$0xff]
    %v3927 = vld [vmem:[#allocation12 + $0x178] sm:$0xff]
    %v3928 = vld [vmem:[#allocation12 + $0x180] sm:$0xff]
    %v3929 = vld [vmem:[#allocation12 + $0x188] sm:$0xff]
    %v3930 = vld [vmem:[#allocation12 + $0x190] sm:$0xff]
    %v3931 = vld [vmem:[#allocation12 + $0x198] sm:$0xff]
    %v3932 = vld [vmem:[#allocation12 + $0x1a0] sm:$0xff]
    %v3933 = vld [vmem:[#allocation12 + $0x1a8] sm:$0xff]
    %v3934 = vld [vmem:[#allocation12 + $0x1b0] sm:$0xff]
    %v3935 = vld [vmem:[#allocation12 + $0x1b8] sm:$0xff]
    %v3936 = vld [vmem:[#allocation12 + $0x1c0] sm:$0xff]
    %v3937 = vld [vmem:[#allocation12 + $0x1c8] sm:$0xff]
    %v3938 = vld [vmem:[#allocation12 + $0x1d0] sm:$0xff]
    %v3939 = vld [vmem:[#allocation12 + $0x1d8] sm:$0xff]
    %v3940 = vld [vmem:[#allocation12 + $0x1e0] sm:$0xff]
    %v3941 = vld [vmem:[#allocation12 + $0x1e8] sm:$0xff]
    %v3942 = vld [vmem:[#allocation12 + $0x1f0] sm:$0xff]
    %v3943 = vld [vmem:[#allocation12 + $0x1f8] sm:$0xff]
    %v3944 = vld [vmem:[#allocation12 + $0x200] sm:$0xff]
    %v3945 = vld [vmem:[#allocation12 + $0x208] sm:$0xff]
    %v3946 = vld [vmem:[#allocation12 + $0x210] sm:$0xff]
    %v3947 = vld [vmem:[#allocation12 + $0x218] sm:$0xff]
    %v3948 = vld [vmem:[#allocation12 + $0x220] sm:$0xff]
    %v3949 = vld [vmem:[#allocation12 + $0x228] sm:$0xff]
    %v3950 = vld [vmem:[#allocation12 + $0x230] sm:$0xff]
    %v3951 = vld [vmem:[#allocation12 + $0x238] sm:$0xff]
    %v3952 = vld [vmem:[#allocation12 + $0x240] sm:$0xff]
    %v3953 = vld [vmem:[#allocation12 + $0x248] sm:$0xff]
    %v3954 = vld [vmem:[#allocation12 + $0x250] sm:$0xff]
    %v3955 = vld [vmem:[#allocation12 + $0x258] sm:$0xff]
    %v3956 = vld [vmem:[#allocation12 + $0x260] sm:$0xff]
    %v3957 = vld [vmem:[#allocation12 + $0x268] sm:$0xff]
    %v3958 = vld [vmem:[#allocation12 + $0x270] sm:$0xff]
    %v3959 = vld [vmem:[#allocation12 + $0x278] sm:$0xff]
    %v3960 = vld [vmem:[#allocation12 + $0x280] sm:$0xff]
    %v3961 = vld [vmem:[#allocation12 + $0x288] sm:$0xff]
    %v3962 = vld [vmem:[#allocation12 + $0x290] sm:$0xff]
    %v3963 = vld [vmem:[#allocation12 + $0x298] sm:$0xff]
    %v3964 = vld [vmem:[#allocation12 + $0x2a0] sm:$0xff]
    %v3965 = vld [vmem:[#allocation12 + $0x2a8] sm:$0xff]
    %v3966 = vld [vmem:[#allocation12 + $0x2b0] sm:$0xff]
    %v3967 = vld [vmem:[#allocation12 + $0x2b8] sm:$0xff]
    %v3968 = vld [vmem:[#allocation12 + $0x2c0] sm:$0xff]
    %v3969 = vld [vmem:[#allocation12 + $0x2c8] sm:$0xff]
    %v3970 = vld [vmem:[#allocation12 + $0x2d0] sm:$0xff]
    %v3971 = vld [vmem:[#allocation12 + $0x2d8] sm:$0xff]
    %v3972 = vld [vmem:[#allocation12 + $0x2e0] sm:$0xff]
    %v3973 = vld [vmem:[#allocation12 + $0x2e8] sm:$0xff]
    %v3974 = vld [vmem:[#allocation12 + $0x2f0] sm:$0xff]
    %v3975 = vld [vmem:[#allocation12 + $0x2f8] sm:$0xff]
    %v3976 = vld [vmem:[#allocation12 + $0x300] sm:$0xff]
    %v3977 = vld [vmem:[#allocation12 + $0x308] sm:$0xff]
    %v3978 = vld [vmem:[#allocation12 + $0x310] sm:$0xff]
    %v3979 = vld [vmem:[#allocation12 + $0x318] sm:$0xff]
    %v3980 = vld [vmem:[#allocation12 + $0x320] sm:$0xff]
    %v3981 = vld [vmem:[#allocation12 + $0x328] sm:$0xff]
    %v3982 = vld [vmem:[#allocation12 + $0x330] sm:$0xff]
    %v3983 = vld [vmem:[#allocation12 + $0x338] sm:$0xff]
    %v3984 = vld [vmem:[#allocation12 + $0x340] sm:$0xff]
    %v3985 = vld [vmem:[#allocation12 + $0x348] sm:$0xff]
    %v3986 = vld [vmem:[#allocation12 + $0x350] sm:$0xff]
    %v3987 = vld [vmem:[#allocation12 + $0x358] sm:$0xff]
    %v3988 = vld [vmem:[#allocation12 + $0x360] sm:$0xff]
    %v3989 = vld [vmem:[#allocation12 + $0x368] sm:$0xff]
    %v3990 = vld [vmem:[#allocation12 + $0x370] sm:$0xff]
    %v3991 = vld [vmem:[#allocation12 + $0x378] sm:$0xff]
    %v3992 = vld [vmem:[#allocation12 + $0x380] sm:$0xff]
    %v3993 = vld [vmem:[#allocation12 + $0x388] sm:$0xff]
    %v3994 = vld [vmem:[#allocation12 + $0x390] sm:$0xff]
    %v3995 = vld [vmem:[#allocation12 + $0x398] sm:$0xff]
    %v3996 = vld [vmem:[#allocation12 + $0x3a0] sm:$0xff]
    %v3997 = vld [vmem:[#allocation12 + $0x3a8] sm:$0xff]
    %v3998 = vld [vmem:[#allocation12 + $0x3b0] sm:$0xff]
    %v3999 = vld [vmem:[#allocation12 + $0x3b8] sm:$0xff]
    %v4000 = vld [vmem:[#allocation12 + $0x3c0] sm:$0xff]
    %v4001 = vld [vmem:[#allocation12 + $0x3c8] sm:$0xff]
    %v4002 = vld [vmem:[#allocation12 + $0x3d0] sm:$0xff]
    %v4003 = vld [vmem:[#allocation12 + $0x3d8] sm:$0xff]
    %v4004 = vld [vmem:[#allocation12 + $0x3e0] sm:$0xff]
    %v4005 = vld [vmem:[#allocation12 + $0x3e8] sm:$0xff]
    %v4006 = vld [vmem:[#allocation12 + $0x3f0] sm:$0xff]
    %v4007 = vld [vmem:[#allocation12 + $0x3f8] sm:$0xff]
    %v4008 = vld [vmem:[%s13] sm:$0xf]
    %v4010 = vperm.slane %v4008, 0
    %v4011 = vperm.slane %v4008, 1
    %v4012 = vperm.slane %v4008, 2
    %v4013 = vperm.slane %v4008, 3
    %4018 = vmatpush.msra.mxu0 %v3940
    %4019 = vmatpush.msra.mxu0 %v3936
    %4020 = vmatpush.msra.mxu0 %v3932
    %4021 = vmatpush.msra.mxu0 %v3928
    %4022 = vmatpush.msra.mxu0 %v3924
    %4023 = vmatpush.msra.mxu0 %v3920
    %4024 = vmatpush.msra.mxu0 %v3916
    %4025 = vmatpush.msra.mxu0 %v3912
    %4026 = vmatpush.msra.mxu0 %v3908
    %4027 = vmatpush.msra.mxu0 %v3904
    %4028 = vmatpush.msra.mxu0 %v3900
    %4029 = vmatpush.msra.mxu0 %v3896
    %4030 = vmatpush.msra.mxu0 %v3892
    %4031 = vmatpush.msra.mxu0 %v3888
    %4032 = vmatpush.msra.mxu0 %v3884
    %4033 = vmatpush.msra.mxu0 %v3880
    %4034 = vmatmul.f32.gmra.mxu0 %v3879
    %v4035 = vpop.f32.mrf.mxu0
    %v4036 = vadd.f32 %v4010, %v4035
    %4037 = vdwg.mxu0
    %4038 = vmatpush.msra.mxu0 %v4004
    %4039 = vmatpush.msra.mxu0 %v4000
    %4040 = vmatpush.msra.mxu0 %v3996
    %4041 = vmatpush.msra.mxu0 %v3992
    %4042 = vmatpush.msra.mxu0 %v3988
    %4043 = vmatpush.msra.mxu0 %v3984
    %4044 = vmatpush.msra.mxu0 %v3980
    %4045 = vmatpush.msra.mxu0 %v3976
    %4046 = vmatpush.msra.mxu0 %v3972
    %4047 = vmatpush.msra.mxu0 %v3968
    %4048 = vmatpush.msra.mxu0 %v3964
    %4049 = vmatpush.msra.mxu0 %v3960
    %4050 = vmatpush.msra.mxu0 %v3956
    %4051 = vmatpush.msra.mxu0 %v3952
    %4052 = vmatpush.msra.mxu0 %v3948
    %4053 = vmatpush.msra.mxu0 %v3944
    %4054 = vmatmul.f32.gmra.mxu0 %v3494
    %v4055 = vpop.f32.mrf.mxu0
    %v4056 = vadd.f32 %v4036, %v4055
    %4057 = vdwg.mxu0
    %4058 = vmatpush.msra.mxu0 %v3941
    %4059 = vmatpush.msra.mxu0 %v3937
    %4060 = vmatpush.msra.mxu0 %v3933
    %4061 = vmatpush.msra.mxu0 %v3929
    %4062 = vmatpush.msra.mxu0 %v3925
    %4063 = vmatpush.msra.mxu0 %v3921
    %4064 = vmatpush.msra.mxu0 %v3917
    %4065 = vmatpush.msra.mxu0 %v3913
    %4066 = vmatpush.msra.mxu0 %v3909
    %4067 = vmatpush.msra.mxu0 %v3905
    %4068 = vmatpush.msra.mxu0 %v3901
    %4069 = vmatpush.msra.mxu0 %v3897
    %4070 = vmatpush.msra.mxu0 %v3893
    %4071 = vmatpush.msra.mxu0 %v3889
    %4072 = vmatpush.msra.mxu0 %v3885
    %4073 = vmatpush.msra.mxu0 %v3881
    %4074 = vmatmul.f32.gmra.mxu0 %v3879
    %v4075 = vpop.f32.mrf.mxu0
    %v4076 = vadd.f32 %v4011, %v4075
    %4077 = vdwg.mxu0
    %4078 = vmatpush.msra.mxu0 %v4005
    %4079 = vmatpush.msra.mxu0 %v4001
    %4080 = vmatpush.msra.mxu0 %v3997
    %4081 = vmatpush.msra.mxu0 %v3993
    %4082 = vmatpush.msra.mxu0 %v3989
    %4083 = vmatpush.msra.mxu0 %v3985
    %4084 = vmatpush.msra.mxu0 %v3981
    %4085 = vmatpush.msra.mxu0 %v3977
    %4086 = vmatpush.msra.mxu0 %v3973
    %4087 = vmatpush.msra.mxu0 %v3969
    %4088 = vmatpush.msra.mxu0 %v3965
    %4089 = vmatpush.msra.mxu0 %v3961
    %4090 = vmatpush.msra.mxu0 %v3957
    %4091 = vmatpush.msra.mxu0 %v3953
    %4092 = vmatpush.msra.mxu0 %v3949
    %4093 = vmatpush.msra.mxu0 %v3945
    %4094 = vmatmul.f32.gmra.mxu0 %v3494
    %v4095 = vpop.f32.mrf.mxu0
    %v4096 = vadd.f32 %v4076, %v4095
    %4097 = vdwg.mxu0
    %4098 = vmatpush.msra.mxu0 %v3942
    %4099 = vmatpush.msra.mxu0 %v3938
    %4100 = vmatpush.msra.mxu0 %v3934
    %4101 = vmatpush.msra.mxu0 %v3930
    %4102 = vmatpush.msra.mxu0 %v3926
    %4103 = vmatpush.msra.mxu0 %v3922
    %4104 = vmatpush.msra.mxu0 %v3918
    %4105 = vmatpush.msra.mxu0 %v3914
    %4106 = vmatpush.msra.mxu0 %v3910
    %4107 = vmatpush.msra.mxu0 %v3906
    %4108 = vmatpush.msra.mxu0 %v3902
    %4109 = vmatpush.msra.mxu0 %v3898
    %4110 = vmatpush.msra.mxu0 %v3894
    %4111 = vmatpush.msra.mxu0 %v3890
    %4112 = vmatpush.msra.mxu0 %v3886
    %4113 = vmatpush.msra.mxu0 %v3882
    %4114 = vmatmul.f32.gmra.mxu0 %v3879
    %v4115 = vpop.f32.mrf.mxu0
    %v4116 = vadd.f32 %v4012, %v4115
    %4117 = vdwg.mxu0
    %4118 = vmatpush.msra.mxu0 %v4006
    %4119 = vmatpush.msra.mxu0 %v4002
    %4120 = vmatpush.msra.mxu0 %v3998
    %4121 = vmatpush.msra.mxu0 %v3994
    %4122 = vmatpush.msra.mxu0 %v3990
    %4123 = vmatpush.msra.mxu0 %v3986
    %4124 = vmatpush.msra.mxu0 %v3982
    %4125 = vmatpush.msra.mxu0 %v3978
    %4126 = vmatpush.msra.mxu0 %v3974
    %4127 = vmatpush.msra.mxu0 %v3970
    %4128 = vmatpush.msra.mxu0 %v3966
    %4129 = vmatpush.msra.mxu0 %v3962
    %4130 = vmatpush.msra.mxu0 %v3958
    %4131 = vmatpush.msra.mxu0 %v3954
    %4132 = vmatpush.msra.mxu0 %v3950
    %4133 = vmatpush.msra.mxu0 %v3946
    %4134 = vmatmul.f32.gmra.mxu0 %v3494
    %v4135 = vpop.f32.mrf.mxu0
    %v4136 = vadd.f32 %v4116, %v4135
    %4137 = vdwg.mxu0
    %4138 = vmatpush.msra.mxu0 %v3943
    %4139 = vmatpush.msra.mxu0 %v3939
    %4140 = vmatpush.msra.mxu0 %v3935
    %4141 = vmatpush.msra.mxu0 %v3931
    %4142 = vmatpush.msra.mxu0 %v3927
    %4143 = vmatpush.msra.mxu0 %v3923
    %4144 = vmatpush.msra.mxu0 %v3919
    %4145 = vmatpush.msra.mxu0 %v3915
    %4146 = vmatpush.msra.mxu0 %v3911
    %4147 = vmatpush.msra.mxu0 %v3907
    %4148 = vmatpush.msra.mxu0 %v3903
    %4149 = vmatpush.msra.mxu0 %v3899
    %4150 = vmatpush.msra.mxu0 %v3895
    %4151 = vmatpush.msra.mxu0 %v3891
    %4152 = vmatpush.msra.mxu0 %v3887
    %4153 = vmatpush.msra.mxu0 %v3883
    %4154 = vmatmul.f32.gmra.mxu0 %v3879
    %v4155 = vpop.f32.mrf.mxu0
    %v4156 = vadd.f32 %v4013, %v4155
    %4157 = vdwg.mxu0
    %4158 = vmatpush.msra.mxu0 %v4007
    %4159 = vmatpush.msra.mxu0 %v4003
    %4160 = vmatpush.msra.mxu0 %v3999
    %4161 = vmatpush.msra.mxu0 %v3995
    %4162 = vmatpush.msra.mxu0 %v3991
    %4163 = vmatpush.msra.mxu0 %v3987
    %4164 = vmatpush.msra.mxu0 %v3983
    %4165 = vmatpush.msra.mxu0 %v3979
    %4166 = vmatpush.msra.mxu0 %v3975
    %4167 = vmatpush.msra.mxu0 %v3971
    %4168 = vmatpush.msra.mxu0 %v3967
    %4169 = vmatpush.msra.mxu0 %v3963
    %4170 = vmatpush.msra.mxu0 %v3959
    %4171 = vmatpush.msra.mxu0 %v3955
    %4172 = vmatpush.msra.mxu0 %v3951
    %4173 = vmatpush.msra.mxu0 %v3947
    %4174 = vmatmul.f32.gmra.mxu0 %v3494
    %v4175 = vpop.f32.mrf.mxu0
    %v4176 = vadd.f32 %v4156, %v4175
    %4177 = vdwg.mxu0
    %v4178 = vxor.u32 %v4056, 2147483648
    %v4179 = vmul.f32 %v4178, 1.442695
    %v4180 = vpow.pop %v4179
    %v4181 = vadd.f32 %v4180, 1.0
    %v4182 = vrcp.pop %v4181
    %v4183 = vmul.f32 %v4181, %v4182
    %v4184 = vsub.f32 1.0, %v4183
    %v4185 = vmul.f32 %v4182, %v4184
    %v4186 = vadd.f32 %v4182, %v4185
    %vm4187 = vweird.f32 %v4181
    %vm4188 = vweird.f32 %v4182
    %vm4189 = vmor %vm4187, %vm4188
    %v4190 = vsel %vm4189, %v4182, %v4186
    %v4191 = vand.u32 2147483647, %v4181
    %vm4192 = vcmp.eq.f32.partialorder %v4191, 8.507059e+37
    %v4193 = vand.u32 %v4181, 2147483648
    %v4194 = vor.u32 1.1754944e-38, %v4193
    %v4195 = vsel %vm4192, %v4194, %v4190
    %v4196 = vmul.f32 1.0, %v4195
    %v4197 = vxor.u32 %v4096, 2147483648
    %v4198 = vmul.f32 %v4197, 1.442695
    %v4199 = vpow.pop %v4198
    %v4200 = vadd.f32 %v4199, 1.0
    %v4201 = vrcp.pop %v4200
    %v4202 = vmul.f32 %v4200, %v4201
    %v4203 = vsub.f32 1.0, %v4202
    %v4204 = vmul.f32 %v4201, %v4203
    %v4205 = vadd.f32 %v4201, %v4204
    %vm4206 = vweird.f32 %v4200
    %vm4207 = vweird.f32 %v4201
    %vm4208 = vmor %vm4206, %vm4207
    %v4209 = vsel %vm4208, %v4201, %v4205
    %v4210 = vand.u32 2147483647, %v4200
    %vm4211 = vcmp.eq.f32.partialorder %v4210, 8.507059e+37
    %v4212 = vand.u32 %v4200, 2147483648
    %v4213 = vor.u32 1.1754944e-38, %v4212
    %v4214 = vsel %vm4211, %v4213, %v4209
    %v4215 = vmul.f32 1.0, %v4214
    %v4216 = vmul.f32 %v4196, %v4176
    %v4217 = vadd.f32 %v4136, %v4216
    %v4218 = vtanh.pop %v4217
    %v4219 = vsub.f32 1.0, %v4215
    %v4220 = vmul.f32 %v4219, %v4218
    %v4221 = vmul.f32 %v4215, %v3494
    %v4222 = vadd.f32 %v4220, %v4221
    %v4223 = vld [vmem:[#allocation14] sm:$0xff]
    %v4224 = vld [vmem:[#allocation14 + $0x8] sm:$0xff]
    %v4225 = vld [vmem:[#allocation14 + $0x10] sm:$0xff]
    %v4226 = vld [vmem:[#allocation14 + $0x18] sm:$0xff]
    %v4227 = vld [vmem:[#allocation14 + $0x20] sm:$0xff]
    %v4228 = vld [vmem:[#allocation14 + $0x28] sm:$0xff]
    %v4229 = vld [vmem:[#allocation14 + $0x30] sm:$0xff]
    %v4230 = vld [vmem:[#allocation14 + $0x38] sm:$0xff]
    %v4231 = vld [vmem:[#allocation14 + $0x40] sm:$0xff]
    %v4232 = vld [vmem:[#allocation14 + $0x48] sm:$0xff]
    %v4233 = vld [vmem:[#allocation14 + $0x50] sm:$0xff]
    %v4234 = vld [vmem:[#allocation14 + $0x58] sm:$0xff]
    %v4235 = vld [vmem:[#allocation14 + $0x60] sm:$0xff]
    %v4236 = vld [vmem:[#allocation14 + $0x68] sm:$0xff]
    %v4237 = vld [vmem:[#allocation14 + $0x70] sm:$0xff]
    %v4238 = vld [vmem:[#allocation14 + $0x78] sm:$0xff]
    %v4239 = vld [vmem:[%s15] sm:$0x1]
    %v4241 = vperm.slane %v4239, 0
    %4243 = vmatpush.msra.mxu0 %v4238
    %4244 = vmatpush.msra.mxu0 %v4237
    %4245 = vmatpush.msra.mxu0 %v4236
    %4246 = vmatpush.msra.mxu0 %v4235
    %4247 = vmatpush.msra.mxu0 %v4234
    %4248 = vmatpush.msra.mxu0 %v4233
    %4249 = vmatpush.msra.mxu0 %v4232
    %4250 = vmatpush.msra.mxu0 %v4231
    %4251 = vmatpush.msra.mxu0 %v4230
    %4252 = vmatpush.msra.mxu0 %v4229
    %4253 = vmatpush.msra.mxu0 %v4228
    %4254 = vmatpush.msra.mxu0 %v4227
    %4255 = vmatpush.msra.mxu0 %v4226
    %4256 = vmatpush.msra.mxu0 %v4225
    %4257 = vmatpush.msra.mxu0 %v4224
    %4258 = vmatpush.msra.mxu0 %v4223
    %4259 = vmatmul.f32.gmra.mxu0 %v4222
    %v4260 = vpop.f32.mrf.mxu0
    %v4261 = vadd.f32 %v4241, %v4260
    %4262 = vdwg.mxu0
    %v4263 = vadd.f32 %v4261, %v3535
    %s4264 = scalar_lea.vmem %s16, 8
    %4265 = vst [vmem:[%s4264] sm:$0xff] %v4263
    %v4266 = vld [vmem:[#allocation11] sm:$0xff]
    %v4267 = vld [vmem:[#allocation11 + $0x8] sm:$0xff]
    %v4268 = vld [vmem:[#allocation11 + $0x10] sm:$0xff]
    %v4269 = vld [vmem:[#allocation11 + $0x18] sm:$0xff]
    %v4270 = vld [vmem:[#allocation11 + $0x20] sm:$0xff]
    %v4271 = vld [vmem:[#allocation11 + $0x28] sm:$0xff]
    %v4272 = vld [vmem:[#allocation11 + $0x30] sm:$0xff]
    %v4273 = vld [vmem:[#allocation11 + $0x38] sm:$0xff]
    %v4274 = vld [vmem:[#allocation11 + $0x40] sm:$0xff]
    %v4275 = vld [vmem:[#allocation11 + $0x48] sm:$0xff]
    %v4276 = vld [vmem:[#allocation11 + $0x50] sm:$0xff]
    %v4277 = vld [vmem:[#allocation11 + $0x58] sm:$0xff]
    %v4278 = vld [vmem:[#allocation11 + $0x60] sm:$0xff]
    %v4279 = vld [vmem:[#allocation11 + $0x68] sm:$0xff]
    %v4280 = vld [vmem:[#allocation11 + $0x70] sm:$0xff]
    %v4281 = vld [vmem:[#allocation11 + $0x78] sm:$0xff]
    %v4282 = vld [vmem:[#allocation11 + $0x80] sm:$0xff]
    %v4283 = vld [vmem:[#allocation11 + $0x88] sm:$0xff]
    %v4284 = vld [vmem:[#allocation11 + $0x90] sm:$0xff]
    %v4285 = vld [vmem:[#allocation11 + $0x98] sm:$0xff]
    %v4286 = vld [vmem:[#allocation11 + $0xa0] sm:$0xff]
    %v4287 = vld [vmem:[#allocation11 + $0xa8] sm:$0xff]
    %v4288 = vld [vmem:[#allocation11 + $0xb0] sm:$0xff]
    %v4289 = vld [vmem:[#allocation11 + $0xb8] sm:$0xff]
    %v4290 = vld [vmem:[#allocation11 + $0xc0] sm:$0xff]
    %v4291 = vld [vmem:[#allocation11 + $0xc8] sm:$0xff]
    %v4292 = vld [vmem:[#allocation11 + $0xd0] sm:$0xff]
    %v4293 = vld [vmem:[#allocation11 + $0xd8] sm:$0xff]
    %v4294 = vld [vmem:[#allocation11 + $0xe0] sm:$0xff]
    %v4295 = vld [vmem:[#allocation11 + $0xe8] sm:$0xff]
    %v4296 = vld [vmem:[#allocation11 + $0xf0] sm:$0xff]
    %v4297 = vld [vmem:[#allocation11 + $0xf8] sm:$0xff]
    %v4298 = vld [vmem:[#allocation11 + $0x100] sm:$0xff]
    %v4299 = vld [vmem:[#allocation11 + $0x108] sm:$0xff]
    %v4300 = vld [vmem:[#allocation11 + $0x110] sm:$0xff]
    %v4301 = vld [vmem:[#allocation11 + $0x118] sm:$0xff]
    %v4302 = vld [vmem:[#allocation11 + $0x120] sm:$0xff]
    %v4303 = vld [vmem:[#allocation11 + $0x128] sm:$0xff]
    %v4304 = vld [vmem:[#allocation11 + $0x130] sm:$0xff]
    %v4305 = vld [vmem:[#allocation11 + $0x138] sm:$0xff]
    %v4306 = vld [vmem:[#allocation11 + $0x140] sm:$0xff]
    %v4307 = vld [vmem:[#allocation11 + $0x148] sm:$0xff]
    %v4308 = vld [vmem:[#allocation11 + $0x150] sm:$0xff]
    %v4309 = vld [vmem:[#allocation11 + $0x158] sm:$0xff]
    %v4310 = vld [vmem:[#allocation11 + $0x160] sm:$0xff]
    %v4311 = vld [vmem:[#allocation11 + $0x168] sm:$0xff]
    %v4312 = vld [vmem:[#allocation11 + $0x170] sm:$0xff]
    %v4313 = vld [vmem:[#allocation11 + $0x178] sm:$0xff]
    %v4314 = vld [vmem:[#allocation11 + $0x180] sm:$0xff]
    %v4315 = vld [vmem:[#allocation11 + $0x188] sm:$0xff]
    %v4316 = vld [vmem:[#allocation11 + $0x190] sm:$0xff]
    %v4317 = vld [vmem:[#allocation11 + $0x198] sm:$0xff]
    %v4318 = vld [vmem:[#allocation11 + $0x1a0] sm:$0xff]
    %v4319 = vld [vmem:[#allocation11 + $0x1a8] sm:$0xff]
    %v4320 = vld [vmem:[#allocation11 + $0x1b0] sm:$0xff]
    %v4321 = vld [vmem:[#allocation11 + $0x1b8] sm:$0xff]
    %v4322 = vld [vmem:[#allocation11 + $0x1c0] sm:$0xff]
    %v4323 = vld [vmem:[#allocation11 + $0x1c8] sm:$0xff]
    %v4324 = vld [vmem:[#allocation11 + $0x1d0] sm:$0xff]
    %v4325 = vld [vmem:[#allocation11 + $0x1d8] sm:$0xff]
    %v4326 = vld [vmem:[#allocation11 + $0x1e0] sm:$0xff]
    %v4327 = vld [vmem:[#allocation11 + $0x1e8] sm:$0xff]
    %v4328 = vld [vmem:[#allocation11 + $0x1f0] sm:$0xff]
    %v4329 = vld [vmem:[#allocation11 + $0x1f8] sm:$0xff]
    %v4330 = vld [vmem:[#allocation11 + $0x200] sm:$0xff]
    %v4331 = vld [vmem:[#allocation11 + $0x208] sm:$0xff]
    %v4332 = vld [vmem:[#allocation11 + $0x210] sm:$0xff]
    %v4333 = vld [vmem:[#allocation11 + $0x218] sm:$0xff]
    %v4334 = vld [vmem:[#allocation11 + $0x220] sm:$0xff]
    %v4335 = vld [vmem:[#allocation11 + $0x228] sm:$0xff]
    %v4336 = vld [vmem:[#allocation11 + $0x230] sm:$0xff]
    %v4337 = vld [vmem:[#allocation11 + $0x238] sm:$0xff]
    %v4338 = vld [vmem:[#allocation11 + $0x240] sm:$0xff]
    %v4339 = vld [vmem:[#allocation11 + $0x248] sm:$0xff]
    %v4340 = vld [vmem:[#allocation11 + $0x250] sm:$0xff]
    %v4341 = vld [vmem:[#allocation11 + $0x258] sm:$0xff]
    %v4342 = vld [vmem:[#allocation11 + $0x260] sm:$0xff]
    %v4343 = vld [vmem:[#allocation11 + $0x268] sm:$0xff]
    %v4344 = vld [vmem:[#allocation11 + $0x270] sm:$0xff]
    %v4345 = vld [vmem:[#allocation11 + $0x278] sm:$0xff]
    %v4346 = vld [vmem:[#allocation11 + $0x280] sm:$0xff]
    %v4347 = vld [vmem:[#allocation11 + $0x288] sm:$0xff]
    %v4348 = vld [vmem:[#allocation11 + $0x290] sm:$0xff]
    %v4349 = vld [vmem:[#allocation11 + $0x298] sm:$0xff]
    %v4350 = vld [vmem:[#allocation11 + $0x2a0] sm:$0xff]
    %v4351 = vld [vmem:[#allocation11 + $0x2a8] sm:$0xff]
    %v4352 = vld [vmem:[#allocation11 + $0x2b0] sm:$0xff]
    %v4353 = vld [vmem:[#allocation11 + $0x2b8] sm:$0xff]
    %v4354 = vld [vmem:[#allocation11 + $0x2c0] sm:$0xff]
    %v4355 = vld [vmem:[#allocation11 + $0x2c8] sm:$0xff]
    %v4356 = vld [vmem:[#allocation11 + $0x2d0] sm:$0xff]
    %v4357 = vld [vmem:[#allocation11 + $0x2d8] sm:$0xff]
    %v4358 = vld [vmem:[#allocation11 + $0x2e0] sm:$0xff]
    %v4359 = vld [vmem:[#allocation11 + $0x2e8] sm:$0xff]
    %v4360 = vld [vmem:[#allocation11 + $0x2f0] sm:$0xff]
    %v4361 = vld [vmem:[#allocation11 + $0x2f8] sm:$0xff]
    %v4362 = vld [vmem:[#allocation11 + $0x300] sm:$0xff]
    %v4363 = vld [vmem:[#allocation11 + $0x308] sm:$0xff]
    %v4364 = vld [vmem:[#allocation11 + $0x310] sm:$0xff]
    %v4365 = vld [vmem:[#allocation11 + $0x318] sm:$0xff]
    %v4366 = vld [vmem:[#allocation11 + $0x320] sm:$0xff]
    %v4367 = vld [vmem:[#allocation11 + $0x328] sm:$0xff]
    %v4368 = vld [vmem:[#allocation11 + $0x330] sm:$0xff]
    %v4369 = vld [vmem:[#allocation11 + $0x338] sm:$0xff]
    %v4370 = vld [vmem:[#allocation11 + $0x340] sm:$0xff]
    %v4371 = vld [vmem:[#allocation11 + $0x348] sm:$0xff]
    %v4372 = vld [vmem:[#allocation11 + $0x350] sm:$0xff]
    %v4373 = vld [vmem:[#allocation11 + $0x358] sm:$0xff]
    %v4374 = vld [vmem:[#allocation11 + $0x360] sm:$0xff]
    %v4375 = vld [vmem:[#allocation11 + $0x368] sm:$0xff]
    %v4376 = vld [vmem:[#allocation11 + $0x370] sm:$0xff]
    %v4377 = vld [vmem:[#allocation11 + $0x378] sm:$0xff]
    %v4378 = vld [vmem:[#allocation11 + $0x380] sm:$0xff]
    %v4379 = vld [vmem:[#allocation11 + $0x388] sm:$0xff]
    %v4380 = vld [vmem:[#allocation11 + $0x390] sm:$0xff]
    %v4381 = vld [vmem:[#allocation11 + $0x398] sm:$0xff]
    %v4382 = vld [vmem:[#allocation11 + $0x3a0] sm:$0xff]
    %v4383 = vld [vmem:[#allocation11 + $0x3a8] sm:$0xff]
    %v4384 = vld [vmem:[#allocation11 + $0x3b0] sm:$0xff]
    %v4385 = vld [vmem:[#allocation11 + $0x3b8] sm:$0xff]
    %v4386 = vld [vmem:[#allocation11 + $0x3c0] sm:$0xff]
    %v4387 = vld [vmem:[#allocation11 + $0x3c8] sm:$0xff]
    %v4388 = vld [vmem:[#allocation11 + $0x3d0] sm:$0xff]
    %v4389 = vld [vmem:[#allocation11 + $0x3d8] sm:$0xff]
    %v4390 = vld [vmem:[#allocation11 + $0x3e0] sm:$0xff]
    %v4391 = vld [vmem:[#allocation11 + $0x3e8] sm:$0xff]
    %v4392 = vld [vmem:[#allocation11 + $0x3f0] sm:$0xff]
    %v4393 = vld [vmem:[#allocation11 + $0x3f8] sm:$0xff]
    %v4394 = vld [vmem:[%s11] sm:$0xf]
    %v4396 = vperm.slane %v4394, 0
    %v4397 = vperm.slane %v4394, 1
    %v4398 = vperm.slane %v4394, 2
    %v4399 = vperm.slane %v4394, 3
    %4404 = vmatpush.msra.mxu0 %v4326
    %4405 = vmatpush.msra.mxu0 %v4322
    %4406 = vmatpush.msra.mxu0 %v4318
    %4407 = vmatpush.msra.mxu0 %v4314
    %4408 = vmatpush.msra.mxu0 %v4310
    %4409 = vmatpush.msra.mxu0 %v4306
    %4410 = vmatpush.msra.mxu0 %v4302
    %4411 = vmatpush.msra.mxu0 %v4298
    %4412 = vmatpush.msra.mxu0 %v4294
    %4413 = vmatpush.msra.mxu0 %v4290
    %4414 = vmatpush.msra.mxu0 %v4286
    %4415 = vmatpush.msra.mxu0 %v4282
    %4416 = vmatpush.msra.mxu0 %v4278
    %4417 = vmatpush.msra.mxu0 %v4274
    %4418 = vmatpush.msra.mxu0 %v4270
    %4419 = vmatpush.msra.mxu0 %v4266
    %4420 = vmatmul.f32.gmra.mxu0 %v4263
    %v4421 = vpop.f32.mrf.mxu0
    %v4422 = vadd.f32 %v4396, %v4421
    %4423 = vdwg.mxu0
    %4424 = vmatpush.msra.mxu0 %v4390
    %4425 = vmatpush.msra.mxu0 %v4386
    %4426 = vmatpush.msra.mxu0 %v4382
    %4427 = vmatpush.msra.mxu0 %v4378
    %4428 = vmatpush.msra.mxu0 %v4374
    %4429 = vmatpush.msra.mxu0 %v4370
    %4430 = vmatpush.msra.mxu0 %v4366
    %4431 = vmatpush.msra.mxu0 %v4362
    %4432 = vmatpush.msra.mxu0 %v4358
    %4433 = vmatpush.msra.mxu0 %v4354
    %4434 = vmatpush.msra.mxu0 %v4350
    %4435 = vmatpush.msra.mxu0 %v4346
    %4436 = vmatpush.msra.mxu0 %v4342
    %4437 = vmatpush.msra.mxu0 %v4338
    %4438 = vmatpush.msra.mxu0 %v4334
    %4439 = vmatpush.msra.mxu0 %v4330
    %4440 = vmatmul.f32.gmra.mxu0 %v3879
    %v4441 = vpop.f32.mrf.mxu0
    %v4442 = vadd.f32 %v4422, %v4441
    %4443 = vdwg.mxu0
    %4444 = vmatpush.msra.mxu0 %v4327
    %4445 = vmatpush.msra.mxu0 %v4323
    %4446 = vmatpush.msra.mxu0 %v4319
    %4447 = vmatpush.msra.mxu0 %v4315
    %4448 = vmatpush.msra.mxu0 %v4311
    %4449 = vmatpush.msra.mxu0 %v4307
    %4450 = vmatpush.msra.mxu0 %v4303
    %4451 = vmatpush.msra.mxu0 %v4299
    %4452 = vmatpush.msra.mxu0 %v4295
    %4453 = vmatpush.msra.mxu0 %v4291
    %4454 = vmatpush.msra.mxu0 %v4287
    %4455 = vmatpush.msra.mxu0 %v4283
    %4456 = vmatpush.msra.mxu0 %v4279
    %4457 = vmatpush.msra.mxu0 %v4275
    %4458 = vmatpush.msra.mxu0 %v4271
    %4459 = vmatpush.msra.mxu0 %v4267
    %4460 = vmatmul.f32.gmra.mxu0 %v4263
    %v4461 = vpop.f32.mrf.mxu0
    %v4462 = vadd.f32 %v4397, %v4461
    %4463 = vdwg.mxu0
    %4464 = vmatpush.msra.mxu0 %v4391
    %4465 = vmatpush.msra.mxu0 %v4387
    %4466 = vmatpush.msra.mxu0 %v4383
    %4467 = vmatpush.msra.mxu0 %v4379
    %4468 = vmatpush.msra.mxu0 %v4375
    %4469 = vmatpush.msra.mxu0 %v4371
    %4470 = vmatpush.msra.mxu0 %v4367
    %4471 = vmatpush.msra.mxu0 %v4363
    %4472 = vmatpush.msra.mxu0 %v4359
    %4473 = vmatpush.msra.mxu0 %v4355
    %4474 = vmatpush.msra.mxu0 %v4351
    %4475 = vmatpush.msra.mxu0 %v4347
    %4476 = vmatpush.msra.mxu0 %v4343
    %4477 = vmatpush.msra.mxu0 %v4339
    %4478 = vmatpush.msra.mxu0 %v4335
    %4479 = vmatpush.msra.mxu0 %v4331
    %4480 = vmatmul.f32.gmra.mxu0 %v3879
    %v4481 = vpop.f32.mrf.mxu0
    %v4482 = vadd.f32 %v4462, %v4481
    %4483 = vdwg.mxu0
    %4484 = vmatpush.msra.mxu0 %v4328
    %4485 = vmatpush.msra.mxu0 %v4324
    %4486 = vmatpush.msra.mxu0 %v4320
    %4487 = vmatpush.msra.mxu0 %v4316
    %4488 = vmatpush.msra.mxu0 %v4312
    %4489 = vmatpush.msra.mxu0 %v4308
    %4490 = vmatpush.msra.mxu0 %v4304
    %4491 = vmatpush.msra.mxu0 %v4300
    %4492 = vmatpush.msra.mxu0 %v4296
    %4493 = vmatpush.msra.mxu0 %v4292
    %4494 = vmatpush.msra.mxu0 %v4288
    %4495 = vmatpush.msra.mxu0 %v4284
    %4496 = vmatpush.msra.mxu0 %v4280
    %4497 = vmatpush.msra.mxu0 %v4276
    %4498 = vmatpush.msra.mxu0 %v4272
    %4499 = vmatpush.msra.mxu0 %v4268
    %4500 = vmatmul.f32.gmra.mxu0 %v4263
    %v4501 = vpop.f32.mrf.mxu0
    %v4502 = vadd.f32 %v4398, %v4501
    %4503 = vdwg.mxu0
    %4504 = vmatpush.msra.mxu0 %v4392
    %4505 = vmatpush.msra.mxu0 %v4388
    %4506 = vmatpush.msra.mxu0 %v4384
    %4507 = vmatpush.msra.mxu0 %v4380
    %4508 = vmatpush.msra.mxu0 %v4376
    %4509 = vmatpush.msra.mxu0 %v4372
    %4510 = vmatpush.msra.mxu0 %v4368
    %4511 = vmatpush.msra.mxu0 %v4364
    %4512 = vmatpush.msra.mxu0 %v4360
    %4513 = vmatpush.msra.mxu0 %v4356
    %4514 = vmatpush.msra.mxu0 %v4352
    %4515 = vmatpush.msra.mxu0 %v4348
    %4516 = vmatpush.msra.mxu0 %v4344
    %4517 = vmatpush.msra.mxu0 %v4340
    %4518 = vmatpush.msra.mxu0 %v4336
    %4519 = vmatpush.msra.mxu0 %v4332
    %4520 = vmatmul.f32.gmra.mxu0 %v3879
    %v4521 = vpop.f32.mrf.mxu0
    %v4522 = vadd.f32 %v4502, %v4521
    %4523 = vdwg.mxu0
    %4524 = vmatpush.msra.mxu0 %v4329
    %4525 = vmatpush.msra.mxu0 %v4325
    %4526 = vmatpush.msra.mxu0 %v4321
    %4527 = vmatpush.msra.mxu0 %v4317
    %4528 = vmatpush.msra.mxu0 %v4313
    %4529 = vmatpush.msra.mxu0 %v4309
    %4530 = vmatpush.msra.mxu0 %v4305
    %4531 = vmatpush.msra.mxu0 %v4301
    %4532 = vmatpush.msra.mxu0 %v4297
    %4533 = vmatpush.msra.mxu0 %v4293
    %4534 = vmatpush.msra.mxu0 %v4289
    %4535 = vmatpush.msra.mxu0 %v4285
    %4536 = vmatpush.msra.mxu0 %v4281
    %4537 = vmatpush.msra.mxu0 %v4277
    %4538 = vmatpush.msra.mxu0 %v4273
    %4539 = vmatpush.msra.mxu0 %v4269
    %4540 = vmatmul.f32.gmra.mxu0 %v4263
    %v4541 = vpop.f32.mrf.mxu0
    %v4542 = vadd.f32 %v4399, %v4541
    %4543 = vdwg.mxu0
    %4544 = vmatpush.msra.mxu0 %v4393
    %4545 = vmatpush.msra.mxu0 %v4389
    %4546 = vmatpush.msra.mxu0 %v4385
    %4547 = vmatpush.msra.mxu0 %v4381
    %4548 = vmatpush.msra.mxu0 %v4377
    %4549 = vmatpush.msra.mxu0 %v4373
    %4550 = vmatpush.msra.mxu0 %v4369
    %4551 = vmatpush.msra.mxu0 %v4365
    %4552 = vmatpush.msra.mxu0 %v4361
    %4553 = vmatpush.msra.mxu0 %v4357
    %4554 = vmatpush.msra.mxu0 %v4353
    %4555 = vmatpush.msra.mxu0 %v4349
    %4556 = vmatpush.msra.mxu0 %v4345
    %4557 = vmatpush.msra.mxu0 %v4341
    %4558 = vmatpush.msra.mxu0 %v4337
    %4559 = vmatpush.msra.mxu0 %v4333
    %4560 = vmatmul.f32.gmra.mxu0 %v3879
    %v4561 = vpop.f32.mrf.mxu0
    %v4562 = vadd.f32 %v4542, %v4561
    %4563 = vdwg.mxu0
    %v4564 = vxor.u32 %v4442, 2147483648
    %v4565 = vmul.f32 %v4564, 1.442695
    %v4566 = vpow.pop %v4565
    %v4567 = vadd.f32 %v4566, 1.0
    %v4568 = vrcp.pop %v4567
    %v4569 = vmul.f32 %v4567, %v4568
    %v4570 = vsub.f32 1.0, %v4569
    %v4571 = vmul.f32 %v4568, %v4570
    %v4572 = vadd.f32 %v4568, %v4571
    %vm4573 = vweird.f32 %v4567
    %vm4574 = vweird.f32 %v4568
    %vm4575 = vmor %vm4573, %vm4574
    %v4576 = vsel %vm4575, %v4568, %v4572
    %v4577 = vand.u32 2147483647, %v4567
    %vm4578 = vcmp.eq.f32.partialorder %v4577, 8.507059e+37
    %v4579 = vand.u32 %v4567, 2147483648
    %v4580 = vor.u32 1.1754944e-38, %v4579
    %v4581 = vsel %vm4578, %v4580, %v4576
    %v4582 = vmul.f32 1.0, %v4581
    %v4583 = vxor.u32 %v4482, 2147483648
    %v4584 = vmul.f32 %v4583, 1.442695
    %v4585 = vpow.pop %v4584
    %v4586 = vadd.f32 %v4585, 1.0
    %v4587 = vrcp.pop %v4586
    %v4588 = vmul.f32 %v4586, %v4587
    %v4589 = vsub.f32 1.0, %v4588
    %v4590 = vmul.f32 %v4587, %v4589
    %v4591 = vadd.f32 %v4587, %v4590
    %vm4592 = vweird.f32 %v4586
    %vm4593 = vweird.f32 %v4587
    %vm4594 = vmor %vm4592, %vm4593
    %v4595 = vsel %vm4594, %v4587, %v4591
    %v4596 = vand.u32 2147483647, %v4586
    %vm4597 = vcmp.eq.f32.partialorder %v4596, 8.507059e+37
    %v4598 = vand.u32 %v4586, 2147483648
    %v4599 = vor.u32 1.1754944e-38, %v4598
    %v4600 = vsel %vm4597, %v4599, %v4595
    %v4601 = vmul.f32 1.0, %v4600
    %v4602 = vmul.f32 %v4582, %v4562
    %v4603 = vadd.f32 %v4522, %v4602
    %v4604 = vtanh.pop %v4603
    %v4605 = vsub.f32 1.0, %v4601
    %v4606 = vmul.f32 %v4605, %v4604
    %v4607 = vmul.f32 %v4601, %v3879
    %v4608 = vadd.f32 %v4606, %v4607
    %v4609 = vld [vmem:[#allocation12] sm:$0xff]
    %v4610 = vld [vmem:[#allocation12 + $0x8] sm:$0xff]
    %v4611 = vld [vmem:[#allocation12 + $0x10] sm:$0xff]
    %v4612 = vld [vmem:[#allocation12 + $0x18] sm:$0xff]
    %v4613 = vld [vmem:[#allocation12 + $0x20] sm:$0xff]
    %v4614 = vld [vmem:[#allocation12 + $0x28] sm:$0xff]
    %v4615 = vld [vmem:[#allocation12 + $0x30] sm:$0xff]
    %v4616 = vld [vmem:[#allocation12 + $0x38] sm:$0xff]
    %v4617 = vld [vmem:[#allocation12 + $0x40] sm:$0xff]
    %v4618 = vld [vmem:[#allocation12 + $0x48] sm:$0xff]
    %v4619 = vld [vmem:[#allocation12 + $0x50] sm:$0xff]
    %v4620 = vld [vmem:[#allocation12 + $0x58] sm:$0xff]
    %v4621 = vld [vmem:[#allocation12 + $0x60] sm:$0xff]
    %v4622 = vld [vmem:[#allocation12 + $0x68] sm:$0xff]
    %v4623 = vld [vmem:[#allocation12 + $0x70] sm:$0xff]
    %v4624 = vld [vmem:[#allocation12 + $0x78] sm:$0xff]
    %v4625 = vld [vmem:[#allocation12 + $0x80] sm:$0xff]
    %v4626 = vld [vmem:[#allocation12 + $0x88] sm:$0xff]
    %v4627 = vld [vmem:[#allocation12 + $0x90] sm:$0xff]
    %v4628 = vld [vmem:[#allocation12 + $0x98] sm:$0xff]
    %v4629 = vld [vmem:[#allocation12 + $0xa0] sm:$0xff]
    %v4630 = vld [vmem:[#allocation12 + $0xa8] sm:$0xff]
    %v4631 = vld [vmem:[#allocation12 + $0xb0] sm:$0xff]
    %v4632 = vld [vmem:[#allocation12 + $0xb8] sm:$0xff]
    %v4633 = vld [vmem:[#allocation12 + $0xc0] sm:$0xff]
    %v4634 = vld [vmem:[#allocation12 + $0xc8] sm:$0xff]
    %v4635 = vld [vmem:[#allocation12 + $0xd0] sm:$0xff]
    %v4636 = vld [vmem:[#allocation12 + $0xd8] sm:$0xff]
    %v4637 = vld [vmem:[#allocation12 + $0xe0] sm:$0xff]
    %v4638 = vld [vmem:[#allocation12 + $0xe8] sm:$0xff]
    %v4639 = vld [vmem:[#allocation12 + $0xf0] sm:$0xff]
    %v4640 = vld [vmem:[#allocation12 + $0xf8] sm:$0xff]
    %v4641 = vld [vmem:[#allocation12 + $0x100] sm:$0xff]
    %v4642 = vld [vmem:[#allocation12 + $0x108] sm:$0xff]
    %v4643 = vld [vmem:[#allocation12 + $0x110] sm:$0xff]
    %v4644 = vld [vmem:[#allocation12 + $0x118] sm:$0xff]
    %v4645 = vld [vmem:[#allocation12 + $0x120] sm:$0xff]
    %v4646 = vld [vmem:[#allocation12 + $0x128] sm:$0xff]
    %v4647 = vld [vmem:[#allocation12 + $0x130] sm:$0xff]
    %v4648 = vld [vmem:[#allocation12 + $0x138] sm:$0xff]
    %v4649 = vld [vmem:[#allocation12 + $0x140] sm:$0xff]
    %v4650 = vld [vmem:[#allocation12 + $0x148] sm:$0xff]
    %v4651 = vld [vmem:[#allocation12 + $0x150] sm:$0xff]
    %v4652 = vld [vmem:[#allocation12 + $0x158] sm:$0xff]
    %v4653 = vld [vmem:[#allocation12 + $0x160] sm:$0xff]
    %v4654 = vld [vmem:[#allocation12 + $0x168] sm:$0xff]
    %v4655 = vld [vmem:[#allocation12 + $0x170] sm:$0xff]
    %v4656 = vld [vmem:[#allocation12 + $0x178] sm:$0xff]
    %v4657 = vld [vmem:[#allocation12 + $0x180] sm:$0xff]
    %v4658 = vld [vmem:[#allocation12 + $0x188] sm:$0xff]
    %v4659 = vld [vmem:[#allocation12 + $0x190] sm:$0xff]
    %v4660 = vld [vmem:[#allocation12 + $0x198] sm:$0xff]
    %v4661 = vld [vmem:[#allocation12 + $0x1a0] sm:$0xff]
    %v4662 = vld [vmem:[#allocation12 + $0x1a8] sm:$0xff]
    %v4663 = vld [vmem:[#allocation12 + $0x1b0] sm:$0xff]
    %v4664 = vld [vmem:[#allocation12 + $0x1b8] sm:$0xff]
    %v4665 = vld [vmem:[#allocation12 + $0x1c0] sm:$0xff]
    %v4666 = vld [vmem:[#allocation12 + $0x1c8] sm:$0xff]
    %v4667 = vld [vmem:[#allocation12 + $0x1d0] sm:$0xff]
    %v4668 = vld [vmem:[#allocation12 + $0x1d8] sm:$0xff]
    %v4669 = vld [vmem:[#allocation12 + $0x1e0] sm:$0xff]
    %v4670 = vld [vmem:[#allocation12 + $0x1e8] sm:$0xff]
    %v4671 = vld [vmem:[#allocation12 + $0x1f0] sm:$0xff]
    %v4672 = vld [vmem:[#allocation12 + $0x1f8] sm:$0xff]
    %v4673 = vld [vmem:[#allocation12 + $0x200] sm:$0xff]
    %v4674 = vld [vmem:[#allocation12 + $0x208] sm:$0xff]
    %v4675 = vld [vmem:[#allocation12 + $0x210] sm:$0xff]
    %v4676 = vld [vmem:[#allocation12 + $0x218] sm:$0xff]
    %v4677 = vld [vmem:[#allocation12 + $0x220] sm:$0xff]
    %v4678 = vld [vmem:[#allocation12 + $0x228] sm:$0xff]
    %v4679 = vld [vmem:[#allocation12 + $0x230] sm:$0xff]
    %v4680 = vld [vmem:[#allocation12 + $0x238] sm:$0xff]
    %v4681 = vld [vmem:[#allocation12 + $0x240] sm:$0xff]
    %v4682 = vld [vmem:[#allocation12 + $0x248] sm:$0xff]
    %v4683 = vld [vmem:[#allocation12 + $0x250] sm:$0xff]
    %v4684 = vld [vmem:[#allocation12 + $0x258] sm:$0xff]
    %v4685 = vld [vmem:[#allocation12 + $0x260] sm:$0xff]
    %v4686 = vld [vmem:[#allocation12 + $0x268] sm:$0xff]
    %v4687 = vld [vmem:[#allocation12 + $0x270] sm:$0xff]
    %v4688 = vld [vmem:[#allocation12 + $0x278] sm:$0xff]
    %v4689 = vld [vmem:[#allocation12 + $0x280] sm:$0xff]
    %v4690 = vld [vmem:[#allocation12 + $0x288] sm:$0xff]
    %v4691 = vld [vmem:[#allocation12 + $0x290] sm:$0xff]
    %v4692 = vld [vmem:[#allocation12 + $0x298] sm:$0xff]
    %v4693 = vld [vmem:[#allocation12 + $0x2a0] sm:$0xff]
    %v4694 = vld [vmem:[#allocation12 + $0x2a8] sm:$0xff]
    %v4695 = vld [vmem:[#allocation12 + $0x2b0] sm:$0xff]
    %v4696 = vld [vmem:[#allocation12 + $0x2b8] sm:$0xff]
    %v4697 = vld [vmem:[#allocation12 + $0x2c0] sm:$0xff]
    %v4698 = vld [vmem:[#allocation12 + $0x2c8] sm:$0xff]
    %v4699 = vld [vmem:[#allocation12 + $0x2d0] sm:$0xff]
    %v4700 = vld [vmem:[#allocation12 + $0x2d8] sm:$0xff]
    %v4701 = vld [vmem:[#allocation12 + $0x2e0] sm:$0xff]
    %v4702 = vld [vmem:[#allocation12 + $0x2e8] sm:$0xff]
    %v4703 = vld [vmem:[#allocation12 + $0x2f0] sm:$0xff]
    %v4704 = vld [vmem:[#allocation12 + $0x2f8] sm:$0xff]
    %v4705 = vld [vmem:[#allocation12 + $0x300] sm:$0xff]
    %v4706 = vld [vmem:[#allocation12 + $0x308] sm:$0xff]
    %v4707 = vld [vmem:[#allocation12 + $0x310] sm:$0xff]
    %v4708 = vld [vmem:[#allocation12 + $0x318] sm:$0xff]
    %v4709 = vld [vmem:[#allocation12 + $0x320] sm:$0xff]
    %v4710 = vld [vmem:[#allocation12 + $0x328] sm:$0xff]
    %v4711 = vld [vmem:[#allocation12 + $0x330] sm:$0xff]
    %v4712 = vld [vmem:[#allocation12 + $0x338] sm:$0xff]
    %v4713 = vld [vmem:[#allocation12 + $0x340] sm:$0xff]
    %v4714 = vld [vmem:[#allocation12 + $0x348] sm:$0xff]
    %v4715 = vld [vmem:[#allocation12 + $0x350] sm:$0xff]
    %v4716 = vld [vmem:[#allocation12 + $0x358] sm:$0xff]
    %v4717 = vld [vmem:[#allocation12 + $0x360] sm:$0xff]
    %v4718 = vld [vmem:[#allocation12 + $0x368] sm:$0xff]
    %v4719 = vld [vmem:[#allocation12 + $0x370] sm:$0xff]
    %v4720 = vld [vmem:[#allocation12 + $0x378] sm:$0xff]
    %v4721 = vld [vmem:[#allocation12 + $0x380] sm:$0xff]
    %v4722 = vld [vmem:[#allocation12 + $0x388] sm:$0xff]
    %v4723 = vld [vmem:[#allocation12 + $0x390] sm:$0xff]
    %v4724 = vld [vmem:[#allocation12 + $0x398] sm:$0xff]
    %v4725 = vld [vmem:[#allocation12 + $0x3a0] sm:$0xff]
    %v4726 = vld [vmem:[#allocation12 + $0x3a8] sm:$0xff]
    %v4727 = vld [vmem:[#allocation12 + $0x3b0] sm:$0xff]
    %v4728 = vld [vmem:[#allocation12 + $0x3b8] sm:$0xff]
    %v4729 = vld [vmem:[#allocation12 + $0x3c0] sm:$0xff]
    %v4730 = vld [vmem:[#allocation12 + $0x3c8] sm:$0xff]
    %v4731 = vld [vmem:[#allocation12 + $0x3d0] sm:$0xff]
    %v4732 = vld [vmem:[#allocation12 + $0x3d8] sm:$0xff]
    %v4733 = vld [vmem:[#allocation12 + $0x3e0] sm:$0xff]
    %v4734 = vld [vmem:[#allocation12 + $0x3e8] sm:$0xff]
    %v4735 = vld [vmem:[#allocation12 + $0x3f0] sm:$0xff]
    %v4736 = vld [vmem:[#allocation12 + $0x3f8] sm:$0xff]
    %v4737 = vld [vmem:[%s13] sm:$0xf]
    %v4739 = vperm.slane %v4737, 0
    %v4740 = vperm.slane %v4737, 1
    %v4741 = vperm.slane %v4737, 2
    %v4742 = vperm.slane %v4737, 3
    %4747 = vmatpush.msra.mxu0 %v4669
    %4748 = vmatpush.msra.mxu0 %v4665
    %4749 = vmatpush.msra.mxu0 %v4661
    %4750 = vmatpush.msra.mxu0 %v4657
    %4751 = vmatpush.msra.mxu0 %v4653
    %4752 = vmatpush.msra.mxu0 %v4649
    %4753 = vmatpush.msra.mxu0 %v4645
    %4754 = vmatpush.msra.mxu0 %v4641
    %4755 = vmatpush.msra.mxu0 %v4637
    %4756 = vmatpush.msra.mxu0 %v4633
    %4757 = vmatpush.msra.mxu0 %v4629
    %4758 = vmatpush.msra.mxu0 %v4625
    %4759 = vmatpush.msra.mxu0 %v4621
    %4760 = vmatpush.msra.mxu0 %v4617
    %4761 = vmatpush.msra.mxu0 %v4613
    %4762 = vmatpush.msra.mxu0 %v4609
    %4763 = vmatmul.f32.gmra.mxu0 %v4608
    %v4764 = vpop.f32.mrf.mxu0
    %v4765 = vadd.f32 %v4739, %v4764
    %4766 = vdwg.mxu0
    %4767 = vmatpush.msra.mxu0 %v4733
    %4768 = vmatpush.msra.mxu0 %v4729
    %4769 = vmatpush.msra.mxu0 %v4725
    %4770 = vmatpush.msra.mxu0 %v4721
    %4771 = vmatpush.msra.mxu0 %v4717
    %4772 = vmatpush.msra.mxu0 %v4713
    %4773 = vmatpush.msra.mxu0 %v4709
    %4774 = vmatpush.msra.mxu0 %v4705
    %4775 = vmatpush.msra.mxu0 %v4701
    %4776 = vmatpush.msra.mxu0 %v4697
    %4777 = vmatpush.msra.mxu0 %v4693
    %4778 = vmatpush.msra.mxu0 %v4689
    %4779 = vmatpush.msra.mxu0 %v4685
    %4780 = vmatpush.msra.mxu0 %v4681
    %4781 = vmatpush.msra.mxu0 %v4677
    %4782 = vmatpush.msra.mxu0 %v4673
    %4783 = vmatmul.f32.gmra.mxu0 %v4222
    %v4784 = vpop.f32.mrf.mxu0
    %v4785 = vadd.f32 %v4765, %v4784
    %4786 = vdwg.mxu0
    %4787 = vmatpush.msra.mxu0 %v4670
    %4788 = vmatpush.msra.mxu0 %v4666
    %4789 = vmatpush.msra.mxu0 %v4662
    %4790 = vmatpush.msra.mxu0 %v4658
    %4791 = vmatpush.msra.mxu0 %v4654
    %4792 = vmatpush.msra.mxu0 %v4650
    %4793 = vmatpush.msra.mxu0 %v4646
    %4794 = vmatpush.msra.mxu0 %v4642
    %4795 = vmatpush.msra.mxu0 %v4638
    %4796 = vmatpush.msra.mxu0 %v4634
    %4797 = vmatpush.msra.mxu0 %v4630
    %4798 = vmatpush.msra.mxu0 %v4626
    %4799 = vmatpush.msra.mxu0 %v4622
    %4800 = vmatpush.msra.mxu0 %v4618
    %4801 = vmatpush.msra.mxu0 %v4614
    %4802 = vmatpush.msra.mxu0 %v4610
    %4803 = vmatmul.f32.gmra.mxu0 %v4608
    %v4804 = vpop.f32.mrf.mxu0
    %v4805 = vadd.f32 %v4740, %v4804
    %4806 = vdwg.mxu0
    %4807 = vmatpush.msra.mxu0 %v4734
    %4808 = vmatpush.msra.mxu0 %v4730
    %4809 = vmatpush.msra.mxu0 %v4726
    %4810 = vmatpush.msra.mxu0 %v4722
    %4811 = vmatpush.msra.mxu0 %v4718
    %4812 = vmatpush.msra.mxu0 %v4714
    %4813 = vmatpush.msra.mxu0 %v4710
    %4814 = vmatpush.msra.mxu0 %v4706
    %4815 = vmatpush.msra.mxu0 %v4702
    %4816 = vmatpush.msra.mxu0 %v4698
    %4817 = vmatpush.msra.mxu0 %v4694
    %4818 = vmatpush.msra.mxu0 %v4690
    %4819 = vmatpush.msra.mxu0 %v4686
    %4820 = vmatpush.msra.mxu0 %v4682
    %4821 = vmatpush.msra.mxu0 %v4678
    %4822 = vmatpush.msra.mxu0 %v4674
    %4823 = vmatmul.f32.gmra.mxu0 %v4222
    %v4824 = vpop.f32.mrf.mxu0
    %v4825 = vadd.f32 %v4805, %v4824
    %4826 = vdwg.mxu0
    %4827 = vmatpush.msra.mxu0 %v4671
    %4828 = vmatpush.msra.mxu0 %v4667
    %4829 = vmatpush.msra.mxu0 %v4663
    %4830 = vmatpush.msra.mxu0 %v4659
    %4831 = vmatpush.msra.mxu0 %v4655
    %4832 = vmatpush.msra.mxu0 %v4651
    %4833 = vmatpush.msra.mxu0 %v4647
    %4834 = vmatpush.msra.mxu0 %v4643
    %4835 = vmatpush.msra.mxu0 %v4639
    %4836 = vmatpush.msra.mxu0 %v4635
    %4837 = vmatpush.msra.mxu0 %v4631
    %4838 = vmatpush.msra.mxu0 %v4627
    %4839 = vmatpush.msra.mxu0 %v4623
    %4840 = vmatpush.msra.mxu0 %v4619
    %4841 = vmatpush.msra.mxu0 %v4615
    %4842 = vmatpush.msra.mxu0 %v4611
    %4843 = vmatmul.f32.gmra.mxu0 %v4608
    %v4844 = vpop.f32.mrf.mxu0
    %v4845 = vadd.f32 %v4741, %v4844
    %4846 = vdwg.mxu0
    %4847 = vmatpush.msra.mxu0 %v4735
    %4848 = vmatpush.msra.mxu0 %v4731
    %4849 = vmatpush.msra.mxu0 %v4727
    %4850 = vmatpush.msra.mxu0 %v4723
    %4851 = vmatpush.msra.mxu0 %v4719
    %4852 = vmatpush.msra.mxu0 %v4715
    %4853 = vmatpush.msra.mxu0 %v4711
    %4854 = vmatpush.msra.mxu0 %v4707
    %4855 = vmatpush.msra.mxu0 %v4703
    %4856 = vmatpush.msra.mxu0 %v4699
    %4857 = vmatpush.msra.mxu0 %v4695
    %4858 = vmatpush.msra.mxu0 %v4691
    %4859 = vmatpush.msra.mxu0 %v4687
    %4860 = vmatpush.msra.mxu0 %v4683
    %4861 = vmatpush.msra.mxu0 %v4679
    %4862 = vmatpush.msra.mxu0 %v4675
    %4863 = vmatmul.f32.gmra.mxu0 %v4222
    %v4864 = vpop.f32.mrf.mxu0
    %v4865 = vadd.f32 %v4845, %v4864
    %4866 = vdwg.mxu0
    %4867 = vmatpush.msra.mxu0 %v4672
    %4868 = vmatpush.msra.mxu0 %v4668
    %4869 = vmatpush.msra.mxu0 %v4664
    %4870 = vmatpush.msra.mxu0 %v4660
    %4871 = vmatpush.msra.mxu0 %v4656
    %4872 = vmatpush.msra.mxu0 %v4652
    %4873 = vmatpush.msra.mxu0 %v4648
    %4874 = vmatpush.msra.mxu0 %v4644
    %4875 = vmatpush.msra.mxu0 %v4640
    %4876 = vmatpush.msra.mxu0 %v4636
    %4877 = vmatpush.msra.mxu0 %v4632
    %4878 = vmatpush.msra.mxu0 %v4628
    %4879 = vmatpush.msra.mxu0 %v4624
    %4880 = vmatpush.msra.mxu0 %v4620
    %4881 = vmatpush.msra.mxu0 %v4616
    %4882 = vmatpush.msra.mxu0 %v4612
    %4883 = vmatmul.f32.gmra.mxu0 %v4608
    %v4884 = vpop.f32.mrf.mxu0
    %v4885 = vadd.f32 %v4742, %v4884
    %4886 = vdwg.mxu0
    %4887 = vmatpush.msra.mxu0 %v4736
    %4888 = vmatpush.msra.mxu0 %v4732
    %4889 = vmatpush.msra.mxu0 %v4728
    %4890 = vmatpush.msra.mxu0 %v4724
    %4891 = vmatpush.msra.mxu0 %v4720
    %4892 = vmatpush.msra.mxu0 %v4716
    %4893 = vmatpush.msra.mxu0 %v4712
    %4894 = vmatpush.msra.mxu0 %v4708
    %4895 = vmatpush.msra.mxu0 %v4704
    %4896 = vmatpush.msra.mxu0 %v4700
    %4897 = vmatpush.msra.mxu0 %v4696
    %4898 = vmatpush.msra.mxu0 %v4692
    %4899 = vmatpush.msra.mxu0 %v4688
    %4900 = vmatpush.msra.mxu0 %v4684
    %4901 = vmatpush.msra.mxu0 %v4680
    %4902 = vmatpush.msra.mxu0 %v4676
    %4903 = vmatmul.f32.gmra.mxu0 %v4222
    %v4904 = vpop.f32.mrf.mxu0
    %v4905 = vadd.f32 %v4885, %v4904
    %4906 = vdwg.mxu0
    %v4907 = vxor.u32 %v4785, 2147483648
    %v4908 = vmul.f32 %v4907, 1.442695
    %v4909 = vpow.pop %v4908
    %v4910 = vadd.f32 %v4909, 1.0
    %v4911 = vrcp.pop %v4910
    %v4912 = vmul.f32 %v4910, %v4911
    %v4913 = vsub.f32 1.0, %v4912
    %v4914 = vmul.f32 %v4911, %v4913
    %v4915 = vadd.f32 %v4911, %v4914
    %vm4916 = vweird.f32 %v4910
    %vm4917 = vweird.f32 %v4911
    %vm4918 = vmor %vm4916, %vm4917
    %v4919 = vsel %vm4918, %v4911, %v4915
    %v4920 = vand.u32 2147483647, %v4910
    %vm4921 = vcmp.eq.f32.partialorder %v4920, 8.507059e+37
    %v4922 = vand.u32 %v4910, 2147483648
    %v4923 = vor.u32 1.1754944e-38, %v4922
    %v4924 = vsel %vm4921, %v4923, %v4919
    %v4925 = vmul.f32 1.0, %v4924
    %v4926 = vxor.u32 %v4825, 2147483648
    %v4927 = vmul.f32 %v4926, 1.442695
    %v4928 = vpow.pop %v4927
    %v4929 = vadd.f32 %v4928, 1.0
    %v4930 = vrcp.pop %v4929
    %v4931 = vmul.f32 %v4929, %v4930
    %v4932 = vsub.f32 1.0, %v4931
    %v4933 = vmul.f32 %v4930, %v4932
    %v4934 = vadd.f32 %v4930, %v4933
    %vm4935 = vweird.f32 %v4929
    %vm4936 = vweird.f32 %v4930
    %vm4937 = vmor %vm4935, %vm4936
    %v4938 = vsel %vm4937, %v4930, %v4934
    %v4939 = vand.u32 2147483647, %v4929
    %vm4940 = vcmp.eq.f32.partialorder %v4939, 8.507059e+37
    %v4941 = vand.u32 %v4929, 2147483648
    %v4942 = vor.u32 1.1754944e-38, %v4941
    %v4943 = vsel %vm4940, %v4942, %v4938
    %v4944 = vmul.f32 1.0, %v4943
    %v4945 = vmul.f32 %v4925, %v4905
    %v4946 = vadd.f32 %v4865, %v4945
    %v4947 = vtanh.pop %v4946
    %v4948 = vsub.f32 1.0, %v4944
    %v4949 = vmul.f32 %v4948, %v4947
    %v4950 = vmul.f32 %v4944, %v4222
    %v4951 = vadd.f32 %v4949, %v4950
    %v4952 = vld [vmem:[#allocation14] sm:$0xff]
    %v4953 = vld [vmem:[#allocation14 + $0x8] sm:$0xff]
    %v4954 = vld [vmem:[#allocation14 + $0x10] sm:$0xff]
    %v4955 = vld [vmem:[#allocation14 + $0x18] sm:$0xff]
    %v4956 = vld [vmem:[#allocation14 + $0x20] sm:$0xff]
    %v4957 = vld [vmem:[#allocation14 + $0x28] sm:$0xff]
    %v4958 = vld [vmem:[#allocation14 + $0x30] sm:$0xff]
    %v4959 = vld [vmem:[#allocation14 + $0x38] sm:$0xff]
    %v4960 = vld [vmem:[#allocation14 + $0x40] sm:$0xff]
    %v4961 = vld [vmem:[#allocation14 + $0x48] sm:$0xff]
    %v4962 = vld [vmem:[#allocation14 + $0x50] sm:$0xff]
    %v4963 = vld [vmem:[#allocation14 + $0x58] sm:$0xff]
    %v4964 = vld [vmem:[#allocation14 + $0x60] sm:$0xff]
    %v4965 = vld [vmem:[#allocation14 + $0x68] sm:$0xff]
    %v4966 = vld [vmem:[#allocation14 + $0x70] sm:$0xff]
    %v4967 = vld [vmem:[#allocation14 + $0x78] sm:$0xff]
    %v4968 = vld [vmem:[%s15] sm:$0x1]
    %v4970 = vperm.slane %v4968, 0
    %4972 = vmatpush.msra.mxu0 %v4967
    %4973 = vmatpush.msra.mxu0 %v4966
    %4974 = vmatpush.msra.mxu0 %v4965
    %4975 = vmatpush.msra.mxu0 %v4964
    %4976 = vmatpush.msra.mxu0 %v4963
    %4977 = vmatpush.msra.mxu0 %v4962
    %4978 = vmatpush.msra.mxu0 %v4961
    %4979 = vmatpush.msra.mxu0 %v4960
    %4980 = vmatpush.msra.mxu0 %v4959
    %4981 = vmatpush.msra.mxu0 %v4958
    %4982 = vmatpush.msra.mxu0 %v4957
    %4983 = vmatpush.msra.mxu0 %v4956
    %4984 = vmatpush.msra.mxu0 %v4955
    %4985 = vmatpush.msra.mxu0 %v4954
    %4986 = vmatpush.msra.mxu0 %v4953
    %4987 = vmatpush.msra.mxu0 %v4952
    %4988 = vmatmul.f32.gmra.mxu0 %v4951
    %v4989 = vpop.f32.mrf.mxu0
    %v4990 = vadd.f32 %v4970, %v4989
    %4991 = vdwg.mxu0
    %v4992 = vadd.f32 %v4990, %v4263
    %s4993 = scalar_lea.vmem %s16, 16
    %4994 = vst [vmem:[%s4993] sm:$0xff] %v4992
    %v4995 = vld [vmem:[#allocation11] sm:$0xff]
    %v4996 = vld [vmem:[#allocation11 + $0x8] sm:$0xff]
    %v4997 = vld [vmem:[#allocation11 + $0x10] sm:$0xff]
    %v4998 = vld [vmem:[#allocation11 + $0x18] sm:$0xff]
    %v4999 = vld [vmem:[#allocation11 + $0x20] sm:$0xff]
    %v5000 = vld [vmem:[#allocation11 + $0x28] sm:$0xff]
    %v5001 = vld [vmem:[#allocation11 + $0x30] sm:$0xff]
    %v5002 = vld [vmem:[#allocation11 + $0x38] sm:$0xff]
    %v5003 = vld [vmem:[#allocation11 + $0x40] sm:$0xff]
    %v5004 = vld [vmem:[#allocation11 + $0x48] sm:$0xff]
    %v5005 = vld [vmem:[#allocation11 + $0x50] sm:$0xff]
    %v5006 = vld [vmem:[#allocation11 + $0x58] sm:$0xff]
    %v5007 = vld [vmem:[#allocation11 + $0x60] sm:$0xff]
    %v5008 = vld [vmem:[#allocation11 + $0x68] sm:$0xff]
    %v5009 = vld [vmem:[#allocation11 + $0x70] sm:$0xff]
    %v5010 = vld [vmem:[#allocation11 + $0x78] sm:$0xff]
    %v5011 = vld [vmem:[#allocation11 + $0x80] sm:$0xff]
    %v5012 = vld [vmem:[#allocation11 + $0x88] sm:$0xff]
    %v5013 = vld [vmem:[#allocation11 + $0x90] sm:$0xff]
    %v5014 = vld [vmem:[#allocation11 + $0x98] sm:$0xff]
    %v5015 = vld [vmem:[#allocation11 + $0xa0] sm:$0xff]
    %v5016 = vld [vmem:[#allocation11 + $0xa8] sm:$0xff]
    %v5017 = vld [vmem:[#allocation11 + $0xb0] sm:$0xff]
    %v5018 = vld [vmem:[#allocation11 + $0xb8] sm:$0xff]
    %v5019 = vld [vmem:[#allocation11 + $0xc0] sm:$0xff]
    %v5020 = vld [vmem:[#allocation11 + $0xc8] sm:$0xff]
    %v5021 = vld [vmem:[#allocation11 + $0xd0] sm:$0xff]
    %v5022 = vld [vmem:[#allocation11 + $0xd8] sm:$0xff]
    %v5023 = vld [vmem:[#allocation11 + $0xe0] sm:$0xff]
    %v5024 = vld [vmem:[#allocation11 + $0xe8] sm:$0xff]
    %v5025 = vld [vmem:[#allocation11 + $0xf0] sm:$0xff]
    %v5026 = vld [vmem:[#allocation11 + $0xf8] sm:$0xff]
    %v5027 = vld [vmem:[#allocation11 + $0x100] sm:$0xff]
    %v5028 = vld [vmem:[#allocation11 + $0x108] sm:$0xff]
    %v5029 = vld [vmem:[#allocation11 + $0x110] sm:$0xff]
    %v5030 = vld [vmem:[#allocation11 + $0x118] sm:$0xff]
    %v5031 = vld [vmem:[#allocation11 + $0x120] sm:$0xff]
    %v5032 = vld [vmem:[#allocation11 + $0x128] sm:$0xff]
    %v5033 = vld [vmem:[#allocation11 + $0x130] sm:$0xff]
    %v5034 = vld [vmem:[#allocation11 + $0x138] sm:$0xff]
    %v5035 = vld [vmem:[#allocation11 + $0x140] sm:$0xff]
    %v5036 = vld [vmem:[#allocation11 + $0x148] sm:$0xff]
    %v5037 = vld [vmem:[#allocation11 + $0x150] sm:$0xff]
    %v5038 = vld [vmem:[#allocation11 + $0x158] sm:$0xff]
    %v5039 = vld [vmem:[#allocation11 + $0x160] sm:$0xff]
    %v5040 = vld [vmem:[#allocation11 + $0x168] sm:$0xff]
    %v5041 = vld [vmem:[#allocation11 + $0x170] sm:$0xff]
    %v5042 = vld [vmem:[#allocation11 + $0x178] sm:$0xff]
    %v5043 = vld [vmem:[#allocation11 + $0x180] sm:$0xff]
    %v5044 = vld [vmem:[#allocation11 + $0x188] sm:$0xff]
    %v5045 = vld [vmem:[#allocation11 + $0x190] sm:$0xff]
    %v5046 = vld [vmem:[#allocation11 + $0x198] sm:$0xff]
    %v5047 = vld [vmem:[#allocation11 + $0x1a0] sm:$0xff]
    %v5048 = vld [vmem:[#allocation11 + $0x1a8] sm:$0xff]
    %v5049 = vld [vmem:[#allocation11 + $0x1b0] sm:$0xff]
    %v5050 = vld [vmem:[#allocation11 + $0x1b8] sm:$0xff]
    %v5051 = vld [vmem:[#allocation11 + $0x1c0] sm:$0xff]
    %v5052 = vld [vmem:[#allocation11 + $0x1c8] sm:$0xff]
    %v5053 = vld [vmem:[#allocation11 + $0x1d0] sm:$0xff]
    %v5054 = vld [vmem:[#allocation11 + $0x1d8] sm:$0xff]
    %v5055 = vld [vmem:[#allocation11 + $0x1e0] sm:$0xff]
    %v5056 = vld [vmem:[#allocation11 + $0x1e8] sm:$0xff]
    %v5057 = vld [vmem:[#allocation11 + $0x1f0] sm:$0xff]
    %v5058 = vld [vmem:[#allocation11 + $0x1f8] sm:$0xff]
    %v5059 = vld [vmem:[#allocation11 + $0x200] sm:$0xff]
    %v5060 = vld [vmem:[#allocation11 + $0x208] sm:$0xff]
    %v5061 = vld [vmem:[#allocation11 + $0x210] sm:$0xff]
    %v5062 = vld [vmem:[#allocation11 + $0x218] sm:$0xff]
    %v5063 = vld [vmem:[#allocation11 + $0x220] sm:$0xff]
    %v5064 = vld [vmem:[#allocation11 + $0x228] sm:$0xff]
    %v5065 = vld [vmem:[#allocation11 + $0x230] sm:$0xff]
    %v5066 = vld [vmem:[#allocation11 + $0x238] sm:$0xff]
    %v5067 = vld [vmem:[#allocation11 + $0x240] sm:$0xff]
    %v5068 = vld [vmem:[#allocation11 + $0x248] sm:$0xff]
    %v5069 = vld [vmem:[#allocation11 + $0x250] sm:$0xff]
    %v5070 = vld [vmem:[#allocation11 + $0x258] sm:$0xff]
    %v5071 = vld [vmem:[#allocation11 + $0x260] sm:$0xff]
    %v5072 = vld [vmem:[#allocation11 + $0x268] sm:$0xff]
    %v5073 = vld [vmem:[#allocation11 + $0x270] sm:$0xff]
    %v5074 = vld [vmem:[#allocation11 + $0x278] sm:$0xff]
    %v5075 = vld [vmem:[#allocation11 + $0x280] sm:$0xff]
    %v5076 = vld [vmem:[#allocation11 + $0x288] sm:$0xff]
    %v5077 = vld [vmem:[#allocation11 + $0x290] sm:$0xff]
    %v5078 = vld [vmem:[#allocation11 + $0x298] sm:$0xff]
    %v5079 = vld [vmem:[#allocation11 + $0x2a0] sm:$0xff]
    %v5080 = vld [vmem:[#allocation11 + $0x2a8] sm:$0xff]
    %v5081 = vld [vmem:[#allocation11 + $0x2b0] sm:$0xff]
    %v5082 = vld [vmem:[#allocation11 + $0x2b8] sm:$0xff]
    %v5083 = vld [vmem:[#allocation11 + $0x2c0] sm:$0xff]
    %v5084 = vld [vmem:[#allocation11 + $0x2c8] sm:$0xff]
    %v5085 = vld [vmem:[#allocation11 + $0x2d0] sm:$0xff]
    %v5086 = vld [vmem:[#allocation11 + $0x2d8] sm:$0xff]
    %v5087 = vld [vmem:[#allocation11 + $0x2e0] sm:$0xff]
    %v5088 = vld [vmem:[#allocation11 + $0x2e8] sm:$0xff]
    %v5089 = vld [vmem:[#allocation11 + $0x2f0] sm:$0xff]
    %v5090 = vld [vmem:[#allocation11 + $0x2f8] sm:$0xff]
    %v5091 = vld [vmem:[#allocation11 + $0x300] sm:$0xff]
    %v5092 = vld [vmem:[#allocation11 + $0x308] sm:$0xff]
    %v5093 = vld [vmem:[#allocation11 + $0x310] sm:$0xff]
    %v5094 = vld [vmem:[#allocation11 + $0x318] sm:$0xff]
    %v5095 = vld [vmem:[#allocation11 + $0x320] sm:$0xff]
    %v5096 = vld [vmem:[#allocation11 + $0x328] sm:$0xff]
    %v5097 = vld [vmem:[#allocation11 + $0x330] sm:$0xff]
    %v5098 = vld [vmem:[#allocation11 + $0x338] sm:$0xff]
    %v5099 = vld [vmem:[#allocation11 + $0x340] sm:$0xff]
    %v5100 = vld [vmem:[#allocation11 + $0x348] sm:$0xff]
    %v5101 = vld [vmem:[#allocation11 + $0x350] sm:$0xff]
    %v5102 = vld [vmem:[#allocation11 + $0x358] sm:$0xff]
    %v5103 = vld [vmem:[#allocation11 + $0x360] sm:$0xff]
    %v5104 = vld [vmem:[#allocation11 + $0x368] sm:$0xff]
    %v5105 = vld [vmem:[#allocation11 + $0x370] sm:$0xff]
    %v5106 = vld [vmem:[#allocation11 + $0x378] sm:$0xff]
    %v5107 = vld [vmem:[#allocation11 + $0x380] sm:$0xff]
    %v5108 = vld [vmem:[#allocation11 + $0x388] sm:$0xff]
    %v5109 = vld [vmem:[#allocation11 + $0x390] sm:$0xff]
    %v5110 = vld [vmem:[#allocation11 + $0x398] sm:$0xff]
    %v5111 = vld [vmem:[#allocation11 + $0x3a0] sm:$0xff]
    %v5112 = vld [vmem:[#allocation11 + $0x3a8] sm:$0xff]
    %v5113 = vld [vmem:[#allocation11 + $0x3b0] sm:$0xff]
    %v5114 = vld [vmem:[#allocation11 + $0x3b8] sm:$0xff]
    %v5115 = vld [vmem:[#allocation11 + $0x3c0] sm:$0xff]
    %v5116 = vld [vmem:[#allocation11 + $0x3c8] sm:$0xff]
    %v5117 = vld [vmem:[#allocation11 + $0x3d0] sm:$0xff]
    %v5118 = vld [vmem:[#allocation11 + $0x3d8] sm:$0xff]
    %v5119 = vld [vmem:[#allocation11 + $0x3e0] sm:$0xff]
    %v5120 = vld [vmem:[#allocation11 + $0x3e8] sm:$0xff]
    %v5121 = vld [vmem:[#allocation11 + $0x3f0] sm:$0xff]
    %v5122 = vld [vmem:[#allocation11 + $0x3f8] sm:$0xff]
    %v5123 = vld [vmem:[%s11] sm:$0xf]
    %v5125 = vperm.slane %v5123, 0
    %v5126 = vperm.slane %v5123, 1
    %v5127 = vperm.slane %v5123, 2
    %v5128 = vperm.slane %v5123, 3
    %5133 = vmatpush.msra.mxu0 %v5055
    %5134 = vmatpush.msra.mxu0 %v5051
    %5135 = vmatpush.msra.mxu0 %v5047
    %5136 = vmatpush.msra.mxu0 %v5043
    %5137 = vmatpush.msra.mxu0 %v5039
    %5138 = vmatpush.msra.mxu0 %v5035
    %5139 = vmatpush.msra.mxu0 %v5031
    %5140 = vmatpush.msra.mxu0 %v5027
    %5141 = vmatpush.msra.mxu0 %v5023
    %5142 = vmatpush.msra.mxu0 %v5019
    %5143 = vmatpush.msra.mxu0 %v5015
    %5144 = vmatpush.msra.mxu0 %v5011
    %5145 = vmatpush.msra.mxu0 %v5007
    %5146 = vmatpush.msra.mxu0 %v5003
    %5147 = vmatpush.msra.mxu0 %v4999
    %5148 = vmatpush.msra.mxu0 %v4995
    %5149 = vmatmul.f32.gmra.mxu0 %v4992
    %v5150 = vpop.f32.mrf.mxu0
    %v5151 = vadd.f32 %v5125, %v5150
    %5152 = vdwg.mxu0
    %5153 = vmatpush.msra.mxu0 %v5119
    %5154 = vmatpush.msra.mxu0 %v5115
    %5155 = vmatpush.msra.mxu0 %v5111
    %5156 = vmatpush.msra.mxu0 %v5107
    %5157 = vmatpush.msra.mxu0 %v5103
    %5158 = vmatpush.msra.mxu0 %v5099
    %5159 = vmatpush.msra.mxu0 %v5095
    %5160 = vmatpush.msra.mxu0 %v5091
    %5161 = vmatpush.msra.mxu0 %v5087
    %5162 = vmatpush.msra.mxu0 %v5083
    %5163 = vmatpush.msra.mxu0 %v5079
    %5164 = vmatpush.msra.mxu0 %v5075
    %5165 = vmatpush.msra.mxu0 %v5071
    %5166 = vmatpush.msra.mxu0 %v5067
    %5167 = vmatpush.msra.mxu0 %v5063
    %5168 = vmatpush.msra.mxu0 %v5059
    %5169 = vmatmul.f32.gmra.mxu0 %v4608
    %v5170 = vpop.f32.mrf.mxu0
    %v5171 = vadd.f32 %v5151, %v5170
    %5172 = vdwg.mxu0
    %5173 = vmatpush.msra.mxu0 %v5056
    %5174 = vmatpush.msra.mxu0 %v5052
    %5175 = vmatpush.msra.mxu0 %v5048
    %5176 = vmatpush.msra.mxu0 %v5044
    %5177 = vmatpush.msra.mxu0 %v5040
    %5178 = vmatpush.msra.mxu0 %v5036
    %5179 = vmatpush.msra.mxu0 %v5032
    %5180 = vmatpush.msra.mxu0 %v5028
    %5181 = vmatpush.msra.mxu0 %v5024
    %5182 = vmatpush.msra.mxu0 %v5020
    %5183 = vmatpush.msra.mxu0 %v5016
    %5184 = vmatpush.msra.mxu0 %v5012
    %5185 = vmatpush.msra.mxu0 %v5008
    %5186 = vmatpush.msra.mxu0 %v5004
    %5187 = vmatpush.msra.mxu0 %v5000
    %5188 = vmatpush.msra.mxu0 %v4996
    %5189 = vmatmul.f32.gmra.mxu0 %v4992
    %v5190 = vpop.f32.mrf.mxu0
    %v5191 = vadd.f32 %v5126, %v5190
    %5192 = vdwg.mxu0
    %5193 = vmatpush.msra.mxu0 %v5120
    %5194 = vmatpush.msra.mxu0 %v5116
    %5195 = vmatpush.msra.mxu0 %v5112
    %5196 = vmatpush.msra.mxu0 %v5108
    %5197 = vmatpush.msra.mxu0 %v5104
    %5198 = vmatpush.msra.mxu0 %v5100
    %5199 = vmatpush.msra.mxu0 %v5096
    %5200 = vmatpush.msra.mxu0 %v5092
    %5201 = vmatpush.msra.mxu0 %v5088
    %5202 = vmatpush.msra.mxu0 %v5084
    %5203 = vmatpush.msra.mxu0 %v5080
    %5204 = vmatpush.msra.mxu0 %v5076
    %5205 = vmatpush.msra.mxu0 %v5072
    %5206 = vmatpush.msra.mxu0 %v5068
    %5207 = vmatpush.msra.mxu0 %v5064
    %5208 = vmatpush.msra.mxu0 %v5060
    %5209 = vmatmul.f32.gmra.mxu0 %v4608
    %v5210 = vpop.f32.mrf.mxu0
    %v5211 = vadd.f32 %v5191, %v5210
    %5212 = vdwg.mxu0
    %5213 = vmatpush.msra.mxu0 %v5057
    %5214 = vmatpush.msra.mxu0 %v5053
    %5215 = vmatpush.msra.mxu0 %v5049
    %5216 = vmatpush.msra.mxu0 %v5045
    %5217 = vmatpush.msra.mxu0 %v5041
    %5218 = vmatpush.msra.mxu0 %v5037
    %5219 = vmatpush.msra.mxu0 %v5033
    %5220 = vmatpush.msra.mxu0 %v5029
    %5221 = vmatpush.msra.mxu0 %v5025
    %5222 = vmatpush.msra.mxu0 %v5021
    %5223 = vmatpush.msra.mxu0 %v5017
    %5224 = vmatpush.msra.mxu0 %v5013
    %5225 = vmatpush.msra.mxu0 %v5009
    %5226 = vmatpush.msra.mxu0 %v5005
    %5227 = vmatpush.msra.mxu0 %v5001
    %5228 = vmatpush.msra.mxu0 %v4997
    %5229 = vmatmul.f32.gmra.mxu0 %v4992
    %v5230 = vpop.f32.mrf.mxu0
    %v5231 = vadd.f32 %v5127, %v5230
    %5232 = vdwg.mxu0
    %5233 = vmatpush.msra.mxu0 %v5121
    %5234 = vmatpush.msra.mxu0 %v5117
    %5235 = vmatpush.msra.mxu0 %v5113
    %5236 = vmatpush.msra.mxu0 %v5109
    %5237 = vmatpush.msra.mxu0 %v5105
    %5238 = vmatpush.msra.mxu0 %v5101
    %5239 = vmatpush.msra.mxu0 %v5097
    %5240 = vmatpush.msra.mxu0 %v5093
    %5241 = vmatpush.msra.mxu0 %v5089
    %5242 = vmatpush.msra.mxu0 %v5085
    %5243 = vmatpush.msra.mxu0 %v5081
    %5244 = vmatpush.msra.mxu0 %v5077
    %5245 = vmatpush.msra.mxu0 %v5073
    %5246 = vmatpush.msra.mxu0 %v5069
    %5247 = vmatpush.msra.mxu0 %v5065
    %5248 = vmatpush.msra.mxu0 %v5061
    %5249 = vmatmul.f32.gmra.mxu0 %v4608
    %v5250 = vpop.f32.mrf.mxu0
    %v5251 = vadd.f32 %v5231, %v5250
    %5252 = vdwg.mxu0
    %5253 = vmatpush.msra.mxu0 %v5058
    %5254 = vmatpush.msra.mxu0 %v5054
    %5255 = vmatpush.msra.mxu0 %v5050
    %5256 = vmatpush.msra.mxu0 %v5046
    %5257 = vmatpush.msra.mxu0 %v5042
    %5258 = vmatpush.msra.mxu0 %v5038
    %5259 = vmatpush.msra.mxu0 %v5034
    %5260 = vmatpush.msra.mxu0 %v5030
    %5261 = vmatpush.msra.mxu0 %v5026
    %5262 = vmatpush.msra.mxu0 %v5022
    %5263 = vmatpush.msra.mxu0 %v5018
    %5264 = vmatpush.msra.mxu0 %v5014
    %5265 = vmatpush.msra.mxu0 %v5010
    %5266 = vmatpush.msra.mxu0 %v5006
    %5267 = vmatpush.msra.mxu0 %v5002
    %5268 = vmatpush.msra.mxu0 %v4998
    %5269 = vmatmul.f32.gmra.mxu0 %v4992
    %v5270 = vpop.f32.mrf.mxu0
    %v5271 = vadd.f32 %v5128, %v5270
    %5272 = vdwg.mxu0
    %5273 = vmatpush.msra.mxu0 %v5122
    %5274 = vmatpush.msra.mxu0 %v5118
    %5275 = vmatpush.msra.mxu0 %v5114
    %5276 = vmatpush.msra.mxu0 %v5110
    %5277 = vmatpush.msra.mxu0 %v5106
    %5278 = vmatpush.msra.mxu0 %v5102
    %5279 = vmatpush.msra.mxu0 %v5098
    %5280 = vmatpush.msra.mxu0 %v5094
    %5281 = vmatpush.msra.mxu0 %v5090
    %5282 = vmatpush.msra.mxu0 %v5086
    %5283 = vmatpush.msra.mxu0 %v5082
    %5284 = vmatpush.msra.mxu0 %v5078
    %5285 = vmatpush.msra.mxu0 %v5074
    %5286 = vmatpush.msra.mxu0 %v5070
    %5287 = vmatpush.msra.mxu0 %v5066
    %5288 = vmatpush.msra.mxu0 %v5062
    %5289 = vmatmul.f32.gmra.mxu0 %v4608
    %v5290 = vpop.f32.mrf.mxu0
    %v5291 = vadd.f32 %v5271, %v5290
    %5292 = vdwg.mxu0
    %v5293 = vxor.u32 %v5171, 2147483648
    %v5294 = vmul.f32 %v5293, 1.442695
    %v5295 = vpow.pop %v5294
    %v5296 = vadd.f32 %v5295, 1.0
    %v5297 = vrcp.pop %v5296
    %v5298 = vmul.f32 %v5296, %v5297
    %v5299 = vsub.f32 1.0, %v5298
    %v5300 = vmul.f32 %v5297, %v5299
    %v5301 = vadd.f32 %v5297, %v5300
    %vm5302 = vweird.f32 %v5296
    %vm5303 = vweird.f32 %v5297
    %vm5304 = vmor %vm5302, %vm5303
    %v5305 = vsel %vm5304, %v5297, %v5301
    %v5306 = vand.u32 2147483647, %v5296
    %vm5307 = vcmp.eq.f32.partialorder %v5306, 8.507059e+37
    %v5308 = vand.u32 %v5296, 2147483648
    %v5309 = vor.u32 1.1754944e-38, %v5308
    %v5310 = vsel %vm5307, %v5309, %v5305
    %v5311 = vmul.f32 1.0, %v5310
    %v5312 = vxor.u32 %v5211, 2147483648
    %v5313 = vmul.f32 %v5312, 1.442695
    %v5314 = vpow.pop %v5313
    %v5315 = vadd.f32 %v5314, 1.0
    %v5316 = vrcp.pop %v5315
    %v5317 = vmul.f32 %v5315, %v5316
    %v5318 = vsub.f32 1.0, %v5317
    %v5319 = vmul.f32 %v5316, %v5318
    %v5320 = vadd.f32 %v5316, %v5319
    %vm5321 = vweird.f32 %v5315
    %vm5322 = vweird.f32 %v5316
    %vm5323 = vmor %vm5321, %vm5322
    %v5324 = vsel %vm5323, %v5316, %v5320
    %v5325 = vand.u32 2147483647, %v5315
    %vm5326 = vcmp.eq.f32.partialorder %v5325, 8.507059e+37
    %v5327 = vand.u32 %v5315, 2147483648
    %v5328 = vor.u32 1.1754944e-38, %v5327
    %v5329 = vsel %vm5326, %v5328, %v5324
    %v5330 = vmul.f32 1.0, %v5329
    %v5331 = vmul.f32 %v5311, %v5291
    %v5332 = vadd.f32 %v5251, %v5331
    %v5333 = vtanh.pop %v5332
    %v5334 = vsub.f32 1.0, %v5330
    %v5335 = vmul.f32 %v5334, %v5333
    %v5336 = vmul.f32 %v5330, %v4608
    %v5337 = vadd.f32 %v5335, %v5336
    %v5338 = vld [vmem:[#allocation12] sm:$0xff]
    %v5339 = vld [vmem:[#allocation12 + $0x8] sm:$0xff]
    %v5340 = vld [vmem:[#allocation12 + $0x10] sm:$0xff]
    %v5341 = vld [vmem:[#allocation12 + $0x18] sm:$0xff]
    %v5342 = vld [vmem:[#allocation12 + $0x20] sm:$0xff]
    %v5343 = vld [vmem:[#allocation12 + $0x28] sm:$0xff]
    %v5344 = vld [vmem:[#allocation12 + $0x30] sm:$0xff]
    %v5345 = vld [vmem:[#allocation12 + $0x38] sm:$0xff]
    %v5346 = vld [vmem:[#allocation12 + $0x40] sm:$0xff]
    %v5347 = vld [vmem:[#allocation12 + $0x48] sm:$0xff]
    %v5348 = vld [vmem:[#allocation12 + $0x50] sm:$0xff]
    %v5349 = vld [vmem:[#allocation12 + $0x58] sm:$0xff]
    %v5350 = vld [vmem:[#allocation12 + $0x60] sm:$0xff]
    %v5351 = vld [vmem:[#allocation12 + $0x68] sm:$0xff]
    %v5352 = vld [vmem:[#allocation12 + $0x70] sm:$0xff]
    %v5353 = vld [vmem:[#allocation12 + $0x78] sm:$0xff]
    %v5354 = vld [vmem:[#allocation12 + $0x80] sm:$0xff]
    %v5355 = vld [vmem:[#allocation12 + $0x88] sm:$0xff]
    %v5356 = vld [vmem:[#allocation12 + $0x90] sm:$0xff]
    %v5357 = vld [vmem:[#allocation12 + $0x98] sm:$0xff]
    %v5358 = vld [vmem:[#allocation12 + $0xa0] sm:$0xff]
    %v5359 = vld [vmem:[#allocation12 + $0xa8] sm:$0xff]
    %v5360 = vld [vmem:[#allocation12 + $0xb0] sm:$0xff]
    %v5361 = vld [vmem:[#allocation12 + $0xb8] sm:$0xff]
    %v5362 = vld [vmem:[#allocation12 + $0xc0] sm:$0xff]
    %v5363 = vld [vmem:[#allocation12 + $0xc8] sm:$0xff]
    %v5364 = vld [vmem:[#allocation12 + $0xd0] sm:$0xff]
    %v5365 = vld [vmem:[#allocation12 + $0xd8] sm:$0xff]
    %v5366 = vld [vmem:[#allocation12 + $0xe0] sm:$0xff]
    %v5367 = vld [vmem:[#allocation12 + $0xe8] sm:$0xff]
    %v5368 = vld [vmem:[#allocation12 + $0xf0] sm:$0xff]
    %v5369 = vld [vmem:[#allocation12 + $0xf8] sm:$0xff]
    %v5370 = vld [vmem:[#allocation12 + $0x100] sm:$0xff]
    %v5371 = vld [vmem:[#allocation12 + $0x108] sm:$0xff]
    %v5372 = vld [vmem:[#allocation12 + $0x110] sm:$0xff]
    %v5373 = vld [vmem:[#allocation12 + $0x118] sm:$0xff]
    %v5374 = vld [vmem:[#allocation12 + $0x120] sm:$0xff]
    %v5375 = vld [vmem:[#allocation12 + $0x128] sm:$0xff]
    %v5376 = vld [vmem:[#allocation12 + $0x130] sm:$0xff]
    %v5377 = vld [vmem:[#allocation12 + $0x138] sm:$0xff]
    %v5378 = vld [vmem:[#allocation12 + $0x140] sm:$0xff]
    %v5379 = vld [vmem:[#allocation12 + $0x148] sm:$0xff]
    %v5380 = vld [vmem:[#allocation12 + $0x150] sm:$0xff]
    %v5381 = vld [vmem:[#allocation12 + $0x158] sm:$0xff]
    %v5382 = vld [vmem:[#allocation12 + $0x160] sm:$0xff]
    %v5383 = vld [vmem:[#allocation12 + $0x168] sm:$0xff]
    %v5384 = vld [vmem:[#allocation12 + $0x170] sm:$0xff]
    %v5385 = vld [vmem:[#allocation12 + $0x178] sm:$0xff]
    %v5386 = vld [vmem:[#allocation12 + $0x180] sm:$0xff]
    %v5387 = vld [vmem:[#allocation12 + $0x188] sm:$0xff]
    %v5388 = vld [vmem:[#allocation12 + $0x190] sm:$0xff]
    %v5389 = vld [vmem:[#allocation12 + $0x198] sm:$0xff]
    %v5390 = vld [vmem:[#allocation12 + $0x1a0] sm:$0xff]
    %v5391 = vld [vmem:[#allocation12 + $0x1a8] sm:$0xff]
    %v5392 = vld [vmem:[#allocation12 + $0x1b0] sm:$0xff]
    %v5393 = vld [vmem:[#allocation12 + $0x1b8] sm:$0xff]
    %v5394 = vld [vmem:[#allocation12 + $0x1c0] sm:$0xff]
    %v5395 = vld [vmem:[#allocation12 + $0x1c8] sm:$0xff]
    %v5396 = vld [vmem:[#allocation12 + $0x1d0] sm:$0xff]
    %v5397 = vld [vmem:[#allocation12 + $0x1d8] sm:$0xff]
    %v5398 = vld [vmem:[#allocation12 + $0x1e0] sm:$0xff]
    %v5399 = vld [vmem:[#allocation12 + $0x1e8] sm:$0xff]
    %v5400 = vld [vmem:[#allocation12 + $0x1f0] sm:$0xff]
    %v5401 = vld [vmem:[#allocation12 + $0x1f8] sm:$0xff]
    %v5402 = vld [vmem:[#allocation12 + $0x200] sm:$0xff]
    %v5403 = vld [vmem:[#allocation12 + $0x208] sm:$0xff]
    %v5404 = vld [vmem:[#allocation12 + $0x210] sm:$0xff]
    %v5405 = vld [vmem:[#allocation12 + $0x218] sm:$0xff]
    %v5406 = vld [vmem:[#allocation12 + $0x220] sm:$0xff]
    %v5407 = vld [vmem:[#allocation12 + $0x228] sm:$0xff]
    %v5408 = vld [vmem:[#allocation12 + $0x230] sm:$0xff]
    %v5409 = vld [vmem:[#allocation12 + $0x238] sm:$0xff]
    %v5410 = vld [vmem:[#allocation12 + $0x240] sm:$0xff]
    %v5411 = vld [vmem:[#allocation12 + $0x248] sm:$0xff]
    %v5412 = vld [vmem:[#allocation12 + $0x250] sm:$0xff]
    %v5413 = vld [vmem:[#allocation12 + $0x258] sm:$0xff]
    %v5414 = vld [vmem:[#allocation12 + $0x260] sm:$0xff]
    %v5415 = vld [vmem:[#allocation12 + $0x268] sm:$0xff]
    %v5416 = vld [vmem:[#allocation12 + $0x270] sm:$0xff]
    %v5417 = vld [vmem:[#allocation12 + $0x278] sm:$0xff]
    %v5418 = vld [vmem:[#allocation12 + $0x280] sm:$0xff]
    %v5419 = vld [vmem:[#allocation12 + $0x288] sm:$0xff]
    %v5420 = vld [vmem:[#allocation12 + $0x290] sm:$0xff]
    %v5421 = vld [vmem:[#allocation12 + $0x298] sm:$0xff]
    %v5422 = vld [vmem:[#allocation12 + $0x2a0] sm:$0xff]
    %v5423 = vld [vmem:[#allocation12 + $0x2a8] sm:$0xff]
    %v5424 = vld [vmem:[#allocation12 + $0x2b0] sm:$0xff]
    %v5425 = vld [vmem:[#allocation12 + $0x2b8] sm:$0xff]
    %v5426 = vld [vmem:[#allocation12 + $0x2c0] sm:$0xff]
    %v5427 = vld [vmem:[#allocation12 + $0x2c8] sm:$0xff]
    %v5428 = vld [vmem:[#allocation12 + $0x2d0] sm:$0xff]
    %v5429 = vld [vmem:[#allocation12 + $0x2d8] sm:$0xff]
    %v5430 = vld [vmem:[#allocation12 + $0x2e0] sm:$0xff]
    %v5431 = vld [vmem:[#allocation12 + $0x2e8] sm:$0xff]
    %v5432 = vld [vmem:[#allocation12 + $0x2f0] sm:$0xff]
    %v5433 = vld [vmem:[#allocation12 + $0x2f8] sm:$0xff]
    %v5434 = vld [vmem:[#allocation12 + $0x300] sm:$0xff]
    %v5435 = vld [vmem:[#allocation12 + $0x308] sm:$0xff]
    %v5436 = vld [vmem:[#allocation12 + $0x310] sm:$0xff]
    %v5437 = vld [vmem:[#allocation12 + $0x318] sm:$0xff]
    %v5438 = vld [vmem:[#allocation12 + $0x320] sm:$0xff]
    %v5439 = vld [vmem:[#allocation12 + $0x328] sm:$0xff]
    %v5440 = vld [vmem:[#allocation12 + $0x330] sm:$0xff]
    %v5441 = vld [vmem:[#allocation12 + $0x338] sm:$0xff]
    %v5442 = vld [vmem:[#allocation12 + $0x340] sm:$0xff]
    %v5443 = vld [vmem:[#allocation12 + $0x348] sm:$0xff]
    %v5444 = vld [vmem:[#allocation12 + $0x350] sm:$0xff]
    %v5445 = vld [vmem:[#allocation12 + $0x358] sm:$0xff]
    %v5446 = vld [vmem:[#allocation12 + $0x360] sm:$0xff]
    %v5447 = vld [vmem:[#allocation12 + $0x368] sm:$0xff]
    %v5448 = vld [vmem:[#allocation12 + $0x370] sm:$0xff]
    %v5449 = vld [vmem:[#allocation12 + $0x378] sm:$0xff]
    %v5450 = vld [vmem:[#allocation12 + $0x380] sm:$0xff]
    %v5451 = vld [vmem:[#allocation12 + $0x388] sm:$0xff]
    %v5452 = vld [vmem:[#allocation12 + $0x390] sm:$0xff]
    %v5453 = vld [vmem:[#allocation12 + $0x398] sm:$0xff]
    %v5454 = vld [vmem:[#allocation12 + $0x3a0] sm:$0xff]
    %v5455 = vld [vmem:[#allocation12 + $0x3a8] sm:$0xff]
    %v5456 = vld [vmem:[#allocation12 + $0x3b0] sm:$0xff]
    %v5457 = vld [vmem:[#allocation12 + $0x3b8] sm:$0xff]
    %v5458 = vld [vmem:[#allocation12 + $0x3c0] sm:$0xff]
    %v5459 = vld [vmem:[#allocation12 + $0x3c8] sm:$0xff]
    %v5460 = vld [vmem:[#allocation12 + $0x3d0] sm:$0xff]
    %v5461 = vld [vmem:[#allocation12 + $0x3d8] sm:$0xff]
    %v5462 = vld [vmem:[#allocation12 + $0x3e0] sm:$0xff]
    %v5463 = vld [vmem:[#allocation12 + $0x3e8] sm:$0xff]
    %v5464 = vld [vmem:[#allocation12 + $0x3f0] sm:$0xff]
    %v5465 = vld [vmem:[#allocation12 + $0x3f8] sm:$0xff]
    %v5466 = vld [vmem:[%s13] sm:$0xf]
    %v5468 = vperm.slane %v5466, 0
    %v5469 = vperm.slane %v5466, 1
    %v5470 = vperm.slane %v5466, 2
    %v5471 = vperm.slane %v5466, 3
    %5476 = vmatpush.msra.mxu0 %v5398
    %5477 = vmatpush.msra.mxu0 %v5394
    %5478 = vmatpush.msra.mxu0 %v5390
    %5479 = vmatpush.msra.mxu0 %v5386
    %5480 = vmatpush.msra.mxu0 %v5382
    %5481 = vmatpush.msra.mxu0 %v5378
    %5482 = vmatpush.msra.mxu0 %v5374
    %5483 = vmatpush.msra.mxu0 %v5370
    %5484 = vmatpush.msra.mxu0 %v5366
    %5485 = vmatpush.msra.mxu0 %v5362
    %5486 = vmatpush.msra.mxu0 %v5358
    %5487 = vmatpush.msra.mxu0 %v5354
    %5488 = vmatpush.msra.mxu0 %v5350
    %5489 = vmatpush.msra.mxu0 %v5346
    %5490 = vmatpush.msra.mxu0 %v5342
    %5491 = vmatpush.msra.mxu0 %v5338
    %5492 = vmatmul.f32.gmra.mxu0 %v5337
    %v5493 = vpop.f32.mrf.mxu0
    %v5494 = vadd.f32 %v5468, %v5493
    %5495 = vdwg.mxu0
    %5496 = vmatpush.msra.mxu0 %v5462
    %5497 = vmatpush.msra.mxu0 %v5458
    %5498 = vmatpush.msra.mxu0 %v5454
    %5499 = vmatpush.msra.mxu0 %v5450
    %5500 = vmatpush.msra.mxu0 %v5446
    %5501 = vmatpush.msra.mxu0 %v5442
    %5502 = vmatpush.msra.mxu0 %v5438
    %5503 = vmatpush.msra.mxu0 %v5434
    %5504 = vmatpush.msra.mxu0 %v5430
    %5505 = vmatpush.msra.mxu0 %v5426
    %5506 = vmatpush.msra.mxu0 %v5422
    %5507 = vmatpush.msra.mxu0 %v5418
    %5508 = vmatpush.msra.mxu0 %v5414
    %5509 = vmatpush.msra.mxu0 %v5410
    %5510 = vmatpush.msra.mxu0 %v5406
    %5511 = vmatpush.msra.mxu0 %v5402
    %5512 = vmatmul.f32.gmra.mxu0 %v4951
    %v5513 = vpop.f32.mrf.mxu0
    %v5514 = vadd.f32 %v5494, %v5513
    %5515 = vdwg.mxu0
    %5516 = vmatpush.msra.mxu0 %v5399
    %5517 = vmatpush.msra.mxu0 %v5395
    %5518 = vmatpush.msra.mxu0 %v5391
    %5519 = vmatpush.msra.mxu0 %v5387
    %5520 = vmatpush.msra.mxu0 %v5383
    %5521 = vmatpush.msra.mxu0 %v5379
    %5522 = vmatpush.msra.mxu0 %v5375
    %5523 = vmatpush.msra.mxu0 %v5371
    %5524 = vmatpush.msra.mxu0 %v5367
    %5525 = vmatpush.msra.mxu0 %v5363
    %5526 = vmatpush.msra.mxu0 %v5359
    %5527 = vmatpush.msra.mxu0 %v5355
    %5528 = vmatpush.msra.mxu0 %v5351
    %5529 = vmatpush.msra.mxu0 %v5347
    %5530 = vmatpush.msra.mxu0 %v5343
    %5531 = vmatpush.msra.mxu0 %v5339
    %5532 = vmatmul.f32.gmra.mxu0 %v5337
    %v5533 = vpop.f32.mrf.mxu0
    %v5534 = vadd.f32 %v5469, %v5533
    %5535 = vdwg.mxu0
    %5536 = vmatpush.msra.mxu0 %v5463
    %5537 = vmatpush.msra.mxu0 %v5459
    %5538 = vmatpush.msra.mxu0 %v5455
    %5539 = vmatpush.msra.mxu0 %v5451
    %5540 = vmatpush.msra.mxu0 %v5447
    %5541 = vmatpush.msra.mxu0 %v5443
    %5542 = vmatpush.msra.mxu0 %v5439
    %5543 = vmatpush.msra.mxu0 %v5435
    %5544 = vmatpush.msra.mxu0 %v5431
    %5545 = vmatpush.msra.mxu0 %v5427
    %5546 = vmatpush.msra.mxu0 %v5423
    %5547 = vmatpush.msra.mxu0 %v5419
    %5548 = vmatpush.msra.mxu0 %v5415
    %5549 = vmatpush.msra.mxu0 %v5411
    %5550 = vmatpush.msra.mxu0 %v5407
    %5551 = vmatpush.msra.mxu0 %v5403
    %5552 = vmatmul.f32.gmra.mxu0 %v4951
    %v5553 = vpop.f32.mrf.mxu0
    %v5554 = vadd.f32 %v5534, %v5553
    %5555 = vdwg.mxu0
    %5556 = vmatpush.msra.mxu0 %v5400
    %5557 = vmatpush.msra.mxu0 %v5396
    %5558 = vmatpush.msra.mxu0 %v5392
    %5559 = vmatpush.msra.mxu0 %v5388
    %5560 = vmatpush.msra.mxu0 %v5384
    %5561 = vmatpush.msra.mxu0 %v5380
    %5562 = vmatpush.msra.mxu0 %v5376
    %5563 = vmatpush.msra.mxu0 %v5372
    %5564 = vmatpush.msra.mxu0 %v5368
    %5565 = vmatpush.msra.mxu0 %v5364
    %5566 = vmatpush.msra.mxu0 %v5360
    %5567 = vmatpush.msra.mxu0 %v5356
    %5568 = vmatpush.msra.mxu0 %v5352
    %5569 = vmatpush.msra.mxu0 %v5348
    %5570 = vmatpush.msra.mxu0 %v5344
    %5571 = vmatpush.msra.mxu0 %v5340
    %5572 = vmatmul.f32.gmra.mxu0 %v5337
    %v5573 = vpop.f32.mrf.mxu0
    %v5574 = vadd.f32 %v5470, %v5573
    %5575 = vdwg.mxu0
    %5576 = vmatpush.msra.mxu0 %v5464
    %5577 = vmatpush.msra.mxu0 %v5460
    %5578 = vmatpush.msra.mxu0 %v5456
    %5579 = vmatpush.msra.mxu0 %v5452
    %5580 = vmatpush.msra.mxu0 %v5448
    %5581 = vmatpush.msra.mxu0 %v5444
    %5582 = vmatpush.msra.mxu0 %v5440
    %5583 = vmatpush.msra.mxu0 %v5436
    %5584 = vmatpush.msra.mxu0 %v5432
    %5585 = vmatpush.msra.mxu0 %v5428
    %5586 = vmatpush.msra.mxu0 %v5424
    %5587 = vmatpush.msra.mxu0 %v5420
    %5588 = vmatpush.msra.mxu0 %v5416
    %5589 = vmatpush.msra.mxu0 %v5412
    %5590 = vmatpush.msra.mxu0 %v5408
    %5591 = vmatpush.msra.mxu0 %v5404
    %5592 = vmatmul.f32.gmra.mxu0 %v4951
    %v5593 = vpop.f32.mrf.mxu0
    %v5594 = vadd.f32 %v5574, %v5593
    %5595 = vdwg.mxu0
    %5596 = vmatpush.msra.mxu0 %v5401
    %5597 = vmatpush.msra.mxu0 %v5397
    %5598 = vmatpush.msra.mxu0 %v5393
    %5599 = vmatpush.msra.mxu0 %v5389
    %5600 = vmatpush.msra.mxu0 %v5385
    %5601 = vmatpush.msra.mxu0 %v5381
    %5602 = vmatpush.msra.mxu0 %v5377
    %5603 = vmatpush.msra.mxu0 %v5373
    %5604 = vmatpush.msra.mxu0 %v5369
    %5605 = vmatpush.msra.mxu0 %v5365
    %5606 = vmatpush.msra.mxu0 %v5361
    %5607 = vmatpush.msra.mxu0 %v5357
    %5608 = vmatpush.msra.mxu0 %v5353
    %5609 = vmatpush.msra.mxu0 %v5349
    %5610 = vmatpush.msra.mxu0 %v5345
    %5611 = vmatpush.msra.mxu0 %v5341
    %5612 = vmatmul.f32.gmra.mxu0 %v5337
    %v5613 = vpop.f32.mrf.mxu0
    %v5614 = vadd.f32 %v5471, %v5613
    %5615 = vdwg.mxu0
    %5616 = vmatpush.msra.mxu0 %v5465
    %5617 = vmatpush.msra.mxu0 %v5461
    %5618 = vmatpush.msra.mxu0 %v5457
    %5619 = vmatpush.msra.mxu0 %v5453
    %5620 = vmatpush.msra.mxu0 %v5449
    %5621 = vmatpush.msra.mxu0 %v5445
    %5622 = vmatpush.msra.mxu0 %v5441
    %5623 = vmatpush.msra.mxu0 %v5437
    %5624 = vmatpush.msra.mxu0 %v5433
    %5625 = vmatpush.msra.mxu0 %v5429
    %5626 = vmatpush.msra.mxu0 %v5425
    %5627 = vmatpush.msra.mxu0 %v5421
    %5628 = vmatpush.msra.mxu0 %v5417
    %5629 = vmatpush.msra.mxu0 %v5413
    %5630 = vmatpush.msra.mxu0 %v5409
    %5631 = vmatpush.msra.mxu0 %v5405
    %5632 = vmatmul.f32.gmra.mxu0 %v4951
    %v5633 = vpop.f32.mrf.mxu0
    %v5634 = vadd.f32 %v5614, %v5633
    %5635 = vdwg.mxu0
    %v5636 = vxor.u32 %v5514, 2147483648
    %v5637 = vmul.f32 %v5636, 1.442695
    %v5638 = vpow.pop %v5637
    %v5639 = vadd.f32 %v5638, 1.0
    %v5640 = vrcp.pop %v5639
    %v5641 = vmul.f32 %v5639, %v5640
    %v5642 = vsub.f32 1.0, %v5641
    %v5643 = vmul.f32 %v5640, %v5642
    %v5644 = vadd.f32 %v5640, %v5643
    %vm5645 = vweird.f32 %v5639
    %vm5646 = vweird.f32 %v5640
    %vm5647 = vmor %vm5645, %vm5646
    %v5648 = vsel %vm5647, %v5640, %v5644
    %v5649 = vand.u32 2147483647, %v5639
    %vm5650 = vcmp.eq.f32.partialorder %v5649, 8.507059e+37
    %v5651 = vand.u32 %v5639, 2147483648
    %v5652 = vor.u32 1.1754944e-38, %v5651
    %v5653 = vsel %vm5650, %v5652, %v5648
    %v5654 = vmul.f32 1.0, %v5653
    %v5655 = vxor.u32 %v5554, 2147483648
    %v5656 = vmul.f32 %v5655, 1.442695
    %v5657 = vpow.pop %v5656
    %v5658 = vadd.f32 %v5657, 1.0
    %v5659 = vrcp.pop %v5658
    %v5660 = vmul.f32 %v5658, %v5659
    %v5661 = vsub.f32 1.0, %v5660
    %v5662 = vmul.f32 %v5659, %v5661
    %v5663 = vadd.f32 %v5659, %v5662
    %vm5664 = vweird.f32 %v5658
    %vm5665 = vweird.f32 %v5659
    %vm5666 = vmor %vm5664, %vm5665
    %v5667 = vsel %vm5666, %v5659, %v5663
    %v5668 = vand.u32 2147483647, %v5658
    %vm5669 = vcmp.eq.f32.partialorder %v5668, 8.507059e+37
    %v5670 = vand.u32 %v5658, 2147483648
    %v5671 = vor.u32 1.1754944e-38, %v5670
    %v5672 = vsel %vm5669, %v5671, %v5667
    %v5673 = vmul.f32 1.0, %v5672
    %v5674 = vmul.f32 %v5654, %v5634
    %v5675 = vadd.f32 %v5594, %v5674
    %v5676 = vtanh.pop %v5675
    %v5677 = vsub.f32 1.0, %v5673
    %v5678 = vmul.f32 %v5677, %v5676
    %v5679 = vmul.f32 %v5673, %v4951
    %v5680 = vadd.f32 %v5678, %v5679
    %v5681 = vld [vmem:[#allocation14] sm:$0xff]
    %v5682 = vld [vmem:[#allocation14 + $0x8] sm:$0xff]
    %v5683 = vld [vmem:[#allocation14 + $0x10] sm:$0xff]
    %v5684 = vld [vmem:[#allocation14 + $0x18] sm:$0xff]
    %v5685 = vld [vmem:[#allocation14 + $0x20] sm:$0xff]
    %v5686 = vld [vmem:[#allocation14 + $0x28] sm:$0xff]
    %v5687 = vld [vmem:[#allocation14 + $0x30] sm:$0xff]
    %v5688 = vld [vmem:[#allocation14 + $0x38] sm:$0xff]
    %v5689 = vld [vmem:[#allocation14 + $0x40] sm:$0xff]
    %v5690 = vld [vmem:[#allocation14 + $0x48] sm:$0xff]
    %v5691 = vld [vmem:[#allocation14 + $0x50] sm:$0xff]
    %v5692 = vld [vmem:[#allocation14 + $0x58] sm:$0xff]
    %v5693 = vld [vmem:[#allocation14 + $0x60] sm:$0xff]
    %v5694 = vld [vmem:[#allocation14 + $0x68] sm:$0xff]
    %v5695 = vld [vmem:[#allocation14 + $0x70] sm:$0xff]
    %v5696 = vld [vmem:[#allocation14 + $0x78] sm:$0xff]
    %v5697 = vld [vmem:[%s15] sm:$0x1]
    %v5699 = vperm.slane %v5697, 0
    %5701 = vmatpush.msra.mxu0 %v5696
    %5702 = vmatpush.msra.mxu0 %v5695
    %5703 = vmatpush.msra.mxu0 %v5694
    %5704 = vmatpush.msra.mxu0 %v5693
    %5705 = vmatpush.msra.mxu0 %v5692
    %5706 = vmatpush.msra.mxu0 %v5691
    %5707 = vmatpush.msra.mxu0 %v5690
    %5708 = vmatpush.msra.mxu0 %v5689
    %5709 = vmatpush.msra.mxu0 %v5688
    %5710 = vmatpush.msra.mxu0 %v5687
    %5711 = vmatpush.msra.mxu0 %v5686
    %5712 = vmatpush.msra.mxu0 %v5685
    %5713 = vmatpush.msra.mxu0 %v5684
    %5714 = vmatpush.msra.mxu0 %v5683
    %5715 = vmatpush.msra.mxu0 %v5682
    %5716 = vmatpush.msra.mxu0 %v5681
    %5717 = vmatmul.f32.gmra.mxu0 %v5680
    %v5718 = vpop.f32.mrf.mxu0
    %v5719 = vadd.f32 %v5699, %v5718
    %5720 = vdwg.mxu0
    %v5721 = vadd.f32 %v5719, %v4992
    %s5722 = scalar_lea.vmem %s16, 24
    %5723 = vst [vmem:[%s5722] sm:$0xff] %v5721
    %v5724 = vld [vmem:[#allocation11] sm:$0xff]
    %v5725 = vld [vmem:[#allocation11 + $0x8] sm:$0xff]
    %v5726 = vld [vmem:[#allocation11 + $0x10] sm:$0xff]
    %v5727 = vld [vmem:[#allocation11 + $0x18] sm:$0xff]
    %v5728 = vld [vmem:[#allocation11 + $0x20] sm:$0xff]
    %v5729 = vld [vmem:[#allocation11 + $0x28] sm:$0xff]
    %v5730 = vld [vmem:[#allocation11 + $0x30] sm:$0xff]
    %v5731 = vld [vmem:[#allocation11 + $0x38] sm:$0xff]
    %v5732 = vld [vmem:[#allocation11 + $0x40] sm:$0xff]
    %v5733 = vld [vmem:[#allocation11 + $0x48] sm:$0xff]
    %v5734 = vld [vmem:[#allocation11 + $0x50] sm:$0xff]
    %v5735 = vld [vmem:[#allocation11 + $0x58] sm:$0xff]
    %v5736 = vld [vmem:[#allocation11 + $0x60] sm:$0xff]
    %v5737 = vld [vmem:[#allocation11 + $0x68] sm:$0xff]
    %v5738 = vld [vmem:[#allocation11 + $0x70] sm:$0xff]
    %v5739 = vld [vmem:[#allocation11 + $0x78] sm:$0xff]
    %v5740 = vld [vmem:[#allocation11 + $0x80] sm:$0xff]
    %v5741 = vld [vmem:[#allocation11 + $0x88] sm:$0xff]
    %v5742 = vld [vmem:[#allocation11 + $0x90] sm:$0xff]
    %v5743 = vld [vmem:[#allocation11 + $0x98] sm:$0xff]
    %v5744 = vld [vmem:[#allocation11 + $0xa0] sm:$0xff]
    %v5745 = vld [vmem:[#allocation11 + $0xa8] sm:$0xff]
    %v5746 = vld [vmem:[#allocation11 + $0xb0] sm:$0xff]
    %v5747 = vld [vmem:[#allocation11 + $0xb8] sm:$0xff]
    %v5748 = vld [vmem:[#allocation11 + $0xc0] sm:$0xff]
    %v5749 = vld [vmem:[#allocation11 + $0xc8] sm:$0xff]
    %v5750 = vld [vmem:[#allocation11 + $0xd0] sm:$0xff]
    %v5751 = vld [vmem:[#allocation11 + $0xd8] sm:$0xff]
    %v5752 = vld [vmem:[#allocation11 + $0xe0] sm:$0xff]
    %v5753 = vld [vmem:[#allocation11 + $0xe8] sm:$0xff]
    %v5754 = vld [vmem:[#allocation11 + $0xf0] sm:$0xff]
    %v5755 = vld [vmem:[#allocation11 + $0xf8] sm:$0xff]
    %v5756 = vld [vmem:[#allocation11 + $0x100] sm:$0xff]
    %v5757 = vld [vmem:[#allocation11 + $0x108] sm:$0xff]
    %v5758 = vld [vmem:[#allocation11 + $0x110] sm:$0xff]
    %v5759 = vld [vmem:[#allocation11 + $0x118] sm:$0xff]
    %v5760 = vld [vmem:[#allocation11 + $0x120] sm:$0xff]
    %v5761 = vld [vmem:[#allocation11 + $0x128] sm:$0xff]
    %v5762 = vld [vmem:[#allocation11 + $0x130] sm:$0xff]
    %v5763 = vld [vmem:[#allocation11 + $0x138] sm:$0xff]
    %v5764 = vld [vmem:[#allocation11 + $0x140] sm:$0xff]
    %v5765 = vld [vmem:[#allocation11 + $0x148] sm:$0xff]
    %v5766 = vld [vmem:[#allocation11 + $0x150] sm:$0xff]
    %v5767 = vld [vmem:[#allocation11 + $0x158] sm:$0xff]
    %v5768 = vld [vmem:[#allocation11 + $0x160] sm:$0xff]
    %v5769 = vld [vmem:[#allocation11 + $0x168] sm:$0xff]
    %v5770 = vld [vmem:[#allocation11 + $0x170] sm:$0xff]
    %v5771 = vld [vmem:[#allocation11 + $0x178] sm:$0xff]
    %v5772 = vld [vmem:[#allocation11 + $0x180] sm:$0xff]
    %v5773 = vld [vmem:[#allocation11 + $0x188] sm:$0xff]
    %v5774 = vld [vmem:[#allocation11 + $0x190] sm:$0xff]
    %v5775 = vld [vmem:[#allocation11 + $0x198] sm:$0xff]
    %v5776 = vld [vmem:[#allocation11 + $0x1a0] sm:$0xff]
    %v5777 = vld [vmem:[#allocation11 + $0x1a8] sm:$0xff]
    %v5778 = vld [vmem:[#allocation11 + $0x1b0] sm:$0xff]
    %v5779 = vld [vmem:[#allocation11 + $0x1b8] sm:$0xff]
    %v5780 = vld [vmem:[#allocation11 + $0x1c0] sm:$0xff]
    %v5781 = vld [vmem:[#allocation11 + $0x1c8] sm:$0xff]
    %v5782 = vld [vmem:[#allocation11 + $0x1d0] sm:$0xff]
    %v5783 = vld [vmem:[#allocation11 + $0x1d8] sm:$0xff]
    %v5784 = vld [vmem:[#allocation11 + $0x1e0] sm:$0xff]
    %v5785 = vld [vmem:[#allocation11 + $0x1e8] sm:$0xff]
    %v5786 = vld [vmem:[#allocation11 + $0x1f0] sm:$0xff]
    %v5787 = vld [vmem:[#allocation11 + $0x1f8] sm:$0xff]
    %v5788 = vld [vmem:[#allocation11 + $0x200] sm:$0xff]
    %v5789 = vld [vmem:[#allocation11 + $0x208] sm:$0xff]
    %v5790 = vld [vmem:[#allocation11 + $0x210] sm:$0xff]
    %v5791 = vld [vmem:[#allocation11 + $0x218] sm:$0xff]
    %v5792 = vld [vmem:[#allocation11 + $0x220] sm:$0xff]
    %v5793 = vld [vmem:[#allocation11 + $0x228] sm:$0xff]
    %v5794 = vld [vmem:[#allocation11 + $0x230] sm:$0xff]
    %v5795 = vld [vmem:[#allocation11 + $0x238] sm:$0xff]
    %v5796 = vld [vmem:[#allocation11 + $0x240] sm:$0xff]
    %v5797 = vld [vmem:[#allocation11 + $0x248] sm:$0xff]
    %v5798 = vld [vmem:[#allocation11 + $0x250] sm:$0xff]
    %v5799 = vld [vmem:[#allocation11 + $0x258] sm:$0xff]
    %v5800 = vld [vmem:[#allocation11 + $0x260] sm:$0xff]
    %v5801 = vld [vmem:[#allocation11 + $0x268] sm:$0xff]
    %v5802 = vld [vmem:[#allocation11 + $0x270] sm:$0xff]
    %v5803 = vld [vmem:[#allocation11 + $0x278] sm:$0xff]
    %v5804 = vld [vmem:[#allocation11 + $0x280] sm:$0xff]
    %v5805 = vld [vmem:[#allocation11 + $0x288] sm:$0xff]
    %v5806 = vld [vmem:[#allocation11 + $0x290] sm:$0xff]
    %v5807 = vld [vmem:[#allocation11 + $0x298] sm:$0xff]
    %v5808 = vld [vmem:[#allocation11 + $0x2a0] sm:$0xff]
    %v5809 = vld [vmem:[#allocation11 + $0x2a8] sm:$0xff]
    %v5810 = vld [vmem:[#allocation11 + $0x2b0] sm:$0xff]
    %v5811 = vld [vmem:[#allocation11 + $0x2b8] sm:$0xff]
    %v5812 = vld [vmem:[#allocation11 + $0x2c0] sm:$0xff]
    %v5813 = vld [vmem:[#allocation11 + $0x2c8] sm:$0xff]
    %v5814 = vld [vmem:[#allocation11 + $0x2d0] sm:$0xff]
    %v5815 = vld [vmem:[#allocation11 + $0x2d8] sm:$0xff]
    %v5816 = vld [vmem:[#allocation11 + $0x2e0] sm:$0xff]
    %v5817 = vld [vmem:[#allocation11 + $0x2e8] sm:$0xff]
    %v5818 = vld [vmem:[#allocation11 + $0x2f0] sm:$0xff]
    %v5819 = vld [vmem:[#allocation11 + $0x2f8] sm:$0xff]
    %v5820 = vld [vmem:[#allocation11 + $0x300] sm:$0xff]
    %v5821 = vld [vmem:[#allocation11 + $0x308] sm:$0xff]
    %v5822 = vld [vmem:[#allocation11 + $0x310] sm:$0xff]
    %v5823 = vld [vmem:[#allocation11 + $0x318] sm:$0xff]
    %v5824 = vld [vmem:[#allocation11 + $0x320] sm:$0xff]
    %v5825 = vld [vmem:[#allocation11 + $0x328] sm:$0xff]
    %v5826 = vld [vmem:[#allocation11 + $0x330] sm:$0xff]
    %v5827 = vld [vmem:[#allocation11 + $0x338] sm:$0xff]
    %v5828 = vld [vmem:[#allocation11 + $0x340] sm:$0xff]
    %v5829 = vld [vmem:[#allocation11 + $0x348] sm:$0xff]
    %v5830 = vld [vmem:[#allocation11 + $0x350] sm:$0xff]
    %v5831 = vld [vmem:[#allocation11 + $0x358] sm:$0xff]
    %v5832 = vld [vmem:[#allocation11 + $0x360] sm:$0xff]
    %v5833 = vld [vmem:[#allocation11 + $0x368] sm:$0xff]
    %v5834 = vld [vmem:[#allocation11 + $0x370] sm:$0xff]
    %v5835 = vld [vmem:[#allocation11 + $0x378] sm:$0xff]
    %v5836 = vld [vmem:[#allocation11 + $0x380] sm:$0xff]
    %v5837 = vld [vmem:[#allocation11 + $0x388] sm:$0xff]
    %v5838 = vld [vmem:[#allocation11 + $0x390] sm:$0xff]
    %v5839 = vld [vmem:[#allocation11 + $0x398] sm:$0xff]
    %v5840 = vld [vmem:[#allocation11 + $0x3a0] sm:$0xff]
    %v5841 = vld [vmem:[#allocation11 + $0x3a8] sm:$0xff]
    %v5842 = vld [vmem:[#allocation11 + $0x3b0] sm:$0xff]
    %v5843 = vld [vmem:[#allocation11 + $0x3b8] sm:$0xff]
    %v5844 = vld [vmem:[#allocation11 + $0x3c0] sm:$0xff]
    %v5845 = vld [vmem:[#allocation11 + $0x3c8] sm:$0xff]
    %v5846 = vld [vmem:[#allocation11 + $0x3d0] sm:$0xff]
    %v5847 = vld [vmem:[#allocation11 + $0x3d8] sm:$0xff]
    %v5848 = vld [vmem:[#allocation11 + $0x3e0] sm:$0xff]
    %v5849 = vld [vmem:[#allocation11 + $0x3e8] sm:$0xff]
    %v5850 = vld [vmem:[#allocation11 + $0x3f0] sm:$0xff]
    %v5851 = vld [vmem:[#allocation11 + $0x3f8] sm:$0xff]
    %v5852 = vld [vmem:[%s11] sm:$0xf]
    %v5854 = vperm.slane %v5852, 0
    %v5855 = vperm.slane %v5852, 1
    %v5856 = vperm.slane %v5852, 2
    %v5857 = vperm.slane %v5852, 3
    %5862 = vmatpush.msra.mxu0 %v5784
    %5863 = vmatpush.msra.mxu0 %v5780
    %5864 = vmatpush.msra.mxu0 %v5776
    %5865 = vmatpush.msra.mxu0 %v5772
    %5866 = vmatpush.msra.mxu0 %v5768
    %5867 = vmatpush.msra.mxu0 %v5764
    %5868 = vmatpush.msra.mxu0 %v5760
    %5869 = vmatpush.msra.mxu0 %v5756
    %5870 = vmatpush.msra.mxu0 %v5752
    %5871 = vmatpush.msra.mxu0 %v5748
    %5872 = vmatpush.msra.mxu0 %v5744
    %5873 = vmatpush.msra.mxu0 %v5740
    %5874 = vmatpush.msra.mxu0 %v5736
    %5875 = vmatpush.msra.mxu0 %v5732
    %5876 = vmatpush.msra.mxu0 %v5728
    %5877 = vmatpush.msra.mxu0 %v5724
    %5878 = vmatmul.f32.gmra.mxu0 %v5721
    %v5879 = vpop.f32.mrf.mxu0
    %v5880 = vadd.f32 %v5854, %v5879
    %5881 = vdwg.mxu0
    %5882 = vmatpush.msra.mxu0 %v5848
    %5883 = vmatpush.msra.mxu0 %v5844
    %5884 = vmatpush.msra.mxu0 %v5840
    %5885 = vmatpush.msra.mxu0 %v5836
    %5886 = vmatpush.msra.mxu0 %v5832
    %5887 = vmatpush.msra.mxu0 %v5828
    %5888 = vmatpush.msra.mxu0 %v5824
    %5889 = vmatpush.msra.mxu0 %v5820
    %5890 = vmatpush.msra.mxu0 %v5816
    %5891 = vmatpush.msra.mxu0 %v5812
    %5892 = vmatpush.msra.mxu0 %v5808
    %5893 = vmatpush.msra.mxu0 %v5804
    %5894 = vmatpush.msra.mxu0 %v5800
    %5895 = vmatpush.msra.mxu0 %v5796
    %5896 = vmatpush.msra.mxu0 %v5792
    %5897 = vmatpush.msra.mxu0 %v5788
    %5898 = vmatmul.f32.gmra.mxu0 %v5337
    %v5899 = vpop.f32.mrf.mxu0
    %v5900 = vadd.f32 %v5880, %v5899
    %5901 = vdwg.mxu0
    %5902 = vmatpush.msra.mxu0 %v5785
    %5903 = vmatpush.msra.mxu0 %v5781
    %5904 = vmatpush.msra.mxu0 %v5777
    %5905 = vmatpush.msra.mxu0 %v5773
    %5906 = vmatpush.msra.mxu0 %v5769
    %5907 = vmatpush.msra.mxu0 %v5765
    %5908 = vmatpush.msra.mxu0 %v5761
    %5909 = vmatpush.msra.mxu0 %v5757
    %5910 = vmatpush.msra.mxu0 %v5753
    %5911 = vmatpush.msra.mxu0 %v5749
    %5912 = vmatpush.msra.mxu0 %v5745
    %5913 = vmatpush.msra.mxu0 %v5741
    %5914 = vmatpush.msra.mxu0 %v5737
    %5915 = vmatpush.msra.mxu0 %v5733
    %5916 = vmatpush.msra.mxu0 %v5729
    %5917 = vmatpush.msra.mxu0 %v5725
    %5918 = vmatmul.f32.gmra.mxu0 %v5721
    %v5919 = vpop.f32.mrf.mxu0
    %v5920 = vadd.f32 %v5855, %v5919
    %5921 = vdwg.mxu0
    %5922 = vmatpush.msra.mxu0 %v5849
    %5923 = vmatpush.msra.mxu0 %v5845
    %5924 = vmatpush.msra.mxu0 %v5841
    %5925 = vmatpush.msra.mxu0 %v5837
    %5926 = vmatpush.msra.mxu0 %v5833
    %5927 = vmatpush.msra.mxu0 %v5829
    %5928 = vmatpush.msra.mxu0 %v5825
    %5929 = vmatpush.msra.mxu0 %v5821
    %5930 = vmatpush.msra.mxu0 %v5817
    %5931 = vmatpush.msra.mxu0 %v5813
    %5932 = vmatpush.msra.mxu0 %v5809
    %5933 = vmatpush.msra.mxu0 %v5805
    %5934 = vmatpush.msra.mxu0 %v5801
    %5935 = vmatpush.msra.mxu0 %v5797
    %5936 = vmatpush.msra.mxu0 %v5793
    %5937 = vmatpush.msra.mxu0 %v5789
    %5938 = vmatmul.f32.gmra.mxu0 %v5337
    %v5939 = vpop.f32.mrf.mxu0
    %v5940 = vadd.f32 %v5920, %v5939
    %5941 = vdwg.mxu0
    %5942 = vmatpush.msra.mxu0 %v5786
    %5943 = vmatpush.msra.mxu0 %v5782
    %5944 = vmatpush.msra.mxu0 %v5778
    %5945 = vmatpush.msra.mxu0 %v5774
    %5946 = vmatpush.msra.mxu0 %v5770
    %5947 = vmatpush.msra.mxu0 %v5766
    %5948 = vmatpush.msra.mxu0 %v5762
    %5949 = vmatpush.msra.mxu0 %v5758
    %5950 = vmatpush.msra.mxu0 %v5754
    %5951 = vmatpush.msra.mxu0 %v5750
    %5952 = vmatpush.msra.mxu0 %v5746
    %5953 = vmatpush.msra.mxu0 %v5742
    %5954 = vmatpush.msra.mxu0 %v5738
    %5955 = vmatpush.msra.mxu0 %v5734
    %5956 = vmatpush.msra.mxu0 %v5730
    %5957 = vmatpush.msra.mxu0 %v5726
    %5958 = vmatmul.f32.gmra.mxu0 %v5721
    %v5959 = vpop.f32.mrf.mxu0
    %v5960 = vadd.f32 %v5856, %v5959
    %5961 = vdwg.mxu0
    %5962 = vmatpush.msra.mxu0 %v5850
    %5963 = vmatpush.msra.mxu0 %v5846
    %5964 = vmatpush.msra.mxu0 %v5842
    %5965 = vmatpush.msra.mxu0 %v5838
    %5966 = vmatpush.msra.mxu0 %v5834
    %5967 = vmatpush.msra.mxu0 %v5830
    %5968 = vmatpush.msra.mxu0 %v5826
    %5969 = vmatpush.msra.mxu0 %v5822
    %5970 = vmatpush.msra.mxu0 %v5818
    %5971 = vmatpush.msra.mxu0 %v5814
    %5972 = vmatpush.msra.mxu0 %v5810
    %5973 = vmatpush.msra.mxu0 %v5806
    %5974 = vmatpush.msra.mxu0 %v5802
    %5975 = vmatpush.msra.mxu0 %v5798
    %5976 = vmatpush.msra.mxu0 %v5794
    %5977 = vmatpush.msra.mxu0 %v5790
    %5978 = vmatmul.f32.gmra.mxu0 %v5337
    %v5979 = vpop.f32.mrf.mxu0
    %v5980 = vadd.f32 %v5960, %v5979
    %5981 = vdwg.mxu0
    %5982 = vmatpush.msra.mxu0 %v5787
    %5983 = vmatpush.msra.mxu0 %v5783
    %5984 = vmatpush.msra.mxu0 %v5779
    %5985 = vmatpush.msra.mxu0 %v5775
    %5986 = vmatpush.msra.mxu0 %v5771
    %5987 = vmatpush.msra.mxu0 %v5767
    %5988 = vmatpush.msra.mxu0 %v5763
    %5989 = vmatpush.msra.mxu0 %v5759
    %5990 = vmatpush.msra.mxu0 %v5755
    %5991 = vmatpush.msra.mxu0 %v5751
    %5992 = vmatpush.msra.mxu0 %v5747
    %5993 = vmatpush.msra.mxu0 %v5743
    %5994 = vmatpush.msra.mxu0 %v5739
    %5995 = vmatpush.msra.mxu0 %v5735
    %5996 = vmatpush.msra.mxu0 %v5731
    %5997 = vmatpush.msra.mxu0 %v5727
    %5998 = vmatmul.f32.gmra.mxu0 %v5721
    %v5999 = vpop.f32.mrf.mxu0
    %v6000 = vadd.f32 %v5857, %v5999
    %6001 = vdwg.mxu0
    %6002 = vmatpush.msra.mxu0 %v5851
    %6003 = vmatpush.msra.mxu0 %v5847
    %6004 = vmatpush.msra.mxu0 %v5843
    %6005 = vmatpush.msra.mxu0 %v5839
    %6006 = vmatpush.msra.mxu0 %v5835
    %6007 = vmatpush.msra.mxu0 %v5831
    %6008 = vmatpush.msra.mxu0 %v5827
    %6009 = vmatpush.msra.mxu0 %v5823
    %6010 = vmatpush.msra.mxu0 %v5819
    %6011 = vmatpush.msra.mxu0 %v5815
    %6012 = vmatpush.msra.mxu0 %v5811
    %6013 = vmatpush.msra.mxu0 %v5807
    %6014 = vmatpush.msra.mxu0 %v5803
    %6015 = vmatpush.msra.mxu0 %v5799
    %6016 = vmatpush.msra.mxu0 %v5795
    %6017 = vmatpush.msra.mxu0 %v5791
    %6018 = vmatmul.f32.gmra.mxu0 %v5337
    %v6019 = vpop.f32.mrf.mxu0
    %v6020 = vadd.f32 %v6000, %v6019
    %6021 = vdwg.mxu0
    %v6022 = vxor.u32 %v5900, 2147483648
    %v6023 = vmul.f32 %v6022, 1.442695
    %v6024 = vpow.pop %v6023
    %v6025 = vadd.f32 %v6024, 1.0
    %v6026 = vrcp.pop %v6025
    %v6027 = vmul.f32 %v6025, %v6026
    %v6028 = vsub.f32 1.0, %v6027
    %v6029 = vmul.f32 %v6026, %v6028
    %v6030 = vadd.f32 %v6026, %v6029
    %vm6031 = vweird.f32 %v6025
    %vm6032 = vweird.f32 %v6026
    %vm6033 = vmor %vm6031, %vm6032
    %v6034 = vsel %vm6033, %v6026, %v6030
    %v6035 = vand.u32 2147483647, %v6025
    %vm6036 = vcmp.eq.f32.partialorder %v6035, 8.507059e+37
    %v6037 = vand.u32 %v6025, 2147483648
    %v6038 = vor.u32 1.1754944e-38, %v6037
    %v6039 = vsel %vm6036, %v6038, %v6034
    %v6040 = vmul.f32 1.0, %v6039
    %v6041 = vxor.u32 %v5940, 2147483648
    %v6042 = vmul.f32 %v6041, 1.442695
    %v6043 = vpow.pop %v6042
    %v6044 = vadd.f32 %v6043, 1.0
    %v6045 = vrcp.pop %v6044
    %v6046 = vmul.f32 %v6044, %v6045
    %v6047 = vsub.f32 1.0, %v6046
    %v6048 = vmul.f32 %v6045, %v6047
    %v6049 = vadd.f32 %v6045, %v6048
    %vm6050 = vweird.f32 %v6044
    %vm6051 = vweird.f32 %v6045
    %vm6052 = vmor %vm6050, %vm6051
    %v6053 = vsel %vm6052, %v6045, %v6049
    %v6054 = vand.u32 2147483647, %v6044
    %vm6055 = vcmp.eq.f32.partialorder %v6054, 8.507059e+37
    %v6056 = vand.u32 %v6044, 2147483648
    %v6057 = vor.u32 1.1754944e-38, %v6056
    %v6058 = vsel %vm6055, %v6057, %v6053
    %v6059 = vmul.f32 1.0, %v6058
    %v6060 = vmul.f32 %v6040, %v6020
    %v6061 = vadd.f32 %v5980, %v6060
    %v6062 = vtanh.pop %v6061
    %v6063 = vsub.f32 1.0, %v6059
    %v6064 = vmul.f32 %v6063, %v6062
    %v6065 = vmul.f32 %v6059, %v5337
    %v6066 = vadd.f32 %v6064, %v6065
    %v6067 = vld [vmem:[#allocation12] sm:$0xff]
    %v6068 = vld [vmem:[#allocation12 + $0x8] sm:$0xff]
    %v6069 = vld [vmem:[#allocation12 + $0x10] sm:$0xff]
    %v6070 = vld [vmem:[#allocation12 + $0x18] sm:$0xff]
    %v6071 = vld [vmem:[#allocation12 + $0x20] sm:$0xff]
    %v6072 = vld [vmem:[#allocation12 + $0x28] sm:$0xff]
    %v6073 = vld [vmem:[#allocation12 + $0x30] sm:$0xff]
    %v6074 = vld [vmem:[#allocation12 + $0x38] sm:$0xff]
    %v6075 = vld [vmem:[#allocation12 + $0x40] sm:$0xff]
    %v6076 = vld [vmem:[#allocation12 + $0x48] sm:$0xff]
    %v6077 = vld [vmem:[#allocation12 + $0x50] sm:$0xff]
    %v6078 = vld [vmem:[#allocation12 + $0x58] sm:$0xff]
    %v6079 = vld [vmem:[#allocation12 + $0x60] sm:$0xff]
    %v6080 = vld [vmem:[#allocation12 + $0x68] sm:$0xff]
    %v6081 = vld [vmem:[#allocation12 + $0x70] sm:$0xff]
    %v6082 = vld [vmem:[#allocation12 + $0x78] sm:$0xff]
    %v6083 = vld [vmem:[#allocation12 + $0x80] sm:$0xff]
    %v6084 = vld [vmem:[#allocation12 + $0x88] sm:$0xff]
    %v6085 = vld [vmem:[#allocation12 + $0x90] sm:$0xff]
    %v6086 = vld [vmem:[#allocation12 + $0x98] sm:$0xff]
    %v6087 = vld [vmem:[#allocation12 + $0xa0] sm:$0xff]
    %v6088 = vld [vmem:[#allocation12 + $0xa8] sm:$0xff]
    %v6089 = vld [vmem:[#allocation12 + $0xb0] sm:$0xff]
    %v6090 = vld [vmem:[#allocation12 + $0xb8] sm:$0xff]
    %v6091 = vld [vmem:[#allocation12 + $0xc0] sm:$0xff]
    %v6092 = vld [vmem:[#allocation12 + $0xc8] sm:$0xff]
    %v6093 = vld [vmem:[#allocation12 + $0xd0] sm:$0xff]
    %v6094 = vld [vmem:[#allocation12 + $0xd8] sm:$0xff]
    %v6095 = vld [vmem:[#allocation12 + $0xe0] sm:$0xff]
    %v6096 = vld [vmem:[#allocation12 + $0xe8] sm:$0xff]
    %v6097 = vld [vmem:[#allocation12 + $0xf0] sm:$0xff]
    %v6098 = vld [vmem:[#allocation12 + $0xf8] sm:$0xff]
    %v6099 = vld [vmem:[#allocation12 + $0x100] sm:$0xff]
    %v6100 = vld [vmem:[#allocation12 + $0x108] sm:$0xff]
    %v6101 = vld [vmem:[#allocation12 + $0x110] sm:$0xff]
    %v6102 = vld [vmem:[#allocation12 + $0x118] sm:$0xff]
    %v6103 = vld [vmem:[#allocation12 + $0x120] sm:$0xff]
    %v6104 = vld [vmem:[#allocation12 + $0x128] sm:$0xff]
    %v6105 = vld [vmem:[#allocation12 + $0x130] sm:$0xff]
    %v6106 = vld [vmem:[#allocation12 + $0x138] sm:$0xff]
    %v6107 = vld [vmem:[#allocation12 + $0x140] sm:$0xff]
    %v6108 = vld [vmem:[#allocation12 + $0x148] sm:$0xff]
    %v6109 = vld [vmem:[#allocation12 + $0x150] sm:$0xff]
    %v6110 = vld [vmem:[#allocation12 + $0x158] sm:$0xff]
    %v6111 = vld [vmem:[#allocation12 + $0x160] sm:$0xff]
    %v6112 = vld [vmem:[#allocation12 + $0x168] sm:$0xff]
    %v6113 = vld [vmem:[#allocation12 + $0x170] sm:$0xff]
    %v6114 = vld [vmem:[#allocation12 + $0x178] sm:$0xff]
    %v6115 = vld [vmem:[#allocation12 + $0x180] sm:$0xff]
    %v6116 = vld [vmem:[#allocation12 + $0x188] sm:$0xff]
    %v6117 = vld [vmem:[#allocation12 + $0x190] sm:$0xff]
    %v6118 = vld [vmem:[#allocation12 + $0x198] sm:$0xff]
    %v6119 = vld [vmem:[#allocation12 + $0x1a0] sm:$0xff]
    %v6120 = vld [vmem:[#allocation12 + $0x1a8] sm:$0xff]
    %v6121 = vld [vmem:[#allocation12 + $0x1b0] sm:$0xff]
    %v6122 = vld [vmem:[#allocation12 + $0x1b8] sm:$0xff]
    %v6123 = vld [vmem:[#allocation12 + $0x1c0] sm:$0xff]
    %v6124 = vld [vmem:[#allocation12 + $0x1c8] sm:$0xff]
    %v6125 = vld [vmem:[#allocation12 + $0x1d0] sm:$0xff]
    %v6126 = vld [vmem:[#allocation12 + $0x1d8] sm:$0xff]
    %v6127 = vld [vmem:[#allocation12 + $0x1e0] sm:$0xff]
    %v6128 = vld [vmem:[#allocation12 + $0x1e8] sm:$0xff]
    %v6129 = vld [vmem:[#allocation12 + $0x1f0] sm:$0xff]
    %v6130 = vld [vmem:[#allocation12 + $0x1f8] sm:$0xff]
    %v6131 = vld [vmem:[#allocation12 + $0x200] sm:$0xff]
    %v6132 = vld [vmem:[#allocation12 + $0x208] sm:$0xff]
    %v6133 = vld [vmem:[#allocation12 + $0x210] sm:$0xff]
    %v6134 = vld [vmem:[#allocation12 + $0x218] sm:$0xff]
    %v6135 = vld [vmem:[#allocation12 + $0x220] sm:$0xff]
    %v6136 = vld [vmem:[#allocation12 + $0x228] sm:$0xff]
    %v6137 = vld [vmem:[#allocation12 + $0x230] sm:$0xff]
    %v6138 = vld [vmem:[#allocation12 + $0x238] sm:$0xff]
    %v6139 = vld [vmem:[#allocation12 + $0x240] sm:$0xff]
    %v6140 = vld [vmem:[#allocation12 + $0x248] sm:$0xff]
    %v6141 = vld [vmem:[#allocation12 + $0x250] sm:$0xff]
    %v6142 = vld [vmem:[#allocation12 + $0x258] sm:$0xff]
    %v6143 = vld [vmem:[#allocation12 + $0x260] sm:$0xff]
    %v6144 = vld [vmem:[#allocation12 + $0x268] sm:$0xff]
    %v6145 = vld [vmem:[#allocation12 + $0x270] sm:$0xff]
    %v6146 = vld [vmem:[#allocation12 + $0x278] sm:$0xff]
    %v6147 = vld [vmem:[#allocation12 + $0x280] sm:$0xff]
    %v6148 = vld [vmem:[#allocation12 + $0x288] sm:$0xff]
    %v6149 = vld [vmem:[#allocation12 + $0x290] sm:$0xff]
    %v6150 = vld [vmem:[#allocation12 + $0x298] sm:$0xff]
    %v6151 = vld [vmem:[#allocation12 + $0x2a0] sm:$0xff]
    %v6152 = vld [vmem:[#allocation12 + $0x2a8] sm:$0xff]
    %v6153 = vld [vmem:[#allocation12 + $0x2b0] sm:$0xff]
    %v6154 = vld [vmem:[#allocation12 + $0x2b8] sm:$0xff]
    %v6155 = vld [vmem:[#allocation12 + $0x2c0] sm:$0xff]
    %v6156 = vld [vmem:[#allocation12 + $0x2c8] sm:$0xff]
    %v6157 = vld [vmem:[#allocation12 + $0x2d0] sm:$0xff]
    %v6158 = vld [vmem:[#allocation12 + $0x2d8] sm:$0xff]
    %v6159 = vld [vmem:[#allocation12 + $0x2e0] sm:$0xff]
    %v6160 = vld [vmem:[#allocation12 + $0x2e8] sm:$0xff]
    %v6161 = vld [vmem:[#allocation12 + $0x2f0] sm:$0xff]
    %v6162 = vld [vmem:[#allocation12 + $0x2f8] sm:$0xff]
    %v6163 = vld [vmem:[#allocation12 + $0x300] sm:$0xff]
    %v6164 = vld [vmem:[#allocation12 + $0x308] sm:$0xff]
    %v6165 = vld [vmem:[#allocation12 + $0x310] sm:$0xff]
    %v6166 = vld [vmem:[#allocation12 + $0x318] sm:$0xff]
    %v6167 = vld [vmem:[#allocation12 + $0x320] sm:$0xff]
    %v6168 = vld [vmem:[#allocation12 + $0x328] sm:$0xff]
    %v6169 = vld [vmem:[#allocation12 + $0x330] sm:$0xff]
    %v6170 = vld [vmem:[#allocation12 + $0x338] sm:$0xff]
    %v6171 = vld [vmem:[#allocation12 + $0x340] sm:$0xff]
    %v6172 = vld [vmem:[#allocation12 + $0x348] sm:$0xff]
    %v6173 = vld [vmem:[#allocation12 + $0x350] sm:$0xff]
    %v6174 = vld [vmem:[#allocation12 + $0x358] sm:$0xff]
    %v6175 = vld [vmem:[#allocation12 + $0x360] sm:$0xff]
    %v6176 = vld [vmem:[#allocation12 + $0x368] sm:$0xff]
    %v6177 = vld [vmem:[#allocation12 + $0x370] sm:$0xff]
    %v6178 = vld [vmem:[#allocation12 + $0x378] sm:$0xff]
    %v6179 = vld [vmem:[#allocation12 + $0x380] sm:$0xff]
    %v6180 = vld [vmem:[#allocation12 + $0x388] sm:$0xff]
    %v6181 = vld [vmem:[#allocation12 + $0x390] sm:$0xff]
    %v6182 = vld [vmem:[#allocation12 + $0x398] sm:$0xff]
    %v6183 = vld [vmem:[#allocation12 + $0x3a0] sm:$0xff]
    %v6184 = vld [vmem:[#allocation12 + $0x3a8] sm:$0xff]
    %v6185 = vld [vmem:[#allocation12 + $0x3b0] sm:$0xff]
    %v6186 = vld [vmem:[#allocation12 + $0x3b8] sm:$0xff]
    %v6187 = vld [vmem:[#allocation12 + $0x3c0] sm:$0xff]
    %v6188 = vld [vmem:[#allocation12 + $0x3c8] sm:$0xff]
    %v6189 = vld [vmem:[#allocation12 + $0x3d0] sm:$0xff]
    %v6190 = vld [vmem:[#allocation12 + $0x3d8] sm:$0xff]
    %v6191 = vld [vmem:[#allocation12 + $0x3e0] sm:$0xff]
    %v6192 = vld [vmem:[#allocation12 + $0x3e8] sm:$0xff]
    %v6193 = vld [vmem:[#allocation12 + $0x3f0] sm:$0xff]
    %v6194 = vld [vmem:[#allocation12 + $0x3f8] sm:$0xff]
    %v6195 = vld [vmem:[%s13] sm:$0xf]
    %v6197 = vperm.slane %v6195, 0
    %v6198 = vperm.slane %v6195, 1
    %v6199 = vperm.slane %v6195, 2
    %v6200 = vperm.slane %v6195, 3
    %6205 = vmatpush.msra.mxu0 %v6127
    %6206 = vmatpush.msra.mxu0 %v6123
    %6207 = vmatpush.msra.mxu0 %v6119
    %6208 = vmatpush.msra.mxu0 %v6115
    %6209 = vmatpush.msra.mxu0 %v6111
    %6210 = vmatpush.msra.mxu0 %v6107
    %6211 = vmatpush.msra.mxu0 %v6103
    %6212 = vmatpush.msra.mxu0 %v6099
    %6213 = vmatpush.msra.mxu0 %v6095
    %6214 = vmatpush.msra.mxu0 %v6091
    %6215 = vmatpush.msra.mxu0 %v6087
    %6216 = vmatpush.msra.mxu0 %v6083
    %6217 = vmatpush.msra.mxu0 %v6079
    %6218 = vmatpush.msra.mxu0 %v6075
    %6219 = vmatpush.msra.mxu0 %v6071
    %6220 = vmatpush.msra.mxu0 %v6067
    %6221 = vmatmul.f32.gmra.mxu0 %v6066
    %v6222 = vpop.f32.mrf.mxu0
    %v6223 = vadd.f32 %v6197, %v6222
    %6224 = vdwg.mxu0
    %6225 = vmatpush.msra.mxu0 %v6191
    %6226 = vmatpush.msra.mxu0 %v6187
    %6227 = vmatpush.msra.mxu0 %v6183
    %6228 = vmatpush.msra.mxu0 %v6179
    %6229 = vmatpush.msra.mxu0 %v6175
    %6230 = vmatpush.msra.mxu0 %v6171
    %6231 = vmatpush.msra.mxu0 %v6167
    %6232 = vmatpush.msra.mxu0 %v6163
    %6233 = vmatpush.msra.mxu0 %v6159
    %6234 = vmatpush.msra.mxu0 %v6155
    %6235 = vmatpush.msra.mxu0 %v6151
    %6236 = vmatpush.msra.mxu0 %v6147
    %6237 = vmatpush.msra.mxu0 %v6143
    %6238 = vmatpush.msra.mxu0 %v6139
    %6239 = vmatpush.msra.mxu0 %v6135
    %6240 = vmatpush.msra.mxu0 %v6131
    %6241 = vmatmul.f32.gmra.mxu0 %v5680
    %v6242 = vpop.f32.mrf.mxu0
    %v6243 = vadd.f32 %v6223, %v6242
    %6244 = vdwg.mxu0
    %6245 = vmatpush.msra.mxu0 %v6128
    %6246 = vmatpush.msra.mxu0 %v6124
    %6247 = vmatpush.msra.mxu0 %v6120
    %6248 = vmatpush.msra.mxu0 %v6116
    %6249 = vmatpush.msra.mxu0 %v6112
    %6250 = vmatpush.msra.mxu0 %v6108
    %6251 = vmatpush.msra.mxu0 %v6104
    %6252 = vmatpush.msra.mxu0 %v6100
    %6253 = vmatpush.msra.mxu0 %v6096
    %6254 = vmatpush.msra.mxu0 %v6092
    %6255 = vmatpush.msra.mxu0 %v6088
    %6256 = vmatpush.msra.mxu0 %v6084
    %6257 = vmatpush.msra.mxu0 %v6080
    %6258 = vmatpush.msra.mxu0 %v6076
    %6259 = vmatpush.msra.mxu0 %v6072
    %6260 = vmatpush.msra.mxu0 %v6068
    %6261 = vmatmul.f32.gmra.mxu0 %v6066
    %v6262 = vpop.f32.mrf.mxu0
    %v6263 = vadd.f32 %v6198, %v6262
    %6264 = vdwg.mxu0
    %6265 = vmatpush.msra.mxu0 %v6192
    %6266 = vmatpush.msra.mxu0 %v6188
    %6267 = vmatpush.msra.mxu0 %v6184
    %6268 = vmatpush.msra.mxu0 %v6180
    %6269 = vmatpush.msra.mxu0 %v6176
    %6270 = vmatpush.msra.mxu0 %v6172
    %6271 = vmatpush.msra.mxu0 %v6168
    %6272 = vmatpush.msra.mxu0 %v6164
    %6273 = vmatpush.msra.mxu0 %v6160
    %6274 = vmatpush.msra.mxu0 %v6156
    %6275 = vmatpush.msra.mxu0 %v6152
    %6276 = vmatpush.msra.mxu0 %v6148
    %6277 = vmatpush.msra.mxu0 %v6144
    %6278 = vmatpush.msra.mxu0 %v6140
    %6279 = vmatpush.msra.mxu0 %v6136
    %6280 = vmatpush.msra.mxu0 %v6132
    %6281 = vmatmul.f32.gmra.mxu0 %v5680
    %v6282 = vpop.f32.mrf.mxu0
    %v6283 = vadd.f32 %v6263, %v6282
    %6284 = vdwg.mxu0
    %6285 = vmatpush.msra.mxu0 %v6129
    %6286 = vmatpush.msra.mxu0 %v6125
    %6287 = vmatpush.msra.mxu0 %v6121
    %6288 = vmatpush.msra.mxu0 %v6117
    %6289 = vmatpush.msra.mxu0 %v6113
    %6290 = vmatpush.msra.mxu0 %v6109
    %6291 = vmatpush.msra.mxu0 %v6105
    %6292 = vmatpush.msra.mxu0 %v6101
    %6293 = vmatpush.msra.mxu0 %v6097
    %6294 = vmatpush.msra.mxu0 %v6093
    %6295 = vmatpush.msra.mxu0 %v6089
    %6296 = vmatpush.msra.mxu0 %v6085
    %6297 = vmatpush.msra.mxu0 %v6081
    %6298 = vmatpush.msra.mxu0 %v6077
    %6299 = vmatpush.msra.mxu0 %v6073
    %6300 = vmatpush.msra.mxu0 %v6069
    %6301 = vmatmul.f32.gmra.mxu0 %v6066
    %v6302 = vpop.f32.mrf.mxu0
    %v6303 = vadd.f32 %v6199, %v6302
    %6304 = vdwg.mxu0
    %6305 = vmatpush.msra.mxu0 %v6193
    %6306 = vmatpush.msra.mxu0 %v6189
    %6307 = vmatpush.msra.mxu0 %v6185
    %6308 = vmatpush.msra.mxu0 %v6181
    %6309 = vmatpush.msra.mxu0 %v6177
    %6310 = vmatpush.msra.mxu0 %v6173
    %6311 = vmatpush.msra.mxu0 %v6169
    %6312 = vmatpush.msra.mxu0 %v6165
    %6313 = vmatpush.msra.mxu0 %v6161
    %6314 = vmatpush.msra.mxu0 %v6157
    %6315 = vmatpush.msra.mxu0 %v6153
    %6316 = vmatpush.msra.mxu0 %v6149
    %6317 = vmatpush.msra.mxu0 %v6145
    %6318 = vmatpush.msra.mxu0 %v6141
    %6319 = vmatpush.msra.mxu0 %v6137
    %6320 = vmatpush.msra.mxu0 %v6133
    %6321 = vmatmul.f32.gmra.mxu0 %v5680
    %v6322 = vpop.f32.mrf.mxu0
    %v6323 = vadd.f32 %v6303, %v6322
    %6324 = vdwg.mxu0
    %6325 = vmatpush.msra.mxu0 %v6130
    %6326 = vmatpush.msra.mxu0 %v6126
    %6327 = vmatpush.msra.mxu0 %v6122
    %6328 = vmatpush.msra.mxu0 %v6118
    %6329 = vmatpush.msra.mxu0 %v6114
    %6330 = vmatpush.msra.mxu0 %v6110
    %6331 = vmatpush.msra.mxu0 %v6106
    %6332 = vmatpush.msra.mxu0 %v6102
    %6333 = vmatpush.msra.mxu0 %v6098
    %6334 = vmatpush.msra.mxu0 %v6094
    %6335 = vmatpush.msra.mxu0 %v6090
    %6336 = vmatpush.msra.mxu0 %v6086
    %6337 = vmatpush.msra.mxu0 %v6082
    %6338 = vmatpush.msra.mxu0 %v6078
    %6339 = vmatpush.msra.mxu0 %v6074
    %6340 = vmatpush.msra.mxu0 %v6070
    %6341 = vmatmul.f32.gmra.mxu0 %v6066
    %v6342 = vpop.f32.mrf.mxu0
    %v6343 = vadd.f32 %v6200, %v6342
    %6344 = vdwg.mxu0
    %6345 = vmatpush.msra.mxu0 %v6194
    %6346 = vmatpush.msra.mxu0 %v6190
    %6347 = vmatpush.msra.mxu0 %v6186
    %6348 = vmatpush.msra.mxu0 %v6182
    %6349 = vmatpush.msra.mxu0 %v6178
    %6350 = vmatpush.msra.mxu0 %v6174
    %6351 = vmatpush.msra.mxu0 %v6170
    %6352 = vmatpush.msra.mxu0 %v6166
    %6353 = vmatpush.msra.mxu0 %v6162
    %6354 = vmatpush.msra.mxu0 %v6158
    %6355 = vmatpush.msra.mxu0 %v6154
    %6356 = vmatpush.msra.mxu0 %v6150
    %6357 = vmatpush.msra.mxu0 %v6146
    %6358 = vmatpush.msra.mxu0 %v6142
    %6359 = vmatpush.msra.mxu0 %v6138
    %6360 = vmatpush.msra.mxu0 %v6134
    %6361 = vmatmul.f32.gmra.mxu0 %v5680
    %v6362 = vpop.f32.mrf.mxu0
    %v6363 = vadd.f32 %v6343, %v6362
    %6364 = vdwg.mxu0
    %v6365 = vxor.u32 %v6243, 2147483648
    %v6366 = vmul.f32 %v6365, 1.442695
    %v6367 = vpow.pop %v6366
    %v6368 = vadd.f32 %v6367, 1.0
    %v6369 = vrcp.pop %v6368
    %v6370 = vmul.f32 %v6368, %v6369
    %v6371 = vsub.f32 1.0, %v6370
    %v6372 = vmul.f32 %v6369, %v6371
    %v6373 = vadd.f32 %v6369, %v6372
    %vm6374 = vweird.f32 %v6368
    %vm6375 = vweird.f32 %v6369
    %vm6376 = vmor %vm6374, %vm6375
    %v6377 = vsel %vm6376, %v6369, %v6373
    %v6378 = vand.u32 2147483647, %v6368
    %vm6379 = vcmp.eq.f32.partialorder %v6378, 8.507059e+37
    %v6380 = vand.u32 %v6368, 2147483648
    %v6381 = vor.u32 1.1754944e-38, %v6380
    %v6382 = vsel %vm6379, %v6381, %v6377
    %v6383 = vmul.f32 1.0, %v6382
    %v6384 = vxor.u32 %v6283, 2147483648
    %v6385 = vmul.f32 %v6384, 1.442695
    %v6386 = vpow.pop %v6385
    %v6387 = vadd.f32 %v6386, 1.0
    %v6388 = vrcp.pop %v6387
    %v6389 = vmul.f32 %v6387, %v6388
    %v6390 = vsub.f32 1.0, %v6389
    %v6391 = vmul.f32 %v6388, %v6390
    %v6392 = vadd.f32 %v6388, %v6391
    %vm6393 = vweird.f32 %v6387
    %vm6394 = vweird.f32 %v6388
    %vm6395 = vmor %vm6393, %vm6394
    %v6396 = vsel %vm6395, %v6388, %v6392
    %v6397 = vand.u32 2147483647, %v6387
    %vm6398 = vcmp.eq.f32.partialorder %v6397, 8.507059e+37
    %v6399 = vand.u32 %v6387, 2147483648
    %v6400 = vor.u32 1.1754944e-38, %v6399
    %v6401 = vsel %vm6398, %v6400, %v6396
    %v6402 = vmul.f32 1.0, %v6401
    %v6403 = vmul.f32 %v6383, %v6363
    %v6404 = vadd.f32 %v6323, %v6403
    %v6405 = vtanh.pop %v6404
    %v6406 = vsub.f32 1.0, %v6402
    %v6407 = vmul.f32 %v6406, %v6405
    %v6408 = vmul.f32 %v6402, %v5680
    %v6409 = vadd.f32 %v6407, %v6408
    %v6410 = vld [vmem:[#allocation14] sm:$0xff]
    %v6411 = vld [vmem:[#allocation14 + $0x8] sm:$0xff]
    %v6412 = vld [vmem:[#allocation14 + $0x10] sm:$0xff]
    %v6413 = vld [vmem:[#allocation14 + $0x18] sm:$0xff]
    %v6414 = vld [vmem:[#allocation14 + $0x20] sm:$0xff]
    %v6415 = vld [vmem:[#allocation14 + $0x28] sm:$0xff]
    %v6416 = vld [vmem:[#allocation14 + $0x30] sm:$0xff]
    %v6417 = vld [vmem:[#allocation14 + $0x38] sm:$0xff]
    %v6418 = vld [vmem:[#allocation14 + $0x40] sm:$0xff]
    %v6419 = vld [vmem:[#allocation14 + $0x48] sm:$0xff]
    %v6420 = vld [vmem:[#allocation14 + $0x50] sm:$0xff]
    %v6421 = vld [vmem:[#allocation14 + $0x58] sm:$0xff]
    %v6422 = vld [vmem:[#allocation14 + $0x60] sm:$0xff]
    %v6423 = vld [vmem:[#allocation14 + $0x68] sm:$0xff]
    %v6424 = vld [vmem:[#allocation14 + $0x70] sm:$0xff]
    %v6425 = vld [vmem:[#allocation14 + $0x78] sm:$0xff]
    %v6426 = vld [vmem:[%s15] sm:$0x1]
    %v6428 = vperm.slane %v6426, 0
    %6430 = vmatpush.msra.mxu0 %v6425
    %6431 = vmatpush.msra.mxu0 %v6424
    %6432 = vmatpush.msra.mxu0 %v6423
    %6433 = vmatpush.msra.mxu0 %v6422
    %6434 = vmatpush.msra.mxu0 %v6421
    %6435 = vmatpush.msra.mxu0 %v6420
    %6436 = vmatpush.msra.mxu0 %v6419
    %6437 = vmatpush.msra.mxu0 %v6418
    %6438 = vmatpush.msra.mxu0 %v6417
    %6439 = vmatpush.msra.mxu0 %v6416
    %6440 = vmatpush.msra.mxu0 %v6415
    %6441 = vmatpush.msra.mxu0 %v6414
    %6442 = vmatpush.msra.mxu0 %v6413
    %6443 = vmatpush.msra.mxu0 %v6412
    %6444 = vmatpush.msra.mxu0 %v6411
    %6445 = vmatpush.msra.mxu0 %v6410
    %6446 = vmatmul.f32.gmra.mxu0 %v6409
    %v6447 = vpop.f32.mrf.mxu0
    %v6448 = vadd.f32 %v6428, %v6447
    %6449 = vdwg.mxu0
    %v6450 = vadd.f32 %v6448, %v5721
    %s6451 = scalar_lea.vmem %s16, 32
    %6452 = vst [vmem:[%s6451] sm:$0xff] %v6450
    // Predicated region
    $region94: #{seq2seq_forward.1} parent=1 // pred_check
      _
    $region95: #{seq2seq_forward.1} parent=1 // pred_check_branch
      %6454 = sbr.rel (0) target = $region97
    $region96: #{seq2seq_forward.1} parent=1 // pred_region
      _
    $region97: #{seq2seq_forward.1} parent=1 // pred_fallthru
      _
    // Predicated region
    $region98: #{seq2seq_forward.1} parent=1 // pred_check
      _
    $region99: #{seq2seq_forward.1} parent=1 // pred_check_branch
      %6456 = sbr.rel (0) target = $region101
    $region100: #{seq2seq_forward.1} parent=1 // pred_region
      _
    $region101: #{seq2seq_forward.1} parent=1 // pred_fallthru
      _
    %6457 = vsyncpa [#allocation5], 1
    %6458 = vsyncpa [#allocation7], 1
    %6459 = vsyncpa [#allocation10], 1
    %6460 = vsyncpa [#allocation13], 1

</llo_original>
